<compile_context>
chip_gen: v5e
topology: v5e:2x2
jax: 0.10.0
libtpu: 0.0.40
codegen_flags: <defaults>
</compile_context>

<pallas_src>
import functools

import jax
import jax.numpy as jnp
from jax.experimental import pallas as pl
from jax.experimental.pallas import tpu as pltpu

_KH = _KW = 5
_B_TILE = 8   # images per grid step -> every lane dim is a multiple of 128


@functools.lru_cache(maxsize=None)
def _compiler_params():
    vmem = 32 * 1024 * 1024
    try:
        kind = jax.devices()[0].device_kind.lower()
        if "v6" in kind:            # 128 MiB physical VMEM on v6e: raise scoped cap
            vmem = 64 * 1024 * 1024
    except Exception:
        pass
    return pltpu.CompilerParams(dimension_semantics=("parallel",),
                                vmem_limit_bytes=vmem)


# ----------------------------------------------------------------------------
# Pallas kernels
# ----------------------------------------------------------------------------
def _encoder_stage_kernel(p_ref, w_ref, b_ref, out_ref, idx_ref):
    """Fused conv + 2x2 max-pool (window-local argmax) + bias + ReLU.

    p_ref  : (1, K, 4*L) bf16  corner-chunked im2col patches, L = B_TILE*Hh*Wh.
    w_ref  : (Cout, K)   bf16  conv weight matrix.
    b_ref  : (Cout, 1)   f32   bias (added once, after the corner max: exact).
    out_ref: (1, Cout, L) f32  pooled + ReLU'd values (lane dim = batch*spatial).
    idx_ref: (1, Cout, L) i32  window-local argmax code in {0,1,2,3}
             (first-max on ties; consistent with the decoder's unpool scatter).
    """
    L = out_ref.shape[-1]
    # Single MXU push over all 4 corners at once (lane axis = 4*L, 128-aligned).
    acc = jnp.dot(w_ref[...], p_ref[0], preferred_element_type=jnp.float32)
    o0 = acc[:, 0 * L:1 * L]
    o1 = acc[:, 1 * L:2 * L]
    o2 = acc[:, 2 * L:3 * L]
    o3 = acc[:, 3 * L:4 * L]
    m01 = jnp.maximum(o0, o1)
    i01 = jnp.where(o0 >= o1, 0, 1)
    m23 = jnp.maximum(o2, o3)
    i23 = jnp.where(o2 >= o3, 2, 3)
    m = jnp.maximum(m01, m23)
    idx = jnp.where(m01 >= m23, i01, i23).astype(jnp.int32)
    out_ref[0] = jnp.maximum(m + b_ref[...], 0.0).astype(out_ref.dtype)  # ReLU after pool
    idx_ref[0] = idx


def _decoder_stage_kernel(p_ref, w_ref, b_ref, o_ref):
    """ConvTranspose (as full-pad conv with flipped kernel) + bias + ReLU.

    p_ref: (1, K, L) bf16 im2col patches of the unpooled+padded maps, L=B_TILE*M.
    w_ref: (Cout, K) bf16; b_ref: (Cout, 1) f32; o_ref: (1, Cout, L) f32.
    """
    acc = jnp.dot(w_ref[...], p_ref[0], preferred_element_type=jnp.float32)
    o_ref[0] = jnp.maximum(acc + b_ref[...], 0.0).astype(o_ref.dtype)


def _fc_chain_kernel(x_ref, w1_ref, b1_ref, w2_ref, b2_ref,
                     w3_ref, b3_ref, w4_ref, b4_ref, o_ref):
    """Fused fc1(relu) -> fc2(relu) -> dfc2 -> dfc1; weights VMEM-resident."""
    h = jnp.dot(x_ref[...], w1_ref[...], preferred_element_type=jnp.float32)
    h = jnp.maximum(h + b1_ref[...], 0.0)
    h = jnp.dot(h, w2_ref[...], preferred_element_type=jnp.float32)
    h = jnp.maximum(h + b2_ref[...], 0.0)
    h = jnp.dot(h, w3_ref[...], preferred_element_type=jnp.float32) + b3_ref[...]
    h = jnp.dot(h, w4_ref[...], preferred_element_type=jnp.float32) + b4_ref[...]
    o_ref[...] = h.astype(o_ref.dtype)


# ----------------------------------------------------------------------------
# JAX glue: patch construction / unpool assembly (tiny, fused by XLA)
# ----------------------------------------------------------------------------
def _build_pool_patches(x, bt):
    """x:(N,Cin,H,W) -> (N//bt, Cin*25, 4*bt*Hh*Wh) corner-chunked patches.

    Lane index within a tile = corner*(bt*Mh) + b_local*Mh + (ph*Wh+pw), where
    corner c = 2*di + dj and the patch is the conv-input window for conv output
    position (2ph+di, 2pw+dj)."""
    N, Cin, H, W = x.shape
    Hh, Wh = (H - _KH + 1) // 2, (W - _KW + 1) // 2
    Mh = Hh * Wh
    corners = []
    for di in range(2):
        for dj in range(2):
            taps = []
            for i in range(_KH):
                for j in range(_KW):
                    taps.append(
                        x[:, :, di + i: di + i + 2 * Hh: 2,
                                dj + j: dj + j + 2 * Wh: 2])   # (N,Cin,Hh,Wh)
            corners.append(jnp.stack(taps, axis=2))            # (N,Cin,25,Hh,Wh)
    p = jnp.stack(corners, axis=0)                              # (4,N,Cin,25,Hh,Wh)
    p = p.reshape(4, N // bt, bt, Cin * _KH * _KW, Mh)          # (4,Nt,bt,K,Mh)
    p = p.transpose(1, 3, 0, 2, 4)                              # (Nt,K,4,bt,Mh)
    return p.reshape(N // bt, Cin * _KH * _KW, 4 * bt * Mh)


def _build_conv_patches(x, bt):
    """x:(N,Cin,Hp,Wp) padded -> (N//bt, Cin*25, bt*Ho*Wo) im2col (valid conv)."""
    N, Cin, Hp, Wp = x.shape
    Ho, Wo = Hp - _KH + 1, Wp - _KW + 1
    taps = []
    for i in range(_KH):
        for j in range(_KW):
            taps.append(x[:, :, i:i + Ho, j:j + Wo])            # (N,Cin,Ho,Wo)
    p = jnp.stack(taps, axis=2)                                  # (N,Cin,25,Ho,Wo)
    p = p.reshape(N // bt, bt, Cin * _KH * _KW, Ho * Wo)         # (Nt,bt,K,M)
    p = p.transpose(0, 2, 1, 3)                                  # (Nt,K,bt,M)
    return p.reshape(N // bt, Cin * _KH * _KW, bt * Ho * Wo)


def _unpool_assemble(v, idx):
    """PyTorch max_unpool2d(k=2,s=2): scatter v into the corner recorded in idx
    (window-local code 0..3), zeros elsewhere."""
    N, C, Hh, Wh = v.shape
    zero = jnp.zeros_like(v)
    a = jnp.where(idx == 0, v, zero)
    b = jnp.where(idx == 1, v, zero)
    c = jnp.where(idx == 2, v, zero)
    d = jnp.where(idx == 3, v, zero)
    row0 = jnp.stack([a, b], axis=-1).reshape(N, C, Hh, 2 * Wh)
    row1 = jnp.stack([c, d], axis=-1).reshape(N, C, Hh, 2 * Wh)
    return jnp.stack([row0, row1], axis=-2).reshape(N, C, 2 * Hh, 2 * Wh)


# ----------------------------------------------------------------------------
# pallas_call wrappers
# ----------------------------------------------------------------------------
def encoder_stage_pallas(x, w, b, bt):
    """Fused conv(k=5,valid) + maxpool2x2(+argmax) + ReLU, batch-tiled grid.

    x:(N,Cin,H,W) f32 (N multiple of bt), w:(Cout,Cin,5,5), b:(Cout,)
    -> pooled (N,Cout,Hh,Wh) f32, idx (N,Cout,Hh,Wh) i32."""
    N, Cin, H, W = x.shape
    Cout = w.shape[0]
    Hh, Wh = (H - _KH + 1) // 2, (W - _KW + 1) // 2
    Mh = Hh * Wh
    K = Cin * _KH * _KW
    Nt = N // bt
    L = bt * Mh                                                  # lane dim (>=128)
    p = _build_pool_patches(x, bt).astype(jnp.bfloat16)          # (Nt,K,4L)
    wm = w.reshape(Cout, K).astype(jnp.bfloat16)
    bm = b.reshape(Cout, 1).astype(jnp.float32)
    pooled, idx = pl.pallas_call(
        _encoder_stage_kernel,
        grid=(Nt,),
        in_specs=[pl.BlockSpec((1, K, 4 * L), lambda n: (n, 0, 0)),
                  pl.BlockSpec((Cout, K), lambda n: (0, 0)),
                  pl.BlockSpec((Cout, 1), lambda n: (0, 0))],
        out_specs=(pl.BlockSpec((1, Cout, L), lambda n: (n, 0, 0)),
                   pl.BlockSpec((1, Cout, L), lambda n: (n, 0, 0))),
        out_shape=(jax.ShapeDtypeStruct((Nt, Cout, L), jnp.float32),
                   jax.ShapeDtypeStruct((Nt, Cout, L), jnp.int32)),
        compiler_params=_compiler_params(),
    )(p, wm, bm)
    pooled = (pooled.reshape(Nt, Cout, bt, Hh, Wh)
                    .transpose(0, 2, 1, 3, 4).reshape(N, Cout, Hh, Wh))
    idx = (idx.reshape(Nt, Cout, bt, Hh, Wh)
              .transpose(0, 2, 1, 3, 4).reshape(N, Cout, Hh, Wh))
    return pooled, idx


def decoder_stage_pallas(v, idx, w, b, bt):
    """Fused max_unpool2x2 -> ConvTranspose2d(k=5) -> ReLU, batch-tiled grid.

    v,idx:(N,C,Hh,Wh); w:(Cin=C,Cout,5,5) (PyTorch ConvTranspose layout);
    returns (N,Cout,2*Hh+4,2*Wh+4) f32."""
    N, C, Hh, Wh = v.shape
    Cout = w.shape[1]
    Ho, Wo = 2 * Hh + _KH - 1, 2 * Wh + _KW - 1
    M = Ho * Wo
    K = C * _KH * _KW
    Nt = N // bt
    L = bt * M
    up = _unpool_assemble(v, idx)                                # (N,C,2Hh,2Wh)
    xp = jnp.pad(up, ((0, 0), (0, 0), (_KH - 1, _KH - 1), (_KW - 1, _KW - 1)))
    pches = _build_conv_patches(xp, bt).astype(jnp.bfloat16)     # (Nt,K,L)
    wc = (jnp.flip(w, axis=(2, 3)).transpose(1, 0, 2, 3)
          .reshape(Cout, K).astype(jnp.bfloat16))
    bm = b.reshape(Cout, 1).astype(jnp.float32)
    out = pl.pallas_call(
        _decoder_stage_kernel,
        grid=(Nt,),
        in_specs=[pl.BlockSpec((1, K, L), lambda n: (n, 0, 0)),
                  pl.BlockSpec((Cout, K), lambda n: (0, 0)),
                  pl.BlockSpec((Cout, 1), lambda n: (0, 0))],
        out_specs=pl.BlockSpec((1, Cout, L), lambda n: (n, 0, 0)),
        out_shape=jax.ShapeDtypeStruct((Nt, Cout, L), jnp.float32),
        compiler_params=_compiler_params(),
    )(pches, wc, bm)
    return (out.reshape(Nt, Cout, bt, Ho, Wo)
               .transpose(0, 2, 1, 3, 4).reshape(N, Cout, Ho, Wo))


def fc_chain_pallas(x, p, bt):
    """Fused fc1(relu)->fc2(relu)->dfc2->dfc1 on a batch grid.  x:(N,320)->(N,320)."""
    N = x.shape[0]
    Nt = N // bt
    args = (x,
            p["fc1_w"], p["fc1_b"].reshape(1, -1),
            p["fc2_w"], p["fc2_b"].reshape(1, -1),
            p["dfc2_w"], p["dfc2_b"].reshape(1, -1),
            p["dfc1_w"], p["dfc1_b"].reshape(1, -1))
    in_specs = [pl.BlockSpec((bt, 320), lambda n: (n, 0))]
    for a in args[1:]:
        in_specs.append(pl.BlockSpec(a.shape, lambda n: (0, 0)))  # weights resident
    return pl.pallas_call(
        _fc_chain_kernel,
        grid=(Nt,),
        in_specs=in_specs,
        out_specs=pl.BlockSpec((bt, 320), lambda n: (n, 0)),
        out_shape=jax.ShapeDtypeStruct((N, 320), jnp.float32),
        compiler_params=_compiler_params(),
    )(*args)


# ----------------------------------------------------------------------------
# Full forward pass (unsupervised branch of Net.forward)
# ----------------------------------------------------------------------------
def net_forward(x, p):
    N = x.shape[0]
    bt = _B_TILE
    Np = ((N + bt - 1) // bt) * bt
    if Np != N:
        x = jnp.pad(x, ((0, Np - N), (0, 0), (0, 0), (0, 0)))
    # Encoder stage 1: conv1 + maxpool(+indices) + relu (fused)
    h1, idx1 = encoder_stage_pallas(x, p["conv1_w"], p["conv1_b"], bt)      # (Np,10,12,12)
    # Encoder stage 2: conv2 (+Dropout2d identity) + maxpool(+indices) + relu
    h2, idx2 = encoder_stage_pallas(h1, p["conv2_w"], p["conv2_b"], bt)     # (Np,20,4,4)
    # Fused FC chain: fc1 -> fc2 -> dfc2 -> dfc1
    f = fc_chain_pallas(h2.reshape(Np, 320), p, bt)                         # (Np,320)
    d = f.reshape(Np, 20, 4, 4)
    # Decoder stage 2: unpool(idx2) + dconv2 + relu (fused)
    d2 = decoder_stage_pallas(d, idx2, p["dconv2_w"], p["dconv2_b"], bt)    # (Np,10,12,12)
    # Decoder stage 1: unpool(idx1) + dconv1 + relu (fused)
    d1 = decoder_stage_pallas(d2, idx1, p["dconv1_w"], p["dconv1_b"], bt)   # (Np,1,28,28)
    return d1[:N]


def init_params(key):
    ks = jax.random.split(key, 10)

    def n(k, shape, scale=0.1):
        return (scale * jax.random.normal(k, shape)).astype(jnp.float32)

    return {
        "conv1_w": n(ks[0], (10, 1, 5, 5)),   "conv1_b": n(ks[0], (10,)),
        "conv2_w": n(ks[1], (20, 10, 5, 5)),  "conv2_b": n(ks[1], (20,)),
        "fc1_w":   n(ks[2], (320, 50)),       "fc1_b":   n(ks[2], (50,)),
        "fc2_w":   n(ks[3], (50, 10)),        "fc2_b":   n(ks[3], (10,)),
        "dfc2_w":  n(ks[4], (10, 50)),        "dfc2_b":  n(ks[4], (50,)),
        "dfc1_w":  n(ks[5], (50, 320)),       "dfc1_b":  n(ks[5], (320,)),
        "dconv2_w": n(ks[6], (20, 10, 5, 5)), "dconv2_b": n(ks[6], (10,)),
        "dconv1_w": n(ks[7], (10, 1, 5, 5)),  "dconv1_b": n(ks[7], (1,)),
    }


if __name__ == "__main__":
    key = jax.random.PRNGKey(0)
    kx, kp = jax.random.split(key)
    # MNIST geometry is required by fc1 (320 = 20*4*4), so spatial must be 28.
    x = jax.random.normal(kx, (2, 1, 28, 28), dtype=jnp.float32)
    params = init_params(kp)

    out = jax.jit(net_forward)(x, params)
    out = jax.block_until_ready(out)
    assert out.shape == (2, 1, 28, 28) and out.dtype == jnp.float32
    print("KERNEL_OK")
</pallas_src>

<mosaic_0001>
module attributes {stable_mosaic.version = 11 : i64} {
  func.func @_encoder_stage_kernel(%arg0: i32, %arg1: memref<1x25x4608xbf16, #tpu.memory_space<vmem>>, %arg2: memref<10x25xbf16, #tpu.memory_space<vmem>>, %arg3: memref<10x1xf32, #tpu.memory_space<vmem>>, %arg4: memref<1x10x1152xf32, #tpu.memory_space<vmem>>, %arg5: memref<1x10x1152xi32, #tpu.memory_space<vmem>>) attributes {dimension_semantics = [#tpu.dimension_semantics<parallel>], iteration_bounds = array<i64: 1>, scalar_prefetch = 0 : i64, scratch_operands = 0 : i64, tpu.core_type = #tpu.core_type<tc>, window_params = [{transform_indices = @transform_0, window_bounds = array<i64: 1, 25, 4608>}, {pipeline_mode = #tpu.pipeline_mode<synchronous>, transform_indices = @transform_1, window_bounds = array<i64: 10, 25>}, {pipeline_mode = #tpu.pipeline_mode<synchronous>, transform_indices = @transform_2, window_bounds = array<i64: 10, 1>}, {transform_indices = @transform_3, window_bounds = array<i64: 1, 10, 1152>}, {transform_indices = @transform_4, window_bounds = array<i64: 1, 10, 1152>}]} {
    %c0 = arith.constant 0 : index
    %c0_0 = arith.constant 0 : index
    %0 = vector.load %arg2[%c0, %c0_0] : memref<10x25xbf16, #tpu.memory_space<vmem>>, vector<10x25xbf16>
    %c0_1 = arith.constant 0 : index
    %c0_2 = arith.constant 0 : index
    %c0_3 = arith.constant 0 : index
    %1 = vector.load %arg1[%c0_1, %c0_2, %c0_3] : memref<1x25x4608xbf16, #tpu.memory_space<vmem>>, vector<1x25x4608xbf16>
    %2 = vector.shape_cast %1 : vector<1x25x4608xbf16> to vector<25x4608xbf16>
    %cst = arith.constant dense<0.000000e+00> : vector<10x4608xf32>
    %3 = tpu.matmul %0, %2, %cst {dimension_numbers = #tpu.dot_dimension_numbers<[1], [0], [0], [1], [0, 0, 1, 1], [], []>} : vector<10x25xbf16>, vector<25x4608xbf16>, vector<10x4608xf32> -> vector<10x4608xf32>
    %4 = vector.extract_strided_slice %3 {offsets = [0, 0], sizes = [10, 1152], strides = [1, 1]} : vector<10x4608xf32> to vector<10x1152xf32>
    %5 = vector.extract_strided_slice %3 {offsets = [0, 1152], sizes = [10, 1152], strides = [1, 1]} : vector<10x4608xf32> to vector<10x1152xf32>
    %6 = vector.extract_strided_slice %3 {offsets = [0, 2304], sizes = [10, 1152], strides = [1, 1]} : vector<10x4608xf32> to vector<10x1152xf32>
    %7 = vector.extract_strided_slice %3 {offsets = [0, 3456], sizes = [10, 1152], strides = [1, 1]} : vector<10x4608xf32> to vector<10x1152xf32>
    %8 = arith.maximumf %4, %5 : vector<10x1152xf32>
    %9 = arith.cmpf oge, %4, %5 : vector<10x1152xf32>
    %c0_i32 = arith.constant 0 : i32
    %c1_i32 = arith.constant 1 : i32
    %10 = vector.broadcast %c0_i32 : i32 to vector<10x1152xi32>
    %11 = vector.broadcast %c1_i32 : i32 to vector<10x1152xi32>
    %12 = arith.select %9, %10, %11 : vector<10x1152xi1>, vector<10x1152xi32>
    %13 = arith.maximumf %6, %7 : vector<10x1152xf32>
    %14 = arith.cmpf oge, %6, %7 : vector<10x1152xf32>
    %c2_i32 = arith.constant 2 : i32
    %c3_i32 = arith.constant 3 : i32
    %15 = vector.broadcast %c2_i32 : i32 to vector<10x1152xi32>
    %16 = vector.broadcast %c3_i32 : i32 to vector<10x1152xi32>
    %17 = arith.select %14, %15, %16 : vector<10x1152xi1>, vector<10x1152xi32>
    %18 = arith.maximumf %8, %13 : vector<10x1152xf32>
    %19 = arith.cmpf oge, %8, %13 : vector<10x1152xf32>
    %20 = arith.select %19, %12, %17 : vector<10x1152xi1>, vector<10x1152xi32>
    %c0_4 = arith.constant 0 : index
    %c0_5 = arith.constant 0 : index
    %21 = vector.load %arg3[%c0_4, %c0_5] : memref<10x1xf32, #tpu.memory_space<vmem>>, vector<10x1xf32>
    %22 = vector.broadcast %21 : vector<10x1xf32> to vector<10x1152xf32>
    %23 = arith.addf %18, %22 : vector<10x1152xf32>
    %cst_6 = arith.constant 0.000000e+00 : f32
    %24 = vector.broadcast %cst_6 : f32 to vector<10x1152xf32>
    %25 = arith.maximumf %23, %24 : vector<10x1152xf32>
    %c0_7 = arith.constant 0 : index
    %c0_8 = arith.constant 0 : index
    %c0_9 = arith.constant 0 : index
    %26 = vector.load %arg4[%c0_7, %c0_8, %c0_9] : memref<1x10x1152xf32, #tpu.memory_space<vmem>>, vector<1x10x1152xf32>
    %27 = vector.shape_cast %26 : vector<1x10x1152xf32> to vector<10x1152xf32>
    %28 = vector.shape_cast %25 : vector<10x1152xf32> to vector<1x10x1152xf32>
    tpu.vector_store %arg4[%c0_7, %c0_8, %c0_9], %28 {strides = array<i32>} : memref<1x10x1152xf32, #tpu.memory_space<vmem>>, vector<1x10x1152xf32>,
    %c0_10 = arith.constant 0 : index
    %c0_11 = arith.constant 0 : index
    %c0_12 = arith.constant 0 : index
    %29 = vector.load %arg5[%c0_10, %c0_11, %c0_12] : memref<1x10x1152xi32, #tpu.memory_space<vmem>>, vector<1x10x1152xi32>
    %30 = vector.shape_cast %29 : vector<1x10x1152xi32> to vector<10x1152xi32>
    %31 = vector.shape_cast %20 : vector<10x1152xi32> to vector<1x10x1152xi32>
    tpu.vector_store %arg5[%c0_10, %c0_11, %c0_12], %31 {strides = array<i32>} : memref<1x10x1152xi32, #tpu.memory_space<vmem>>, vector<1x10x1152xi32>,
    return
  }
  func.func @transform_0(%arg0: i32) -> (i32, i32, i32) {
    %c0_i32 = arith.constant 0 : i32
    %c0_i32_0 = arith.constant 0 : i32
    %c0_i32_1 = arith.constant 0 : i32
    return %arg0, %c0_i32, %c0_i32_0 : i32, i32, i32
  }
  func.func @transform_1(%arg0: i32) -> (i32, i32) {
    %c0_i32 = arith.constant 0 : i32
    %c0_i32_0 = arith.constant 0 : i32
    %c0_i32_1 = arith.constant 0 : i32
    return %c0_i32, %c0_i32_0 : i32, i32
  }
  func.func @transform_2(%arg0: i32) -> (i32, i32) {
    %c0_i32 = arith.constant 0 : i32
    %c0_i32_0 = arith.constant 0 : i32
    %c0_i32_1 = arith.constant 0 : i32
    return %c0_i32, %c0_i32_0 : i32, i32
  }
  func.func @transform_3(%arg0: i32) -> (i32, i32, i32) {
    %c0_i32 = arith.constant 0 : i32
    %c0_i32_0 = arith.constant 0 : i32
    %c0_i32_1 = arith.constant 0 : i32
    return %arg0, %c0_i32, %c0_i32_0 : i32, i32, i32
  }
  func.func @transform_4(%arg0: i32) -> (i32, i32, i32) {
    %c0_i32 = arith.constant 0 : i32
    %c0_i32_0 = arith.constant 0 : i32
    %c0_i32_1 = arith.constant 0 : i32
    return %arg0, %c0_i32, %c0_i32_0 : i32, i32, i32
  }
}

module attributes {stable_mosaic.version = 11 : i64} {
  func.func @_encoder_stage_kernel(%arg0: i32, %arg1: memref<1x250x512xbf16, #tpu.memory_space<vmem>>, %arg2: memref<20x250xbf16, #tpu.memory_space<vmem>>, %arg3: memref<20x1xf32, #tpu.memory_space<vmem>>, %arg4: memref<1x20x128xf32, #tpu.memory_space<vmem>>, %arg5: memref<1x20x128xi32, #tpu.memory_space<vmem>>) attributes {dimension_semantics = [#tpu.dimension_semantics<parallel>], iteration_bounds = array<i64: 1>, scalar_prefetch = 0 : i64, scratch_operands = 0 : i64, tpu.core_type = #tpu.core_type<tc>, window_params = [{transform_indices = @transform_0, window_bounds = array<i64: 1, 250, 512>}, {pipeline_mode = #tpu.pipeline_mode<synchronous>, transform_indices = @transform_1, window_bounds = array<i64: 20, 250>}, {pipeline_mode = #tpu.pipeline_mode<synchronous>, transform_indices = @transform_2, window_bounds = array<i64: 20, 1>}, {transform_indices = @transform_3, window_bounds = array<i64: 1, 20, 128>}, {transform_indices = @transform_4, window_bounds = array<i64: 1, 20, 128>}]} {
    %c0 = arith.constant 0 : index
    %c0_0 = arith.constant 0 : index
    %0 = vector.load %arg2[%c0, %c0_0] : memref<20x250xbf16, #tpu.memory_space<vmem>>, vector<20x250xbf16>
    %c0_1 = arith.constant 0 : index
    %c0_2 = arith.constant 0 : index
    %c0_3 = arith.constant 0 : index
    %1 = vector.load %arg1[%c0_1, %c0_2, %c0_3] : memref<1x250x512xbf16, #tpu.memory_space<vmem>>, vector<1x250x512xbf16>
    %2 = vector.shape_cast %1 : vector<1x250x512xbf16> to vector<250x512xbf16>
    %cst = arith.constant dense<0.000000e+00> : vector<20x512xf32>
    %3 = tpu.matmul %0, %2, %cst {dimension_numbers = #tpu.dot_dimension_numbers<[1], [0], [0], [1], [0, 0, 1, 1], [], []>} : vector<20x250xbf16>, vector<250x512xbf16>, vector<20x512xf32> -> vector<20x512xf32>
    %4 = vector.extract_strided_slice %3 {offsets = [0, 0], sizes = [20, 128], strides = [1, 1]} : vector<20x512xf32> to vector<20x128xf32>
    %5 = vector.extract_strided_slice %3 {offsets = [0, 128], sizes = [20, 128], strides = [1, 1]} : vector<20x512xf32> to vector<20x128xf32>
    %6 = vector.extract_strided_slice %3 {offsets = [0, 256], sizes = [20, 128], strides = [1, 1]} : vector<20x512xf32> to vector<20x128xf32>
    %7 = vector.extract_strided_slice %3 {offsets = [0, 384], sizes = [20, 128], strides = [1, 1]} : vector<20x512xf32> to vector<20x128xf32>
    %8 = arith.maximumf %4, %5 : vector<20x128xf32>
    %9 = arith.cmpf oge, %4, %5 : vector<20x128xf32>
    %c0_i32 = arith.constant 0 : i32
    %c1_i32 = arith.constant 1 : i32
    %10 = vector.broadcast %c0_i32 : i32 to vector<20x128xi32>
    %11 = vector.broadcast %c1_i32 : i32 to vector<20x128xi32>
    %12 = arith.select %9, %10, %11 : vector<20x128xi1>, vector<20x128xi32>
    %13 = arith.maximumf %6, %7 : vector<20x128xf32>
    %14 = arith.cmpf oge, %6, %7 : vector<20x128xf32>
    %c2_i32 = arith.constant 2 : i32
    %c3_i32 = arith.constant 3 : i32
    %15 = vector.broadcast %c2_i32 : i32 to vector<20x128xi32>
    %16 = vector.broadcast %c3_i32 : i32 to vector<20x128xi32>
    %17 = arith.select %14, %15, %16 : vector<20x128xi1>, vector<20x128xi32>
    %18 = arith.maximumf %8, %13 : vector<20x128xf32>
    %19 = arith.cmpf oge, %8, %13 : vector<20x128xf32>
    %20 = arith.select %19, %12, %17 : vector<20x128xi1>, vector<20x128xi32>
    %c0_4 = arith.constant 0 : index
    %c0_5 = arith.constant 0 : index
    %21 = vector.load %arg3[%c0_4, %c0_5] : memref<20x1xf32, #tpu.memory_space<vmem>>, vector<20x1xf32>
    %22 = vector.broadcast %21 : vector<20x1xf32> to vector<20x128xf32>
    %23 = arith.addf %18, %22 : vector<20x128xf32>
    %cst_6 = arith.constant 0.000000e+00 : f32
    %24 = vector.broadcast %cst_6 : f32 to vector<20x128xf32>
    %25 = arith.maximumf %23, %24 : vector<20x128xf32>
    %c0_7 = arith.constant 0 : index
    %c0_8 = arith.constant 0 : index
    %c0_9 = arith.constant 0 : index
    %26 = vector.load %arg4[%c0_7, %c0_8, %c0_9] : memref<1x20x128xf32, #tpu.memory_space<vmem>>, vector<1x20x128xf32>
    %27 = vector.shape_cast %26 : vector<1x20x128xf32> to vector<20x128xf32>
    %28 = vector.shape_cast %25 : vector<20x128xf32> to vector<1x20x128xf32>
    tpu.vector_store %arg4[%c0_7, %c0_8, %c0_9], %28 {strides = array<i32>} : memref<1x20x128xf32, #tpu.memory_space<vmem>>, vector<1x20x128xf32>,
    %c0_10 = arith.constant 0 : index
    %c0_11 = arith.constant 0 : index
    %c0_12 = arith.constant 0 : index
    %29 = vector.load %arg5[%c0_10, %c0_11, %c0_12] : memref<1x20x128xi32, #tpu.memory_space<vmem>>, vector<1x20x128xi32>
    %30 = vector.shape_cast %29 : vector<1x20x128xi32> to vector<20x128xi32>
    %31 = vector.shape_cast %20 : vector<20x128xi32> to vector<1x20x128xi32>
    tpu.vector_store %arg5[%c0_10, %c0_11, %c0_12], %31 {strides = array<i32>} : memref<1x20x128xi32, #tpu.memory_space<vmem>>, vector<1x20x128xi32>,
    return
  }
  func.func @transform_0(%arg0: i32) -> (i32, i32, i32) {
    %c0_i32 = arith.constant 0 : i32
    %c0_i32_0 = arith.constant 0 : i32
    %c0_i32_1 = arith.constant 0 : i32
    return %arg0, %c0_i32, %c0_i32_0 : i32, i32, i32
  }
  func.func @transform_1(%arg0: i32) -> (i32, i32) {
    %c0_i32 = arith.constant 0 : i32
    %c0_i32_0 = arith.constant 0 : i32
    %c0_i32_1 = arith.constant 0 : i32
    return %c0_i32, %c0_i32_0 : i32, i32
  }
  func.func @transform_2(%arg0: i32) -> (i32, i32) {
    %c0_i32 = arith.constant 0 : i32
    %c0_i32_0 = arith.constant 0 : i32
    %c0_i32_1 = arith.constant 0 : i32
    return %c0_i32, %c0_i32_0 : i32, i32
  }
  func.func @transform_3(%arg0: i32) -> (i32, i32, i32) {
    %c0_i32 = arith.constant 0 : i32
    %c0_i32_0 = arith.constant 0 : i32
    %c0_i32_1 = arith.constant 0 : i32
    return %arg0, %c0_i32, %c0_i32_0 : i32, i32, i32
  }
  func.func @transform_4(%arg0: i32) -> (i32, i32, i32) {
    %c0_i32 = arith.constant 0 : i32
    %c0_i32_0 = arith.constant 0 : i32
    %c0_i32_1 = arith.constant 0 : i32
    return %arg0, %c0_i32, %c0_i32_0 : i32, i32, i32
  }
}

module attributes {stable_mosaic.version = 11 : i64} {
  func.func @_fc_chain_kernel(%arg0: i32, %arg1: memref<8x320xf32, #tpu.memory_space<vmem>>, %arg2: memref<320x50xf32, #tpu.memory_space<vmem>>, %arg3: memref<1x50xf32, #tpu.memory_space<vmem>>, %arg4: memref<50x10xf32, #tpu.memory_space<vmem>>, %arg5: memref<1x10xf32, #tpu.memory_space<vmem>>, %arg6: memref<10x50xf32, #tpu.memory_space<vmem>>, %arg7: memref<1x50xf32, #tpu.memory_space<vmem>>, %arg8: memref<50x320xf32, #tpu.memory_space<vmem>>, %arg9: memref<1x320xf32, #tpu.memory_space<vmem>>, %arg10: memref<8x320xf32, #tpu.memory_space<vmem>>) attributes {dimension_semantics = [#tpu.dimension_semantics<parallel>], iteration_bounds = array<i64: 1>, scalar_prefetch = 0 : i64, scratch_operands = 0 : i64, tpu.core_type = #tpu.core_type<tc>, window_params = [{transform_indices = @transform_0, window_bounds = array<i64: 8, 320>}, {pipeline_mode = #tpu.pipeline_mode<synchronous>, transform_indices = @transform_1, window_bounds = array<i64: 320, 50>}, {pipeline_mode = #tpu.pipeline_mode<synchronous>, transform_indices = @transform_2, window_bounds = array<i64: 1, 50>}, {pipeline_mode = #tpu.pipeline_mode<synchronous>, transform_indices = @transform_3, window_bounds = array<i64: 50, 10>}, {pipeline_mode = #tpu.pipeline_mode<synchronous>, transform_indices = @transform_4, window_bounds = array<i64: 1, 10>}, {pipeline_mode = #tpu.pipeline_mode<synchronous>, transform_indices = @transform_5, window_bounds = array<i64: 10, 50>}, {pipeline_mode = #tpu.pipeline_mode<synchronous>, transform_indices = @transform_6, window_bounds = array<i64: 1, 50>}, {pipeline_mode = #tpu.pipeline_mode<synchronous>, transform_indices = @transform_7, window_bounds = array<i64: 50, 320>}, {pipeline_mode = #tpu.pipeline_mode<synchronous>, transform_indices = @transform_8, window_bounds = array<i64: 1, 320>}, {transform_indices = @transform_9, window_bounds = array<i64: 8, 320>}]} {
    %c0 = arith.constant 0 : index
    %c0_0 = arith.constant 0 : index
    %0 = vector.load %arg1[%c0, %c0_0] : memref<8x320xf32, #tpu.memory_space<vmem>>, vector<8x320xf32>
    %c0_1 = arith.constant 0 : index
    %c0_2 = arith.constant 0 : index
    %1 = vector.load %arg2[%c0_1, %c0_2] : memref<320x50xf32, #tpu.memory_space<vmem>>, vector<320x50xf32>
    %cst = arith.constant dense<0.000000e+00> : vector<8x50xf32>
    %2 = tpu.matmul %0, %1, %cst {dimension_numbers = #tpu.dot_dimension_numbers<[1], [0], [0], [1], [0, 0, 1, 1], [], []>} : vector<8x320xf32>, vector<320x50xf32>, vector<8x50xf32> -> vector<8x50xf32>
    %c0_3 = arith.constant 0 : index
    %c0_4 = arith.constant 0 : index
    %3 = vector.load %arg3[%c0_3, %c0_4] : memref<1x50xf32, #tpu.memory_space<vmem>>, vector<1x50xf32>
    %4 = vector.broadcast %3 : vector<1x50xf32> to vector<8x50xf32>
    %5 = arith.addf %2, %4 : vector<8x50xf32>
    %cst_5 = arith.constant 0.000000e+00 : f32
    %6 = vector.broadcast %cst_5 : f32 to vector<8x50xf32>
    %7 = arith.maximumf %5, %6 : vector<8x50xf32>
    %c0_6 = arith.constant 0 : index
    %c0_7 = arith.constant 0 : index
    %8 = vector.load %arg4[%c0_6, %c0_7] : memref<50x10xf32, #tpu.memory_space<vmem>>, vector<50x10xf32>
    %cst_8 = arith.constant dense<0.000000e+00> : vector<8x10xf32>
    %9 = tpu.matmul %7, %8, %cst_8 {dimension_numbers = #tpu.dot_dimension_numbers<[1], [0], [0], [1], [0, 0, 1, 1], [], []>} : vector<8x50xf32>, vector<50x10xf32>, vector<8x10xf32> -> vector<8x10xf32>
    %c0_9 = arith.constant 0 : index
    %c0_10 = arith.constant 0 : index
    %10 = vector.load %arg5[%c0_9, %c0_10] : memref<1x10xf32, #tpu.memory_space<vmem>>, vector<1x10xf32>
    %11 = vector.broadcast %10 : vector<1x10xf32> to vector<8x10xf32>
    %12 = arith.addf %9, %11 : vector<8x10xf32>
    %cst_11 = arith.constant 0.000000e+00 : f32
    %13 = vector.broadcast %cst_11 : f32 to vector<8x10xf32>
    %14 = arith.maximumf %12, %13 : vector<8x10xf32>
    %c0_12 = arith.constant 0 : index
    %c0_13 = arith.constant 0 : index
    %15 = vector.load %arg6[%c0_12, %c0_13] : memref<10x50xf32, #tpu.memory_space<vmem>>, vector<10x50xf32>
    %cst_14 = arith.constant dense<0.000000e+00> : vector<8x50xf32>
    %16 = tpu.matmul %14, %15, %cst_14 {dimension_numbers = #tpu.dot_dimension_numbers<[1], [0], [0], [1], [0, 0, 1, 1], [], []>} : vector<8x10xf32>, vector<10x50xf32>, vector<8x50xf32> -> vector<8x50xf32>
    %c0_15 = arith.constant 0 : index
    %c0_16 = arith.constant 0 : index
    %17 = vector.load %arg7[%c0_15, %c0_16] : memref<1x50xf32, #tpu.memory_space<vmem>>, vector<1x50xf32>
    %18 = vector.broadcast %17 : vector<1x50xf32> to vector<8x50xf32>
    %19 = arith.addf %16, %18 : vector<8x50xf32>
    %c0_17 = arith.constant 0 : index
    %c0_18 = arith.constant 0 : index
    %20 = vector.load %arg8[%c0_17, %c0_18] : memref<50x320xf32, #tpu.memory_space<vmem>>, vector<50x320xf32>
    %cst_19 = arith.constant dense<0.000000e+00> : vector<8x320xf32>
    %21 = tpu.matmul %19, %20, %cst_19 {dimension_numbers = #tpu.dot_dimension_numbers<[1], [0], [0], [1], [0, 0, 1, 1], [], []>} : vector<8x50xf32>, vector<50x320xf32>, vector<8x320xf32> -> vector<8x320xf32>
    %c0_20 = arith.constant 0 : index
    %c0_21 = arith.constant 0 : index
    %22 = vector.load %arg9[%c0_20, %c0_21] : memref<1x320xf32, #tpu.memory_space<vmem>>, vector<1x320xf32>
    %23 = vector.broadcast %22 : vector<1x320xf32> to vector<8x320xf32>
    %24 = arith.addf %21, %23 : vector<8x320xf32>
    %c0_22 = arith.constant 0 : index
    %c0_23 = arith.constant 0 : index
    %25 = vector.load %arg10[%c0_22, %c0_23] : memref<8x320xf32, #tpu.memory_space<vmem>>, vector<8x320xf32>
    tpu.vector_store %arg10[%c0_22, %c0_23], %24 {strides = array<i32>} : memref<8x320xf32, #tpu.memory_space<vmem>>, vector<8x320xf32>,
    return
  }
  func.func @transform_0(%arg0: i32) -> (i32, i32) {
    %c0_i32 = arith.constant 0 : i32
    %c0_i32_0 = arith.constant 0 : i32
    return %arg0, %c0_i32 : i32, i32
  }
  func.func @transform_1(%arg0: i32) -> (i32, i32) {
    %c0_i32 = arith.constant 0 : i32
    %c0_i32_0 = arith.constant 0 : i32
    %c0_i32_1 = arith.constant 0 : i32
    return %c0_i32, %c0_i32_0 : i32, i32
  }
  func.func @transform_2(%arg0: i32) -> (i32, i32) {
    %c0_i32 = arith.constant 0 : i32
    %c0_i32_0 = arith.constant 0 : i32
    %c0_i32_1 = arith.constant 0 : i32
    return %c0_i32, %c0_i32_0 : i32, i32
  }
  func.func @transform_3(%arg0: i32) -> (i32, i32) {
    %c0_i32 = arith.constant 0 : i32
    %c0_i32_0 = arith.constant 0 : i32
    %c0_i32_1 = arith.constant 0 : i32
    return %c0_i32, %c0_i32_0 : i32, i32
  }
  func.func @transform_4(%arg0: i32) -> (i32, i32) {
    %c0_i32 = arith.constant 0 : i32
    %c0_i32_0 = arith.constant 0 : i32
    %c0_i32_1 = arith.constant 0 : i32
    return %c0_i32, %c0_i32_0 : i32, i32
  }
  func.func @transform_5(%arg0: i32) -> (i32, i32) {
    %c0_i32 = arith.constant 0 : i32
    %c0_i32_0 = arith.constant 0 : i32
    %c0_i32_1 = arith.constant 0 : i32
    return %c0_i32, %c0_i32_0 : i32, i32
  }
  func.func @transform_6(%arg0: i32) -> (i32, i32) {
    %c0_i32 = arith.constant 0 : i32
    %c0_i32_0 = arith.constant 0 : i32
    %c0_i32_1 = arith.constant 0 : i32
    return %c0_i32, %c0_i32_0 : i32, i32
  }
  func.func @transform_7(%arg0: i32) -> (i32, i32) {
    %c0_i32 = arith.constant 0 : i32
    %c0_i32_0 = arith.constant 0 : i32
    %c0_i32_1 = arith.constant 0 : i32
    return %c0_i32, %c0_i32_0 : i32, i32
  }
  func.func @transform_8(%arg0: i32) -> (i32, i32) {
    %c0_i32 = arith.constant 0 : i32
    %c0_i32_0 = arith.constant 0 : i32
    %c0_i32_1 = arith.constant 0 : i32
    return %c0_i32, %c0_i32_0 : i32, i32
  }
  func.func @transform_9(%arg0: i32) -> (i32, i32) {
    %c0_i32 = arith.constant 0 : i32
    %c0_i32_0 = arith.constant 0 : i32
    return %arg0, %c0_i32 : i32, i32
  }
}

module attributes {stable_mosaic.version = 11 : i64} {
  func.func @_decoder_stage_kernel(%arg0: i32, %arg1: memref<1x500x1152xbf16, #tpu.memory_space<vmem>>, %arg2: memref<10x500xbf16, #tpu.memory_space<vmem>>, %arg3: memref<10x1xf32, #tpu.memory_space<vmem>>, %arg4: memref<1x10x1152xf32, #tpu.memory_space<vmem>>) attributes {dimension_semantics = [#tpu.dimension_semantics<parallel>], iteration_bounds = array<i64: 1>, scalar_prefetch = 0 : i64, scratch_operands = 0 : i64, tpu.core_type = #tpu.core_type<tc>, window_params = [{transform_indices = @transform_0, window_bounds = array<i64: 1, 500, 1152>}, {pipeline_mode = #tpu.pipeline_mode<synchronous>, transform_indices = @transform_1, window_bounds = array<i64: 10, 500>}, {pipeline_mode = #tpu.pipeline_mode<synchronous>, transform_indices = @transform_2, window_bounds = array<i64: 10, 1>}, {transform_indices = @transform_3, window_bounds = array<i64: 1, 10, 1152>}]} {
    %c0 = arith.constant 0 : index
    %c0_0 = arith.constant 0 : index
    %0 = vector.load %arg2[%c0, %c0_0] : memref<10x500xbf16, #tpu.memory_space<vmem>>, vector<10x500xbf16>
    %c0_1 = arith.constant 0 : index
    %c0_2 = arith.constant 0 : index
    %c0_3 = arith.constant 0 : index
    %1 = vector.load %arg1[%c0_1, %c0_2, %c0_3] : memref<1x500x1152xbf16, #tpu.memory_space<vmem>>, vector<1x500x1152xbf16>
    %2 = vector.shape_cast %1 : vector<1x500x1152xbf16> to vector<500x1152xbf16>
    %cst = arith.constant dense<0.000000e+00> : vector<10x1152xf32>
    %3 = tpu.matmul %0, %2, %cst {dimension_numbers = #tpu.dot_dimension_numbers<[1], [0], [0], [1], [0, 0, 1, 1], [], []>} : vector<10x500xbf16>, vector<500x1152xbf16>, vector<10x1152xf32> -> vector<10x1152xf32>
    %c0_4 = arith.constant 0 : index
    %c0_5 = arith.constant 0 : index
    %4 = vector.load %arg3[%c0_4, %c0_5] : memref<10x1xf32, #tpu.memory_space<vmem>>, vector<10x1xf32>
    %5 = vector.broadcast %4 : vector<10x1xf32> to vector<10x1152xf32>
    %6 = arith.addf %3, %5 : vector<10x1152xf32>
    %cst_6 = arith.constant 0.000000e+00 : f32
    %7 = vector.broadcast %cst_6 : f32 to vector<10x1152xf32>
    %8 = arith.maximumf %6, %7 : vector<10x1152xf32>
    %c0_7 = arith.constant 0 : index
    %c0_8 = arith.constant 0 : index
    %c0_9 = arith.constant 0 : index
    %9 = vector.load %arg4[%c0_7, %c0_8, %c0_9] : memref<1x10x1152xf32, #tpu.memory_space<vmem>>, vector<1x10x1152xf32>
    %10 = vector.shape_cast %9 : vector<1x10x1152xf32> to vector<10x1152xf32>
    %11 = vector.shape_cast %8 : vector<10x1152xf32> to vector<1x10x1152xf32>
    tpu.vector_store %arg4[%c0_7, %c0_8, %c0_9], %11 {strides = array<i32>} : memref<1x10x1152xf32, #tpu.memory_space<vmem>>, vector<1x10x1152xf32>,
    return
  }
  func.func @transform_0(%arg0: i32) -> (i32, i32, i32) {
    %c0_i32 = arith.constant 0 : i32
    %c0_i32_0 = arith.constant 0 : i32
    %c0_i32_1 = arith.constant 0 : i32
    return %arg0, %c0_i32, %c0_i32_0 : i32, i32, i32
  }
  func.func @transform_1(%arg0: i32) -> (i32, i32) {
    %c0_i32 = arith.constant 0 : i32
    %c0_i32_0 = arith.constant 0 : i32
    %c0_i32_1 = arith.constant 0 : i32
    return %c0_i32, %c0_i32_0 : i32, i32
  }
  func.func @transform_2(%arg0: i32) -> (i32, i32) {
    %c0_i32 = arith.constant 0 : i32
    %c0_i32_0 = arith.constant 0 : i32
    %c0_i32_1 = arith.constant 0 : i32
    return %c0_i32, %c0_i32_0 : i32, i32
  }
  func.func @transform_3(%arg0: i32) -> (i32, i32, i32) {
    %c0_i32 = arith.constant 0 : i32
    %c0_i32_0 = arith.constant 0 : i32
    %c0_i32_1 = arith.constant 0 : i32
    return %arg0, %c0_i32, %c0_i32_0 : i32, i32, i32
  }
}

module attributes {stable_mosaic.version = 11 : i64} {
  func.func @_decoder_stage_kernel(%arg0: i32, %arg1: memref<1x250x6272xbf16, #tpu.memory_space<vmem>>, %arg2: memref<1x250xbf16, #tpu.memory_space<vmem>>, %arg3: memref<1x1xf32, #tpu.memory_space<vmem>>, %arg4: memref<1x1x6272xf32, #tpu.memory_space<vmem>>) attributes {dimension_semantics = [#tpu.dimension_semantics<parallel>], iteration_bounds = array<i64: 1>, scalar_prefetch = 0 : i64, scratch_operands = 0 : i64, tpu.core_type = #tpu.core_type<tc>, window_params = [{transform_indices = @transform_0, window_bounds = array<i64: 1, 250, 6272>}, {pipeline_mode = #tpu.pipeline_mode<synchronous>, transform_indices = @transform_1, window_bounds = array<i64: 1, 250>}, {pipeline_mode = #tpu.pipeline_mode<synchronous>, transform_indices = @transform_2, window_bounds = array<i64: 1, 1>}, {transform_indices = @transform_3, window_bounds = array<i64: 1, 1, 6272>}]} {
    %c0 = arith.constant 0 : index
    %c0_0 = arith.constant 0 : index
    %0 = vector.load %arg2[%c0, %c0_0] : memref<1x250xbf16, #tpu.memory_space<vmem>>, vector<1x250xbf16>
    %c0_1 = arith.constant 0 : index
    %c0_2 = arith.constant 0 : index
    %c0_3 = arith.constant 0 : index
    %1 = vector.load %arg1[%c0_1, %c0_2, %c0_3] : memref<1x250x6272xbf16, #tpu.memory_space<vmem>>, vector<1x250x6272xbf16>
    %2 = vector.shape_cast %1 : vector<1x250x6272xbf16> to vector<250x6272xbf16>
    %cst = arith.constant dense<0.000000e+00> : vector<1x6272xf32>
    %3 = tpu.matmul %0, %2, %cst {dimension_numbers = #tpu.dot_dimension_numbers<[1], [0], [0], [1], [0, 0, 1, 1], [], []>} : vector<1x250xbf16>, vector<250x6272xbf16>, vector<1x6272xf32> -> vector<1x6272xf32>
    %c0_4 = arith.constant 0 : index
    %c0_5 = arith.constant 0 : index
    %4 = vector.load %arg3[%c0_4, %c0_5] : memref<1x1xf32, #tpu.memory_space<vmem>>, vector<1x1xf32>
    %5 = vector.broadcast %4 : vector<1x1xf32> to vector<1x6272xf32>
    %6 = arith.addf %3, %5 : vector<1x6272xf32>
    %cst_6 = arith.constant 0.000000e+00 : f32
    %7 = vector.broadcast %cst_6 : f32 to vector<1x6272xf32>
    %8 = arith.maximumf %6, %7 : vector<1x6272xf32>
    %c0_7 = arith.constant 0 : index
    %c0_8 = arith.constant 0 : index
    %c0_9 = arith.constant 0 : index
    %9 = vector.load %arg4[%c0_7, %c0_8, %c0_9] : memref<1x1x6272xf32, #tpu.memory_space<vmem>>, vector<1x1x6272xf32>
    %10 = vector.shape_cast %9 : vector<1x1x6272xf32> to vector<1x6272xf32>
    %11 = vector.shape_cast %8 : vector<1x6272xf32> to vector<1x1x6272xf32>
    tpu.vector_store %arg4[%c0_7, %c0_8, %c0_9], %11 {strides = array<i32>} : memref<1x1x6272xf32, #tpu.memory_space<vmem>>, vector<1x1x6272xf32>,
    return
  }
  func.func @transform_0(%arg0: i32) -> (i32, i32, i32) {
    %c0_i32 = arith.constant 0 : i32
    %c0_i32_0 = arith.constant 0 : i32
    %c0_i32_1 = arith.constant 0 : i32
    return %arg0, %c0_i32, %c0_i32_0 : i32, i32, i32
  }
  func.func @transform_1(%arg0: i32) -> (i32, i32) {
    %c0_i32 = arith.constant 0 : i32
    %c0_i32_0 = arith.constant 0 : i32
    %c0_i32_1 = arith.constant 0 : i32
    return %c0_i32, %c0_i32_0 : i32, i32
  }
  func.func @transform_2(%arg0: i32) -> (i32, i32) {
    %c0_i32 = arith.constant 0 : i32
    %c0_i32_0 = arith.constant 0 : i32
    %c0_i32_1 = arith.constant 0 : i32
    return %c0_i32, %c0_i32_0 : i32, i32
  }
  func.func @transform_3(%arg0: i32) -> (i32, i32, i32) {
    %c0_i32 = arith.constant 0 : i32
    %c0_i32_0 = arith.constant 0 : i32
    %c0_i32_1 = arith.constant 0 : i32
    return %arg0, %c0_i32, %c0_i32_0 : i32, i32, i32
  }
}

</mosaic_0001>

<llo_original>
// kernel: net_forward.5
$region0: #{net_forward.5}
  #allocation0 [shape = 'u32[]', space=smem, size = 0x4, offset = 0x4, fixed_abs, tag = 'smem constant byte address 0x4 - core index']
  #allocation1 [shape = 'u32[72,128]{1,0:T(1,128)}', space=vmem, size = 0x9000, scoped, tag = 'internal scratch']
  %s0 = inlined_call_operand.vmem [shape: bf16[1,25,4608], index: 0, kind: input, shape index: {}]
  %s1 = inlined_call_operand.vmem [shape: bf16[10,25], index: 1, kind: input, shape index: {}]
  %s2 = inlined_call_operand.vmem [shape: f32[10,1], index: 2, kind: input, shape index: {}]
  %s3 = inlined_call_operand.vmem [shape: f32[1,10,1152], index: 3, kind: output, shape index: {0}]
  %s4 = inlined_call_operand.vmem [shape: s32[1,10,1152], index: 4, kind: output, shape index: {1}]
  %5 = xla_tuple %s3, %s4
  %s6 = sld [smem:[#allocation0]]
  $region30: #{net_forward.5} parent=0
    _
  %s8 = ssub.s32 1, %s6
  %s9 = scalar_select 0, %s8, %s6
  // Predicated region
  $region2: #{net_forward.5} parent=0 // pred_check
    _
  $region3: #{net_forward.5} parent=0 // pred_check_branch
    %11 = sbr.rel (0) target = $region5
  $region4: #{net_forward.5} parent=0 // pred_region
    _
  $region5: #{net_forward.5} parent=0 // pred_fallthru
    _
  // Predicated region
  $region6: #{net_forward.5} parent=0 // pred_check
    _
  $region7: #{net_forward.5} parent=0 // pred_check_branch
    %13 = sbr.rel (0) target = $region9
  $region8: #{net_forward.5} parent=0 // pred_region
    _
  $region9: #{net_forward.5} parent=0 // pred_fallthru
    _
  // Predicated region
  $region10: #{net_forward.5} parent=0 // pred_check
    _
  $region11: #{net_forward.5} parent=0 // pred_check_branch
    %15 = sbr.rel (0) target = $region13
  $region12: #{net_forward.5} parent=0 // pred_region
    _
  $region13: #{net_forward.5} parent=0 // pred_fallthru
    _
  %v17 = vld [vmem:[%s1] sm:$0xf]
  %v18 = vld [vmem:[%s1 + $0x4] sm:$0x1]
  %v19 = vld [vmem:[%s0] sm:$0xff]
  %v20 = vld [vmem:[%s0 + $0x8] sm:$0xff]
  %v21 = vld [vmem:[%s0 + $0x10] sm:$0xff]
  %v22 = vld [vmem:[%s0 + $0x18] sm:$0xff]
  %v23 = vld [vmem:[%s0 + $0x20] sm:$0xff]
  %v24 = vld [vmem:[%s0 + $0x28] sm:$0xff]
  %v25 = vld [vmem:[%s0 + $0x30] sm:$0xff]
  %v26 = vld [vmem:[%s0 + $0x38] sm:$0xff]
  %v27 = vld [vmem:[%s0 + $0x40] sm:$0xff]
  %v28 = vld [vmem:[%s0 + $0x48] sm:$0xff]
  %v29 = vld [vmem:[%s0 + $0x50] sm:$0xff]
  %v30 = vld [vmem:[%s0 + $0x58] sm:$0xff]
  %v31 = vld [vmem:[%s0 + $0x60] sm:$0xff]
  %v32 = vld [vmem:[%s0 + $0x68] sm:$0xff]
  %v33 = vld [vmem:[%s0 + $0x70] sm:$0xff]
  %v34 = vld [vmem:[%s0 + $0x78] sm:$0xff]
  %v35 = vld [vmem:[%s0 + $0x80] sm:$0xff]
  %v36 = vld [vmem:[%s0 + $0x88] sm:$0xff]
  %v37 = vld [vmem:[%s0 + $0x90] sm:$0xff]
  %v38 = vld [vmem:[%s0 + $0x98] sm:$0xff]
  %v39 = vld [vmem:[%s0 + $0xa0] sm:$0xff]
  %v40 = vld [vmem:[%s0 + $0xa8] sm:$0xff]
  %v41 = vld [vmem:[%s0 + $0xb0] sm:$0xff]
  %v42 = vld [vmem:[%s0 + $0xb8] sm:$0xff]
  %v43 = vld [vmem:[%s0 + $0xc0] sm:$0xff]
  %v44 = vld [vmem:[%s0 + $0xc8] sm:$0xff]
  %v45 = vld [vmem:[%s0 + $0xd0] sm:$0xff]
  %v46 = vld [vmem:[%s0 + $0xd8] sm:$0xff]
  %v47 = vld [vmem:[%s0 + $0xe0] sm:$0xff]
  %v48 = vld [vmem:[%s0 + $0xe8] sm:$0xff]
  %v49 = vld [vmem:[%s0 + $0xf0] sm:$0xff]
  %v50 = vld [vmem:[%s0 + $0xf8] sm:$0xff]
  %v51 = vld [vmem:[%s0 + $0x100] sm:$0xff]
  %v52 = vld [vmem:[%s0 + $0x108] sm:$0xff]
  %v53 = vld [vmem:[%s0 + $0x110] sm:$0xff]
  %v54 = vld [vmem:[%s0 + $0x118] sm:$0xff]
  %v55 = vld [vmem:[%s0 + $0x120] sm:$0xff]
  %v56 = vld [vmem:[%s0 + $0x128] sm:$0xff]
  %v57 = vld [vmem:[%s0 + $0x130] sm:$0xff]
  %v58 = vld [vmem:[%s0 + $0x138] sm:$0xff]
  %v59 = vld [vmem:[%s0 + $0x140] sm:$0xff]
  %v60 = vld [vmem:[%s0 + $0x148] sm:$0xff]
  %v61 = vld [vmem:[%s0 + $0x150] sm:$0xff]
  %v62 = vld [vmem:[%s0 + $0x158] sm:$0xff]
  %v63 = vld [vmem:[%s0 + $0x160] sm:$0xff]
  %v64 = vld [vmem:[%s0 + $0x168] sm:$0xff]
  %v65 = vld [vmem:[%s0 + $0x170] sm:$0xff]
  %v66 = vld [vmem:[%s0 + $0x178] sm:$0xff]
  %v67 = vld [vmem:[%s0 + $0x180] sm:$0xff]
  %v68 = vld [vmem:[%s0 + $0x188] sm:$0xff]
  %v69 = vld [vmem:[%s0 + $0x190] sm:$0xff]
  %v70 = vld [vmem:[%s0 + $0x198] sm:$0xff]
  %v71 = vld [vmem:[%s0 + $0x1a0] sm:$0xff]
  %v72 = vld [vmem:[%s0 + $0x1a8] sm:$0xff]
  %v73 = vld [vmem:[%s0 + $0x1b0] sm:$0x11]
  %v74 = vld [vmem:[%s0 + $0x1b8] sm:$0x11]
  %v75 = vld [vmem:[%s0 + $0x1c0] sm:$0x11]
  %v76 = vld [vmem:[%s0 + $0x1c8] sm:$0x11]
  %v77 = vld [vmem:[%s0 + $0x1d0] sm:$0x11]
  %v78 = vld [vmem:[%s0 + $0x1d8] sm:$0x11]
  %v79 = vld [vmem:[%s0 + $0x1e0] sm:$0x11]
  %v80 = vld [vmem:[%s0 + $0x1e8] sm:$0x11]
  %v81 = vld [vmem:[%s0 + $0x1f0] sm:$0x11]
  %v82 = vld [vmem:[%s0 + $0x1f8] sm:$0x11]
  %v83 = vld [vmem:[%s0 + $0x200] sm:$0x11]
  %v84 = vld [vmem:[%s0 + $0x208] sm:$0x11]
  %v85 = vld [vmem:[%s0 + $0x210] sm:$0x11]
  %v86 = vld [vmem:[%s0 + $0x218] sm:$0x11]
  %v87 = vld [vmem:[%s0 + $0x220] sm:$0x11]
  %v88 = vld [vmem:[%s0 + $0x228] sm:$0x11]
  %v89 = vld [vmem:[%s0 + $0x230] sm:$0x11]
  %v90 = vld [vmem:[%s0 + $0x238] sm:$0x11]
  %v93 = vunpack.c.l.b16 %v17
  %v94 = vunpack.c.l.b16 %v18
  %v95 = vpack.c.b16 %v94, %v93
  %v168 = vunpack.c.l.b16 %v19
  %v169 = vunpack.c.h.b16 %v19
  %v170 = vunpack.c.l.b16 %v20
  %v171 = vunpack.c.h.b16 %v20
  %v172 = vunpack.c.l.b16 %v21
  %v173 = vunpack.c.h.b16 %v21
  %v174 = vunpack.c.l.b16 %v22
  %v175 = vunpack.c.h.b16 %v22
  %v176 = vunpack.c.l.b16 %v23
  %v177 = vunpack.c.h.b16 %v23
  %v178 = vunpack.c.l.b16 %v24
  %v179 = vunpack.c.h.b16 %v24
  %v180 = vunpack.c.l.b16 %v25
  %v181 = vunpack.c.h.b16 %v25
  %v182 = vunpack.c.l.b16 %v26
  %v183 = vunpack.c.h.b16 %v26
  %v184 = vunpack.c.l.b16 %v27
  %v185 = vunpack.c.h.b16 %v27
  %v186 = vunpack.c.l.b16 %v28
  %v187 = vunpack.c.h.b16 %v28
  %v188 = vunpack.c.l.b16 %v29
  %v189 = vunpack.c.h.b16 %v29
  %v190 = vunpack.c.l.b16 %v30
  %v191 = vunpack.c.h.b16 %v30
  %v192 = vunpack.c.l.b16 %v31
  %v193 = vunpack.c.h.b16 %v31
  %v194 = vunpack.c.l.b16 %v32
  %v195 = vunpack.c.h.b16 %v32
  %v196 = vunpack.c.l.b16 %v33
  %v197 = vunpack.c.h.b16 %v33
  %v198 = vunpack.c.l.b16 %v34
  %v199 = vunpack.c.h.b16 %v34
  %v200 = vunpack.c.l.b16 %v35
  %v201 = vunpack.c.h.b16 %v35
  %v202 = vunpack.c.l.b16 %v36
  %v203 = vunpack.c.h.b16 %v36
  %v204 = vunpack.c.l.b16 %v37
  %v205 = vunpack.c.h.b16 %v37
  %v206 = vunpack.c.l.b16 %v38
  %v207 = vunpack.c.h.b16 %v38
  %v208 = vunpack.c.l.b16 %v39
  %v209 = vunpack.c.h.b16 %v39
  %v210 = vunpack.c.l.b16 %v40
  %v211 = vunpack.c.h.b16 %v40
  %v212 = vunpack.c.l.b16 %v41
  %v213 = vunpack.c.h.b16 %v41
  %v214 = vunpack.c.l.b16 %v42
  %v215 = vunpack.c.h.b16 %v42
  %v216 = vunpack.c.l.b16 %v43
  %v217 = vunpack.c.h.b16 %v43
  %v218 = vunpack.c.l.b16 %v44
  %v219 = vunpack.c.h.b16 %v44
  %v220 = vunpack.c.l.b16 %v45
  %v221 = vunpack.c.h.b16 %v45
  %v222 = vunpack.c.l.b16 %v46
  %v223 = vunpack.c.h.b16 %v46
  %v224 = vunpack.c.l.b16 %v47
  %v225 = vunpack.c.h.b16 %v47
  %v226 = vunpack.c.l.b16 %v48
  %v227 = vunpack.c.h.b16 %v48
  %v228 = vunpack.c.l.b16 %v49
  %v229 = vunpack.c.h.b16 %v49
  %v230 = vunpack.c.l.b16 %v50
  %v231 = vunpack.c.h.b16 %v50
  %v232 = vunpack.c.l.b16 %v51
  %v233 = vunpack.c.h.b16 %v51
  %v234 = vunpack.c.l.b16 %v52
  %v235 = vunpack.c.h.b16 %v52
  %v236 = vunpack.c.l.b16 %v53
  %v237 = vunpack.c.h.b16 %v53
  %v238 = vunpack.c.l.b16 %v54
  %v239 = vunpack.c.h.b16 %v54
  %v240 = vunpack.c.l.b16 %v55
  %v241 = vunpack.c.h.b16 %v55
  %v242 = vunpack.c.l.b16 %v56
  %v243 = vunpack.c.h.b16 %v56
  %v244 = vunpack.c.l.b16 %v57
  %v245 = vunpack.c.h.b16 %v57
  %v246 = vunpack.c.l.b16 %v58
  %v247 = vunpack.c.h.b16 %v58
  %v248 = vunpack.c.l.b16 %v59
  %v249 = vunpack.c.h.b16 %v59
  %v250 = vunpack.c.l.b16 %v60
  %v251 = vunpack.c.h.b16 %v60
  %v252 = vunpack.c.l.b16 %v61
  %v253 = vunpack.c.h.b16 %v61
  %v254 = vunpack.c.l.b16 %v62
  %v255 = vunpack.c.h.b16 %v62
  %v256 = vunpack.c.l.b16 %v63
  %v257 = vunpack.c.h.b16 %v63
  %v258 = vunpack.c.l.b16 %v64
  %v259 = vunpack.c.h.b16 %v64
  %v260 = vunpack.c.l.b16 %v65
  %v261 = vunpack.c.h.b16 %v65
  %v262 = vunpack.c.l.b16 %v66
  %v263 = vunpack.c.h.b16 %v66
  %v264 = vunpack.c.l.b16 %v67
  %v265 = vunpack.c.h.b16 %v67
  %v266 = vunpack.c.l.b16 %v68
  %v267 = vunpack.c.h.b16 %v68
  %v268 = vunpack.c.l.b16 %v69
  %v269 = vunpack.c.h.b16 %v69
  %v270 = vunpack.c.l.b16 %v70
  %v271 = vunpack.c.h.b16 %v70
  %v272 = vunpack.c.l.b16 %v71
  %v273 = vunpack.c.h.b16 %v71
  %v274 = vunpack.c.l.b16 %v72
  %v275 = vunpack.c.h.b16 %v72
  %v276 = vunpack.c.l.b16 %v73
  %v277 = vunpack.c.h.b16 %v73
  %v278 = vunpack.c.l.b16 %v74
  %v279 = vunpack.c.h.b16 %v74
  %v280 = vunpack.c.l.b16 %v75
  %v281 = vunpack.c.h.b16 %v75
  %v282 = vunpack.c.l.b16 %v76
  %v283 = vunpack.c.h.b16 %v76
  %v284 = vunpack.c.l.b16 %v77
  %v285 = vunpack.c.h.b16 %v77
  %v286 = vunpack.c.l.b16 %v78
  %v287 = vunpack.c.h.b16 %v78
  %v288 = vunpack.c.l.b16 %v79
  %v289 = vunpack.c.h.b16 %v79
  %v290 = vunpack.c.l.b16 %v80
  %v291 = vunpack.c.h.b16 %v80
  %v292 = vunpack.c.l.b16 %v81
  %v293 = vunpack.c.h.b16 %v81
  %v294 = vunpack.c.l.b16 %v82
  %v295 = vunpack.c.h.b16 %v82
  %v296 = vunpack.c.l.b16 %v83
  %v297 = vunpack.c.h.b16 %v83
  %v298 = vunpack.c.l.b16 %v84
  %v299 = vunpack.c.h.b16 %v84
  %v300 = vunpack.c.l.b16 %v85
  %v301 = vunpack.c.h.b16 %v85
  %v302 = vunpack.c.l.b16 %v86
  %v303 = vunpack.c.h.b16 %v86
  %v304 = vunpack.c.l.b16 %v87
  %v305 = vunpack.c.h.b16 %v87
  %v306 = vunpack.c.l.b16 %v88
  %v307 = vunpack.c.h.b16 %v88
  %v308 = vunpack.c.l.b16 %v89
  %v309 = vunpack.c.h.b16 %v89
  %v310 = vunpack.c.l.b16 %v90
  %v311 = vunpack.c.h.b16 %v90
  %v312 = vpack.c.b16 %v204, %v168
  %v313 = vpack.c.b16 %v205, %v169
  %v314 = vpack.c.b16 %v206, %v170
  %v315 = vpack.c.b16 %v207, %v171
  %v316 = vpack.c.b16 %v208, %v172
  %v317 = vpack.c.b16 %v209, %v173
  %v318 = vpack.c.b16 %v210, %v174
  %v319 = vpack.c.b16 %v211, %v175
  %v320 = vpack.c.b16 %v212, %v176
  %v321 = vpack.c.b16 %v213, %v177
  %v322 = vpack.c.b16 %v214, %v178
  %v323 = vpack.c.b16 %v215, %v179
  %v324 = vpack.c.b16 %v216, %v180
  %v325 = vpack.c.b16 %v217, %v181
  %v326 = vpack.c.b16 %v218, %v182
  %v327 = vpack.c.b16 %v219, %v183
  %v328 = vpack.c.b16 %v220, %v184
  %v329 = vpack.c.b16 %v221, %v185
  %v330 = vpack.c.b16 %v222, %v186
  %v331 = vpack.c.b16 %v223, %v187
  %v332 = vpack.c.b16 %v224, %v188
  %v333 = vpack.c.b16 %v225, %v189
  %v334 = vpack.c.b16 %v226, %v190
  %v335 = vpack.c.b16 %v227, %v191
  %v336 = vpack.c.b16 %v228, %v192
  %v337 = vpack.c.b16 %v229, %v193
  %v338 = vpack.c.b16 %v230, %v194
  %v339 = vpack.c.b16 %v231, %v195
  %v340 = vpack.c.b16 %v232, %v196
  %v341 = vpack.c.b16 %v233, %v197
  %v342 = vpack.c.b16 %v234, %v198
  %v343 = vpack.c.b16 %v235, %v199
  %v344 = vpack.c.b16 %v236, %v200
  %v345 = vpack.c.b16 %v237, %v201
  %v346 = vpack.c.b16 %v238, %v202
  %v347 = vpack.c.b16 %v239, %v203
  %v348 = vpack.c.b16 %v276, %v240
  %v349 = vpack.c.b16 %v277, %v241
  %v350 = vpack.c.b16 %v278, %v242
  %v351 = vpack.c.b16 %v279, %v243
  %v352 = vpack.c.b16 %v280, %v244
  %v353 = vpack.c.b16 %v281, %v245
  %v354 = vpack.c.b16 %v282, %v246
  %v355 = vpack.c.b16 %v283, %v247
  %v356 = vpack.c.b16 %v284, %v248
  %v357 = vpack.c.b16 %v285, %v249
  %v358 = vpack.c.b16 %v286, %v250
  %v359 = vpack.c.b16 %v287, %v251
  %v360 = vpack.c.b16 %v288, %v252
  %v361 = vpack.c.b16 %v289, %v253
  %v362 = vpack.c.b16 %v290, %v254
  %v363 = vpack.c.b16 %v291, %v255
  %v364 = vpack.c.b16 %v292, %v256
  %v365 = vpack.c.b16 %v293, %v257
  %v366 = vpack.c.b16 %v294, %v258
  %v367 = vpack.c.b16 %v295, %v259
  %v368 = vpack.c.b16 %v296, %v260
  %v369 = vpack.c.b16 %v297, %v261
  %v370 = vpack.c.b16 %v298, %v262
  %v371 = vpack.c.b16 %v299, %v263
  %v372 = vpack.c.b16 %v300, %v264
  %v373 = vpack.c.b16 %v301, %v265
  %v374 = vpack.c.b16 %v302, %v266
  %v375 = vpack.c.b16 %v303, %v267
  %v376 = vpack.c.b16 %v304, %v268
  %v377 = vpack.c.b16 %v305, %v269
  %v378 = vpack.c.b16 %v306, %v270
  %v379 = vpack.c.b16 %v307, %v271
  %v380 = vpack.c.b16 %v308, %v272
  %v381 = vpack.c.b16 %v309, %v273
  %v382 = vpack.c.b16 %v310, %v274
  %v383 = vpack.c.b16 %v311, %v275
  %vm420 = vcmask 203776
  %v422 = vsel %vm420, %v95, 0
  %vm424 = vcmask 1043456
  %vm425 = vcmask 1044480
  %v426 = vsel %vm424, 4294967295, 65535
  %v427 = vsel %vm425, %v426, 0
  %v429 = vand.u32 %v348, %v427
  %v432 = vand.u32 %v349, %v427
  %v435 = vand.u32 %v350, %v427
  %v438 = vand.u32 %v351, %v427
  %v441 = vand.u32 %v352, %v427
  %v444 = vand.u32 %v353, %v427
  %v447 = vand.u32 %v354, %v427
  %v450 = vand.u32 %v355, %v427
  %v453 = vand.u32 %v356, %v427
  %v456 = vand.u32 %v357, %v427
  %v459 = vand.u32 %v358, %v427
  %v462 = vand.u32 %v359, %v427
  %v465 = vand.u32 %v360, %v427
  %v468 = vand.u32 %v361, %v427
  %v471 = vand.u32 %v362, %v427
  %v474 = vand.u32 %v363, %v427
  %v477 = vand.u32 %v364, %v427
  %v480 = vand.u32 %v365, %v427
  %v483 = vand.u32 %v366, %v427
  %v486 = vand.u32 %v367, %v427
  %v489 = vand.u32 %v368, %v427
  %v492 = vand.u32 %v369, %v427
  %v495 = vand.u32 %v370, %v427
  %v498 = vand.u32 %v371, %v427
  %v501 = vand.u32 %v372, %v427
  %v504 = vand.u32 %v373, %v427
  %v507 = vand.u32 %v374, %v427
  %v510 = vand.u32 %v375, %v427
  %v513 = vand.u32 %v376, %v427
  %v516 = vand.u32 %v377, %v427
  %v519 = vand.u32 %v378, %v427
  %v522 = vand.u32 %v379, %v427
  %v525 = vand.u32 %v380, %v427
  %v528 = vand.u32 %v381, %v427
  %v531 = vand.u32 %v382, %v427
  %v534 = vand.u32 %v383, %v427
  %536 = vmatpush.bf16.msra.mxu0 0
  %537 = vmatpush.bf16.msra.mxu0 0
  %538 = vmatpush.bf16.msra.mxu0 0
  %539 = vmatpush.bf16.msra.mxu0 0
  %540 = vmatpush.bf16.msra.mxu0 0
  %541 = vmatpush.bf16.msra.mxu0 0
  %542 = vmatpush.bf16.msra.mxu0 %v429
  %543 = vmatpush.bf16.msra.mxu0 %v312
  %544 = vmatmul.bf16.gmra.mxu0 %v422
  %v545 = vpop.f32.mrf.mxu0
  %v546 = vadd.f32 0.0, %v545
  %v547 = vpop.f32.mrf.mxu0
  %v548 = vadd.f32 0.0, %v547
  %549 = vdwg.mxu0
  %550 = vmatpush.bf16.msra.mxu0 0
  %551 = vmatpush.bf16.msra.mxu0 0
  %552 = vmatpush.bf16.msra.mxu0 0
  %553 = vmatpush.bf16.msra.mxu0 0
  %554 = vmatpush.bf16.msra.mxu0 0
  %555 = vmatpush.bf16.msra.mxu0 0
  %556 = vmatpush.bf16.msra.mxu0 %v432
  %557 = vmatpush.bf16.msra.mxu0 %v313
  %558 = vmatmul.bf16.gmra.mxu0 %v422
  %v559 = vpop.f32.mrf.mxu0
  %v560 = vadd.f32 0.0, %v559
  %v561 = vpop.f32.mrf.mxu0
  %v562 = vadd.f32 0.0, %v561
  %563 = vdwg.mxu0
  %564 = vmatpush.bf16.msra.mxu0 0
  %565 = vmatpush.bf16.msra.mxu0 0
  %566 = vmatpush.bf16.msra.mxu0 0
  %567 = vmatpush.bf16.msra.mxu0 0
  %568 = vmatpush.bf16.msra.mxu0 0
  %569 = vmatpush.bf16.msra.mxu0 0
  %570 = vmatpush.bf16.msra.mxu0 %v435
  %571 = vmatpush.bf16.msra.mxu0 %v314
  %572 = vmatmul.bf16.gmra.mxu0 %v422
  %v573 = vpop.f32.mrf.mxu0
  %v574 = vadd.f32 0.0, %v573
  %v575 = vpop.f32.mrf.mxu0
  %v576 = vadd.f32 0.0, %v575
  %577 = vdwg.mxu0
  %578 = vmatpush.bf16.msra.mxu0 0
  %579 = vmatpush.bf16.msra.mxu0 0
  %580 = vmatpush.bf16.msra.mxu0 0
  %581 = vmatpush.bf16.msra.mxu0 0
  %582 = vmatpush.bf16.msra.mxu0 0
  %583 = vmatpush.bf16.msra.mxu0 0
  %584 = vmatpush.bf16.msra.mxu0 %v438
  %585 = vmatpush.bf16.msra.mxu0 %v315
  %586 = vmatmul.bf16.gmra.mxu0 %v422
  %v587 = vpop.f32.mrf.mxu0
  %v588 = vadd.f32 0.0, %v587
  %v589 = vpop.f32.mrf.mxu0
  %v590 = vadd.f32 0.0, %v589
  %591 = vdwg.mxu0
  %592 = vmatpush.bf16.msra.mxu0 0
  %593 = vmatpush.bf16.msra.mxu0 0
  %594 = vmatpush.bf16.msra.mxu0 0
  %595 = vmatpush.bf16.msra.mxu0 0
  %596 = vmatpush.bf16.msra.mxu0 0
  %597 = vmatpush.bf16.msra.mxu0 0
  %598 = vmatpush.bf16.msra.mxu0 %v441
  %599 = vmatpush.bf16.msra.mxu0 %v316
  %600 = vmatmul.bf16.gmra.mxu0 %v422
  %v601 = vpop.f32.mrf.mxu0
  %v602 = vadd.f32 0.0, %v601
  %v603 = vpop.f32.mrf.mxu0
  %v604 = vadd.f32 0.0, %v603
  %605 = vdwg.mxu0
  %606 = vmatpush.bf16.msra.mxu0 0
  %607 = vmatpush.bf16.msra.mxu0 0
  %608 = vmatpush.bf16.msra.mxu0 0
  %609 = vmatpush.bf16.msra.mxu0 0
  %610 = vmatpush.bf16.msra.mxu0 0
  %611 = vmatpush.bf16.msra.mxu0 0
  %612 = vmatpush.bf16.msra.mxu0 %v444
  %613 = vmatpush.bf16.msra.mxu0 %v317
  %614 = vmatmul.bf16.gmra.mxu0 %v422
  %v615 = vpop.f32.mrf.mxu0
  %v616 = vadd.f32 0.0, %v615
  %v617 = vpop.f32.mrf.mxu0
  %v618 = vadd.f32 0.0, %v617
  %619 = vdwg.mxu0
  %620 = vmatpush.bf16.msra.mxu0 0
  %621 = vmatpush.bf16.msra.mxu0 0
  %622 = vmatpush.bf16.msra.mxu0 0
  %623 = vmatpush.bf16.msra.mxu0 0
  %624 = vmatpush.bf16.msra.mxu0 0
  %625 = vmatpush.bf16.msra.mxu0 0
  %626 = vmatpush.bf16.msra.mxu0 %v447
  %627 = vmatpush.bf16.msra.mxu0 %v318
  %628 = vmatmul.bf16.gmra.mxu0 %v422
  %v629 = vpop.f32.mrf.mxu0
  %v630 = vadd.f32 0.0, %v629
  %v631 = vpop.f32.mrf.mxu0
  %v632 = vadd.f32 0.0, %v631
  %633 = vdwg.mxu0
  %634 = vmatpush.bf16.msra.mxu0 0
  %635 = vmatpush.bf16.msra.mxu0 0
  %636 = vmatpush.bf16.msra.mxu0 0
  %637 = vmatpush.bf16.msra.mxu0 0
  %638 = vmatpush.bf16.msra.mxu0 0
  %639 = vmatpush.bf16.msra.mxu0 0
  %640 = vmatpush.bf16.msra.mxu0 %v450
  %641 = vmatpush.bf16.msra.mxu0 %v319
  %642 = vmatmul.bf16.gmra.mxu0 %v422
  %v643 = vpop.f32.mrf.mxu0
  %v644 = vadd.f32 0.0, %v643
  %v645 = vpop.f32.mrf.mxu0
  %v646 = vadd.f32 0.0, %v645
  %647 = vdwg.mxu0
  %648 = vmatpush.bf16.msra.mxu0 0
  %649 = vmatpush.bf16.msra.mxu0 0
  %650 = vmatpush.bf16.msra.mxu0 0
  %651 = vmatpush.bf16.msra.mxu0 0
  %652 = vmatpush.bf16.msra.mxu0 0
  %653 = vmatpush.bf16.msra.mxu0 0
  %654 = vmatpush.bf16.msra.mxu0 %v453
  %655 = vmatpush.bf16.msra.mxu0 %v320
  %656 = vmatmul.bf16.gmra.mxu0 %v422
  %v657 = vpop.f32.mrf.mxu0
  %v658 = vadd.f32 0.0, %v657
  %v659 = vpop.f32.mrf.mxu0
  %v660 = vadd.f32 0.0, %v659
  %661 = vdwg.mxu0
  %662 = vmatpush.bf16.msra.mxu0 0
  %663 = vmatpush.bf16.msra.mxu0 0
  %664 = vmatpush.bf16.msra.mxu0 0
  %665 = vmatpush.bf16.msra.mxu0 0
  %666 = vmatpush.bf16.msra.mxu0 0
  %667 = vmatpush.bf16.msra.mxu0 0
  %668 = vmatpush.bf16.msra.mxu0 %v456
  %669 = vmatpush.bf16.msra.mxu0 %v321
  %670 = vmatmul.bf16.gmra.mxu0 %v422
  %v671 = vpop.f32.mrf.mxu0
  %v672 = vadd.f32 0.0, %v671
  %v673 = vpop.f32.mrf.mxu0
  %v674 = vadd.f32 0.0, %v673
  %675 = vdwg.mxu0
  %676 = vmatpush.bf16.msra.mxu0 0
  %677 = vmatpush.bf16.msra.mxu0 0
  %678 = vmatpush.bf16.msra.mxu0 0
  %679 = vmatpush.bf16.msra.mxu0 0
  %680 = vmatpush.bf16.msra.mxu0 0
  %681 = vmatpush.bf16.msra.mxu0 0
  %682 = vmatpush.bf16.msra.mxu0 %v459
  %683 = vmatpush.bf16.msra.mxu0 %v322
  %684 = vmatmul.bf16.gmra.mxu0 %v422
  %v685 = vpop.f32.mrf.mxu0
  %v686 = vadd.f32 0.0, %v685
  %v687 = vpop.f32.mrf.mxu0
  %v688 = vadd.f32 0.0, %v687
  %689 = vdwg.mxu0
  %690 = vmatpush.bf16.msra.mxu0 0
  %691 = vmatpush.bf16.msra.mxu0 0
  %692 = vmatpush.bf16.msra.mxu0 0
  %693 = vmatpush.bf16.msra.mxu0 0
  %694 = vmatpush.bf16.msra.mxu0 0
  %695 = vmatpush.bf16.msra.mxu0 0
  %696 = vmatpush.bf16.msra.mxu0 %v462
  %697 = vmatpush.bf16.msra.mxu0 %v323
  %698 = vmatmul.bf16.gmra.mxu0 %v422
  %v699 = vpop.f32.mrf.mxu0
  %v700 = vadd.f32 0.0, %v699
  %v701 = vpop.f32.mrf.mxu0
  %v702 = vadd.f32 0.0, %v701
  %703 = vdwg.mxu0
  %704 = vmatpush.bf16.msra.mxu0 0
  %705 = vmatpush.bf16.msra.mxu0 0
  %706 = vmatpush.bf16.msra.mxu0 0
  %707 = vmatpush.bf16.msra.mxu0 0
  %708 = vmatpush.bf16.msra.mxu0 0
  %709 = vmatpush.bf16.msra.mxu0 0
  %710 = vmatpush.bf16.msra.mxu0 %v465
  %711 = vmatpush.bf16.msra.mxu0 %v324
  %712 = vmatmul.bf16.gmra.mxu0 %v422
  %v713 = vpop.f32.mrf.mxu0
  %v714 = vadd.f32 0.0, %v713
  %v715 = vpop.f32.mrf.mxu0
  %v716 = vadd.f32 0.0, %v715
  %717 = vdwg.mxu0
  %718 = vmatpush.bf16.msra.mxu0 0
  %719 = vmatpush.bf16.msra.mxu0 0
  %720 = vmatpush.bf16.msra.mxu0 0
  %721 = vmatpush.bf16.msra.mxu0 0
  %722 = vmatpush.bf16.msra.mxu0 0
  %723 = vmatpush.bf16.msra.mxu0 0
  %724 = vmatpush.bf16.msra.mxu0 %v468
  %725 = vmatpush.bf16.msra.mxu0 %v325
  %726 = vmatmul.bf16.gmra.mxu0 %v422
  %v727 = vpop.f32.mrf.mxu0
  %v728 = vadd.f32 0.0, %v727
  %v729 = vpop.f32.mrf.mxu0
  %v730 = vadd.f32 0.0, %v729
  %731 = vdwg.mxu0
  %732 = vmatpush.bf16.msra.mxu0 0
  %733 = vmatpush.bf16.msra.mxu0 0
  %734 = vmatpush.bf16.msra.mxu0 0
  %735 = vmatpush.bf16.msra.mxu0 0
  %736 = vmatpush.bf16.msra.mxu0 0
  %737 = vmatpush.bf16.msra.mxu0 0
  %738 = vmatpush.bf16.msra.mxu0 %v471
  %739 = vmatpush.bf16.msra.mxu0 %v326
  %740 = vmatmul.bf16.gmra.mxu0 %v422
  %v741 = vpop.f32.mrf.mxu0
  %v742 = vadd.f32 0.0, %v741
  %v743 = vpop.f32.mrf.mxu0
  %v744 = vadd.f32 0.0, %v743
  %745 = vdwg.mxu0
  %746 = vmatpush.bf16.msra.mxu0 0
  %747 = vmatpush.bf16.msra.mxu0 0
  %748 = vmatpush.bf16.msra.mxu0 0
  %749 = vmatpush.bf16.msra.mxu0 0
  %750 = vmatpush.bf16.msra.mxu0 0
  %751 = vmatpush.bf16.msra.mxu0 0
  %752 = vmatpush.bf16.msra.mxu0 %v474
  %753 = vmatpush.bf16.msra.mxu0 %v327
  %754 = vmatmul.bf16.gmra.mxu0 %v422
  %v755 = vpop.f32.mrf.mxu0
  %v756 = vadd.f32 0.0, %v755
  %v757 = vpop.f32.mrf.mxu0
  %v758 = vadd.f32 0.0, %v757
  %759 = vdwg.mxu0
  %760 = vmatpush.bf16.msra.mxu0 0
  %761 = vmatpush.bf16.msra.mxu0 0
  %762 = vmatpush.bf16.msra.mxu0 0
  %763 = vmatpush.bf16.msra.mxu0 0
  %764 = vmatpush.bf16.msra.mxu0 0
  %765 = vmatpush.bf16.msra.mxu0 0
  %766 = vmatpush.bf16.msra.mxu0 %v477
  %767 = vmatpush.bf16.msra.mxu0 %v328
  %768 = vmatmul.bf16.gmra.mxu0 %v422
  %v769 = vpop.f32.mrf.mxu0
  %v770 = vadd.f32 0.0, %v769
  %v771 = vpop.f32.mrf.mxu0
  %v772 = vadd.f32 0.0, %v771
  %773 = vdwg.mxu0
  %774 = vmatpush.bf16.msra.mxu0 0
  %775 = vmatpush.bf16.msra.mxu0 0
  %776 = vmatpush.bf16.msra.mxu0 0
  %777 = vmatpush.bf16.msra.mxu0 0
  %778 = vmatpush.bf16.msra.mxu0 0
  %779 = vmatpush.bf16.msra.mxu0 0
  %780 = vmatpush.bf16.msra.mxu0 %v480
  %781 = vmatpush.bf16.msra.mxu0 %v329
  %782 = vmatmul.bf16.gmra.mxu0 %v422
  %v783 = vpop.f32.mrf.mxu0
  %v784 = vadd.f32 0.0, %v783
  %v785 = vpop.f32.mrf.mxu0
  %v786 = vadd.f32 0.0, %v785
  %787 = vdwg.mxu0
  %788 = vmatpush.bf16.msra.mxu0 0
  %789 = vmatpush.bf16.msra.mxu0 0
  %790 = vmatpush.bf16.msra.mxu0 0
  %791 = vmatpush.bf16.msra.mxu0 0
  %792 = vmatpush.bf16.msra.mxu0 0
  %793 = vmatpush.bf16.msra.mxu0 0
  %794 = vmatpush.bf16.msra.mxu0 %v483
  %795 = vmatpush.bf16.msra.mxu0 %v330
  %796 = vmatmul.bf16.gmra.mxu0 %v422
  %v797 = vpop.f32.mrf.mxu0
  %v798 = vadd.f32 0.0, %v797
  %v799 = vpop.f32.mrf.mxu0
  %v800 = vadd.f32 0.0, %v799
  %801 = vdwg.mxu0
  %802 = vmatpush.bf16.msra.mxu0 0
  %803 = vmatpush.bf16.msra.mxu0 0
  %804 = vmatpush.bf16.msra.mxu0 0
  %805 = vmatpush.bf16.msra.mxu0 0
  %806 = vmatpush.bf16.msra.mxu0 0
  %807 = vmatpush.bf16.msra.mxu0 0
  %808 = vmatpush.bf16.msra.mxu0 %v486
  %809 = vmatpush.bf16.msra.mxu0 %v331
  %810 = vmatmul.bf16.gmra.mxu0 %v422
  %v811 = vpop.f32.mrf.mxu0
  %v812 = vadd.f32 0.0, %v811
  %v813 = vpop.f32.mrf.mxu0
  %v814 = vadd.f32 0.0, %v813
  %815 = vdwg.mxu0
  %816 = vmatpush.bf16.msra.mxu0 0
  %817 = vmatpush.bf16.msra.mxu0 0
  %818 = vmatpush.bf16.msra.mxu0 0
  %819 = vmatpush.bf16.msra.mxu0 0
  %820 = vmatpush.bf16.msra.mxu0 0
  %821 = vmatpush.bf16.msra.mxu0 0
  %822 = vmatpush.bf16.msra.mxu0 %v489
  %823 = vmatpush.bf16.msra.mxu0 %v332
  %824 = vmatmul.bf16.gmra.mxu0 %v422
  %v825 = vpop.f32.mrf.mxu0
  %v826 = vadd.f32 0.0, %v825
  %v827 = vpop.f32.mrf.mxu0
  %v828 = vadd.f32 0.0, %v827
  %829 = vdwg.mxu0
  %830 = vmatpush.bf16.msra.mxu0 0
  %831 = vmatpush.bf16.msra.mxu0 0
  %832 = vmatpush.bf16.msra.mxu0 0
  %833 = vmatpush.bf16.msra.mxu0 0
  %834 = vmatpush.bf16.msra.mxu0 0
  %835 = vmatpush.bf16.msra.mxu0 0
  %836 = vmatpush.bf16.msra.mxu0 %v492
  %837 = vmatpush.bf16.msra.mxu0 %v333
  %838 = vmatmul.bf16.gmra.mxu0 %v422
  %v839 = vpop.f32.mrf.mxu0
  %v840 = vadd.f32 0.0, %v839
  %v841 = vpop.f32.mrf.mxu0
  %v842 = vadd.f32 0.0, %v841
  %843 = vdwg.mxu0
  %844 = vmatpush.bf16.msra.mxu0 0
  %845 = vmatpush.bf16.msra.mxu0 0
  %846 = vmatpush.bf16.msra.mxu0 0
  %847 = vmatpush.bf16.msra.mxu0 0
  %848 = vmatpush.bf16.msra.mxu0 0
  %849 = vmatpush.bf16.msra.mxu0 0
  %850 = vmatpush.bf16.msra.mxu0 %v495
  %851 = vmatpush.bf16.msra.mxu0 %v334
  %852 = vmatmul.bf16.gmra.mxu0 %v422
  %v853 = vpop.f32.mrf.mxu0
  %v854 = vadd.f32 0.0, %v853
  %v855 = vpop.f32.mrf.mxu0
  %v856 = vadd.f32 0.0, %v855
  %857 = vdwg.mxu0
  %858 = vmatpush.bf16.msra.mxu0 0
  %859 = vmatpush.bf16.msra.mxu0 0
  %860 = vmatpush.bf16.msra.mxu0 0
  %861 = vmatpush.bf16.msra.mxu0 0
  %862 = vmatpush.bf16.msra.mxu0 0
  %863 = vmatpush.bf16.msra.mxu0 0
  %864 = vmatpush.bf16.msra.mxu0 %v498
  %865 = vmatpush.bf16.msra.mxu0 %v335
  %866 = vmatmul.bf16.gmra.mxu0 %v422
  %v867 = vpop.f32.mrf.mxu0
  %v868 = vadd.f32 0.0, %v867
  %v869 = vpop.f32.mrf.mxu0
  %v870 = vadd.f32 0.0, %v869
  %871 = vdwg.mxu0
  %872 = vmatpush.bf16.msra.mxu0 0
  %873 = vmatpush.bf16.msra.mxu0 0
  %874 = vmatpush.bf16.msra.mxu0 0
  %875 = vmatpush.bf16.msra.mxu0 0
  %876 = vmatpush.bf16.msra.mxu0 0
  %877 = vmatpush.bf16.msra.mxu0 0
  %878 = vmatpush.bf16.msra.mxu0 %v501
  %879 = vmatpush.bf16.msra.mxu0 %v336
  %880 = vmatmul.bf16.gmra.mxu0 %v422
  %v881 = vpop.f32.mrf.mxu0
  %v882 = vadd.f32 0.0, %v881
  %v883 = vpop.f32.mrf.mxu0
  %v884 = vadd.f32 0.0, %v883
  %885 = vdwg.mxu0
  %886 = vmatpush.bf16.msra.mxu0 0
  %887 = vmatpush.bf16.msra.mxu0 0
  %888 = vmatpush.bf16.msra.mxu0 0
  %889 = vmatpush.bf16.msra.mxu0 0
  %890 = vmatpush.bf16.msra.mxu0 0
  %891 = vmatpush.bf16.msra.mxu0 0
  %892 = vmatpush.bf16.msra.mxu0 %v504
  %893 = vmatpush.bf16.msra.mxu0 %v337
  %894 = vmatmul.bf16.gmra.mxu0 %v422
  %v895 = vpop.f32.mrf.mxu0
  %v896 = vadd.f32 0.0, %v895
  %v897 = vpop.f32.mrf.mxu0
  %v898 = vadd.f32 0.0, %v897
  %899 = vdwg.mxu0
  %900 = vmatpush.bf16.msra.mxu0 0
  %901 = vmatpush.bf16.msra.mxu0 0
  %902 = vmatpush.bf16.msra.mxu0 0
  %903 = vmatpush.bf16.msra.mxu0 0
  %904 = vmatpush.bf16.msra.mxu0 0
  %905 = vmatpush.bf16.msra.mxu0 0
  %906 = vmatpush.bf16.msra.mxu0 %v507
  %907 = vmatpush.bf16.msra.mxu0 %v338
  %908 = vmatmul.bf16.gmra.mxu0 %v422
  %v909 = vpop.f32.mrf.mxu0
  %v910 = vadd.f32 0.0, %v909
  %v911 = vpop.f32.mrf.mxu0
  %v912 = vadd.f32 0.0, %v911
  %913 = vdwg.mxu0
  %914 = vmatpush.bf16.msra.mxu0 0
  %915 = vmatpush.bf16.msra.mxu0 0
  %916 = vmatpush.bf16.msra.mxu0 0
  %917 = vmatpush.bf16.msra.mxu0 0
  %918 = vmatpush.bf16.msra.mxu0 0
  %919 = vmatpush.bf16.msra.mxu0 0
  %920 = vmatpush.bf16.msra.mxu0 %v510
  %921 = vmatpush.bf16.msra.mxu0 %v339
  %922 = vmatmul.bf16.gmra.mxu0 %v422
  %v923 = vpop.f32.mrf.mxu0
  %v924 = vadd.f32 0.0, %v923
  %v925 = vpop.f32.mrf.mxu0
  %v926 = vadd.f32 0.0, %v925
  %927 = vdwg.mxu0
  %928 = vmatpush.bf16.msra.mxu0 0
  %929 = vmatpush.bf16.msra.mxu0 0
  %930 = vmatpush.bf16.msra.mxu0 0
  %931 = vmatpush.bf16.msra.mxu0 0
  %932 = vmatpush.bf16.msra.mxu0 0
  %933 = vmatpush.bf16.msra.mxu0 0
  %934 = vmatpush.bf16.msra.mxu0 %v513
  %935 = vmatpush.bf16.msra.mxu0 %v340
  %936 = vmatmul.bf16.gmra.mxu0 %v422
  %v937 = vpop.f32.mrf.mxu0
  %v938 = vadd.f32 0.0, %v937
  %v939 = vpop.f32.mrf.mxu0
  %v940 = vadd.f32 0.0, %v939
  %941 = vdwg.mxu0
  %942 = vmatpush.bf16.msra.mxu0 0
  %943 = vmatpush.bf16.msra.mxu0 0
  %944 = vmatpush.bf16.msra.mxu0 0
  %945 = vmatpush.bf16.msra.mxu0 0
  %946 = vmatpush.bf16.msra.mxu0 0
  %947 = vmatpush.bf16.msra.mxu0 0
  %948 = vmatpush.bf16.msra.mxu0 %v516
  %949 = vmatpush.bf16.msra.mxu0 %v341
  %950 = vmatmul.bf16.gmra.mxu0 %v422
  %v951 = vpop.f32.mrf.mxu0
  %v952 = vadd.f32 0.0, %v951
  %v953 = vpop.f32.mrf.mxu0
  %v954 = vadd.f32 0.0, %v953
  %955 = vdwg.mxu0
  %956 = vmatpush.bf16.msra.mxu0 0
  %957 = vmatpush.bf16.msra.mxu0 0
  %958 = vmatpush.bf16.msra.mxu0 0
  %959 = vmatpush.bf16.msra.mxu0 0
  %960 = vmatpush.bf16.msra.mxu0 0
  %961 = vmatpush.bf16.msra.mxu0 0
  %962 = vmatpush.bf16.msra.mxu0 %v519
  %963 = vmatpush.bf16.msra.mxu0 %v342
  %964 = vmatmul.bf16.gmra.mxu0 %v422
  %v965 = vpop.f32.mrf.mxu0
  %v966 = vadd.f32 0.0, %v965
  %v967 = vpop.f32.mrf.mxu0
  %v968 = vadd.f32 0.0, %v967
  %969 = vdwg.mxu0
  %970 = vmatpush.bf16.msra.mxu0 0
  %971 = vmatpush.bf16.msra.mxu0 0
  %972 = vmatpush.bf16.msra.mxu0 0
  %973 = vmatpush.bf16.msra.mxu0 0
  %974 = vmatpush.bf16.msra.mxu0 0
  %975 = vmatpush.bf16.msra.mxu0 0
  %976 = vmatpush.bf16.msra.mxu0 %v522
  %977 = vmatpush.bf16.msra.mxu0 %v343
  %978 = vmatmul.bf16.gmra.mxu0 %v422
  %v979 = vpop.f32.mrf.mxu0
  %v980 = vadd.f32 0.0, %v979
  %v981 = vpop.f32.mrf.mxu0
  %v982 = vadd.f32 0.0, %v981
  %983 = vdwg.mxu0
  %984 = vmatpush.bf16.msra.mxu0 0
  %985 = vmatpush.bf16.msra.mxu0 0
  %986 = vmatpush.bf16.msra.mxu0 0
  %987 = vmatpush.bf16.msra.mxu0 0
  %988 = vmatpush.bf16.msra.mxu0 0
  %989 = vmatpush.bf16.msra.mxu0 0
  %990 = vmatpush.bf16.msra.mxu0 %v525
  %991 = vmatpush.bf16.msra.mxu0 %v344
  %992 = vmatmul.bf16.gmra.mxu0 %v422
  %v993 = vpop.f32.mrf.mxu0
  %v994 = vadd.f32 0.0, %v993
  %v995 = vpop.f32.mrf.mxu0
  %v996 = vadd.f32 0.0, %v995
  %997 = vdwg.mxu0
  %998 = vmatpush.bf16.msra.mxu0 0
  %999 = vmatpush.bf16.msra.mxu0 0
  %1000 = vmatpush.bf16.msra.mxu0 0
  %1001 = vmatpush.bf16.msra.mxu0 0
  %1002 = vmatpush.bf16.msra.mxu0 0
  %1003 = vmatpush.bf16.msra.mxu0 0
  %1004 = vmatpush.bf16.msra.mxu0 %v528
  %1005 = vmatpush.bf16.msra.mxu0 %v345
  %1006 = vmatmul.bf16.gmra.mxu0 %v422
  %v1007 = vpop.f32.mrf.mxu0
  %v1008 = vadd.f32 0.0, %v1007
  %v1009 = vpop.f32.mrf.mxu0
  %v1010 = vadd.f32 0.0, %v1009
  %1011 = vdwg.mxu0
  %1012 = vmatpush.bf16.msra.mxu0 0
  %1013 = vmatpush.bf16.msra.mxu0 0
  %1014 = vmatpush.bf16.msra.mxu0 0
  %1015 = vmatpush.bf16.msra.mxu0 0
  %1016 = vmatpush.bf16.msra.mxu0 0
  %1017 = vmatpush.bf16.msra.mxu0 0
  %1018 = vmatpush.bf16.msra.mxu0 %v531
  %1019 = vmatpush.bf16.msra.mxu0 %v346
  %1020 = vmatmul.bf16.gmra.mxu0 %v422
  %v1021 = vpop.f32.mrf.mxu0
  %v1022 = vadd.f32 0.0, %v1021
  %v1023 = vpop.f32.mrf.mxu0
  %v1024 = vadd.f32 0.0, %v1023
  %1025 = vdwg.mxu0
  %1026 = vmatpush.bf16.msra.mxu0 0
  %1027 = vmatpush.bf16.msra.mxu0 0
  %1028 = vmatpush.bf16.msra.mxu0 0
  %1029 = vmatpush.bf16.msra.mxu0 0
  %1030 = vmatpush.bf16.msra.mxu0 0
  %1031 = vmatpush.bf16.msra.mxu0 0
  %1032 = vmatpush.bf16.msra.mxu0 %v534
  %1033 = vmatpush.bf16.msra.mxu0 %v347
  %1034 = vmatmul.bf16.gmra.mxu0 %v422
  %v1035 = vpop.f32.mrf.mxu0
  %v1036 = vadd.f32 0.0, %v1035
  %v1037 = vpop.f32.mrf.mxu0
  %v1038 = vadd.f32 0.0, %v1037
  %1039 = vdwg.mxu0
  %v1040 = vmax.f32 %v546, %v672
  %v1041 = vmax.f32 %v560, %v686
  %v1042 = vmax.f32 %v574, %v700
  %v1043 = vmax.f32 %v588, %v714
  %v1044 = vmax.f32 %v602, %v728
  %v1045 = vmax.f32 %v616, %v742
  %v1046 = vmax.f32 %v630, %v756
  %v1047 = vmax.f32 %v644, %v770
  %v1048 = vmax.f32 %v658, %v784
  %v1049 = vmax.f32 %v548, %v674
  %v1050 = vmax.f32 %v562, %v688
  %v1051 = vmax.f32 %v576, %v702
  %v1052 = vmax.f32 %v590, %v716
  %v1053 = vmax.f32 %v604, %v730
  %v1054 = vmax.f32 %v618, %v744
  %v1055 = vmax.f32 %v632, %v758
  %v1056 = vmax.f32 %v646, %v772
  %v1057 = vmax.f32 %v660, %v786
  %vm1058 = vcmp.ge.f32.partialorder %v546, %v672
  %vm1059 = vcmp.ge.f32.partialorder %v560, %v686
  %vm1060 = vcmp.ge.f32.partialorder %v574, %v700
  %vm1061 = vcmp.ge.f32.partialorder %v588, %v714
  %vm1062 = vcmp.ge.f32.partialorder %v602, %v728
  %vm1063 = vcmp.ge.f32.partialorder %v616, %v742
  %vm1064 = vcmp.ge.f32.partialorder %v630, %v756
  %vm1065 = vcmp.ge.f32.partialorder %v644, %v770
  %vm1066 = vcmp.ge.f32.partialorder %v658, %v784
  %vm1067 = vcmp.ge.f32.partialorder %v548, %v674
  %vm1068 = vcmp.ge.f32.partialorder %v562, %v688
  %vm1069 = vcmp.ge.f32.partialorder %v576, %v702
  %vm1070 = vcmp.ge.f32.partialorder %v590, %v716
  %vm1071 = vcmp.ge.f32.partialorder %v604, %v730
  %vm1072 = vcmp.ge.f32.partialorder %v618, %v744
  %vm1073 = vcmp.ge.f32.partialorder %v632, %v758
  %vm1074 = vcmp.ge.f32.partialorder %v646, %v772
  %vm1075 = vcmp.ge.f32.partialorder %v660, %v786
  %v1076 = vsel %vm1058, 0, 1
  %v1077 = vsel %vm1059, 0, 1
  %v1078 = vsel %vm1060, 0, 1
  %v1079 = vsel %vm1061, 0, 1
  %v1080 = vsel %vm1062, 0, 1
  %v1081 = vsel %vm1063, 0, 1
  %v1082 = vsel %vm1064, 0, 1
  %v1083 = vsel %vm1065, 0, 1
  %v1084 = vsel %vm1066, 0, 1
  %v1085 = vsel %vm1067, 0, 1
  %v1086 = vsel %vm1068, 0, 1
  %v1087 = vsel %vm1069, 0, 1
  %v1088 = vsel %vm1070, 0, 1
  %v1089 = vsel %vm1071, 0, 1
  %v1090 = vsel %vm1072, 0, 1
  %v1091 = vsel %vm1073, 0, 1
  %v1092 = vsel %vm1074, 0, 1
  %v1093 = vsel %vm1075, 0, 1
  %v1094 = vmax.f32 %v798, %v924
  %v1095 = vmax.f32 %v812, %v938
  %v1096 = vmax.f32 %v826, %v952
  %v1097 = vmax.f32 %v840, %v966
  %v1098 = vmax.f32 %v854, %v980
  %v1099 = vmax.f32 %v868, %v994
  %v1100 = vmax.f32 %v882, %v1008
  %v1101 = vmax.f32 %v896, %v1022
  %v1102 = vmax.f32 %v910, %v1036
  %v1103 = vmax.f32 %v800, %v926
  %v1104 = vmax.f32 %v814, %v940
  %v1105 = vmax.f32 %v828, %v954
  %v1106 = vmax.f32 %v842, %v968
  %v1107 = vmax.f32 %v856, %v982
  %v1108 = vmax.f32 %v870, %v996
  %v1109 = vmax.f32 %v884, %v1010
  %v1110 = vmax.f32 %v898, %v1024
  %v1111 = vmax.f32 %v912, %v1038
  %vm1112 = vcmp.ge.f32.partialorder %v798, %v924
  %vm1113 = vcmp.ge.f32.partialorder %v812, %v938
  %vm1114 = vcmp.ge.f32.partialorder %v826, %v952
  %vm1115 = vcmp.ge.f32.partialorder %v840, %v966
  %vm1116 = vcmp.ge.f32.partialorder %v854, %v980
  %vm1117 = vcmp.ge.f32.partialorder %v868, %v994
  %vm1118 = vcmp.ge.f32.partialorder %v882, %v1008
  %vm1119 = vcmp.ge.f32.partialorder %v896, %v1022
  %vm1120 = vcmp.ge.f32.partialorder %v910, %v1036
  %vm1121 = vcmp.ge.f32.partialorder %v800, %v926
  %vm1122 = vcmp.ge.f32.partialorder %v814, %v940
  %vm1123 = vcmp.ge.f32.partialorder %v828, %v954
  %vm1124 = vcmp.ge.f32.partialorder %v842, %v968
  %vm1125 = vcmp.ge.f32.partialorder %v856, %v982
  %vm1126 = vcmp.ge.f32.partialorder %v870, %v996
  %vm1127 = vcmp.ge.f32.partialorder %v884, %v1010
  %vm1128 = vcmp.ge.f32.partialorder %v898, %v1024
  %vm1129 = vcmp.ge.f32.partialorder %v912, %v1038
  %v1130 = vsel %vm1112, 2, 3
  %v1131 = vsel %vm1113, 2, 3
  %v1132 = vsel %vm1114, 2, 3
  %v1133 = vsel %vm1115, 2, 3
  %v1134 = vsel %vm1116, 2, 3
  %v1135 = vsel %vm1117, 2, 3
  %v1136 = vsel %vm1118, 2, 3
  %v1137 = vsel %vm1119, 2, 3
  %v1138 = vsel %vm1120, 2, 3
  %v1139 = vsel %vm1121, 2, 3
  %v1140 = vsel %vm1122, 2, 3
  %v1141 = vsel %vm1123, 2, 3
  %v1142 = vsel %vm1124, 2, 3
  %v1143 = vsel %vm1125, 2, 3
  %v1144 = vsel %vm1126, 2, 3
  %v1145 = vsel %vm1127, 2, 3
  %v1146 = vsel %vm1128, 2, 3
  %v1147 = vsel %vm1129, 2, 3
  %v1148 = vmax.f32 %v1040, %v1094
  %v1149 = vmax.f32 %v1041, %v1095
  %v1150 = vmax.f32 %v1042, %v1096
  %v1151 = vmax.f32 %v1043, %v1097
  %v1152 = vmax.f32 %v1044, %v1098
  %v1153 = vmax.f32 %v1045, %v1099
  %v1154 = vmax.f32 %v1046, %v1100
  %v1155 = vmax.f32 %v1047, %v1101
  %v1156 = vmax.f32 %v1048, %v1102
  %v1157 = vmax.f32 %v1049, %v1103
  %v1158 = vmax.f32 %v1050, %v1104
  %v1159 = vmax.f32 %v1051, %v1105
  %v1160 = vmax.f32 %v1052, %v1106
  %v1161 = vmax.f32 %v1053, %v1107
  %v1162 = vmax.f32 %v1054, %v1108
  %v1163 = vmax.f32 %v1055, %v1109
  %v1164 = vmax.f32 %v1056, %v1110
  %v1165 = vmax.f32 %v1057, %v1111
  %vm1166 = vcmp.ge.f32.partialorder %v1040, %v1094
  %vm1167 = vcmp.ge.f32.partialorder %v1041, %v1095
  %vm1168 = vcmp.ge.f32.partialorder %v1042, %v1096
  %vm1169 = vcmp.ge.f32.partialorder %v1043, %v1097
  %vm1170 = vcmp.ge.f32.partialorder %v1044, %v1098
  %vm1171 = vcmp.ge.f32.partialorder %v1045, %v1099
  %vm1172 = vcmp.ge.f32.partialorder %v1046, %v1100
  %vm1173 = vcmp.ge.f32.partialorder %v1047, %v1101
  %vm1174 = vcmp.ge.f32.partialorder %v1048, %v1102
  %vm1175 = vcmp.ge.f32.partialorder %v1049, %v1103
  %vm1176 = vcmp.ge.f32.partialorder %v1050, %v1104
  %vm1177 = vcmp.ge.f32.partialorder %v1051, %v1105
  %vm1178 = vcmp.ge.f32.partialorder %v1052, %v1106
  %vm1179 = vcmp.ge.f32.partialorder %v1053, %v1107
  %vm1180 = vcmp.ge.f32.partialorder %v1054, %v1108
  %vm1181 = vcmp.ge.f32.partialorder %v1055, %v1109
  %vm1182 = vcmp.ge.f32.partialorder %v1056, %v1110
  %vm1183 = vcmp.ge.f32.partialorder %v1057, %v1111
  %v1184 = vsel %vm1166, %v1076, %v1130
  %v1185 = vsel %vm1167, %v1077, %v1131
  %v1186 = vsel %vm1168, %v1078, %v1132
  %v1187 = vsel %vm1169, %v1079, %v1133
  %v1188 = vsel %vm1170, %v1080, %v1134
  %v1189 = vsel %vm1171, %v1081, %v1135
  %v1190 = vsel %vm1172, %v1082, %v1136
  %v1191 = vsel %vm1173, %v1083, %v1137
  %v1192 = vsel %vm1174, %v1084, %v1138
  %v1193 = vsel %vm1175, %v1085, %v1139
  %v1194 = vsel %vm1176, %v1086, %v1140
  %v1195 = vsel %vm1177, %v1087, %v1141
  %v1196 = vsel %vm1178, %v1088, %v1142
  %v1197 = vsel %vm1179, %v1089, %v1143
  %v1198 = vsel %vm1180, %v1090, %v1144
  %v1199 = vsel %vm1181, %v1091, %v1145
  %v1200 = vsel %vm1182, %v1092, %v1146
  %v1201 = vsel %vm1183, %v1093, %v1147
  %v1202 = vld [vmem:[%s2] sm:$0xff]
  %v1203 = vld [vmem:[%s2 + $0x8] sm:$0x3]
  %1205 = vset.pattern.permute.xlu0 0
  %1206 = vperm.xlu0 %1205, %v1202
  %v1207 = vpop.permute.xlu0 %1206
  %1210 = vset.pattern.permute.xlu0 0
  %1211 = vperm.xlu0 %1210, %v1203
  %v1212 = vpop.permute.xlu0 %1211
  %v1214 = vadd.f32 %v1148, %v1207
  %v1215 = vadd.f32 %v1149, %v1207
  %v1216 = vadd.f32 %v1150, %v1207
  %v1217 = vadd.f32 %v1151, %v1207
  %v1218 = vadd.f32 %v1152, %v1207
  %v1219 = vadd.f32 %v1153, %v1207
  %v1220 = vadd.f32 %v1154, %v1207
  %v1221 = vadd.f32 %v1155, %v1207
  %v1222 = vadd.f32 %v1156, %v1207
  %v1223 = vadd.f32 %v1157, %v1212
  %v1224 = vadd.f32 %v1158, %v1212
  %v1225 = vadd.f32 %v1159, %v1212
  %v1226 = vadd.f32 %v1160, %v1212
  %v1227 = vadd.f32 %v1161, %v1212
  %v1228 = vadd.f32 %v1162, %v1212
  %v1229 = vadd.f32 %v1163, %v1212
  %v1230 = vadd.f32 %v1164, %v1212
  %v1231 = vadd.f32 %v1165, %v1212
  %v1232 = vmax.f32 %v1214, 0.0
  %v1233 = vmax.f32 %v1215, 0.0
  %v1234 = vmax.f32 %v1216, 0.0
  %v1235 = vmax.f32 %v1217, 0.0
  %v1236 = vmax.f32 %v1218, 0.0
  %v1237 = vmax.f32 %v1219, 0.0
  %v1238 = vmax.f32 %v1220, 0.0
  %v1239 = vmax.f32 %v1221, 0.0
  %v1240 = vmax.f32 %v1222, 0.0
  %v1241 = vmax.f32 %v1223, 0.0
  %v1242 = vmax.f32 %v1224, 0.0
  %v1243 = vmax.f32 %v1225, 0.0
  %v1244 = vmax.f32 %v1226, 0.0
  %v1245 = vmax.f32 %v1227, 0.0
  %v1246 = vmax.f32 %v1228, 0.0
  %v1247 = vmax.f32 %v1229, 0.0
  %v1248 = vmax.f32 %v1230, 0.0
  %v1249 = vmax.f32 %v1231, 0.0
  %1250 = vst [vmem:[%s3] sm:$0xff] %v1232
  %1251 = vst [vmem:[%s3 + $0x8] sm:$0xff] %v1233
  %1252 = vst [vmem:[%s3 + $0x10] sm:$0xff] %v1234
  %1253 = vst [vmem:[%s3 + $0x18] sm:$0xff] %v1235
  %1254 = vst [vmem:[%s3 + $0x20] sm:$0xff] %v1236
  %1255 = vst [vmem:[%s3 + $0x28] sm:$0xff] %v1237
  %1256 = vst [vmem:[%s3 + $0x30] sm:$0xff] %v1238
  %1257 = vst [vmem:[%s3 + $0x38] sm:$0xff] %v1239
  %1258 = vst [vmem:[%s3 + $0x40] sm:$0xff] %v1240
  %1259 = vst [vmem:[%s3 + $0x48] sm:$0x3] %v1241
  %1260 = vst [vmem:[%s3 + $0x50] sm:$0x3] %v1242
  %1261 = vst [vmem:[%s3 + $0x58] sm:$0x3] %v1243
  %1262 = vst [vmem:[%s3 + $0x60] sm:$0x3] %v1244
  %1263 = vst [vmem:[%s3 + $0x68] sm:$0x3] %v1245
  %1264 = vst [vmem:[%s3 + $0x70] sm:$0x3] %v1246
  %1265 = vst [vmem:[%s3 + $0x78] sm:$0x3] %v1247
  %1266 = vst [vmem:[%s3 + $0x80] sm:$0x3] %v1248
  %1267 = vst [vmem:[%s3 + $0x88] sm:$0x3] %v1249
  %1268 = vst [vmem:[%s4] sm:$0xff] %v1184
  %1269 = vst [vmem:[%s4 + $0x8] sm:$0xff] %v1185
  %1270 = vst [vmem:[%s4 + $0x10] sm:$0xff] %v1186
  %1271 = vst [vmem:[%s4 + $0x18] sm:$0xff] %v1187
  %1272 = vst [vmem:[%s4 + $0x20] sm:$0xff] %v1188
  %1273 = vst [vmem:[%s4 + $0x28] sm:$0xff] %v1189
  %1274 = vst [vmem:[%s4 + $0x30] sm:$0xff] %v1190
  %1275 = vst [vmem:[%s4 + $0x38] sm:$0xff] %v1191
  %1276 = vst [vmem:[%s4 + $0x40] sm:$0xff] %v1192
  %1277 = vst [vmem:[%s4 + $0x48] sm:$0x3] %v1193
  %1278 = vst [vmem:[%s4 + $0x50] sm:$0x3] %v1194
  %1279 = vst [vmem:[%s4 + $0x58] sm:$0x3] %v1195
  %1280 = vst [vmem:[%s4 + $0x60] sm:$0x3] %v1196
  %1281 = vst [vmem:[%s4 + $0x68] sm:$0x3] %v1197
  %1282 = vst [vmem:[%s4 + $0x70] sm:$0x3] %v1198
  %1283 = vst [vmem:[%s4 + $0x78] sm:$0x3] %v1199
  %1284 = vst [vmem:[%s4 + $0x80] sm:$0x3] %v1200
  %1285 = vst [vmem:[%s4 + $0x88] sm:$0x3] %v1201
  // Predicated region
  $region14: #{net_forward.5} parent=0 // pred_check
    _
  $region15: #{net_forward.5} parent=0 // pred_check_branch
    %1287 = sbr.rel (0) target = $region17
  $region16: #{net_forward.5} parent=0 // pred_region
    _
  $region17: #{net_forward.5} parent=0 // pred_fallthru
    _
  // Predicated region
  $region18: #{net_forward.5} parent=0 // pred_check
    _
  $region19: #{net_forward.5} parent=0 // pred_check_branch
    %1289 = sbr.rel (0) target = $region21
  $region20: #{net_forward.5} parent=0 // pred_region
    _
  $region21: #{net_forward.5} parent=0 // pred_fallthru
    _
  // Predicated region
  $region22: #{net_forward.5} parent=0 // pred_check
    _
  $region23: #{net_forward.5} parent=0 // pred_check_branch
    %1291 = sbr.rel (0) target = $region25
  $region24: #{net_forward.5} parent=0 // pred_region
    _
  $region25: #{net_forward.5} parent=0 // pred_fallthru
    _
  // Predicated region
  $region26: #{net_forward.5} parent=0 // pred_check
    _
  $region27: #{net_forward.5} parent=0 // pred_check_branch
    %1293 = sbr.rel (0) target = $region29
  $region28: #{net_forward.5} parent=0 // pred_region
    _
  $region29: #{net_forward.5} parent=0 // pred_fallthru
    _

// kernel: net_forward.6
$region0: #{net_forward.6}
  #allocation0 [shape = 'u32[]', space=smem, size = 0x4, offset = 0x4, fixed_abs, tag = 'smem constant byte address 0x4 - core index']
  #allocation1 [shape = 'u32[72,128]{1,0:T(1,128)}', space=vmem, size = 0x9000, scoped, tag = 'internal scratch']
  %s0 = inlined_call_operand.vmem [shape: bf16[1,250,512], index: 0, kind: input, shape index: {}]
  %s1 = inlined_call_operand.vmem [shape: bf16[20,250], index: 1, kind: input, shape index: {}]
  %s2 = inlined_call_operand.vmem [shape: f32[20,1], index: 2, kind: input, shape index: {}]
  %s3 = inlined_call_operand.vmem [shape: f32[1,20,128], index: 3, kind: output, shape index: {0}]
  %s4 = inlined_call_operand.vmem [shape: s32[1,20,128], index: 4, kind: output, shape index: {1}]
  %5 = xla_tuple %s3, %s4
  %s6 = sld [smem:[#allocation0]]
  $region30: #{net_forward.6} parent=0
    _
  %s8 = ssub.s32 1, %s6
  %s9 = scalar_select 0, %s8, %s6
  // Predicated region
  $region2: #{net_forward.6} parent=0 // pred_check
    _
  $region3: #{net_forward.6} parent=0 // pred_check_branch
    %11 = sbr.rel (0) target = $region5
  $region4: #{net_forward.6} parent=0 // pred_region
    _
  $region5: #{net_forward.6} parent=0 // pred_fallthru
    _
  // Predicated region
  $region6: #{net_forward.6} parent=0 // pred_check
    _
  $region7: #{net_forward.6} parent=0 // pred_check_branch
    %13 = sbr.rel (0) target = $region9
  $region8: #{net_forward.6} parent=0 // pred_region
    _
  $region9: #{net_forward.6} parent=0 // pred_fallthru
    _
  // Predicated region
  $region10: #{net_forward.6} parent=0 // pred_check
    _
  $region11: #{net_forward.6} parent=0 // pred_check_branch
    %15 = sbr.rel (0) target = $region13
  $region12: #{net_forward.6} parent=0 // pred_region
    _
  $region13: #{net_forward.6} parent=0 // pred_fallthru
    _
  %v16 = vld [vmem:[%s1] sm:$0xff]
  %v17 = vld [vmem:[%s1 + $0x8] sm:$0xff]
  %v18 = vld [vmem:[%s1 + $0x10] sm:$0x33]
  %v19 = vld [vmem:[%s0] sm:$0xff]
  %v20 = vld [vmem:[%s0 + $0x8] sm:$0xff]
  %v21 = vld [vmem:[%s0 + $0x10] sm:$0xff]
  %v22 = vld [vmem:[%s0 + $0x18] sm:$0xff]
  %v23 = vld [vmem:[%s0 + $0x20] sm:$0xff]
  %v24 = vld [vmem:[%s0 + $0x28] sm:$0xff]
  %v25 = vld [vmem:[%s0 + $0x30] sm:$0xff]
  %v26 = vld [vmem:[%s0 + $0x38] sm:$0xff]
  %v27 = vld [vmem:[%s0 + $0x40] sm:$0xff]
  %v28 = vld [vmem:[%s0 + $0x48] sm:$0xff]
  %v29 = vld [vmem:[%s0 + $0x50] sm:$0xff]
  %v30 = vld [vmem:[%s0 + $0x58] sm:$0xff]
  %v31 = vld [vmem:[%s0 + $0x60] sm:$0xff]
  %v32 = vld [vmem:[%s0 + $0x68] sm:$0xff]
  %v33 = vld [vmem:[%s0 + $0x70] sm:$0xff]
  %v34 = vld [vmem:[%s0 + $0x78] sm:$0xff]
  %v35 = vld [vmem:[%s0 + $0x80] sm:$0xff]
  %v36 = vld [vmem:[%s0 + $0x88] sm:$0xff]
  %v37 = vld [vmem:[%s0 + $0x90] sm:$0xff]
  %v38 = vld [vmem:[%s0 + $0x98] sm:$0xff]
  %v39 = vld [vmem:[%s0 + $0xa0] sm:$0xff]
  %v40 = vld [vmem:[%s0 + $0xa8] sm:$0xff]
  %v41 = vld [vmem:[%s0 + $0xb0] sm:$0xff]
  %v42 = vld [vmem:[%s0 + $0xb8] sm:$0xff]
  %v43 = vld [vmem:[%s0 + $0xc0] sm:$0xff]
  %v44 = vld [vmem:[%s0 + $0xc8] sm:$0xff]
  %v45 = vld [vmem:[%s0 + $0xd0] sm:$0xff]
  %v46 = vld [vmem:[%s0 + $0xd8] sm:$0xff]
  %v47 = vld [vmem:[%s0 + $0xe0] sm:$0xff]
  %v48 = vld [vmem:[%s0 + $0xe8] sm:$0xff]
  %v49 = vld [vmem:[%s0 + $0xf0] sm:$0xff]
  %v50 = vld [vmem:[%s0 + $0xf8] sm:$0xff]
  %v51 = vld [vmem:[%s0 + $0x100] sm:$0xff]
  %v52 = vld [vmem:[%s0 + $0x108] sm:$0xff]
  %v53 = vld [vmem:[%s0 + $0x110] sm:$0xff]
  %v54 = vld [vmem:[%s0 + $0x118] sm:$0xff]
  %v55 = vld [vmem:[%s0 + $0x120] sm:$0xff]
  %v56 = vld [vmem:[%s0 + $0x128] sm:$0xff]
  %v57 = vld [vmem:[%s0 + $0x130] sm:$0xff]
  %v58 = vld [vmem:[%s0 + $0x138] sm:$0xff]
  %v59 = vld [vmem:[%s0 + $0x140] sm:$0xff]
  %v60 = vld [vmem:[%s0 + $0x148] sm:$0xff]
  %v61 = vld [vmem:[%s0 + $0x150] sm:$0xff]
  %v62 = vld [vmem:[%s0 + $0x158] sm:$0xff]
  %v63 = vld [vmem:[%s0 + $0x160] sm:$0xff]
  %v64 = vld [vmem:[%s0 + $0x168] sm:$0xff]
  %v65 = vld [vmem:[%s0 + $0x170] sm:$0xff]
  %v66 = vld [vmem:[%s0 + $0x178] sm:$0xff]
  %v67 = vld [vmem:[%s0 + $0x180] sm:$0xff]
  %v68 = vld [vmem:[%s0 + $0x188] sm:$0xff]
  %v69 = vld [vmem:[%s0 + $0x190] sm:$0xff]
  %v70 = vld [vmem:[%s0 + $0x198] sm:$0xff]
  %v71 = vld [vmem:[%s0 + $0x1a0] sm:$0xff]
  %v72 = vld [vmem:[%s0 + $0x1a8] sm:$0xff]
  %v73 = vld [vmem:[%s0 + $0x1b0] sm:$0xff]
  %v74 = vld [vmem:[%s0 + $0x1b8] sm:$0xff]
  %v75 = vld [vmem:[%s0 + $0x1c0] sm:$0xff]
  %v76 = vld [vmem:[%s0 + $0x1c8] sm:$0xff]
  %v77 = vld [vmem:[%s0 + $0x1d0] sm:$0xff]
  %v78 = vld [vmem:[%s0 + $0x1d8] sm:$0xff]
  %v79 = vld [vmem:[%s0 + $0x1e0] sm:$0xff]
  %v80 = vld [vmem:[%s0 + $0x1e8] sm:$0xff]
  %v81 = vld [vmem:[%s0 + $0x1f0] sm:$0x11]
  %v82 = vld [vmem:[%s0 + $0x1f8] sm:$0x11]
  %v86 = vunpack.c.l.b16 %v16
  %v87 = vunpack.c.h.b16 %v16
  %v88 = vunpack.c.l.b16 %v17
  %v89 = vunpack.c.h.b16 %v17
  %v90 = vunpack.c.l.b16 %v18
  %v91 = vunpack.c.h.b16 %v18
  %v92 = vpack.c.b16 %v88, %v86
  %v93 = vpack.c.b16 %v89, %v87
  %v94 = vpack.c.b16 %v90, %v90
  %v95 = vpack.c.b16 %v91, %v91
  %v162 = vunpack.c.l.b16 %v19
  %v163 = vunpack.c.h.b16 %v19
  %v164 = vunpack.c.l.b16 %v20
  %v165 = vunpack.c.h.b16 %v20
  %v166 = vunpack.c.l.b16 %v21
  %v167 = vunpack.c.h.b16 %v21
  %v168 = vunpack.c.l.b16 %v22
  %v169 = vunpack.c.h.b16 %v22
  %v170 = vunpack.c.l.b16 %v23
  %v171 = vunpack.c.h.b16 %v23
  %v172 = vunpack.c.l.b16 %v24
  %v173 = vunpack.c.h.b16 %v24
  %v174 = vunpack.c.l.b16 %v25
  %v175 = vunpack.c.h.b16 %v25
  %v176 = vunpack.c.l.b16 %v26
  %v177 = vunpack.c.h.b16 %v26
  %v178 = vunpack.c.l.b16 %v27
  %v179 = vunpack.c.h.b16 %v27
  %v180 = vunpack.c.l.b16 %v28
  %v181 = vunpack.c.h.b16 %v28
  %v182 = vunpack.c.l.b16 %v29
  %v183 = vunpack.c.h.b16 %v29
  %v184 = vunpack.c.l.b16 %v30
  %v185 = vunpack.c.h.b16 %v30
  %v186 = vunpack.c.l.b16 %v31
  %v187 = vunpack.c.h.b16 %v31
  %v188 = vunpack.c.l.b16 %v32
  %v189 = vunpack.c.h.b16 %v32
  %v190 = vunpack.c.l.b16 %v33
  %v191 = vunpack.c.h.b16 %v33
  %v192 = vunpack.c.l.b16 %v34
  %v193 = vunpack.c.h.b16 %v34
  %v194 = vunpack.c.l.b16 %v35
  %v195 = vunpack.c.h.b16 %v35
  %v196 = vunpack.c.l.b16 %v36
  %v197 = vunpack.c.h.b16 %v36
  %v198 = vunpack.c.l.b16 %v37
  %v199 = vunpack.c.h.b16 %v37
  %v200 = vunpack.c.l.b16 %v38
  %v201 = vunpack.c.h.b16 %v38
  %v202 = vunpack.c.l.b16 %v39
  %v203 = vunpack.c.h.b16 %v39
  %v204 = vunpack.c.l.b16 %v40
  %v205 = vunpack.c.h.b16 %v40
  %v206 = vunpack.c.l.b16 %v41
  %v207 = vunpack.c.h.b16 %v41
  %v208 = vunpack.c.l.b16 %v42
  %v209 = vunpack.c.h.b16 %v42
  %v210 = vunpack.c.l.b16 %v43
  %v211 = vunpack.c.h.b16 %v43
  %v212 = vunpack.c.l.b16 %v44
  %v213 = vunpack.c.h.b16 %v44
  %v214 = vunpack.c.l.b16 %v45
  %v215 = vunpack.c.h.b16 %v45
  %v216 = vunpack.c.l.b16 %v46
  %v217 = vunpack.c.h.b16 %v46
  %v218 = vunpack.c.l.b16 %v47
  %v219 = vunpack.c.h.b16 %v47
  %v220 = vunpack.c.l.b16 %v48
  %v221 = vunpack.c.h.b16 %v48
  %v222 = vunpack.c.l.b16 %v49
  %v223 = vunpack.c.h.b16 %v49
  %v224 = vunpack.c.l.b16 %v50
  %v225 = vunpack.c.h.b16 %v50
  %v226 = vunpack.c.l.b16 %v51
  %v227 = vunpack.c.h.b16 %v51
  %v228 = vunpack.c.l.b16 %v52
  %v229 = vunpack.c.h.b16 %v52
  %v230 = vunpack.c.l.b16 %v53
  %v231 = vunpack.c.h.b16 %v53
  %v232 = vunpack.c.l.b16 %v54
  %v233 = vunpack.c.h.b16 %v54
  %v234 = vunpack.c.l.b16 %v55
  %v235 = vunpack.c.h.b16 %v55
  %v236 = vunpack.c.l.b16 %v56
  %v237 = vunpack.c.h.b16 %v56
  %v238 = vunpack.c.l.b16 %v57
  %v239 = vunpack.c.h.b16 %v57
  %v240 = vunpack.c.l.b16 %v58
  %v241 = vunpack.c.h.b16 %v58
  %v242 = vunpack.c.l.b16 %v59
  %v243 = vunpack.c.h.b16 %v59
  %v244 = vunpack.c.l.b16 %v60
  %v245 = vunpack.c.h.b16 %v60
  %v246 = vunpack.c.l.b16 %v61
  %v247 = vunpack.c.h.b16 %v61
  %v248 = vunpack.c.l.b16 %v62
  %v249 = vunpack.c.h.b16 %v62
  %v250 = vunpack.c.l.b16 %v63
  %v251 = vunpack.c.h.b16 %v63
  %v252 = vunpack.c.l.b16 %v64
  %v253 = vunpack.c.h.b16 %v64
  %v254 = vunpack.c.l.b16 %v65
  %v255 = vunpack.c.h.b16 %v65
  %v256 = vunpack.c.l.b16 %v66
  %v257 = vunpack.c.h.b16 %v66
  %v258 = vunpack.c.l.b16 %v67
  %v259 = vunpack.c.h.b16 %v67
  %v260 = vunpack.c.l.b16 %v68
  %v261 = vunpack.c.h.b16 %v68
  %v262 = vunpack.c.l.b16 %v69
  %v263 = vunpack.c.h.b16 %v69
  %v264 = vunpack.c.l.b16 %v70
  %v265 = vunpack.c.h.b16 %v70
  %v266 = vunpack.c.l.b16 %v71
  %v267 = vunpack.c.h.b16 %v71
  %v268 = vunpack.c.l.b16 %v72
  %v269 = vunpack.c.h.b16 %v72
  %v270 = vunpack.c.l.b16 %v73
  %v271 = vunpack.c.h.b16 %v73
  %v272 = vunpack.c.l.b16 %v74
  %v273 = vunpack.c.h.b16 %v74
  %v274 = vunpack.c.l.b16 %v75
  %v275 = vunpack.c.h.b16 %v75
  %v276 = vunpack.c.l.b16 %v76
  %v277 = vunpack.c.h.b16 %v76
  %v278 = vunpack.c.l.b16 %v77
  %v279 = vunpack.c.h.b16 %v77
  %v280 = vunpack.c.l.b16 %v78
  %v281 = vunpack.c.h.b16 %v78
  %v282 = vunpack.c.l.b16 %v79
  %v283 = vunpack.c.h.b16 %v79
  %v284 = vunpack.c.l.b16 %v80
  %v285 = vunpack.c.h.b16 %v80
  %v286 = vunpack.c.l.b16 %v81
  %v287 = vunpack.c.h.b16 %v81
  %v288 = vunpack.c.l.b16 %v82
  %v289 = vunpack.c.h.b16 %v82
  %v290 = vpack.c.b16 %v166, %v162
  %v291 = vpack.c.b16 %v167, %v163
  %v292 = vpack.c.b16 %v168, %v164
  %v293 = vpack.c.b16 %v169, %v165
  %v294 = vpack.c.b16 %v174, %v170
  %v295 = vpack.c.b16 %v175, %v171
  %v296 = vpack.c.b16 %v176, %v172
  %v297 = vpack.c.b16 %v177, %v173
  %v298 = vpack.c.b16 %v182, %v178
  %v299 = vpack.c.b16 %v183, %v179
  %v300 = vpack.c.b16 %v184, %v180
  %v301 = vpack.c.b16 %v185, %v181
  %v302 = vpack.c.b16 %v190, %v186
  %v303 = vpack.c.b16 %v191, %v187
  %v304 = vpack.c.b16 %v192, %v188
  %v305 = vpack.c.b16 %v193, %v189
  %v306 = vpack.c.b16 %v198, %v194
  %v307 = vpack.c.b16 %v199, %v195
  %v308 = vpack.c.b16 %v200, %v196
  %v309 = vpack.c.b16 %v201, %v197
  %v310 = vpack.c.b16 %v206, %v202
  %v311 = vpack.c.b16 %v207, %v203
  %v312 = vpack.c.b16 %v208, %v204
  %v313 = vpack.c.b16 %v209, %v205
  %v314 = vpack.c.b16 %v214, %v210
  %v315 = vpack.c.b16 %v215, %v211
  %v316 = vpack.c.b16 %v216, %v212
  %v317 = vpack.c.b16 %v217, %v213
  %v318 = vpack.c.b16 %v222, %v218
  %v319 = vpack.c.b16 %v223, %v219
  %v320 = vpack.c.b16 %v224, %v220
  %v321 = vpack.c.b16 %v225, %v221
  %v322 = vpack.c.b16 %v230, %v226
  %v323 = vpack.c.b16 %v231, %v227
  %v324 = vpack.c.b16 %v232, %v228
  %v325 = vpack.c.b16 %v233, %v229
  %v326 = vpack.c.b16 %v238, %v234
  %v327 = vpack.c.b16 %v239, %v235
  %v328 = vpack.c.b16 %v240, %v236
  %v329 = vpack.c.b16 %v241, %v237
  %v330 = vpack.c.b16 %v246, %v242
  %v331 = vpack.c.b16 %v247, %v243
  %v332 = vpack.c.b16 %v248, %v244
  %v333 = vpack.c.b16 %v249, %v245
  %v334 = vpack.c.b16 %v254, %v250
  %v335 = vpack.c.b16 %v255, %v251
  %v336 = vpack.c.b16 %v256, %v252
  %v337 = vpack.c.b16 %v257, %v253
  %v338 = vpack.c.b16 %v262, %v258
  %v339 = vpack.c.b16 %v263, %v259
  %v340 = vpack.c.b16 %v264, %v260
  %v341 = vpack.c.b16 %v265, %v261
  %v342 = vpack.c.b16 %v270, %v266
  %v343 = vpack.c.b16 %v271, %v267
  %v344 = vpack.c.b16 %v272, %v268
  %v345 = vpack.c.b16 %v273, %v269
  %v346 = vpack.c.b16 %v278, %v274
  %v347 = vpack.c.b16 %v279, %v275
  %v348 = vpack.c.b16 %v280, %v276
  %v349 = vpack.c.b16 %v281, %v277
  %v350 = vpack.c.b16 %v286, %v282
  %v351 = vpack.c.b16 %v287, %v283
  %v352 = vpack.c.b16 %v288, %v284
  %v353 = vpack.c.b16 %v289, %v285
  %vm414 = vcmask 998400
  %v416 = vsel %vm414, %v93, 0
  %v419 = vsel %vm414, %v95, 0
  %vm421 = vcmask 1044480
  %v423 = vsel %vm421, %v350, 0
  %v426 = vsel %vm421, %v351, 0
  %v429 = vsel %vm421, %v352, 0
  %v432 = vsel %vm421, %v353, 0
  %434 = vmatpush.bf16.msra.mxu0 %v318
  %435 = vmatpush.bf16.msra.mxu0 %v314
  %436 = vmatpush.bf16.msra.mxu0 %v310
  %437 = vmatpush.bf16.msra.mxu0 %v306
  %438 = vmatpush.bf16.msra.mxu0 %v302
  %439 = vmatpush.bf16.msra.mxu0 %v298
  %440 = vmatpush.bf16.msra.mxu0 %v294
  %441 = vmatpush.bf16.msra.mxu0 %v290
  %442 = vmatmul.bf16.gmra.mxu0 %v92
  %v443 = vpop.f32.mrf.mxu0
  %v444 = vadd.f32 0.0, %v443
  %v445 = vpop.f32.mrf.mxu0
  %v446 = vadd.f32 0.0, %v445
  %447 = vmatmul.bf16.gmra.mxu0 %v94
  %v448 = vpop.f32.mrf.mxu0
  %v449 = vadd.f32 0.0, %v448
  %v450 = vpop.f32.mrf.mxu0
  %451 = vdwg.mxu0
  %452 = vmatpush.bf16.msra.mxu0 %v423
  %453 = vmatpush.bf16.msra.mxu0 %v346
  %454 = vmatpush.bf16.msra.mxu0 %v342
  %455 = vmatpush.bf16.msra.mxu0 %v338
  %456 = vmatpush.bf16.msra.mxu0 %v334
  %457 = vmatpush.bf16.msra.mxu0 %v330
  %458 = vmatpush.bf16.msra.mxu0 %v326
  %459 = vmatpush.bf16.msra.mxu0 %v322
  %460 = vmatmul.bf16.gmra.mxu0 %v416
  %v461 = vpop.f32.mrf.mxu0
  %v462 = vadd.f32 %v444, %v461
  %v463 = vpop.f32.mrf.mxu0
  %v464 = vadd.f32 %v446, %v463
  %465 = vmatmul.bf16.gmra.mxu0 %v419
  %v466 = vpop.f32.mrf.mxu0
  %v467 = vadd.f32 %v449, %v466
  %v468 = vpop.f32.mrf.mxu0
  %469 = vdwg.mxu0
  %470 = vmatpush.bf16.msra.mxu0 %v319
  %471 = vmatpush.bf16.msra.mxu0 %v315
  %472 = vmatpush.bf16.msra.mxu0 %v311
  %473 = vmatpush.bf16.msra.mxu0 %v307
  %474 = vmatpush.bf16.msra.mxu0 %v303
  %475 = vmatpush.bf16.msra.mxu0 %v299
  %476 = vmatpush.bf16.msra.mxu0 %v295
  %477 = vmatpush.bf16.msra.mxu0 %v291
  %478 = vmatmul.bf16.gmra.mxu0 %v92
  %v479 = vpop.f32.mrf.mxu0
  %v480 = vadd.f32 0.0, %v479
  %v481 = vpop.f32.mrf.mxu0
  %v482 = vadd.f32 0.0, %v481
  %483 = vmatmul.bf16.gmra.mxu0 %v94
  %v484 = vpop.f32.mrf.mxu0
  %v485 = vadd.f32 0.0, %v484
  %v486 = vpop.f32.mrf.mxu0
  %487 = vdwg.mxu0
  %488 = vmatpush.bf16.msra.mxu0 %v426
  %489 = vmatpush.bf16.msra.mxu0 %v347
  %490 = vmatpush.bf16.msra.mxu0 %v343
  %491 = vmatpush.bf16.msra.mxu0 %v339
  %492 = vmatpush.bf16.msra.mxu0 %v335
  %493 = vmatpush.bf16.msra.mxu0 %v331
  %494 = vmatpush.bf16.msra.mxu0 %v327
  %495 = vmatpush.bf16.msra.mxu0 %v323
  %496 = vmatmul.bf16.gmra.mxu0 %v416
  %v497 = vpop.f32.mrf.mxu0
  %v498 = vadd.f32 %v480, %v497
  %v499 = vpop.f32.mrf.mxu0
  %v500 = vadd.f32 %v482, %v499
  %501 = vmatmul.bf16.gmra.mxu0 %v419
  %v502 = vpop.f32.mrf.mxu0
  %v503 = vadd.f32 %v485, %v502
  %v504 = vpop.f32.mrf.mxu0
  %505 = vdwg.mxu0
  %506 = vmatpush.bf16.msra.mxu0 %v320
  %507 = vmatpush.bf16.msra.mxu0 %v316
  %508 = vmatpush.bf16.msra.mxu0 %v312
  %509 = vmatpush.bf16.msra.mxu0 %v308
  %510 = vmatpush.bf16.msra.mxu0 %v304
  %511 = vmatpush.bf16.msra.mxu0 %v300
  %512 = vmatpush.bf16.msra.mxu0 %v296
  %513 = vmatpush.bf16.msra.mxu0 %v292
  %514 = vmatmul.bf16.gmra.mxu0 %v92
  %v515 = vpop.f32.mrf.mxu0
  %v516 = vadd.f32 0.0, %v515
  %v517 = vpop.f32.mrf.mxu0
  %v518 = vadd.f32 0.0, %v517
  %519 = vmatmul.bf16.gmra.mxu0 %v94
  %v520 = vpop.f32.mrf.mxu0
  %v521 = vadd.f32 0.0, %v520
  %v522 = vpop.f32.mrf.mxu0
  %523 = vdwg.mxu0
  %524 = vmatpush.bf16.msra.mxu0 %v429
  %525 = vmatpush.bf16.msra.mxu0 %v348
  %526 = vmatpush.bf16.msra.mxu0 %v344
  %527 = vmatpush.bf16.msra.mxu0 %v340
  %528 = vmatpush.bf16.msra.mxu0 %v336
  %529 = vmatpush.bf16.msra.mxu0 %v332
  %530 = vmatpush.bf16.msra.mxu0 %v328
  %531 = vmatpush.bf16.msra.mxu0 %v324
  %532 = vmatmul.bf16.gmra.mxu0 %v416
  %v533 = vpop.f32.mrf.mxu0
  %v534 = vadd.f32 %v516, %v533
  %v535 = vpop.f32.mrf.mxu0
  %v536 = vadd.f32 %v518, %v535
  %537 = vmatmul.bf16.gmra.mxu0 %v419
  %v538 = vpop.f32.mrf.mxu0
  %v539 = vadd.f32 %v521, %v538
  %v540 = vpop.f32.mrf.mxu0
  %541 = vdwg.mxu0
  %542 = vmatpush.bf16.msra.mxu0 %v321
  %543 = vmatpush.bf16.msra.mxu0 %v317
  %544 = vmatpush.bf16.msra.mxu0 %v313
  %545 = vmatpush.bf16.msra.mxu0 %v309
  %546 = vmatpush.bf16.msra.mxu0 %v305
  %547 = vmatpush.bf16.msra.mxu0 %v301
  %548 = vmatpush.bf16.msra.mxu0 %v297
  %549 = vmatpush.bf16.msra.mxu0 %v293
  %550 = vmatmul.bf16.gmra.mxu0 %v92
  %v551 = vpop.f32.mrf.mxu0
  %v552 = vadd.f32 0.0, %v551
  %v553 = vpop.f32.mrf.mxu0
  %v554 = vadd.f32 0.0, %v553
  %555 = vmatmul.bf16.gmra.mxu0 %v94
  %v556 = vpop.f32.mrf.mxu0
  %v557 = vadd.f32 0.0, %v556
  %v558 = vpop.f32.mrf.mxu0
  %559 = vdwg.mxu0
  %560 = vmatpush.bf16.msra.mxu0 %v432
  %561 = vmatpush.bf16.msra.mxu0 %v349
  %562 = vmatpush.bf16.msra.mxu0 %v345
  %563 = vmatpush.bf16.msra.mxu0 %v341
  %564 = vmatpush.bf16.msra.mxu0 %v337
  %565 = vmatpush.bf16.msra.mxu0 %v333
  %566 = vmatpush.bf16.msra.mxu0 %v329
  %567 = vmatpush.bf16.msra.mxu0 %v325
  %568 = vmatmul.bf16.gmra.mxu0 %v416
  %v569 = vpop.f32.mrf.mxu0
  %v570 = vadd.f32 %v552, %v569
  %v571 = vpop.f32.mrf.mxu0
  %v572 = vadd.f32 %v554, %v571
  %573 = vmatmul.bf16.gmra.mxu0 %v419
  %v574 = vpop.f32.mrf.mxu0
  %v575 = vadd.f32 %v557, %v574
  %v576 = vpop.f32.mrf.mxu0
  %577 = vdwg.mxu0
  %v578 = vmax.f32 %v462, %v498
  %v579 = vmax.f32 %v464, %v500
  %v580 = vmax.f32 %v467, %v503
  %vm581 = vcmp.ge.f32.partialorder %v462, %v498
  %vm582 = vcmp.ge.f32.partialorder %v464, %v500
  %vm583 = vcmp.ge.f32.partialorder %v467, %v503
  %v584 = vsel %vm581, 0, 1
  %v585 = vsel %vm582, 0, 1
  %v586 = vsel %vm583, 0, 1
  %v587 = vmax.f32 %v534, %v570
  %v588 = vmax.f32 %v536, %v572
  %v589 = vmax.f32 %v539, %v575
  %vm590 = vcmp.ge.f32.partialorder %v534, %v570
  %vm591 = vcmp.ge.f32.partialorder %v536, %v572
  %vm592 = vcmp.ge.f32.partialorder %v539, %v575
  %v593 = vsel %vm590, 2, 3
  %v594 = vsel %vm591, 2, 3
  %v595 = vsel %vm592, 2, 3
  %v596 = vmax.f32 %v578, %v587
  %v597 = vmax.f32 %v579, %v588
  %v598 = vmax.f32 %v580, %v589
  %vm599 = vcmp.ge.f32.partialorder %v578, %v587
  %vm600 = vcmp.ge.f32.partialorder %v579, %v588
  %vm601 = vcmp.ge.f32.partialorder %v580, %v589
  %v602 = vsel %vm599, %v584, %v593
  %v603 = vsel %vm600, %v585, %v594
  %v604 = vsel %vm601, %v586, %v595
  %v605 = vld [vmem:[%s2] sm:$0xff]
  %v606 = vld [vmem:[%s2 + $0x8] sm:$0xff]
  %v607 = vld [vmem:[%s2 + $0x10] sm:$0xf]
  %609 = vset.pattern.permute.xlu0 0
  %610 = vperm.xlu0 %609, %v605
  %v611 = vpop.permute.xlu0 %610
  %614 = vset.pattern.permute.xlu0 0
  %615 = vperm.xlu0 %614, %v606
  %v616 = vpop.permute.xlu0 %615
  %619 = vset.pattern.permute.xlu0 0
  %620 = vperm.xlu0 %619, %v607
  %v621 = vpop.permute.xlu0 %620
  %v623 = vadd.f32 %v596, %v611
  %v624 = vadd.f32 %v597, %v616
  %v625 = vadd.f32 %v598, %v621
  %v626 = vmax.f32 %v623, 0.0
  %v627 = vmax.f32 %v624, 0.0
  %v628 = vmax.f32 %v625, 0.0
  %629 = vst [vmem:[%s3] sm:$0xff] %v626
  %630 = vst [vmem:[%s3 + $0x8] sm:$0xff] %v627
  %631 = vst [vmem:[%s3 + $0x10] sm:$0xf] %v628
  %632 = vst [vmem:[%s4] sm:$0xff] %v602
  %633 = vst [vmem:[%s4 + $0x8] sm:$0xff] %v603
  %634 = vst [vmem:[%s4 + $0x10] sm:$0xf] %v604
  // Predicated region
  $region14: #{net_forward.6} parent=0 // pred_check
    _
  $region15: #{net_forward.6} parent=0 // pred_check_branch
    %636 = sbr.rel (0) target = $region17
  $region16: #{net_forward.6} parent=0 // pred_region
    _
  $region17: #{net_forward.6} parent=0 // pred_fallthru
    _
  // Predicated region
  $region18: #{net_forward.6} parent=0 // pred_check
    _
  $region19: #{net_forward.6} parent=0 // pred_check_branch
    %638 = sbr.rel (0) target = $region21
  $region20: #{net_forward.6} parent=0 // pred_region
    _
  $region21: #{net_forward.6} parent=0 // pred_fallthru
    _
  // Predicated region
  $region22: #{net_forward.6} parent=0 // pred_check
    _
  $region23: #{net_forward.6} parent=0 // pred_check_branch
    %640 = sbr.rel (0) target = $region25
  $region24: #{net_forward.6} parent=0 // pred_region
    _
  $region25: #{net_forward.6} parent=0 // pred_fallthru
    _
  // Predicated region
  $region26: #{net_forward.6} parent=0 // pred_check
    _
  $region27: #{net_forward.6} parent=0 // pred_check_branch
    %642 = sbr.rel (0) target = $region29
  $region28: #{net_forward.6} parent=0 // pred_region
    _
  $region29: #{net_forward.6} parent=0 // pred_fallthru
    _

// kernel: net_forward.7
$region0: #{net_forward.7}
  #allocation0 [shape = 'u32[]', space=smem, size = 0x4, offset = 0x4, fixed_abs, tag = 'smem constant byte address 0x4 - core index']
  #allocation1 [shape = 'u32[72,128]{1,0:T(1,128)}', space=vmem, size = 0x9000, scoped, tag = 'internal scratch']
  %s0 = inlined_call_operand.vmem [shape: f32[8,320], index: 0, kind: input, shape index: {}]
  %s1 = inlined_call_operand.vmem [shape: f32[320,50], index: 1, kind: input, shape index: {}]
  %s2 = inlined_call_operand.vmem [shape: f32[1,50], index: 2, kind: input, shape index: {}]
  %s3 = inlined_call_operand.vmem [shape: f32[50,10], index: 3, kind: input, shape index: {}]
  %s4 = inlined_call_operand.vmem [shape: f32[1,10], index: 4, kind: input, shape index: {}]
  %s5 = inlined_call_operand.vmem [shape: f32[10,50], index: 5, kind: input, shape index: {}]
  %s6 = inlined_call_operand.vmem [shape: f32[1,50], index: 6, kind: input, shape index: {}]
  %s7 = inlined_call_operand.vmem [shape: f32[50,320], index: 7, kind: input, shape index: {}]
  %s8 = inlined_call_operand.vmem [shape: f32[1,320], index: 8, kind: input, shape index: {}]
  %s9 = inlined_call_operand.vmem [shape: f32[8,320], index: 9, kind: output, shape index: {}]
  %s10 = sld [smem:[#allocation0]]
  $region46: #{net_forward.7} parent=0
    _
  %s12 = ssub.s32 1, %s10
  %s13 = scalar_select 0, %s12, %s10
  // Predicated region
  $region2: #{net_forward.7} parent=0 // pred_check
    _
  $region3: #{net_forward.7} parent=0 // pred_check_branch
    %15 = sbr.rel (0) target = $region5
  $region4: #{net_forward.7} parent=0 // pred_region
    _
  $region5: #{net_forward.7} parent=0 // pred_fallthru
    _
  // Predicated region
  $region6: #{net_forward.7} parent=0 // pred_check
    _
  $region7: #{net_forward.7} parent=0 // pred_check_branch
    %17 = sbr.rel (0) target = $region9
  $region8: #{net_forward.7} parent=0 // pred_region
    _
  $region9: #{net_forward.7} parent=0 // pred_fallthru
    _
  // Predicated region
  $region10: #{net_forward.7} parent=0 // pred_check
    _
  $region11: #{net_forward.7} parent=0 // pred_check_branch
    %19 = sbr.rel (0) target = $region13
  $region12: #{net_forward.7} parent=0 // pred_region
    _
  $region13: #{net_forward.7} parent=0 // pred_fallthru
    _
  // Predicated region
  $region14: #{net_forward.7} parent=0 // pred_check
    _
  $region15: #{net_forward.7} parent=0 // pred_check_branch
    %21 = sbr.rel (0) target = $region17
  $region16: #{net_forward.7} parent=0 // pred_region
    _
  $region17: #{net_forward.7} parent=0 // pred_fallthru
    _
  // Predicated region
  $region18: #{net_forward.7} parent=0 // pred_check
    _
  $region19: #{net_forward.7} parent=0 // pred_check_branch
    %23 = sbr.rel (0) target = $region21
  $region20: #{net_forward.7} parent=0 // pred_region
    _
  $region21: #{net_forward.7} parent=0 // pred_fallthru
    _
  // Predicated region
  $region22: #{net_forward.7} parent=0 // pred_check
    _
  $region23: #{net_forward.7} parent=0 // pred_check_branch
    %25 = sbr.rel (0) target = $region25
  $region24: #{net_forward.7} parent=0 // pred_region
    _
  $region25: #{net_forward.7} parent=0 // pred_fallthru
    _
  // Predicated region
  $region26: #{net_forward.7} parent=0 // pred_check
    _
  $region27: #{net_forward.7} parent=0 // pred_check_branch
    %27 = sbr.rel (0) target = $region29
  $region28: #{net_forward.7} parent=0 // pred_region
    _
  $region29: #{net_forward.7} parent=0 // pred_fallthru
    _
  // Predicated region
  $region30: #{net_forward.7} parent=0 // pred_check
    _
  $region31: #{net_forward.7} parent=0 // pred_check_branch
    %29 = sbr.rel (0) target = $region33
  $region32: #{net_forward.7} parent=0 // pred_region
    _
  $region33: #{net_forward.7} parent=0 // pred_fallthru
    _
  // Predicated region
  $region34: #{net_forward.7} parent=0 // pred_check
    _
  $region35: #{net_forward.7} parent=0 // pred_check_branch
    %31 = sbr.rel (0) target = $region37
  $region36: #{net_forward.7} parent=0 // pred_region
    _
  $region37: #{net_forward.7} parent=0 // pred_fallthru
    _
  %v32 = vld [vmem:[%s0] sm:$0xff]
  %v33 = vld [vmem:[%s0 + $0x8] sm:$0xff]
  %v34 = vld [vmem:[%s0 + $0x10] sm:$0xff]
  %v35 = vld [vmem:[%s1] sm:$0xff]
  %v36 = vld [vmem:[%s1 + $0x8] sm:$0xff]
  %v37 = vld [vmem:[%s1 + $0x10] sm:$0xff]
  %v38 = vld [vmem:[%s1 + $0x18] sm:$0xff]
  %v39 = vld [vmem:[%s1 + $0x20] sm:$0xff]
  %v40 = vld [vmem:[%s1 + $0x28] sm:$0xff]
  %v41 = vld [vmem:[%s1 + $0x30] sm:$0xff]
  %v42 = vld [vmem:[%s1 + $0x38] sm:$0xff]
  %v43 = vld [vmem:[%s1 + $0x40] sm:$0xff]
  %v44 = vld [vmem:[%s1 + $0x48] sm:$0xff]
  %v45 = vld [vmem:[%s1 + $0x50] sm:$0xff]
  %v46 = vld [vmem:[%s1 + $0x58] sm:$0xff]
  %v47 = vld [vmem:[%s1 + $0x60] sm:$0xff]
  %v48 = vld [vmem:[%s1 + $0x68] sm:$0xff]
  %v49 = vld [vmem:[%s1 + $0x70] sm:$0xff]
  %v50 = vld [vmem:[%s1 + $0x78] sm:$0xff]
  %v51 = vld [vmem:[%s1 + $0x80] sm:$0xff]
  %v52 = vld [vmem:[%s1 + $0x88] sm:$0xff]
  %v53 = vld [vmem:[%s1 + $0x90] sm:$0xff]
  %v54 = vld [vmem:[%s1 + $0x98] sm:$0xff]
  %v55 = vld [vmem:[%s1 + $0xa0] sm:$0xff]
  %v56 = vld [vmem:[%s1 + $0xa8] sm:$0xff]
  %v57 = vld [vmem:[%s1 + $0xb0] sm:$0xff]
  %v58 = vld [vmem:[%s1 + $0xb8] sm:$0xff]
  %v59 = vld [vmem:[%s1 + $0xc0] sm:$0xff]
  %v60 = vld [vmem:[%s1 + $0xc8] sm:$0xff]
  %v61 = vld [vmem:[%s1 + $0xd0] sm:$0xff]
  %v62 = vld [vmem:[%s1 + $0xd8] sm:$0xff]
  %v63 = vld [vmem:[%s1 + $0xe0] sm:$0xff]
  %v64 = vld [vmem:[%s1 + $0xe8] sm:$0xff]
  %v65 = vld [vmem:[%s1 + $0xf0] sm:$0xff]
  %v66 = vld [vmem:[%s1 + $0xf8] sm:$0xff]
  %v67 = vld [vmem:[%s1 + $0x100] sm:$0xff]
  %v68 = vld [vmem:[%s1 + $0x108] sm:$0xff]
  %v69 = vld [vmem:[%s1 + $0x110] sm:$0xff]
  %v70 = vld [vmem:[%s1 + $0x118] sm:$0xff]
  %v71 = vld [vmem:[%s1 + $0x120] sm:$0xff]
  %v72 = vld [vmem:[%s1 + $0x128] sm:$0xff]
  %v73 = vld [vmem:[%s1 + $0x130] sm:$0xff]
  %v74 = vld [vmem:[%s1 + $0x138] sm:$0xff]
  %v75 = vld [vmem:[%s2] sm:$0x1]
  %v77 = vperm.slane %v75, 0
  %vm79 = vcmask 523264
  %v81 = vsel %vm79, %v34, 0
  %83 = vmatpush.msra.mxu0 %v50
  %84 = vmatpush.msra.mxu0 %v49
  %85 = vmatpush.msra.mxu0 %v48
  %86 = vmatpush.msra.mxu0 %v47
  %87 = vmatpush.msra.mxu0 %v46
  %88 = vmatpush.msra.mxu0 %v45
  %89 = vmatpush.msra.mxu0 %v44
  %90 = vmatpush.msra.mxu0 %v43
  %91 = vmatpush.msra.mxu0 %v42
  %92 = vmatpush.msra.mxu0 %v41
  %93 = vmatpush.msra.mxu0 %v40
  %94 = vmatpush.msra.mxu0 %v39
  %95 = vmatpush.msra.mxu0 %v38
  %96 = vmatpush.msra.mxu0 %v37
  %97 = vmatpush.msra.mxu0 %v36
  %98 = vmatpush.msra.mxu0 %v35
  %99 = vmatmul.f32.gmra.mxu0 %v32
  %v100 = vpop.f32.mrf.mxu0
  %v101 = vadd.f32 %v77, %v100
  %102 = vdwg.mxu0
  %103 = vmatpush.msra.mxu0 %v66
  %104 = vmatpush.msra.mxu0 %v65
  %105 = vmatpush.msra.mxu0 %v64
  %106 = vmatpush.msra.mxu0 %v63
  %107 = vmatpush.msra.mxu0 %v62
  %108 = vmatpush.msra.mxu0 %v61
  %109 = vmatpush.msra.mxu0 %v60
  %110 = vmatpush.msra.mxu0 %v59
  %111 = vmatpush.msra.mxu0 %v58
  %112 = vmatpush.msra.mxu0 %v57
  %113 = vmatpush.msra.mxu0 %v56
  %114 = vmatpush.msra.mxu0 %v55
  %115 = vmatpush.msra.mxu0 %v54
  %116 = vmatpush.msra.mxu0 %v53
  %117 = vmatpush.msra.mxu0 %v52
  %118 = vmatpush.msra.mxu0 %v51
  %119 = vmatmul.f32.gmra.mxu0 %v33
  %v120 = vpop.f32.mrf.mxu0
  %v121 = vadd.f32 %v101, %v120
  %122 = vdwg.mxu0
  %123 = vmatpush.msra.mxu0 0.0
  %124 = vmatpush.msra.mxu0 0.0
  %125 = vmatpush.msra.mxu0 0.0
  %126 = vmatpush.msra.mxu0 0.0
  %127 = vmatpush.msra.mxu0 0.0
  %128 = vmatpush.msra.mxu0 0.0
  %129 = vmatpush.msra.mxu0 0.0
  %130 = vmatpush.msra.mxu0 0.0
  %131 = vmatpush.msra.mxu0 %v74
  %132 = vmatpush.msra.mxu0 %v73
  %133 = vmatpush.msra.mxu0 %v72
  %134 = vmatpush.msra.mxu0 %v71
  %135 = vmatpush.msra.mxu0 %v70
  %136 = vmatpush.msra.mxu0 %v69
  %137 = vmatpush.msra.mxu0 %v68
  %138 = vmatpush.msra.mxu0 %v67
  %139 = vmatmul.f32.gmra.mxu0 %v81
  %v140 = vpop.f32.mrf.mxu0
  %v141 = vadd.f32 %v121, %v140
  %142 = vdwg.mxu0
  %v143 = vmax.f32 %v141, 0.0
  %v144 = vld [vmem:[%s3] sm:$0xff]
  %v145 = vld [vmem:[%s3 + $0x8] sm:$0xff]
  %v146 = vld [vmem:[%s3 + $0x10] sm:$0xff]
  %v147 = vld [vmem:[%s3 + $0x18] sm:$0xff]
  %v148 = vld [vmem:[%s3 + $0x20] sm:$0xff]
  %v149 = vld [vmem:[%s3 + $0x28] sm:$0xff]
  %v150 = vld [vmem:[%s3 + $0x30] sm:$0x3]
  %v151 = vld [vmem:[%s4] sm:$0x1]
  %v153 = vperm.slane %v151, 0
  %vm155 = vcmask 408576
  %v157 = vsel %vm155, %v143, 0
  %vm159 = vcmask 1041408
  %v161 = vsel %vm159, %v150, 0
  %163 = vmatpush.msra.mxu0 0.0
  %164 = vmatpush.msra.mxu0 0.0
  %165 = vmatpush.msra.mxu0 0.0
  %166 = vmatpush.msra.mxu0 0.0
  %167 = vmatpush.msra.mxu0 0.0
  %168 = vmatpush.msra.mxu0 0.0
  %169 = vmatpush.msra.mxu0 0.0
  %170 = vmatpush.msra.mxu0 0.0
  %171 = vmatpush.msra.mxu0 0.0
  %172 = vmatpush.msra.mxu0 %v161
  %173 = vmatpush.msra.mxu0 %v149
  %174 = vmatpush.msra.mxu0 %v148
  %175 = vmatpush.msra.mxu0 %v147
  %176 = vmatpush.msra.mxu0 %v146
  %177 = vmatpush.msra.mxu0 %v145
  %178 = vmatpush.msra.mxu0 %v144
  %179 = vmatmul.f32.gmra.mxu0 %v157
  %v180 = vpop.f32.mrf.mxu0
  %v181 = vadd.f32 %v153, %v180
  %182 = vdwg.mxu0
  %v183 = vmax.f32 %v181, 0.0
  %v184 = vld [vmem:[%s5] sm:$0xff]
  %v185 = vld [vmem:[%s5 + $0x8] sm:$0x3]
  %v186 = vld [vmem:[%s6] sm:$0x1]
  %v188 = vperm.slane %v186, 0
  %vm190 = vcmask 80896
  %v192 = vsel %vm190, %v183, 0
  %v195 = vsel %vm159, %v185, 0
  %197 = vmatpush.msra.mxu0 0.0
  %198 = vmatpush.msra.mxu0 0.0
  %199 = vmatpush.msra.mxu0 0.0
  %200 = vmatpush.msra.mxu0 0.0
  %201 = vmatpush.msra.mxu0 0.0
  %202 = vmatpush.msra.mxu0 0.0
  %203 = vmatpush.msra.mxu0 0.0
  %204 = vmatpush.msra.mxu0 0.0
  %205 = vmatpush.msra.mxu0 0.0
  %206 = vmatpush.msra.mxu0 0.0
  %207 = vmatpush.msra.mxu0 0.0
  %208 = vmatpush.msra.mxu0 0.0
  %209 = vmatpush.msra.mxu0 0.0
  %210 = vmatpush.msra.mxu0 0.0
  %211 = vmatpush.msra.mxu0 %v195
  %212 = vmatpush.msra.mxu0 %v184
  %213 = vmatmul.f32.gmra.mxu0 %v192
  %v214 = vpop.f32.mrf.mxu0
  %v215 = vadd.f32 %v188, %v214
  %216 = vdwg.mxu0
  %v217 = vld [vmem:[%s7] sm:$0xff]
  %v218 = vld [vmem:[%s7 + $0x8] sm:$0xff]
  %v219 = vld [vmem:[%s7 + $0x10] sm:$0xff]
  %v220 = vld [vmem:[%s7 + $0x18] sm:$0xff]
  %v221 = vld [vmem:[%s7 + $0x20] sm:$0xff]
  %v222 = vld [vmem:[%s7 + $0x28] sm:$0xff]
  %v223 = vld [vmem:[%s7 + $0x30] sm:$0xff]
  %v224 = vld [vmem:[%s7 + $0x38] sm:$0xff]
  %v225 = vld [vmem:[%s7 + $0x40] sm:$0xff]
  %v226 = vld [vmem:[%s7 + $0x48] sm:$0xff]
  %v227 = vld [vmem:[%s7 + $0x50] sm:$0xff]
  %v228 = vld [vmem:[%s7 + $0x58] sm:$0xff]
  %v229 = vld [vmem:[%s7 + $0x60] sm:$0xff]
  %v230 = vld [vmem:[%s7 + $0x68] sm:$0xff]
  %v231 = vld [vmem:[%s7 + $0x70] sm:$0xff]
  %v232 = vld [vmem:[%s7 + $0x78] sm:$0xff]
  %v233 = vld [vmem:[%s7 + $0x80] sm:$0xff]
  %v234 = vld [vmem:[%s7 + $0x88] sm:$0xff]
  %v235 = vld [vmem:[%s7 + $0x90] sm:$0x3]
  %v236 = vld [vmem:[%s7 + $0x98] sm:$0x3]
  %v237 = vld [vmem:[%s7 + $0xa0] sm:$0x3]
  %v238 = vld [vmem:[%s8] sm:$0x7]
  %v240 = vperm.slane %v238, 0
  %v241 = vperm.slane %v238, 1
  %v242 = vperm.slane %v238, 2
  %v247 = vsel %vm155, %v215, 0
  %v250 = vsel %vm159, %v235, 0
  %v253 = vsel %vm159, %v236, 0
  %v256 = vsel %vm159, %v237, 0
  %258 = vmatpush.msra.mxu0 0.0
  %259 = vmatpush.msra.mxu0 0.0
  %260 = vmatpush.msra.mxu0 0.0
  %261 = vmatpush.msra.mxu0 0.0
  %262 = vmatpush.msra.mxu0 0.0
  %263 = vmatpush.msra.mxu0 0.0
  %264 = vmatpush.msra.mxu0 0.0
  %265 = vmatpush.msra.mxu0 0.0
  %266 = vmatpush.msra.mxu0 0.0
  %267 = vmatpush.msra.mxu0 %v250
  %268 = vmatpush.msra.mxu0 %v232
  %269 = vmatpush.msra.mxu0 %v229
  %270 = vmatpush.msra.mxu0 %v226
  %271 = vmatpush.msra.mxu0 %v223
  %272 = vmatpush.msra.mxu0 %v220
  %273 = vmatpush.msra.mxu0 %v217
  %274 = vmatmul.f32.gmra.mxu0 %v247
  %v275 = vpop.f32.mrf.mxu0
  %v276 = vadd.f32 %v240, %v275
  %277 = vdwg.mxu0
  %278 = vmatpush.msra.mxu0 0.0
  %279 = vmatpush.msra.mxu0 0.0
  %280 = vmatpush.msra.mxu0 0.0
  %281 = vmatpush.msra.mxu0 0.0
  %282 = vmatpush.msra.mxu0 0.0
  %283 = vmatpush.msra.mxu0 0.0
  %284 = vmatpush.msra.mxu0 0.0
  %285 = vmatpush.msra.mxu0 0.0
  %286 = vmatpush.msra.mxu0 0.0
  %287 = vmatpush.msra.mxu0 %v253
  %288 = vmatpush.msra.mxu0 %v233
  %289 = vmatpush.msra.mxu0 %v230
  %290 = vmatpush.msra.mxu0 %v227
  %291 = vmatpush.msra.mxu0 %v224
  %292 = vmatpush.msra.mxu0 %v221
  %293 = vmatpush.msra.mxu0 %v218
  %294 = vmatmul.f32.gmra.mxu0 %v247
  %v295 = vpop.f32.mrf.mxu0
  %v296 = vadd.f32 %v241, %v295
  %297 = vdwg.mxu0
  %298 = vmatpush.msra.mxu0 0.0
  %299 = vmatpush.msra.mxu0 0.0
  %300 = vmatpush.msra.mxu0 0.0
  %301 = vmatpush.msra.mxu0 0.0
  %302 = vmatpush.msra.mxu0 0.0
  %303 = vmatpush.msra.mxu0 0.0
  %304 = vmatpush.msra.mxu0 0.0
  %305 = vmatpush.msra.mxu0 0.0
  %306 = vmatpush.msra.mxu0 0.0
  %307 = vmatpush.msra.mxu0 %v256
  %308 = vmatpush.msra.mxu0 %v234
  %309 = vmatpush.msra.mxu0 %v231
  %310 = vmatpush.msra.mxu0 %v228
  %311 = vmatpush.msra.mxu0 %v225
  %312 = vmatpush.msra.mxu0 %v222
  %313 = vmatpush.msra.mxu0 %v219
  %314 = vmatmul.f32.gmra.mxu0 %v247
  %v315 = vpop.f32.mrf.mxu0
  %v316 = vadd.f32 %v242, %v315
  %317 = vdwg.mxu0
  %318 = vst [vmem:[%s9] sm:$0xff] %v276
  %319 = vst [vmem:[%s9 + $0x8] sm:$0xff] %v296
  %320 = vst.msk [vmem:[%s9 + $0x10] sm:$0xff] %vm79, %v316
  // Predicated region
  $region38: #{net_forward.7} parent=0 // pred_check
    _
  $region39: #{net_forward.7} parent=0 // pred_check_branch
    %322 = sbr.rel (0) target = $region41
  $region40: #{net_forward.7} parent=0 // pred_region
    _
  $region41: #{net_forward.7} parent=0 // pred_fallthru
    _
  // Predicated region
  $region42: #{net_forward.7} parent=0 // pred_check
    _
  $region43: #{net_forward.7} parent=0 // pred_check_branch
    %324 = sbr.rel (0) target = $region45
  $region44: #{net_forward.7} parent=0 // pred_region
    _
  $region45: #{net_forward.7} parent=0 // pred_fallthru
    _

// kernel: net_forward.8
$region0: #{net_forward.8}
  #allocation0 [shape = 'u32[]', space=smem, size = 0x4, offset = 0x4, fixed_abs, tag = 'smem constant byte address 0x4 - core index']
  #allocation1 [shape = 'u32[72,128]{1,0:T(1,128)}', space=vmem, size = 0x9000, scoped, tag = 'internal scratch']
  %s0 = inlined_call_operand.vmem [shape: bf16[1,500,1152], index: 0, kind: input, shape index: {}]
  %s1 = inlined_call_operand.vmem [shape: bf16[10,500], index: 1, kind: input, shape index: {}]
  %s2 = inlined_call_operand.vmem [shape: f32[10,1], index: 2, kind: input, shape index: {}]
  %s3 = inlined_call_operand.vmem [shape: f32[1,10,1152], index: 3, kind: output, shape index: {}]
  %s4 = sld [smem:[#allocation0]]
  $region22: #{net_forward.8} parent=0
    _
  %s6 = ssub.s32 1, %s4
  %s7 = scalar_select 0, %s6, %s4
  // Predicated region
  $region2: #{net_forward.8} parent=0 // pred_check
    _
  $region3: #{net_forward.8} parent=0 // pred_check_branch
    %9 = sbr.rel (0) target = $region5
  $region4: #{net_forward.8} parent=0 // pred_region
    _
  $region5: #{net_forward.8} parent=0 // pred_fallthru
    _
  // Predicated region
  $region6: #{net_forward.8} parent=0 // pred_check
    _
  $region7: #{net_forward.8} parent=0 // pred_check_branch
    %11 = sbr.rel (0) target = $region9
  $region8: #{net_forward.8} parent=0 // pred_region
    _
  $region9: #{net_forward.8} parent=0 // pred_fallthru
    _
  // Predicated region
  $region10: #{net_forward.8} parent=0 // pred_check
    _
  $region11: #{net_forward.8} parent=0 // pred_check_branch
    %13 = sbr.rel (0) target = $region13
  $region12: #{net_forward.8} parent=0 // pred_region
    _
  $region13: #{net_forward.8} parent=0 // pred_fallthru
    _
  %v14 = vld [vmem:[%s1] sm:$0xff]
  %v15 = vld [vmem:[%s1 + $0x8] sm:$0xff]
  %v16 = vld [vmem:[%s1 + $0x10] sm:$0x11]
  %v17 = vld [vmem:[%s1 + $0x18] sm:$0x11]
  %v18 = vld [vmem:[%s0] sm:$0xff]
  %v19 = vld [vmem:[%s0 + $0x8] sm:$0xff]
  %v20 = vld [vmem:[%s0 + $0x10] sm:$0xff]
  %v21 = vld [vmem:[%s0 + $0x18] sm:$0xff]
  %v22 = vld [vmem:[%s0 + $0x20] sm:$0xf]
  %v23 = vld [vmem:[%s0 + $0x24] sm:$0xff]
  %v24 = vld [vmem:[%s0 + $0x2c] sm:$0xff]
  %v25 = vld [vmem:[%s0 + $0x34] sm:$0xff]
  %v26 = vld [vmem:[%s0 + $0x3c] sm:$0xff]
  %v27 = vld [vmem:[%s0 + $0x44] sm:$0xf]
  %v28 = vld [vmem:[%s0 + $0x48] sm:$0xff]
  %v29 = vld [vmem:[%s0 + $0x50] sm:$0xff]
  %v30 = vld [vmem:[%s0 + $0x58] sm:$0xff]
  %v31 = vld [vmem:[%s0 + $0x60] sm:$0xff]
  %v32 = vld [vmem:[%s0 + $0x68] sm:$0xf]
  %v33 = vld [vmem:[%s0 + $0x6c] sm:$0xff]
  %v34 = vld [vmem:[%s0 + $0x74] sm:$0xff]
  %v35 = vld [vmem:[%s0 + $0x7c] sm:$0xff]
  %v36 = vld [vmem:[%s0 + $0x84] sm:$0xff]
  %v37 = vld [vmem:[%s0 + $0x8c] sm:$0xf]
  %v38 = vld [vmem:[%s0 + $0x90] sm:$0xff]
  %v39 = vld [vmem:[%s0 + $0x98] sm:$0xff]
  %v40 = vld [vmem:[%s0 + $0xa0] sm:$0xff]
  %v41 = vld [vmem:[%s0 + $0xa8] sm:$0xff]
  %v42 = vld [vmem:[%s0 + $0xb0] sm:$0xf]
  %v43 = vld [vmem:[%s0 + $0xb4] sm:$0xff]
  %v44 = vld [vmem:[%s0 + $0xbc] sm:$0xff]
  %v45 = vld [vmem:[%s0 + $0xc4] sm:$0xff]
  %v46 = vld [vmem:[%s0 + $0xcc] sm:$0xff]
  %v47 = vld [vmem:[%s0 + $0xd4] sm:$0xf]
  %v48 = vld [vmem:[%s0 + $0xd8] sm:$0xff]
  %v49 = vld [vmem:[%s0 + $0xe0] sm:$0xff]
  %v50 = vld [vmem:[%s0 + $0xe8] sm:$0xff]
  %v51 = vld [vmem:[%s0 + $0xf0] sm:$0xff]
  %v52 = vld [vmem:[%s0 + $0xf8] sm:$0xf]
  %v53 = vld [vmem:[%s0 + $0xfc] sm:$0xff]
  %v54 = vld [vmem:[%s0 + $0x104] sm:$0xff]
  %v55 = vld [vmem:[%s0 + $0x10c] sm:$0xff]
  %v56 = vld [vmem:[%s0 + $0x114] sm:$0xff]
  %v57 = vld [vmem:[%s0 + $0x11c] sm:$0xf]
  %v58 = vld [vmem:[%s0 + $0x120] sm:$0xff]
  %v59 = vld [vmem:[%s0 + $0x128] sm:$0xff]
  %v60 = vld [vmem:[%s0 + $0x130] sm:$0xff]
  %v61 = vld [vmem:[%s0 + $0x138] sm:$0xff]
  %v62 = vld [vmem:[%s0 + $0x140] sm:$0xf]
  %v63 = vld [vmem:[%s0 + $0x144] sm:$0xff]
  %v64 = vld [vmem:[%s0 + $0x14c] sm:$0xff]
  %v65 = vld [vmem:[%s0 + $0x154] sm:$0xff]
  %v66 = vld [vmem:[%s0 + $0x15c] sm:$0xff]
  %v67 = vld [vmem:[%s0 + $0x164] sm:$0xf]
  %v68 = vld [vmem:[%s0 + $0x168] sm:$0xff]
  %v69 = vld [vmem:[%s0 + $0x170] sm:$0xff]
  %v70 = vld [vmem:[%s0 + $0x178] sm:$0xff]
  %v71 = vld [vmem:[%s0 + $0x180] sm:$0xff]
  %v72 = vld [vmem:[%s0 + $0x188] sm:$0xf]
  %v73 = vld [vmem:[%s0 + $0x18c] sm:$0xff]
  %v74 = vld [vmem:[%s0 + $0x194] sm:$0xff]
  %v75 = vld [vmem:[%s0 + $0x19c] sm:$0xff]
  %v76 = vld [vmem:[%s0 + $0x1a4] sm:$0xff]
  %v77 = vld [vmem:[%s0 + $0x1ac] sm:$0xf]
  %v78 = vld [vmem:[%s0 + $0x1b0] sm:$0xff]
  %v79 = vld [vmem:[%s0 + $0x1b8] sm:$0xff]
  %v80 = vld [vmem:[%s0 + $0x1c0] sm:$0xff]
  %v81 = vld [vmem:[%s0 + $0x1c8] sm:$0xff]
  %v82 = vld [vmem:[%s0 + $0x1d0] sm:$0xf]
  %v83 = vld [vmem:[%s0 + $0x1d4] sm:$0xff]
  %v84 = vld [vmem:[%s0 + $0x1dc] sm:$0xff]
  %v85 = vld [vmem:[%s0 + $0x1e4] sm:$0xff]
  %v86 = vld [vmem:[%s0 + $0x1ec] sm:$0xff]
  %v87 = vld [vmem:[%s0 + $0x1f4] sm:$0xf]
  %v88 = vld [vmem:[%s0 + $0x1f8] sm:$0xff]
  %v89 = vld [vmem:[%s0 + $0x200] sm:$0xff]
  %v90 = vld [vmem:[%s0 + $0x208] sm:$0xff]
  %v91 = vld [vmem:[%s0 + $0x210] sm:$0xff]
  %v92 = vld [vmem:[%s0 + $0x218] sm:$0xf]
  %v93 = vld [vmem:[%s0 + $0x21c] sm:$0xff]
  %v94 = vld [vmem:[%s0 + $0x224] sm:$0xff]
  %v95 = vld [vmem:[%s0 + $0x22c] sm:$0xff]
  %v96 = vld [vmem:[%s0 + $0x234] sm:$0xff]
  %v97 = vld [vmem:[%s0 + $0x23c] sm:$0xf]
  %v98 = vld [vmem:[%s0 + $0x240] sm:$0xff]
  %v99 = vld [vmem:[%s0 + $0x248] sm:$0xff]
  %v100 = vld [vmem:[%s0 + $0x250] sm:$0xff]
  %v101 = vld [vmem:[%s0 + $0x258] sm:$0xff]
  %v102 = vld [vmem:[%s0 + $0x260] sm:$0xf]
  %v103 = vld [vmem:[%s0 + $0x264] sm:$0xff]
  %v104 = vld [vmem:[%s0 + $0x26c] sm:$0xff]
  %v105 = vld [vmem:[%s0 + $0x274] sm:$0xff]
  %v106 = vld [vmem:[%s0 + $0x27c] sm:$0xff]
  %v107 = vld [vmem:[%s0 + $0x284] sm:$0xf]
  %v108 = vld [vmem:[%s0 + $0x288] sm:$0xff]
  %v109 = vld [vmem:[%s0 + $0x290] sm:$0xff]
  %v110 = vld [vmem:[%s0 + $0x298] sm:$0xff]
  %v111 = vld [vmem:[%s0 + $0x2a0] sm:$0xff]
  %v112 = vld [vmem:[%s0 + $0x2a8] sm:$0xf]
  %v113 = vld [vmem:[%s0 + $0x2ac] sm:$0xff]
  %v114 = vld [vmem:[%s0 + $0x2b4] sm:$0xff]
  %v115 = vld [vmem:[%s0 + $0x2bc] sm:$0xff]
  %v116 = vld [vmem:[%s0 + $0x2c4] sm:$0xff]
  %v117 = vld [vmem:[%s0 + $0x2cc] sm:$0xf]
  %v118 = vld [vmem:[%s0 + $0x2d0] sm:$0xff]
  %v119 = vld [vmem:[%s0 + $0x2d8] sm:$0xff]
  %v120 = vld [vmem:[%s0 + $0x2e0] sm:$0xff]
  %v121 = vld [vmem:[%s0 + $0x2e8] sm:$0xff]
  %v122 = vld [vmem:[%s0 + $0x2f0] sm:$0xf]
  %v123 = vld [vmem:[%s0 + $0x2f4] sm:$0xff]
  %v124 = vld [vmem:[%s0 + $0x2fc] sm:$0xff]
  %v125 = vld [vmem:[%s0 + $0x304] sm:$0xff]
  %v126 = vld [vmem:[%s0 + $0x30c] sm:$0xff]
  %v127 = vld [vmem:[%s0 + $0x314] sm:$0xf]
  %v128 = vld [vmem:[%s0 + $0x318] sm:$0xff]
  %v129 = vld [vmem:[%s0 + $0x320] sm:$0xff]
  %v130 = vld [vmem:[%s0 + $0x328] sm:$0xff]
  %v131 = vld [vmem:[%s0 + $0x330] sm:$0xff]
  %v132 = vld [vmem:[%s0 + $0x338] sm:$0xf]
  %v133 = vld [vmem:[%s0 + $0x33c] sm:$0xff]
  %v134 = vld [vmem:[%s0 + $0x344] sm:$0xff]
  %v135 = vld [vmem:[%s0 + $0x34c] sm:$0xff]
  %v136 = vld [vmem:[%s0 + $0x354] sm:$0xff]
  %v137 = vld [vmem:[%s0 + $0x35c] sm:$0xf]
  %v138 = vld [vmem:[%s0 + $0x360] sm:$0xff]
  %v139 = vld [vmem:[%s0 + $0x368] sm:$0xff]
  %v140 = vld [vmem:[%s0 + $0x370] sm:$0xff]
  %v141 = vld [vmem:[%s0 + $0x378] sm:$0xff]
  %v142 = vld [vmem:[%s0 + $0x380] sm:$0xf]
  %v143 = vld [vmem:[%s0 + $0x384] sm:$0xff]
  %v144 = vld [vmem:[%s0 + $0x38c] sm:$0xff]
  %v145 = vld [vmem:[%s0 + $0x394] sm:$0xff]
  %v146 = vld [vmem:[%s0 + $0x39c] sm:$0xff]
  %v147 = vld [vmem:[%s0 + $0x3a4] sm:$0xf]
  %v148 = vld [vmem:[%s0 + $0x3a8] sm:$0xff]
  %v149 = vld [vmem:[%s0 + $0x3b0] sm:$0xff]
  %v150 = vld [vmem:[%s0 + $0x3b8] sm:$0xff]
  %v151 = vld [vmem:[%s0 + $0x3c0] sm:$0xff]
  %v152 = vld [vmem:[%s0 + $0x3c8] sm:$0xf]
  %v153 = vld [vmem:[%s0 + $0x3cc] sm:$0xff]
  %v154 = vld [vmem:[%s0 + $0x3d4] sm:$0xff]
  %v155 = vld [vmem:[%s0 + $0x3dc] sm:$0xff]
  %v156 = vld [vmem:[%s0 + $0x3e4] sm:$0xff]
  %v157 = vld [vmem:[%s0 + $0x3ec] sm:$0xf]
  %v158 = vld [vmem:[%s0 + $0x3f0] sm:$0xff]
  %v159 = vld [vmem:[%s0 + $0x3f8] sm:$0xff]
  %v160 = vld [vmem:[%s0 + $0x400] sm:$0xff]
  %v161 = vld [vmem:[%s0 + $0x408] sm:$0xff]
  %v162 = vld [vmem:[%s0 + $0x410] sm:$0xf]
  %v163 = vld [vmem:[%s0 + $0x414] sm:$0xff]
  %v164 = vld [vmem:[%s0 + $0x41c] sm:$0xff]
  %v165 = vld [vmem:[%s0 + $0x424] sm:$0xff]
  %v166 = vld [vmem:[%s0 + $0x42c] sm:$0xff]
  %v167 = vld [vmem:[%s0 + $0x434] sm:$0xf]
  %v168 = vld [vmem:[%s0 + $0x438] sm:$0xff]
  %v169 = vld [vmem:[%s0 + $0x440] sm:$0xff]
  %v170 = vld [vmem:[%s0 + $0x448] sm:$0xff]
  %v171 = vld [vmem:[%s0 + $0x450] sm:$0xff]
  %v172 = vld [vmem:[%s0 + $0x458] sm:$0xf]
  %v173 = vld [vmem:[%s0 + $0x45c] sm:$0xff]
  %v174 = vld [vmem:[%s0 + $0x464] sm:$0xff]
  %v175 = vld [vmem:[%s0 + $0x46c] sm:$0xff]
  %v176 = vld [vmem:[%s0 + $0x474] sm:$0xff]
  %v177 = vld [vmem:[%s0 + $0x47c] sm:$0xf]
  %v178 = vld [vmem:[%s0 + $0x480] sm:$0xff]
  %v179 = vld [vmem:[%s0 + $0x488] sm:$0xff]
  %v180 = vld [vmem:[%s0 + $0x490] sm:$0xff]
  %v181 = vld [vmem:[%s0 + $0x498] sm:$0xff]
  %v182 = vld [vmem:[%s0 + $0x4a0] sm:$0xf]
  %v183 = vld [vmem:[%s0 + $0x4a4] sm:$0xff]
  %v184 = vld [vmem:[%s0 + $0x4ac] sm:$0xff]
  %v185 = vld [vmem:[%s0 + $0x4b4] sm:$0xff]
  %v186 = vld [vmem:[%s0 + $0x4bc] sm:$0xff]
  %v187 = vld [vmem:[%s0 + $0x4c4] sm:$0xf]
  %v188 = vld [vmem:[%s0 + $0x4c8] sm:$0xff]
  %v189 = vld [vmem:[%s0 + $0x4d0] sm:$0xff]
  %v190 = vld [vmem:[%s0 + $0x4d8] sm:$0xff]
  %v191 = vld [vmem:[%s0 + $0x4e0] sm:$0xff]
  %v192 = vld [vmem:[%s0 + $0x4e8] sm:$0xf]
  %v193 = vld [vmem:[%s0 + $0x4ec] sm:$0xff]
  %v194 = vld [vmem:[%s0 + $0x4f4] sm:$0xff]
  %v195 = vld [vmem:[%s0 + $0x4fc] sm:$0xff]
  %v196 = vld [vmem:[%s0 + $0x504] sm:$0xff]
  %v197 = vld [vmem:[%s0 + $0x50c] sm:$0xf]
  %v198 = vld [vmem:[%s0 + $0x510] sm:$0xff]
  %v199 = vld [vmem:[%s0 + $0x518] sm:$0xff]
  %v200 = vld [vmem:[%s0 + $0x520] sm:$0xff]
  %v201 = vld [vmem:[%s0 + $0x528] sm:$0xff]
  %v202 = vld [vmem:[%s0 + $0x530] sm:$0xf]
  %v203 = vld [vmem:[%s0 + $0x534] sm:$0xff]
  %v204 = vld [vmem:[%s0 + $0x53c] sm:$0xff]
  %v205 = vld [vmem:[%s0 + $0x544] sm:$0xff]
  %v206 = vld [vmem:[%s0 + $0x54c] sm:$0xff]
  %v207 = vld [vmem:[%s0 + $0x554] sm:$0xf]
  %v208 = vld [vmem:[%s0 + $0x558] sm:$0xff]
  %v209 = vld [vmem:[%s0 + $0x560] sm:$0xff]
  %v210 = vld [vmem:[%s0 + $0x568] sm:$0xff]
  %v211 = vld [vmem:[%s0 + $0x570] sm:$0xff]
  %v212 = vld [vmem:[%s0 + $0x578] sm:$0xf]
  %v213 = vld [vmem:[%s0 + $0x57c] sm:$0xff]
  %v214 = vld [vmem:[%s0 + $0x584] sm:$0xff]
  %v215 = vld [vmem:[%s0 + $0x58c] sm:$0xff]
  %v216 = vld [vmem:[%s0 + $0x594] sm:$0xff]
  %v217 = vld [vmem:[%s0 + $0x59c] sm:$0xf]
  %v218 = vld [vmem:[%s0 + $0x5a0] sm:$0xff]
  %v219 = vld [vmem:[%s0 + $0x5a8] sm:$0xff]
  %v220 = vld [vmem:[%s0 + $0x5b0] sm:$0xff]
  %v221 = vld [vmem:[%s0 + $0x5b8] sm:$0xff]
  %v222 = vld [vmem:[%s0 + $0x5c0] sm:$0xf]
  %v223 = vld [vmem:[%s0 + $0x5c4] sm:$0xff]
  %v224 = vld [vmem:[%s0 + $0x5cc] sm:$0xff]
  %v225 = vld [vmem:[%s0 + $0x5d4] sm:$0xff]
  %v226 = vld [vmem:[%s0 + $0x5dc] sm:$0xff]
  %v227 = vld [vmem:[%s0 + $0x5e4] sm:$0xf]
  %v228 = vld [vmem:[%s0 + $0x5e8] sm:$0xff]
  %v229 = vld [vmem:[%s0 + $0x5f0] sm:$0xff]
  %v230 = vld [vmem:[%s0 + $0x5f8] sm:$0xff]
  %v231 = vld [vmem:[%s0 + $0x600] sm:$0xff]
  %v232 = vld [vmem:[%s0 + $0x608] sm:$0xf]
  %v233 = vld [vmem:[%s0 + $0x60c] sm:$0xff]
  %v234 = vld [vmem:[%s0 + $0x614] sm:$0xff]
  %v235 = vld [vmem:[%s0 + $0x61c] sm:$0xff]
  %v236 = vld [vmem:[%s0 + $0x624] sm:$0xff]
  %v237 = vld [vmem:[%s0 + $0x62c] sm:$0xf]
  %v238 = vld [vmem:[%s0 + $0x630] sm:$0xff]
  %v239 = vld [vmem:[%s0 + $0x638] sm:$0xff]
  %v240 = vld [vmem:[%s0 + $0x640] sm:$0xff]
  %v241 = vld [vmem:[%s0 + $0x648] sm:$0xff]
  %v242 = vld [vmem:[%s0 + $0x650] sm:$0xf]
  %v243 = vld [vmem:[%s0 + $0x654] sm:$0xff]
  %v244 = vld [vmem:[%s0 + $0x65c] sm:$0xff]
  %v245 = vld [vmem:[%s0 + $0x664] sm:$0xff]
  %v246 = vld [vmem:[%s0 + $0x66c] sm:$0xff]
  %v247 = vld [vmem:[%s0 + $0x674] sm:$0xf]
  %v248 = vld [vmem:[%s0 + $0x678] sm:$0xff]
  %v249 = vld [vmem:[%s0 + $0x680] sm:$0xff]
  %v250 = vld [vmem:[%s0 + $0x688] sm:$0xff]
  %v251 = vld [vmem:[%s0 + $0x690] sm:$0xff]
  %v252 = vld [vmem:[%s0 + $0x698] sm:$0xf]
  %v253 = vld [vmem:[%s0 + $0x69c] sm:$0xff]
  %v254 = vld [vmem:[%s0 + $0x6a4] sm:$0xff]
  %v255 = vld [vmem:[%s0 + $0x6ac] sm:$0xff]
  %v256 = vld [vmem:[%s0 + $0x6b4] sm:$0xff]
  %v257 = vld [vmem:[%s0 + $0x6bc] sm:$0xf]
  %v258 = vld [vmem:[%s0 + $0x6c0] sm:$0xff]
  %v259 = vld [vmem:[%s0 + $0x6c8] sm:$0xff]
  %v260 = vld [vmem:[%s0 + $0x6d0] sm:$0xff]
  %v261 = vld [vmem:[%s0 + $0x6d8] sm:$0xff]
  %v262 = vld [vmem:[%s0 + $0x6e0] sm:$0xf]
  %v263 = vld [vmem:[%s0 + $0x6e4] sm:$0xff]
  %v264 = vld [vmem:[%s0 + $0x6ec] sm:$0xff]
  %v265 = vld [vmem:[%s0 + $0x6f4] sm:$0xff]
  %v266 = vld [vmem:[%s0 + $0x6fc] sm:$0xff]
  %v267 = vld [vmem:[%s0 + $0x704] sm:$0xf]
  %v268 = vld [vmem:[%s0 + $0x708] sm:$0xff]
  %v269 = vld [vmem:[%s0 + $0x710] sm:$0xff]
  %v270 = vld [vmem:[%s0 + $0x718] sm:$0xff]
  %v271 = vld [vmem:[%s0 + $0x720] sm:$0xff]
  %v272 = vld [vmem:[%s0 + $0x728] sm:$0xf]
  %v273 = vld [vmem:[%s0 + $0x72c] sm:$0xff]
  %v274 = vld [vmem:[%s0 + $0x734] sm:$0xff]
  %v275 = vld [vmem:[%s0 + $0x73c] sm:$0xff]
  %v276 = vld [vmem:[%s0 + $0x744] sm:$0xff]
  %v277 = vld [vmem:[%s0 + $0x74c] sm:$0xf]
  %v278 = vld [vmem:[%s0 + $0x750] sm:$0xff]
  %v279 = vld [vmem:[%s0 + $0x758] sm:$0xff]
  %v280 = vld [vmem:[%s0 + $0x760] sm:$0xff]
  %v281 = vld [vmem:[%s0 + $0x768] sm:$0xff]
  %v282 = vld [vmem:[%s0 + $0x770] sm:$0xf]
  %v283 = vld [vmem:[%s0 + $0x774] sm:$0xff]
  %v284 = vld [vmem:[%s0 + $0x77c] sm:$0xff]
  %v285 = vld [vmem:[%s0 + $0x784] sm:$0xff]
  %v286 = vld [vmem:[%s0 + $0x78c] sm:$0xff]
  %v287 = vld [vmem:[%s0 + $0x794] sm:$0xf]
  %v288 = vld [vmem:[%s0 + $0x798] sm:$0xff]
  %v289 = vld [vmem:[%s0 + $0x7a0] sm:$0xff]
  %v290 = vld [vmem:[%s0 + $0x7a8] sm:$0xff]
  %v291 = vld [vmem:[%s0 + $0x7b0] sm:$0xff]
  %v292 = vld [vmem:[%s0 + $0x7b8] sm:$0xf]
  %v293 = vld [vmem:[%s0 + $0x7bc] sm:$0xff]
  %v294 = vld [vmem:[%s0 + $0x7c4] sm:$0xff]
  %v295 = vld [vmem:[%s0 + $0x7cc] sm:$0xff]
  %v296 = vld [vmem:[%s0 + $0x7d4] sm:$0xff]
  %v297 = vld [vmem:[%s0 + $0x7dc] sm:$0xf]
  %v298 = vld [vmem:[%s0 + $0x7e0] sm:$0xff]
  %v299 = vld [vmem:[%s0 + $0x7e8] sm:$0xff]
  %v300 = vld [vmem:[%s0 + $0x7f0] sm:$0xff]
  %v301 = vld [vmem:[%s0 + $0x7f8] sm:$0xff]
  %v302 = vld [vmem:[%s0 + $0x800] sm:$0xf]
  %v303 = vld [vmem:[%s0 + $0x804] sm:$0xff]
  %v304 = vld [vmem:[%s0 + $0x80c] sm:$0xff]
  %v305 = vld [vmem:[%s0 + $0x814] sm:$0xff]
  %v306 = vld [vmem:[%s0 + $0x81c] sm:$0xff]
  %v307 = vld [vmem:[%s0 + $0x824] sm:$0xf]
  %v308 = vld [vmem:[%s0 + $0x828] sm:$0xff]
  %v309 = vld [vmem:[%s0 + $0x830] sm:$0xff]
  %v310 = vld [vmem:[%s0 + $0x838] sm:$0xff]
  %v311 = vld [vmem:[%s0 + $0x840] sm:$0xff]
  %v312 = vld [vmem:[%s0 + $0x848] sm:$0xf]
  %v313 = vld [vmem:[%s0 + $0x84c] sm:$0xff]
  %v314 = vld [vmem:[%s0 + $0x854] sm:$0xff]
  %v315 = vld [vmem:[%s0 + $0x85c] sm:$0xff]
  %v316 = vld [vmem:[%s0 + $0x864] sm:$0xff]
  %v317 = vld [vmem:[%s0 + $0x86c] sm:$0xf]
  %v318 = vld [vmem:[%s0 + $0x870] sm:$0xff]
  %v319 = vld [vmem:[%s0 + $0x878] sm:$0xff]
  %v320 = vld [vmem:[%s0 + $0x880] sm:$0xff]
  %v321 = vld [vmem:[%s0 + $0x888] sm:$0xff]
  %v322 = vld [vmem:[%s0 + $0x890] sm:$0xf]
  %v323 = vld [vmem:[%s0 + $0x894] sm:$0xff]
  %v324 = vld [vmem:[%s0 + $0x89c] sm:$0xff]
  %v325 = vld [vmem:[%s0 + $0x8a4] sm:$0xff]
  %v326 = vld [vmem:[%s0 + $0x8ac] sm:$0xff]
  %v327 = vld [vmem:[%s0 + $0x8b4] sm:$0xf]
  %v328 = vld [vmem:[%s0 + $0x8b8] sm:$0x33]
  %v329 = vld [vmem:[%s0 + $0x8c0] sm:$0x33]
  %v330 = vld [vmem:[%s0 + $0x8c8] sm:$0x33]
  %v331 = vld [vmem:[%s0 + $0x8d0] sm:$0x33]
  %v332 = vld [vmem:[%s0 + $0x8d8] sm:$0x3]
  %v333 = vld [vmem:[%s2] sm:$0xff]
  %v334 = vld [vmem:[%s2 + $0x8] sm:$0x3]
  %336 = vset.pattern.permute.xlu0 0
  %337 = vperm.xlu0 %336, %v333
  %v338 = vpop.permute.xlu0 %337
  %341 = vset.pattern.permute.xlu0 0
  %342 = vperm.xlu0 %341, %v334
  %v343 = vpop.permute.xlu0 %342
  %v349 = vunpack.c.l.b16 %v14
  %v350 = vunpack.c.h.b16 %v14
  %v351 = vunpack.c.l.b16 %v15
  %v352 = vunpack.c.h.b16 %v15
  %v353 = vunpack.c.l.b16 %v16
  %v354 = vunpack.c.h.b16 %v16
  %v355 = vunpack.c.l.b16 %v17
  %v356 = vunpack.c.h.b16 %v17
  %v357 = vpack.c.b16 %v353, %v349
  %v358 = vpack.c.b16 %v354, %v350
  %v359 = vpack.c.b16 %v355, %v351
  %v360 = vpack.c.b16 %v356, %v352
  %v679 = vunpack.c.l.b16 %v18
  %v680 = vunpack.c.h.b16 %v18
  %v681 = vunpack.c.l.b16 %v19
  %v682 = vunpack.c.h.b16 %v19
  %v683 = vunpack.c.l.b16 %v20
  %v684 = vunpack.c.h.b16 %v20
  %v685 = vunpack.c.l.b16 %v21
  %v686 = vunpack.c.h.b16 %v21
  %v687 = vunpack.c.l.b16 %v22
  %v688 = vunpack.c.l.b16 %v23
  %v689 = vunpack.c.h.b16 %v23
  %v690 = vunpack.c.l.b16 %v24
  %v691 = vunpack.c.h.b16 %v24
  %v692 = vunpack.c.l.b16 %v25
  %v693 = vunpack.c.h.b16 %v25
  %v694 = vunpack.c.l.b16 %v26
  %v695 = vunpack.c.h.b16 %v26
  %v696 = vunpack.c.l.b16 %v27
  %v697 = vunpack.c.l.b16 %v28
  %v698 = vunpack.c.h.b16 %v28
  %v699 = vunpack.c.l.b16 %v29
  %v700 = vunpack.c.h.b16 %v29
  %v701 = vunpack.c.l.b16 %v30
  %v702 = vunpack.c.h.b16 %v30
  %v703 = vunpack.c.l.b16 %v31
  %v704 = vunpack.c.h.b16 %v31
  %v705 = vunpack.c.l.b16 %v32
  %v706 = vunpack.c.l.b16 %v33
  %v707 = vunpack.c.h.b16 %v33
  %v708 = vunpack.c.l.b16 %v34
  %v709 = vunpack.c.h.b16 %v34
  %v710 = vunpack.c.l.b16 %v35
  %v711 = vunpack.c.h.b16 %v35
  %v712 = vunpack.c.l.b16 %v36
  %v713 = vunpack.c.h.b16 %v36
  %v714 = vunpack.c.l.b16 %v37
  %v715 = vunpack.c.l.b16 %v38
  %v716 = vunpack.c.h.b16 %v38
  %v717 = vunpack.c.l.b16 %v39
  %v718 = vunpack.c.h.b16 %v39
  %v719 = vunpack.c.l.b16 %v40
  %v720 = vunpack.c.h.b16 %v40
  %v721 = vunpack.c.l.b16 %v41
  %v722 = vunpack.c.h.b16 %v41
  %v723 = vunpack.c.l.b16 %v42
  %v724 = vunpack.c.l.b16 %v43
  %v725 = vunpack.c.h.b16 %v43
  %v726 = vunpack.c.l.b16 %v44
  %v727 = vunpack.c.h.b16 %v44
  %v728 = vunpack.c.l.b16 %v45
  %v729 = vunpack.c.h.b16 %v45
  %v730 = vunpack.c.l.b16 %v46
  %v731 = vunpack.c.h.b16 %v46
  %v732 = vunpack.c.l.b16 %v47
  %v733 = vunpack.c.l.b16 %v48
  %v734 = vunpack.c.h.b16 %v48
  %v735 = vunpack.c.l.b16 %v49
  %v736 = vunpack.c.h.b16 %v49
  %v737 = vunpack.c.l.b16 %v50
  %v738 = vunpack.c.h.b16 %v50
  %v739 = vunpack.c.l.b16 %v51
  %v740 = vunpack.c.h.b16 %v51
  %v741 = vunpack.c.l.b16 %v52
  %v742 = vunpack.c.l.b16 %v53
  %v743 = vunpack.c.h.b16 %v53
  %v744 = vunpack.c.l.b16 %v54
  %v745 = vunpack.c.h.b16 %v54
  %v746 = vunpack.c.l.b16 %v55
  %v747 = vunpack.c.h.b16 %v55
  %v748 = vunpack.c.l.b16 %v56
  %v749 = vunpack.c.h.b16 %v56
  %v750 = vunpack.c.l.b16 %v57
  %v751 = vunpack.c.l.b16 %v58
  %v752 = vunpack.c.h.b16 %v58
  %v753 = vunpack.c.l.b16 %v59
  %v754 = vunpack.c.h.b16 %v59
  %v755 = vunpack.c.l.b16 %v60
  %v756 = vunpack.c.h.b16 %v60
  %v757 = vunpack.c.l.b16 %v61
  %v758 = vunpack.c.h.b16 %v61
  %v759 = vunpack.c.l.b16 %v62
  %v760 = vunpack.c.l.b16 %v63
  %v761 = vunpack.c.h.b16 %v63
  %v762 = vunpack.c.l.b16 %v64
  %v763 = vunpack.c.h.b16 %v64
  %v764 = vunpack.c.l.b16 %v65
  %v765 = vunpack.c.h.b16 %v65
  %v766 = vunpack.c.l.b16 %v66
  %v767 = vunpack.c.h.b16 %v66
  %v768 = vunpack.c.l.b16 %v67
  %v769 = vunpack.c.l.b16 %v68
  %v770 = vunpack.c.h.b16 %v68
  %v771 = vunpack.c.l.b16 %v69
  %v772 = vunpack.c.h.b16 %v69
  %v773 = vunpack.c.l.b16 %v70
  %v774 = vunpack.c.h.b16 %v70
  %v775 = vunpack.c.l.b16 %v71
  %v776 = vunpack.c.h.b16 %v71
  %v777 = vunpack.c.l.b16 %v72
  %v778 = vunpack.c.l.b16 %v73
  %v779 = vunpack.c.h.b16 %v73
  %v780 = vunpack.c.l.b16 %v74
  %v781 = vunpack.c.h.b16 %v74
  %v782 = vunpack.c.l.b16 %v75
  %v783 = vunpack.c.h.b16 %v75
  %v784 = vunpack.c.l.b16 %v76
  %v785 = vunpack.c.h.b16 %v76
  %v786 = vunpack.c.l.b16 %v77
  %v787 = vunpack.c.l.b16 %v78
  %v788 = vunpack.c.h.b16 %v78
  %v789 = vunpack.c.l.b16 %v79
  %v790 = vunpack.c.h.b16 %v79
  %v791 = vunpack.c.l.b16 %v80
  %v792 = vunpack.c.h.b16 %v80
  %v793 = vunpack.c.l.b16 %v81
  %v794 = vunpack.c.h.b16 %v81
  %v795 = vunpack.c.l.b16 %v82
  %v796 = vunpack.c.l.b16 %v83
  %v797 = vunpack.c.h.b16 %v83
  %v798 = vunpack.c.l.b16 %v84
  %v799 = vunpack.c.h.b16 %v84
  %v800 = vunpack.c.l.b16 %v85
  %v801 = vunpack.c.h.b16 %v85
  %v802 = vunpack.c.l.b16 %v86
  %v803 = vunpack.c.h.b16 %v86
  %v804 = vunpack.c.l.b16 %v87
  %v805 = vunpack.c.l.b16 %v88
  %v806 = vunpack.c.h.b16 %v88
  %v807 = vunpack.c.l.b16 %v89
  %v808 = vunpack.c.h.b16 %v89
  %v809 = vunpack.c.l.b16 %v90
  %v810 = vunpack.c.h.b16 %v90
  %v811 = vunpack.c.l.b16 %v91
  %v812 = vunpack.c.h.b16 %v91
  %v813 = vunpack.c.l.b16 %v92
  %v814 = vunpack.c.l.b16 %v93
  %v815 = vunpack.c.h.b16 %v93
  %v816 = vunpack.c.l.b16 %v94
  %v817 = vunpack.c.h.b16 %v94
  %v818 = vunpack.c.l.b16 %v95
  %v819 = vunpack.c.h.b16 %v95
  %v820 = vunpack.c.l.b16 %v96
  %v821 = vunpack.c.h.b16 %v96
  %v822 = vunpack.c.l.b16 %v97
  %v823 = vunpack.c.l.b16 %v98
  %v824 = vunpack.c.h.b16 %v98
  %v825 = vunpack.c.l.b16 %v99
  %v826 = vunpack.c.h.b16 %v99
  %v827 = vunpack.c.l.b16 %v100
  %v828 = vunpack.c.h.b16 %v100
  %v829 = vunpack.c.l.b16 %v101
  %v830 = vunpack.c.h.b16 %v101
  %v831 = vunpack.c.l.b16 %v102
  %v832 = vunpack.c.l.b16 %v103
  %v833 = vunpack.c.h.b16 %v103
  %v834 = vunpack.c.l.b16 %v104
  %v835 = vunpack.c.h.b16 %v104
  %v836 = vunpack.c.l.b16 %v105
  %v837 = vunpack.c.h.b16 %v105
  %v838 = vunpack.c.l.b16 %v106
  %v839 = vunpack.c.h.b16 %v106
  %v840 = vunpack.c.l.b16 %v107
  %v841 = vunpack.c.l.b16 %v108
  %v842 = vunpack.c.h.b16 %v108
  %v843 = vunpack.c.l.b16 %v109
  %v844 = vunpack.c.h.b16 %v109
  %v845 = vunpack.c.l.b16 %v110
  %v846 = vunpack.c.h.b16 %v110
  %v847 = vunpack.c.l.b16 %v111
  %v848 = vunpack.c.h.b16 %v111
  %v849 = vunpack.c.l.b16 %v112
  %v850 = vunpack.c.l.b16 %v113
  %v851 = vunpack.c.h.b16 %v113
  %v852 = vunpack.c.l.b16 %v114
  %v853 = vunpack.c.h.b16 %v114
  %v854 = vunpack.c.l.b16 %v115
  %v855 = vunpack.c.h.b16 %v115
  %v856 = vunpack.c.l.b16 %v116
  %v857 = vunpack.c.h.b16 %v116
  %v858 = vunpack.c.l.b16 %v117
  %v859 = vunpack.c.l.b16 %v118
  %v860 = vunpack.c.h.b16 %v118
  %v861 = vunpack.c.l.b16 %v119
  %v862 = vunpack.c.h.b16 %v119
  %v863 = vunpack.c.l.b16 %v120
  %v864 = vunpack.c.h.b16 %v120
  %v865 = vunpack.c.l.b16 %v121
  %v866 = vunpack.c.h.b16 %v121
  %v867 = vunpack.c.l.b16 %v122
  %v868 = vunpack.c.l.b16 %v123
  %v869 = vunpack.c.h.b16 %v123
  %v870 = vunpack.c.l.b16 %v124
  %v871 = vunpack.c.h.b16 %v124
  %v872 = vunpack.c.l.b16 %v125
  %v873 = vunpack.c.h.b16 %v125
  %v874 = vunpack.c.l.b16 %v126
  %v875 = vunpack.c.h.b16 %v126
  %v876 = vunpack.c.l.b16 %v127
  %v877 = vunpack.c.l.b16 %v128
  %v878 = vunpack.c.h.b16 %v128
  %v879 = vunpack.c.l.b16 %v129
  %v880 = vunpack.c.h.b16 %v129
  %v881 = vunpack.c.l.b16 %v130
  %v882 = vunpack.c.h.b16 %v130
  %v883 = vunpack.c.l.b16 %v131
  %v884 = vunpack.c.h.b16 %v131
  %v885 = vunpack.c.l.b16 %v132
  %v886 = vunpack.c.l.b16 %v133
  %v887 = vunpack.c.h.b16 %v133
  %v888 = vunpack.c.l.b16 %v134
  %v889 = vunpack.c.h.b16 %v134
  %v890 = vunpack.c.l.b16 %v135
  %v891 = vunpack.c.h.b16 %v135
  %v892 = vunpack.c.l.b16 %v136
  %v893 = vunpack.c.h.b16 %v136
  %v894 = vunpack.c.l.b16 %v137
  %v895 = vunpack.c.l.b16 %v138
  %v896 = vunpack.c.h.b16 %v138
  %v897 = vunpack.c.l.b16 %v139
  %v898 = vunpack.c.h.b16 %v139
  %v899 = vunpack.c.l.b16 %v140
  %v900 = vunpack.c.h.b16 %v140
  %v901 = vunpack.c.l.b16 %v141
  %v902 = vunpack.c.h.b16 %v141
  %v903 = vunpack.c.l.b16 %v142
  %v904 = vunpack.c.l.b16 %v143
  %v905 = vunpack.c.h.b16 %v143
  %v906 = vunpack.c.l.b16 %v144
  %v907 = vunpack.c.h.b16 %v144
  %v908 = vunpack.c.l.b16 %v145
  %v909 = vunpack.c.h.b16 %v145
  %v910 = vunpack.c.l.b16 %v146
  %v911 = vunpack.c.h.b16 %v146
  %v912 = vunpack.c.l.b16 %v147
  %v913 = vunpack.c.l.b16 %v148
  %v914 = vunpack.c.h.b16 %v148
  %v915 = vunpack.c.l.b16 %v149
  %v916 = vunpack.c.h.b16 %v149
  %v917 = vunpack.c.l.b16 %v150
  %v918 = vunpack.c.h.b16 %v150
  %v919 = vunpack.c.l.b16 %v151
  %v920 = vunpack.c.h.b16 %v151
  %v921 = vunpack.c.l.b16 %v152
  %v922 = vunpack.c.l.b16 %v153
  %v923 = vunpack.c.h.b16 %v153
  %v924 = vunpack.c.l.b16 %v154
  %v925 = vunpack.c.h.b16 %v154
  %v926 = vunpack.c.l.b16 %v155
  %v927 = vunpack.c.h.b16 %v155
  %v928 = vunpack.c.l.b16 %v156
  %v929 = vunpack.c.h.b16 %v156
  %v930 = vunpack.c.l.b16 %v157
  %v931 = vunpack.c.l.b16 %v158
  %v932 = vunpack.c.h.b16 %v158
  %v933 = vunpack.c.l.b16 %v159
  %v934 = vunpack.c.h.b16 %v159
  %v935 = vunpack.c.l.b16 %v160
  %v936 = vunpack.c.h.b16 %v160
  %v937 = vunpack.c.l.b16 %v161
  %v938 = vunpack.c.h.b16 %v161
  %v939 = vunpack.c.l.b16 %v162
  %v940 = vunpack.c.l.b16 %v163
  %v941 = vunpack.c.h.b16 %v163
  %v942 = vunpack.c.l.b16 %v164
  %v943 = vunpack.c.h.b16 %v164
  %v944 = vunpack.c.l.b16 %v165
  %v945 = vunpack.c.h.b16 %v165
  %v946 = vunpack.c.l.b16 %v166
  %v947 = vunpack.c.h.b16 %v166
  %v948 = vunpack.c.l.b16 %v167
  %v949 = vunpack.c.l.b16 %v168
  %v950 = vunpack.c.h.b16 %v168
  %v951 = vunpack.c.l.b16 %v169
  %v952 = vunpack.c.h.b16 %v169
  %v953 = vunpack.c.l.b16 %v170
  %v954 = vunpack.c.h.b16 %v170
  %v955 = vunpack.c.l.b16 %v171
  %v956 = vunpack.c.h.b16 %v171
  %v957 = vunpack.c.l.b16 %v172
  %v958 = vunpack.c.l.b16 %v173
  %v959 = vunpack.c.h.b16 %v173
  %v960 = vunpack.c.l.b16 %v174
  %v961 = vunpack.c.h.b16 %v174
  %v962 = vunpack.c.l.b16 %v175
  %v963 = vunpack.c.h.b16 %v175
  %v964 = vunpack.c.l.b16 %v176
  %v965 = vunpack.c.h.b16 %v176
  %v966 = vunpack.c.l.b16 %v177
  %v967 = vunpack.c.l.b16 %v178
  %v968 = vunpack.c.h.b16 %v178
  %v969 = vunpack.c.l.b16 %v179
  %v970 = vunpack.c.h.b16 %v179
  %v971 = vunpack.c.l.b16 %v180
  %v972 = vunpack.c.h.b16 %v180
  %v973 = vunpack.c.l.b16 %v181
  %v974 = vunpack.c.h.b16 %v181
  %v975 = vunpack.c.l.b16 %v182
  %v976 = vunpack.c.l.b16 %v183
  %v977 = vunpack.c.h.b16 %v183
  %v978 = vunpack.c.l.b16 %v184
  %v979 = vunpack.c.h.b16 %v184
  %v980 = vunpack.c.l.b16 %v185
  %v981 = vunpack.c.h.b16 %v185
  %v982 = vunpack.c.l.b16 %v186
  %v983 = vunpack.c.h.b16 %v186
  %v984 = vunpack.c.l.b16 %v187
  %v985 = vunpack.c.l.b16 %v188
  %v986 = vunpack.c.h.b16 %v188
  %v987 = vunpack.c.l.b16 %v189
  %v988 = vunpack.c.h.b16 %v189
  %v989 = vunpack.c.l.b16 %v190
  %v990 = vunpack.c.h.b16 %v190
  %v991 = vunpack.c.l.b16 %v191
  %v992 = vunpack.c.h.b16 %v191
  %v993 = vunpack.c.l.b16 %v192
  %v994 = vunpack.c.l.b16 %v193
  %v995 = vunpack.c.h.b16 %v193
  %v996 = vunpack.c.l.b16 %v194
  %v997 = vunpack.c.h.b16 %v194
  %v998 = vunpack.c.l.b16 %v195
  %v999 = vunpack.c.h.b16 %v195
  %v1000 = vunpack.c.l.b16 %v196
  %v1001 = vunpack.c.h.b16 %v196
  %v1002 = vunpack.c.l.b16 %v197
  %v1003 = vunpack.c.l.b16 %v198
  %v1004 = vunpack.c.h.b16 %v198
  %v1005 = vunpack.c.l.b16 %v199
  %v1006 = vunpack.c.h.b16 %v199
  %v1007 = vunpack.c.l.b16 %v200
  %v1008 = vunpack.c.h.b16 %v200
  %v1009 = vunpack.c.l.b16 %v201
  %v1010 = vunpack.c.h.b16 %v201
  %v1011 = vunpack.c.l.b16 %v202
  %v1012 = vunpack.c.l.b16 %v203
  %v1013 = vunpack.c.h.b16 %v203
  %v1014 = vunpack.c.l.b16 %v204
  %v1015 = vunpack.c.h.b16 %v204
  %v1016 = vunpack.c.l.b16 %v205
  %v1017 = vunpack.c.h.b16 %v205
  %v1018 = vunpack.c.l.b16 %v206
  %v1019 = vunpack.c.h.b16 %v206
  %v1020 = vunpack.c.l.b16 %v207
  %v1021 = vunpack.c.l.b16 %v208
  %v1022 = vunpack.c.h.b16 %v208
  %v1023 = vunpack.c.l.b16 %v209
  %v1024 = vunpack.c.h.b16 %v209
  %v1025 = vunpack.c.l.b16 %v210
  %v1026 = vunpack.c.h.b16 %v210
  %v1027 = vunpack.c.l.b16 %v211
  %v1028 = vunpack.c.h.b16 %v211
  %v1029 = vunpack.c.l.b16 %v212
  %v1030 = vunpack.c.l.b16 %v213
  %v1031 = vunpack.c.h.b16 %v213
  %v1032 = vunpack.c.l.b16 %v214
  %v1033 = vunpack.c.h.b16 %v214
  %v1034 = vunpack.c.l.b16 %v215
  %v1035 = vunpack.c.h.b16 %v215
  %v1036 = vunpack.c.l.b16 %v216
  %v1037 = vunpack.c.h.b16 %v216
  %v1038 = vunpack.c.l.b16 %v217
  %v1039 = vunpack.c.l.b16 %v218
  %v1040 = vunpack.c.h.b16 %v218
  %v1041 = vunpack.c.l.b16 %v219
  %v1042 = vunpack.c.h.b16 %v219
  %v1043 = vunpack.c.l.b16 %v220
  %v1044 = vunpack.c.h.b16 %v220
  %v1045 = vunpack.c.l.b16 %v221
  %v1046 = vunpack.c.h.b16 %v221
  %v1047 = vunpack.c.l.b16 %v222
  %v1048 = vunpack.c.l.b16 %v223
  %v1049 = vunpack.c.h.b16 %v223
  %v1050 = vunpack.c.l.b16 %v224
  %v1051 = vunpack.c.h.b16 %v224
  %v1052 = vunpack.c.l.b16 %v225
  %v1053 = vunpack.c.h.b16 %v225
  %v1054 = vunpack.c.l.b16 %v226
  %v1055 = vunpack.c.h.b16 %v226
  %v1056 = vunpack.c.l.b16 %v227
  %v1057 = vunpack.c.l.b16 %v228
  %v1058 = vunpack.c.h.b16 %v228
  %v1059 = vunpack.c.l.b16 %v229
  %v1060 = vunpack.c.h.b16 %v229
  %v1061 = vunpack.c.l.b16 %v230
  %v1062 = vunpack.c.h.b16 %v230
  %v1063 = vunpack.c.l.b16 %v231
  %v1064 = vunpack.c.h.b16 %v231
  %v1065 = vunpack.c.l.b16 %v232
  %v1066 = vunpack.c.l.b16 %v233
  %v1067 = vunpack.c.h.b16 %v233
  %v1068 = vunpack.c.l.b16 %v234
  %v1069 = vunpack.c.h.b16 %v234
  %v1070 = vunpack.c.l.b16 %v235
  %v1071 = vunpack.c.h.b16 %v235
  %v1072 = vunpack.c.l.b16 %v236
  %v1073 = vunpack.c.h.b16 %v236
  %v1074 = vunpack.c.l.b16 %v237
  %v1075 = vunpack.c.l.b16 %v238
  %v1076 = vunpack.c.h.b16 %v238
  %v1077 = vunpack.c.l.b16 %v239
  %v1078 = vunpack.c.h.b16 %v239
  %v1079 = vunpack.c.l.b16 %v240
  %v1080 = vunpack.c.h.b16 %v240
  %v1081 = vunpack.c.l.b16 %v241
  %v1082 = vunpack.c.h.b16 %v241
  %v1083 = vunpack.c.l.b16 %v242
  %v1084 = vunpack.c.l.b16 %v243
  %v1085 = vunpack.c.h.b16 %v243
  %v1086 = vunpack.c.l.b16 %v244
  %v1087 = vunpack.c.h.b16 %v244
  %v1088 = vunpack.c.l.b16 %v245
  %v1089 = vunpack.c.h.b16 %v245
  %v1090 = vunpack.c.l.b16 %v246
  %v1091 = vunpack.c.h.b16 %v246
  %v1092 = vunpack.c.l.b16 %v247
  %v1093 = vunpack.c.l.b16 %v248
  %v1094 = vunpack.c.h.b16 %v248
  %v1095 = vunpack.c.l.b16 %v249
  %v1096 = vunpack.c.h.b16 %v249
  %v1097 = vunpack.c.l.b16 %v250
  %v1098 = vunpack.c.h.b16 %v250
  %v1099 = vunpack.c.l.b16 %v251
  %v1100 = vunpack.c.h.b16 %v251
  %v1101 = vunpack.c.l.b16 %v252
  %v1102 = vunpack.c.l.b16 %v253
  %v1103 = vunpack.c.h.b16 %v253
  %v1104 = vunpack.c.l.b16 %v254
  %v1105 = vunpack.c.h.b16 %v254
  %v1106 = vunpack.c.l.b16 %v255
  %v1107 = vunpack.c.h.b16 %v255
  %v1108 = vunpack.c.l.b16 %v256
  %v1109 = vunpack.c.h.b16 %v256
  %v1110 = vunpack.c.l.b16 %v257
  %v1111 = vunpack.c.l.b16 %v258
  %v1112 = vunpack.c.h.b16 %v258
  %v1113 = vunpack.c.l.b16 %v259
  %v1114 = vunpack.c.h.b16 %v259
  %v1115 = vunpack.c.l.b16 %v260
  %v1116 = vunpack.c.h.b16 %v260
  %v1117 = vunpack.c.l.b16 %v261
  %v1118 = vunpack.c.h.b16 %v261
  %v1119 = vunpack.c.l.b16 %v262
  %v1120 = vunpack.c.l.b16 %v263
  %v1121 = vunpack.c.h.b16 %v263
  %v1122 = vunpack.c.l.b16 %v264
  %v1123 = vunpack.c.h.b16 %v264
  %v1124 = vunpack.c.l.b16 %v265
  %v1125 = vunpack.c.h.b16 %v265
  %v1126 = vunpack.c.l.b16 %v266
  %v1127 = vunpack.c.h.b16 %v266
  %v1128 = vunpack.c.l.b16 %v267
  %v1129 = vunpack.c.l.b16 %v268
  %v1130 = vunpack.c.h.b16 %v268
  %v1131 = vunpack.c.l.b16 %v269
  %v1132 = vunpack.c.h.b16 %v269
  %v1133 = vunpack.c.l.b16 %v270
  %v1134 = vunpack.c.h.b16 %v270
  %v1135 = vunpack.c.l.b16 %v271
  %v1136 = vunpack.c.h.b16 %v271
  %v1137 = vunpack.c.l.b16 %v272
  %v1138 = vunpack.c.l.b16 %v273
  %v1139 = vunpack.c.h.b16 %v273
  %v1140 = vunpack.c.l.b16 %v274
  %v1141 = vunpack.c.h.b16 %v274
  %v1142 = vunpack.c.l.b16 %v275
  %v1143 = vunpack.c.h.b16 %v275
  %v1144 = vunpack.c.l.b16 %v276
  %v1145 = vunpack.c.h.b16 %v276
  %v1146 = vunpack.c.l.b16 %v277
  %v1147 = vunpack.c.l.b16 %v278
  %v1148 = vunpack.c.h.b16 %v278
  %v1149 = vunpack.c.l.b16 %v279
  %v1150 = vunpack.c.h.b16 %v279
  %v1151 = vunpack.c.l.b16 %v280
  %v1152 = vunpack.c.h.b16 %v280
  %v1153 = vunpack.c.l.b16 %v281
  %v1154 = vunpack.c.h.b16 %v281
  %v1155 = vunpack.c.l.b16 %v282
  %v1156 = vunpack.c.l.b16 %v283
  %v1157 = vunpack.c.h.b16 %v283
  %v1158 = vunpack.c.l.b16 %v284
  %v1159 = vunpack.c.h.b16 %v284
  %v1160 = vunpack.c.l.b16 %v285
  %v1161 = vunpack.c.h.b16 %v285
  %v1162 = vunpack.c.l.b16 %v286
  %v1163 = vunpack.c.h.b16 %v286
  %v1164 = vunpack.c.l.b16 %v287
  %v1165 = vunpack.c.l.b16 %v288
  %v1166 = vunpack.c.h.b16 %v288
  %v1167 = vunpack.c.l.b16 %v289
  %v1168 = vunpack.c.h.b16 %v289
  %v1169 = vunpack.c.l.b16 %v290
  %v1170 = vunpack.c.h.b16 %v290
  %v1171 = vunpack.c.l.b16 %v291
  %v1172 = vunpack.c.h.b16 %v291
  %v1173 = vunpack.c.l.b16 %v292
  %v1174 = vunpack.c.l.b16 %v293
  %v1175 = vunpack.c.h.b16 %v293
  %v1176 = vunpack.c.l.b16 %v294
  %v1177 = vunpack.c.h.b16 %v294
  %v1178 = vunpack.c.l.b16 %v295
  %v1179 = vunpack.c.h.b16 %v295
  %v1180 = vunpack.c.l.b16 %v296
  %v1181 = vunpack.c.h.b16 %v296
  %v1182 = vunpack.c.l.b16 %v297
  %v1183 = vunpack.c.l.b16 %v298
  %v1184 = vunpack.c.h.b16 %v298
  %v1185 = vunpack.c.l.b16 %v299
  %v1186 = vunpack.c.h.b16 %v299
  %v1187 = vunpack.c.l.b16 %v300
  %v1188 = vunpack.c.h.b16 %v300
  %v1189 = vunpack.c.l.b16 %v301
  %v1190 = vunpack.c.h.b16 %v301
  %v1191 = vunpack.c.l.b16 %v302
  %v1192 = vunpack.c.l.b16 %v303
  %v1193 = vunpack.c.h.b16 %v303
  %v1194 = vunpack.c.l.b16 %v304
  %v1195 = vunpack.c.h.b16 %v304
  %v1196 = vunpack.c.l.b16 %v305
  %v1197 = vunpack.c.h.b16 %v305
  %v1198 = vunpack.c.l.b16 %v306
  %v1199 = vunpack.c.h.b16 %v306
  %v1200 = vunpack.c.l.b16 %v307
  %v1201 = vunpack.c.l.b16 %v308
  %v1202 = vunpack.c.h.b16 %v308
  %v1203 = vunpack.c.l.b16 %v309
  %v1204 = vunpack.c.h.b16 %v309
  %v1205 = vunpack.c.l.b16 %v310
  %v1206 = vunpack.c.h.b16 %v310
  %v1207 = vunpack.c.l.b16 %v311
  %v1208 = vunpack.c.h.b16 %v311
  %v1209 = vunpack.c.l.b16 %v312
  %v1210 = vunpack.c.l.b16 %v313
  %v1211 = vunpack.c.h.b16 %v313
  %v1212 = vunpack.c.l.b16 %v314
  %v1213 = vunpack.c.h.b16 %v314
  %v1214 = vunpack.c.l.b16 %v315
  %v1215 = vunpack.c.h.b16 %v315
  %v1216 = vunpack.c.l.b16 %v316
  %v1217 = vunpack.c.h.b16 %v316
  %v1218 = vunpack.c.l.b16 %v317
  %v1219 = vunpack.c.l.b16 %v318
  %v1220 = vunpack.c.h.b16 %v318
  %v1221 = vunpack.c.l.b16 %v319
  %v1222 = vunpack.c.h.b16 %v319
  %v1223 = vunpack.c.l.b16 %v320
  %v1224 = vunpack.c.h.b16 %v320
  %v1225 = vunpack.c.l.b16 %v321
  %v1226 = vunpack.c.h.b16 %v321
  %v1227 = vunpack.c.l.b16 %v322
  %v1228 = vunpack.c.l.b16 %v323
  %v1229 = vunpack.c.h.b16 %v323
  %v1230 = vunpack.c.l.b16 %v324
  %v1231 = vunpack.c.h.b16 %v324
  %v1232 = vunpack.c.l.b16 %v325
  %v1233 = vunpack.c.h.b16 %v325
  %v1234 = vunpack.c.l.b16 %v326
  %v1235 = vunpack.c.h.b16 %v326
  %v1236 = vunpack.c.l.b16 %v327
  %v1237 = vunpack.c.l.b16 %v328
  %v1238 = vunpack.c.h.b16 %v328
  %v1239 = vunpack.c.l.b16 %v329
  %v1240 = vunpack.c.h.b16 %v329
  %v1241 = vunpack.c.l.b16 %v330
  %v1242 = vunpack.c.h.b16 %v330
  %v1243 = vunpack.c.l.b16 %v331
  %v1244 = vunpack.c.h.b16 %v331
  %v1245 = vunpack.c.l.b16 %v332
  %v1246 = vpack.c.b16 %v688, %v679
  %v1247 = vpack.c.b16 %v689, %v680
  %v1248 = vpack.c.b16 %v690, %v681
  %v1249 = vpack.c.b16 %v691, %v682
  %v1250 = vpack.c.b16 %v692, %v683
  %v1251 = vpack.c.b16 %v693, %v684
  %v1252 = vpack.c.b16 %v694, %v685
  %v1253 = vpack.c.b16 %v695, %v686
  %v1254 = vpack.c.b16 %v696, %v687
  %v1255 = vpack.c.b16 %v706, %v697
  %v1256 = vpack.c.b16 %v707, %v698
  %v1257 = vpack.c.b16 %v708, %v699
  %v1258 = vpack.c.b16 %v709, %v700
  %v1259 = vpack.c.b16 %v710, %v701
  %v1260 = vpack.c.b16 %v711, %v702
  %v1261 = vpack.c.b16 %v712, %v703
  %v1262 = vpack.c.b16 %v713, %v704
  %v1263 = vpack.c.b16 %v714, %v705
  %v1264 = vpack.c.b16 %v724, %v715
  %v1265 = vpack.c.b16 %v725, %v716
  %v1266 = vpack.c.b16 %v726, %v717
  %v1267 = vpack.c.b16 %v727, %v718
  %v1268 = vpack.c.b16 %v728, %v719
  %v1269 = vpack.c.b16 %v729, %v720
  %v1270 = vpack.c.b16 %v730, %v721
  %v1271 = vpack.c.b16 %v731, %v722
  %v1272 = vpack.c.b16 %v732, %v723
  %v1273 = vpack.c.b16 %v742, %v733
  %v1274 = vpack.c.b16 %v743, %v734
  %v1275 = vpack.c.b16 %v744, %v735
  %v1276 = vpack.c.b16 %v745, %v736
  %v1277 = vpack.c.b16 %v746, %v737
  %v1278 = vpack.c.b16 %v747, %v738
  %v1279 = vpack.c.b16 %v748, %v739
  %v1280 = vpack.c.b16 %v749, %v740
  %v1281 = vpack.c.b16 %v750, %v741
  %v1282 = vpack.c.b16 %v760, %v751
  %v1283 = vpack.c.b16 %v761, %v752
  %v1284 = vpack.c.b16 %v762, %v753
  %v1285 = vpack.c.b16 %v763, %v754
  %v1286 = vpack.c.b16 %v764, %v755
  %v1287 = vpack.c.b16 %v765, %v756
  %v1288 = vpack.c.b16 %v766, %v757
  %v1289 = vpack.c.b16 %v767, %v758
  %v1290 = vpack.c.b16 %v768, %v759
  %v1291 = vpack.c.b16 %v778, %v769
  %v1292 = vpack.c.b16 %v779, %v770
  %v1293 = vpack.c.b16 %v780, %v771
  %v1294 = vpack.c.b16 %v781, %v772
  %v1295 = vpack.c.b16 %v782, %v773
  %v1296 = vpack.c.b16 %v783, %v774
  %v1297 = vpack.c.b16 %v784, %v775
  %v1298 = vpack.c.b16 %v785, %v776
  %v1299 = vpack.c.b16 %v786, %v777
  %v1300 = vpack.c.b16 %v796, %v787
  %v1301 = vpack.c.b16 %v797, %v788
  %v1302 = vpack.c.b16 %v798, %v789
  %v1303 = vpack.c.b16 %v799, %v790
  %v1304 = vpack.c.b16 %v800, %v791
  %v1305 = vpack.c.b16 %v801, %v792
  %v1306 = vpack.c.b16 %v802, %v793
  %v1307 = vpack.c.b16 %v803, %v794
  %v1308 = vpack.c.b16 %v804, %v795
  %v1309 = vpack.c.b16 %v814, %v805
  %v1310 = vpack.c.b16 %v815, %v806
  %v1311 = vpack.c.b16 %v816, %v807
  %v1312 = vpack.c.b16 %v817, %v808
  %v1313 = vpack.c.b16 %v818, %v809
  %v1314 = vpack.c.b16 %v819, %v810
  %v1315 = vpack.c.b16 %v820, %v811
  %v1316 = vpack.c.b16 %v821, %v812
  %v1317 = vpack.c.b16 %v822, %v813
  %v1318 = vpack.c.b16 %v832, %v823
  %v1319 = vpack.c.b16 %v833, %v824
  %v1320 = vpack.c.b16 %v834, %v825
  %v1321 = vpack.c.b16 %v835, %v826
  %v1322 = vpack.c.b16 %v836, %v827
  %v1323 = vpack.c.b16 %v837, %v828
  %v1324 = vpack.c.b16 %v838, %v829
  %v1325 = vpack.c.b16 %v839, %v830
  %v1326 = vpack.c.b16 %v840, %v831
  %v1327 = vpack.c.b16 %v850, %v841
  %v1328 = vpack.c.b16 %v851, %v842
  %v1329 = vpack.c.b16 %v852, %v843
  %v1330 = vpack.c.b16 %v853, %v844
  %v1331 = vpack.c.b16 %v854, %v845
  %v1332 = vpack.c.b16 %v855, %v846
  %v1333 = vpack.c.b16 %v856, %v847
  %v1334 = vpack.c.b16 %v857, %v848
  %v1335 = vpack.c.b16 %v858, %v849
  %v1336 = vpack.c.b16 %v868, %v859
  %v1337 = vpack.c.b16 %v869, %v860
  %v1338 = vpack.c.b16 %v870, %v861
  %v1339 = vpack.c.b16 %v871, %v862
  %v1340 = vpack.c.b16 %v872, %v863
  %v1341 = vpack.c.b16 %v873, %v864
  %v1342 = vpack.c.b16 %v874, %v865
  %v1343 = vpack.c.b16 %v875, %v866
  %v1344 = vpack.c.b16 %v876, %v867
  %v1345 = vpack.c.b16 %v886, %v877
  %v1346 = vpack.c.b16 %v887, %v878
  %v1347 = vpack.c.b16 %v888, %v879
  %v1348 = vpack.c.b16 %v889, %v880
  %v1349 = vpack.c.b16 %v890, %v881
  %v1350 = vpack.c.b16 %v891, %v882
  %v1351 = vpack.c.b16 %v892, %v883
  %v1352 = vpack.c.b16 %v893, %v884
  %v1353 = vpack.c.b16 %v894, %v885
  %v1354 = vpack.c.b16 %v904, %v895
  %v1355 = vpack.c.b16 %v905, %v896
  %v1356 = vpack.c.b16 %v906, %v897
  %v1357 = vpack.c.b16 %v907, %v898
  %v1358 = vpack.c.b16 %v908, %v899
  %v1359 = vpack.c.b16 %v909, %v900
  %v1360 = vpack.c.b16 %v910, %v901
  %v1361 = vpack.c.b16 %v911, %v902
  %v1362 = vpack.c.b16 %v912, %v903
  %v1363 = vpack.c.b16 %v922, %v913
  %v1364 = vpack.c.b16 %v923, %v914
  %v1365 = vpack.c.b16 %v924, %v915
  %v1366 = vpack.c.b16 %v925, %v916
  %v1367 = vpack.c.b16 %v926, %v917
  %v1368 = vpack.c.b16 %v927, %v918
  %v1369 = vpack.c.b16 %v928, %v919
  %v1370 = vpack.c.b16 %v929, %v920
  %v1371 = vpack.c.b16 %v930, %v921
  %v1372 = vpack.c.b16 %v940, %v931
  %v1373 = vpack.c.b16 %v941, %v932
  %v1374 = vpack.c.b16 %v942, %v933
  %v1375 = vpack.c.b16 %v943, %v934
  %v1376 = vpack.c.b16 %v944, %v935
  %v1377 = vpack.c.b16 %v945, %v936
  %v1378 = vpack.c.b16 %v946, %v937
  %v1379 = vpack.c.b16 %v947, %v938
  %v1380 = vpack.c.b16 %v948, %v939
  %v1381 = vpack.c.b16 %v958, %v949
  %v1382 = vpack.c.b16 %v959, %v950
  %v1383 = vpack.c.b16 %v960, %v951
  %v1384 = vpack.c.b16 %v961, %v952
  %v1385 = vpack.c.b16 %v962, %v953
  %v1386 = vpack.c.b16 %v963, %v954
  %v1387 = vpack.c.b16 %v964, %v955
  %v1388 = vpack.c.b16 %v965, %v956
  %v1389 = vpack.c.b16 %v966, %v957
  %v1390 = vpack.c.b16 %v976, %v967
  %v1391 = vpack.c.b16 %v977, %v968
  %v1392 = vpack.c.b16 %v978, %v969
  %v1393 = vpack.c.b16 %v979, %v970
  %v1394 = vpack.c.b16 %v980, %v971
  %v1395 = vpack.c.b16 %v981, %v972
  %v1396 = vpack.c.b16 %v982, %v973
  %v1397 = vpack.c.b16 %v983, %v974
  %v1398 = vpack.c.b16 %v984, %v975
  %v1399 = vpack.c.b16 %v994, %v985
  %v1400 = vpack.c.b16 %v995, %v986
  %v1401 = vpack.c.b16 %v996, %v987
  %v1402 = vpack.c.b16 %v997, %v988
  %v1403 = vpack.c.b16 %v998, %v989
  %v1404 = vpack.c.b16 %v999, %v990
  %v1405 = vpack.c.b16 %v1000, %v991
  %v1406 = vpack.c.b16 %v1001, %v992
  %v1407 = vpack.c.b16 %v1002, %v993
  %v1408 = vpack.c.b16 %v1012, %v1003
  %v1409 = vpack.c.b16 %v1013, %v1004
  %v1410 = vpack.c.b16 %v1014, %v1005
  %v1411 = vpack.c.b16 %v1015, %v1006
  %v1412 = vpack.c.b16 %v1016, %v1007
  %v1413 = vpack.c.b16 %v1017, %v1008
  %v1414 = vpack.c.b16 %v1018, %v1009
  %v1415 = vpack.c.b16 %v1019, %v1010
  %v1416 = vpack.c.b16 %v1020, %v1011
  %v1417 = vpack.c.b16 %v1030, %v1021
  %v1418 = vpack.c.b16 %v1031, %v1022
  %v1419 = vpack.c.b16 %v1032, %v1023
  %v1420 = vpack.c.b16 %v1033, %v1024
  %v1421 = vpack.c.b16 %v1034, %v1025
  %v1422 = vpack.c.b16 %v1035, %v1026
  %v1423 = vpack.c.b16 %v1036, %v1027
  %v1424 = vpack.c.b16 %v1037, %v1028
  %v1425 = vpack.c.b16 %v1038, %v1029
  %v1426 = vpack.c.b16 %v1048, %v1039
  %v1427 = vpack.c.b16 %v1049, %v1040
  %v1428 = vpack.c.b16 %v1050, %v1041
  %v1429 = vpack.c.b16 %v1051, %v1042
  %v1430 = vpack.c.b16 %v1052, %v1043
  %v1431 = vpack.c.b16 %v1053, %v1044
  %v1432 = vpack.c.b16 %v1054, %v1045
  %v1433 = vpack.c.b16 %v1055, %v1046
  %v1434 = vpack.c.b16 %v1056, %v1047
  %v1435 = vpack.c.b16 %v1066, %v1057
  %v1436 = vpack.c.b16 %v1067, %v1058
  %v1437 = vpack.c.b16 %v1068, %v1059
  %v1438 = vpack.c.b16 %v1069, %v1060
  %v1439 = vpack.c.b16 %v1070, %v1061
  %v1440 = vpack.c.b16 %v1071, %v1062
  %v1441 = vpack.c.b16 %v1072, %v1063
  %v1442 = vpack.c.b16 %v1073, %v1064
  %v1443 = vpack.c.b16 %v1074, %v1065
  %v1444 = vpack.c.b16 %v1084, %v1075
  %v1445 = vpack.c.b16 %v1085, %v1076
  %v1446 = vpack.c.b16 %v1086, %v1077
  %v1447 = vpack.c.b16 %v1087, %v1078
  %v1448 = vpack.c.b16 %v1088, %v1079
  %v1449 = vpack.c.b16 %v1089, %v1080
  %v1450 = vpack.c.b16 %v1090, %v1081
  %v1451 = vpack.c.b16 %v1091, %v1082
  %v1452 = vpack.c.b16 %v1092, %v1083
  %v1453 = vpack.c.b16 %v1102, %v1093
  %v1454 = vpack.c.b16 %v1103, %v1094
  %v1455 = vpack.c.b16 %v1104, %v1095
  %v1456 = vpack.c.b16 %v1105, %v1096
  %v1457 = vpack.c.b16 %v1106, %v1097
  %v1458 = vpack.c.b16 %v1107, %v1098
  %v1459 = vpack.c.b16 %v1108, %v1099
  %v1460 = vpack.c.b16 %v1109, %v1100
  %v1461 = vpack.c.b16 %v1110, %v1101
  %v1462 = vpack.c.b16 %v1120, %v1111
  %v1463 = vpack.c.b16 %v1121, %v1112
  %v1464 = vpack.c.b16 %v1122, %v1113
  %v1465 = vpack.c.b16 %v1123, %v1114
  %v1466 = vpack.c.b16 %v1124, %v1115
  %v1467 = vpack.c.b16 %v1125, %v1116
  %v1468 = vpack.c.b16 %v1126, %v1117
  %v1469 = vpack.c.b16 %v1127, %v1118
  %v1470 = vpack.c.b16 %v1128, %v1119
  %v1471 = vpack.c.b16 %v1138, %v1129
  %v1472 = vpack.c.b16 %v1139, %v1130
  %v1473 = vpack.c.b16 %v1140, %v1131
  %v1474 = vpack.c.b16 %v1141, %v1132
  %v1475 = vpack.c.b16 %v1142, %v1133
  %v1476 = vpack.c.b16 %v1143, %v1134
  %v1477 = vpack.c.b16 %v1144, %v1135
  %v1478 = vpack.c.b16 %v1145, %v1136
  %v1479 = vpack.c.b16 %v1146, %v1137
  %v1480 = vpack.c.b16 %v1156, %v1147
  %v1481 = vpack.c.b16 %v1157, %v1148
  %v1482 = vpack.c.b16 %v1158, %v1149
  %v1483 = vpack.c.b16 %v1159, %v1150
  %v1484 = vpack.c.b16 %v1160, %v1151
  %v1485 = vpack.c.b16 %v1161, %v1152
  %v1486 = vpack.c.b16 %v1162, %v1153
  %v1487 = vpack.c.b16 %v1163, %v1154
  %v1488 = vpack.c.b16 %v1164, %v1155
  %v1489 = vpack.c.b16 %v1174, %v1165
  %v1490 = vpack.c.b16 %v1175, %v1166
  %v1491 = vpack.c.b16 %v1176, %v1167
  %v1492 = vpack.c.b16 %v1177, %v1168
  %v1493 = vpack.c.b16 %v1178, %v1169
  %v1494 = vpack.c.b16 %v1179, %v1170
  %v1495 = vpack.c.b16 %v1180, %v1171
  %v1496 = vpack.c.b16 %v1181, %v1172
  %v1497 = vpack.c.b16 %v1182, %v1173
  %v1498 = vpack.c.b16 %v1192, %v1183
  %v1499 = vpack.c.b16 %v1193, %v1184
  %v1500 = vpack.c.b16 %v1194, %v1185
  %v1501 = vpack.c.b16 %v1195, %v1186
  %v1502 = vpack.c.b16 %v1196, %v1187
  %v1503 = vpack.c.b16 %v1197, %v1188
  %v1504 = vpack.c.b16 %v1198, %v1189
  %v1505 = vpack.c.b16 %v1199, %v1190
  %v1506 = vpack.c.b16 %v1200, %v1191
  %v1507 = vpack.c.b16 %v1210, %v1201
  %v1508 = vpack.c.b16 %v1211, %v1202
  %v1509 = vpack.c.b16 %v1212, %v1203
  %v1510 = vpack.c.b16 %v1213, %v1204
  %v1511 = vpack.c.b16 %v1214, %v1205
  %v1512 = vpack.c.b16 %v1215, %v1206
  %v1513 = vpack.c.b16 %v1216, %v1207
  %v1514 = vpack.c.b16 %v1217, %v1208
  %v1515 = vpack.c.b16 %v1218, %v1209
  %v1516 = vpack.c.b16 %v1228, %v1219
  %v1517 = vpack.c.b16 %v1229, %v1220
  %v1518 = vpack.c.b16 %v1230, %v1221
  %v1519 = vpack.c.b16 %v1231, %v1222
  %v1520 = vpack.c.b16 %v1232, %v1223
  %v1521 = vpack.c.b16 %v1233, %v1224
  %v1522 = vpack.c.b16 %v1234, %v1225
  %v1523 = vpack.c.b16 %v1235, %v1226
  %v1524 = vpack.c.b16 %v1236, %v1227
  %v1525 = vpack.c.b16 %v1237, %v1237
  %v1526 = vpack.c.b16 %v1238, %v1238
  %v1527 = vpack.c.b16 %v1239, %v1239
  %v1528 = vpack.c.b16 %v1240, %v1240
  %v1529 = vpack.c.b16 %v1241, %v1241
  %v1530 = vpack.c.b16 %v1242, %v1242
  %v1531 = vpack.c.b16 %v1243, %v1243
  %v1532 = vpack.c.b16 %v1244, %v1244
  %v1533 = vpack.c.b16 %v1245, %v1245
  %vm1813 = vcmask 949248
  %v1815 = vsel %vm1813, %v360, 0
  %vm1817 = vcmask 1041408
  %v1819 = vsel %vm1817, %v1525, 0
  %v1822 = vsel %vm1817, %v1526, 0
  %v1825 = vsel %vm1817, %v1527, 0
  %v1828 = vsel %vm1817, %v1528, 0
  %v1831 = vsel %vm1817, %v1529, 0
  %v1834 = vsel %vm1817, %v1530, 0
  %v1837 = vsel %vm1817, %v1531, 0
  %v1840 = vsel %vm1817, %v1532, 0
  %v1843 = vsel %vm1817, %v1533, 0
  %1845 = vmatpush.bf16.msra.mxu0 %v1309
  %1846 = vmatpush.bf16.msra.mxu0 %v1300
  %1847 = vmatpush.bf16.msra.mxu0 %v1291
  %1848 = vmatpush.bf16.msra.mxu0 %v1282
  %1849 = vmatpush.bf16.msra.mxu0 %v1273
  %1850 = vmatpush.bf16.msra.mxu0 %v1264
  %1851 = vmatpush.bf16.msra.mxu0 %v1255
  %1852 = vmatpush.bf16.msra.mxu0 %v1246
  %1853 = vmatmul.bf16.gmra.mxu0 %v357
  %v1854 = vpop.f32.mrf.mxu0
  %v1855 = vadd.f32 %v338, %v1854
  %v1856 = vpop.f32.mrf.mxu0
  %v1857 = vadd.f32 %v343, %v1856
  %1858 = vdwg.mxu0
  %1859 = vmatpush.bf16.msra.mxu0 %v1381
  %1860 = vmatpush.bf16.msra.mxu0 %v1372
  %1861 = vmatpush.bf16.msra.mxu0 %v1363
  %1862 = vmatpush.bf16.msra.mxu0 %v1354
  %1863 = vmatpush.bf16.msra.mxu0 %v1345
  %1864 = vmatpush.bf16.msra.mxu0 %v1336
  %1865 = vmatpush.bf16.msra.mxu0 %v1327
  %1866 = vmatpush.bf16.msra.mxu0 %v1318
  %1867 = vmatmul.bf16.gmra.mxu0 %v358
  %v1868 = vpop.f32.mrf.mxu0
  %v1869 = vadd.f32 %v1855, %v1868
  %v1870 = vpop.f32.mrf.mxu0
  %v1871 = vadd.f32 %v1857, %v1870
  %1872 = vdwg.mxu0
  %1873 = vmatpush.bf16.msra.mxu0 %v1453
  %1874 = vmatpush.bf16.msra.mxu0 %v1444
  %1875 = vmatpush.bf16.msra.mxu0 %v1435
  %1876 = vmatpush.bf16.msra.mxu0 %v1426
  %1877 = vmatpush.bf16.msra.mxu0 %v1417
  %1878 = vmatpush.bf16.msra.mxu0 %v1408
  %1879 = vmatpush.bf16.msra.mxu0 %v1399
  %1880 = vmatpush.bf16.msra.mxu0 %v1390
  %1881 = vmatmul.bf16.gmra.mxu0 %v359
  %v1882 = vpop.f32.mrf.mxu0
  %v1883 = vadd.f32 %v1869, %v1882
  %v1884 = vpop.f32.mrf.mxu0
  %v1885 = vadd.f32 %v1871, %v1884
  %1886 = vdwg.mxu0
  %1887 = vmatpush.bf16.msra.mxu0 %v1819
  %1888 = vmatpush.bf16.msra.mxu0 %v1516
  %1889 = vmatpush.bf16.msra.mxu0 %v1507
  %1890 = vmatpush.bf16.msra.mxu0 %v1498
  %1891 = vmatpush.bf16.msra.mxu0 %v1489
  %1892 = vmatpush.bf16.msra.mxu0 %v1480
  %1893 = vmatpush.bf16.msra.mxu0 %v1471
  %1894 = vmatpush.bf16.msra.mxu0 %v1462
  %1895 = vmatmul.bf16.gmra.mxu0 %v1815
  %v1896 = vpop.f32.mrf.mxu0
  %v1897 = vadd.f32 %v1883, %v1896
  %v1898 = vpop.f32.mrf.mxu0
  %v1899 = vadd.f32 %v1885, %v1898
  %1900 = vdwg.mxu0
  %1901 = vmatpush.bf16.msra.mxu0 %v1310
  %1902 = vmatpush.bf16.msra.mxu0 %v1301
  %1903 = vmatpush.bf16.msra.mxu0 %v1292
  %1904 = vmatpush.bf16.msra.mxu0 %v1283
  %1905 = vmatpush.bf16.msra.mxu0 %v1274
  %1906 = vmatpush.bf16.msra.mxu0 %v1265
  %1907 = vmatpush.bf16.msra.mxu0 %v1256
  %1908 = vmatpush.bf16.msra.mxu0 %v1247
  %1909 = vmatmul.bf16.gmra.mxu0 %v357
  %v1910 = vpop.f32.mrf.mxu0
  %v1911 = vadd.f32 %v338, %v1910
  %v1912 = vpop.f32.mrf.mxu0
  %v1913 = vadd.f32 %v343, %v1912
  %1914 = vdwg.mxu0
  %1915 = vmatpush.bf16.msra.mxu0 %v1382
  %1916 = vmatpush.bf16.msra.mxu0 %v1373
  %1917 = vmatpush.bf16.msra.mxu0 %v1364
  %1918 = vmatpush.bf16.msra.mxu0 %v1355
  %1919 = vmatpush.bf16.msra.mxu0 %v1346
  %1920 = vmatpush.bf16.msra.mxu0 %v1337
  %1921 = vmatpush.bf16.msra.mxu0 %v1328
  %1922 = vmatpush.bf16.msra.mxu0 %v1319
  %1923 = vmatmul.bf16.gmra.mxu0 %v358
  %v1924 = vpop.f32.mrf.mxu0
  %v1925 = vadd.f32 %v1911, %v1924
  %v1926 = vpop.f32.mrf.mxu0
  %v1927 = vadd.f32 %v1913, %v1926
  %1928 = vdwg.mxu0
  %1929 = vmatpush.bf16.msra.mxu0 %v1454
  %1930 = vmatpush.bf16.msra.mxu0 %v1445
  %1931 = vmatpush.bf16.msra.mxu0 %v1436
  %1932 = vmatpush.bf16.msra.mxu0 %v1427
  %1933 = vmatpush.bf16.msra.mxu0 %v1418
  %1934 = vmatpush.bf16.msra.mxu0 %v1409
  %1935 = vmatpush.bf16.msra.mxu0 %v1400
  %1936 = vmatpush.bf16.msra.mxu0 %v1391
  %1937 = vmatmul.bf16.gmra.mxu0 %v359
  %v1938 = vpop.f32.mrf.mxu0
  %v1939 = vadd.f32 %v1925, %v1938
  %v1940 = vpop.f32.mrf.mxu0
  %v1941 = vadd.f32 %v1927, %v1940
  %1942 = vdwg.mxu0
  %1943 = vmatpush.bf16.msra.mxu0 %v1822
  %1944 = vmatpush.bf16.msra.mxu0 %v1517
  %1945 = vmatpush.bf16.msra.mxu0 %v1508
  %1946 = vmatpush.bf16.msra.mxu0 %v1499
  %1947 = vmatpush.bf16.msra.mxu0 %v1490
  %1948 = vmatpush.bf16.msra.mxu0 %v1481
  %1949 = vmatpush.bf16.msra.mxu0 %v1472
  %1950 = vmatpush.bf16.msra.mxu0 %v1463
  %1951 = vmatmul.bf16.gmra.mxu0 %v1815
  %v1952 = vpop.f32.mrf.mxu0
  %v1953 = vadd.f32 %v1939, %v1952
  %v1954 = vpop.f32.mrf.mxu0
  %v1955 = vadd.f32 %v1941, %v1954
  %1956 = vdwg.mxu0
  %1957 = vmatpush.bf16.msra.mxu0 %v1311
  %1958 = vmatpush.bf16.msra.mxu0 %v1302
  %1959 = vmatpush.bf16.msra.mxu0 %v1293
  %1960 = vmatpush.bf16.msra.mxu0 %v1284
  %1961 = vmatpush.bf16.msra.mxu0 %v1275
  %1962 = vmatpush.bf16.msra.mxu0 %v1266
  %1963 = vmatpush.bf16.msra.mxu0 %v1257
  %1964 = vmatpush.bf16.msra.mxu0 %v1248
  %1965 = vmatmul.bf16.gmra.mxu0 %v357
  %v1966 = vpop.f32.mrf.mxu0
  %v1967 = vadd.f32 %v338, %v1966
  %v1968 = vpop.f32.mrf.mxu0
  %v1969 = vadd.f32 %v343, %v1968
  %1970 = vdwg.mxu0
  %1971 = vmatpush.bf16.msra.mxu0 %v1383
  %1972 = vmatpush.bf16.msra.mxu0 %v1374
  %1973 = vmatpush.bf16.msra.mxu0 %v1365
  %1974 = vmatpush.bf16.msra.mxu0 %v1356
  %1975 = vmatpush.bf16.msra.mxu0 %v1347
  %1976 = vmatpush.bf16.msra.mxu0 %v1338
  %1977 = vmatpush.bf16.msra.mxu0 %v1329
  %1978 = vmatpush.bf16.msra.mxu0 %v1320
  %1979 = vmatmul.bf16.gmra.mxu0 %v358
  %v1980 = vpop.f32.mrf.mxu0
  %v1981 = vadd.f32 %v1967, %v1980
  %v1982 = vpop.f32.mrf.mxu0
  %v1983 = vadd.f32 %v1969, %v1982
  %1984 = vdwg.mxu0
  %1985 = vmatpush.bf16.msra.mxu0 %v1455
  %1986 = vmatpush.bf16.msra.mxu0 %v1446
  %1987 = vmatpush.bf16.msra.mxu0 %v1437
  %1988 = vmatpush.bf16.msra.mxu0 %v1428
  %1989 = vmatpush.bf16.msra.mxu0 %v1419
  %1990 = vmatpush.bf16.msra.mxu0 %v1410
  %1991 = vmatpush.bf16.msra.mxu0 %v1401
  %1992 = vmatpush.bf16.msra.mxu0 %v1392
  %1993 = vmatmul.bf16.gmra.mxu0 %v359
  %v1994 = vpop.f32.mrf.mxu0
  %v1995 = vadd.f32 %v1981, %v1994
  %v1996 = vpop.f32.mrf.mxu0
  %v1997 = vadd.f32 %v1983, %v1996
  %1998 = vdwg.mxu0
  %1999 = vmatpush.bf16.msra.mxu0 %v1825
  %2000 = vmatpush.bf16.msra.mxu0 %v1518
  %2001 = vmatpush.bf16.msra.mxu0 %v1509
  %2002 = vmatpush.bf16.msra.mxu0 %v1500
  %2003 = vmatpush.bf16.msra.mxu0 %v1491
  %2004 = vmatpush.bf16.msra.mxu0 %v1482
  %2005 = vmatpush.bf16.msra.mxu0 %v1473
  %2006 = vmatpush.bf16.msra.mxu0 %v1464
  %2007 = vmatmul.bf16.gmra.mxu0 %v1815
  %v2008 = vpop.f32.mrf.mxu0
  %v2009 = vadd.f32 %v1995, %v2008
  %v2010 = vpop.f32.mrf.mxu0
  %v2011 = vadd.f32 %v1997, %v2010
  %2012 = vdwg.mxu0
  %2013 = vmatpush.bf16.msra.mxu0 %v1312
  %2014 = vmatpush.bf16.msra.mxu0 %v1303
  %2015 = vmatpush.bf16.msra.mxu0 %v1294
  %2016 = vmatpush.bf16.msra.mxu0 %v1285
  %2017 = vmatpush.bf16.msra.mxu0 %v1276
  %2018 = vmatpush.bf16.msra.mxu0 %v1267
  %2019 = vmatpush.bf16.msra.mxu0 %v1258
  %2020 = vmatpush.bf16.msra.mxu0 %v1249
  %2021 = vmatmul.bf16.gmra.mxu0 %v357
  %v2022 = vpop.f32.mrf.mxu0
  %v2023 = vadd.f32 %v338, %v2022
  %v2024 = vpop.f32.mrf.mxu0
  %v2025 = vadd.f32 %v343, %v2024
  %2026 = vdwg.mxu0
  %2027 = vmatpush.bf16.msra.mxu0 %v1384
  %2028 = vmatpush.bf16.msra.mxu0 %v1375
  %2029 = vmatpush.bf16.msra.mxu0 %v1366
  %2030 = vmatpush.bf16.msra.mxu0 %v1357
  %2031 = vmatpush.bf16.msra.mxu0 %v1348
  %2032 = vmatpush.bf16.msra.mxu0 %v1339
  %2033 = vmatpush.bf16.msra.mxu0 %v1330
  %2034 = vmatpush.bf16.msra.mxu0 %v1321
  %2035 = vmatmul.bf16.gmra.mxu0 %v358
  %v2036 = vpop.f32.mrf.mxu0
  %v2037 = vadd.f32 %v2023, %v2036
  %v2038 = vpop.f32.mrf.mxu0
  %v2039 = vadd.f32 %v2025, %v2038
  %2040 = vdwg.mxu0
  %2041 = vmatpush.bf16.msra.mxu0 %v1456
  %2042 = vmatpush.bf16.msra.mxu0 %v1447
  %2043 = vmatpush.bf16.msra.mxu0 %v1438
  %2044 = vmatpush.bf16.msra.mxu0 %v1429
  %2045 = vmatpush.bf16.msra.mxu0 %v1420
  %2046 = vmatpush.bf16.msra.mxu0 %v1411
  %2047 = vmatpush.bf16.msra.mxu0 %v1402
  %2048 = vmatpush.bf16.msra.mxu0 %v1393
  %2049 = vmatmul.bf16.gmra.mxu0 %v359
  %v2050 = vpop.f32.mrf.mxu0
  %v2051 = vadd.f32 %v2037, %v2050
  %v2052 = vpop.f32.mrf.mxu0
  %v2053 = vadd.f32 %v2039, %v2052
  %2054 = vdwg.mxu0
  %2055 = vmatpush.bf16.msra.mxu0 %v1828
  %2056 = vmatpush.bf16.msra.mxu0 %v1519
  %2057 = vmatpush.bf16.msra.mxu0 %v1510
  %2058 = vmatpush.bf16.msra.mxu0 %v1501
  %2059 = vmatpush.bf16.msra.mxu0 %v1492
  %2060 = vmatpush.bf16.msra.mxu0 %v1483
  %2061 = vmatpush.bf16.msra.mxu0 %v1474
  %2062 = vmatpush.bf16.msra.mxu0 %v1465
  %2063 = vmatmul.bf16.gmra.mxu0 %v1815
  %v2064 = vpop.f32.mrf.mxu0
  %v2065 = vadd.f32 %v2051, %v2064
  %v2066 = vpop.f32.mrf.mxu0
  %v2067 = vadd.f32 %v2053, %v2066
  %2068 = vdwg.mxu0
  %2069 = vmatpush.bf16.msra.mxu0 %v1313
  %2070 = vmatpush.bf16.msra.mxu0 %v1304
  %2071 = vmatpush.bf16.msra.mxu0 %v1295
  %2072 = vmatpush.bf16.msra.mxu0 %v1286
  %2073 = vmatpush.bf16.msra.mxu0 %v1277
  %2074 = vmatpush.bf16.msra.mxu0 %v1268
  %2075 = vmatpush.bf16.msra.mxu0 %v1259
  %2076 = vmatpush.bf16.msra.mxu0 %v1250
  %2077 = vmatmul.bf16.gmra.mxu0 %v357
  %v2078 = vpop.f32.mrf.mxu0
  %v2079 = vadd.f32 %v338, %v2078
  %v2080 = vpop.f32.mrf.mxu0
  %v2081 = vadd.f32 %v343, %v2080
  %2082 = vdwg.mxu0
  %2083 = vmatpush.bf16.msra.mxu0 %v1385
  %2084 = vmatpush.bf16.msra.mxu0 %v1376
  %2085 = vmatpush.bf16.msra.mxu0 %v1367
  %2086 = vmatpush.bf16.msra.mxu0 %v1358
  %2087 = vmatpush.bf16.msra.mxu0 %v1349
  %2088 = vmatpush.bf16.msra.mxu0 %v1340
  %2089 = vmatpush.bf16.msra.mxu0 %v1331
  %2090 = vmatpush.bf16.msra.mxu0 %v1322
  %2091 = vmatmul.bf16.gmra.mxu0 %v358
  %v2092 = vpop.f32.mrf.mxu0
  %v2093 = vadd.f32 %v2079, %v2092
  %v2094 = vpop.f32.mrf.mxu0
  %v2095 = vadd.f32 %v2081, %v2094
  %2096 = vdwg.mxu0
  %2097 = vmatpush.bf16.msra.mxu0 %v1457
  %2098 = vmatpush.bf16.msra.mxu0 %v1448
  %2099 = vmatpush.bf16.msra.mxu0 %v1439
  %2100 = vmatpush.bf16.msra.mxu0 %v1430
  %2101 = vmatpush.bf16.msra.mxu0 %v1421
  %2102 = vmatpush.bf16.msra.mxu0 %v1412
  %2103 = vmatpush.bf16.msra.mxu0 %v1403
  %2104 = vmatpush.bf16.msra.mxu0 %v1394
  %2105 = vmatmul.bf16.gmra.mxu0 %v359
  %v2106 = vpop.f32.mrf.mxu0
  %v2107 = vadd.f32 %v2093, %v2106
  %v2108 = vpop.f32.mrf.mxu0
  %v2109 = vadd.f32 %v2095, %v2108
  %2110 = vdwg.mxu0
  %2111 = vmatpush.bf16.msra.mxu0 %v1831
  %2112 = vmatpush.bf16.msra.mxu0 %v1520
  %2113 = vmatpush.bf16.msra.mxu0 %v1511
  %2114 = vmatpush.bf16.msra.mxu0 %v1502
  %2115 = vmatpush.bf16.msra.mxu0 %v1493
  %2116 = vmatpush.bf16.msra.mxu0 %v1484
  %2117 = vmatpush.bf16.msra.mxu0 %v1475
  %2118 = vmatpush.bf16.msra.mxu0 %v1466
  %2119 = vmatmul.bf16.gmra.mxu0 %v1815
  %v2120 = vpop.f32.mrf.mxu0
  %v2121 = vadd.f32 %v2107, %v2120
  %v2122 = vpop.f32.mrf.mxu0
  %v2123 = vadd.f32 %v2109, %v2122
  %2124 = vdwg.mxu0
  %2125 = vmatpush.bf16.msra.mxu0 %v1314
  %2126 = vmatpush.bf16.msra.mxu0 %v1305
  %2127 = vmatpush.bf16.msra.mxu0 %v1296
  %2128 = vmatpush.bf16.msra.mxu0 %v1287
  %2129 = vmatpush.bf16.msra.mxu0 %v1278
  %2130 = vmatpush.bf16.msra.mxu0 %v1269
  %2131 = vmatpush.bf16.msra.mxu0 %v1260
  %2132 = vmatpush.bf16.msra.mxu0 %v1251
  %2133 = vmatmul.bf16.gmra.mxu0 %v357
  %v2134 = vpop.f32.mrf.mxu0
  %v2135 = vadd.f32 %v338, %v2134
  %v2136 = vpop.f32.mrf.mxu0
  %v2137 = vadd.f32 %v343, %v2136
  %2138 = vdwg.mxu0
  %2139 = vmatpush.bf16.msra.mxu0 %v1386
  %2140 = vmatpush.bf16.msra.mxu0 %v1377
  %2141 = vmatpush.bf16.msra.mxu0 %v1368
  %2142 = vmatpush.bf16.msra.mxu0 %v1359
  %2143 = vmatpush.bf16.msra.mxu0 %v1350
  %2144 = vmatpush.bf16.msra.mxu0 %v1341
  %2145 = vmatpush.bf16.msra.mxu0 %v1332
  %2146 = vmatpush.bf16.msra.mxu0 %v1323
  %2147 = vmatmul.bf16.gmra.mxu0 %v358
  %v2148 = vpop.f32.mrf.mxu0
  %v2149 = vadd.f32 %v2135, %v2148
  %v2150 = vpop.f32.mrf.mxu0
  %v2151 = vadd.f32 %v2137, %v2150
  %2152 = vdwg.mxu0
  %2153 = vmatpush.bf16.msra.mxu0 %v1458
  %2154 = vmatpush.bf16.msra.mxu0 %v1449
  %2155 = vmatpush.bf16.msra.mxu0 %v1440
  %2156 = vmatpush.bf16.msra.mxu0 %v1431
  %2157 = vmatpush.bf16.msra.mxu0 %v1422
  %2158 = vmatpush.bf16.msra.mxu0 %v1413
  %2159 = vmatpush.bf16.msra.mxu0 %v1404
  %2160 = vmatpush.bf16.msra.mxu0 %v1395
  %2161 = vmatmul.bf16.gmra.mxu0 %v359
  %v2162 = vpop.f32.mrf.mxu0
  %v2163 = vadd.f32 %v2149, %v2162
  %v2164 = vpop.f32.mrf.mxu0
  %v2165 = vadd.f32 %v2151, %v2164
  %2166 = vdwg.mxu0
  %2167 = vmatpush.bf16.msra.mxu0 %v1834
  %2168 = vmatpush.bf16.msra.mxu0 %v1521
  %2169 = vmatpush.bf16.msra.mxu0 %v1512
  %2170 = vmatpush.bf16.msra.mxu0 %v1503
  %2171 = vmatpush.bf16.msra.mxu0 %v1494
  %2172 = vmatpush.bf16.msra.mxu0 %v1485
  %2173 = vmatpush.bf16.msra.mxu0 %v1476
  %2174 = vmatpush.bf16.msra.mxu0 %v1467
  %2175 = vmatmul.bf16.gmra.mxu0 %v1815
  %v2176 = vpop.f32.mrf.mxu0
  %v2177 = vadd.f32 %v2163, %v2176
  %v2178 = vpop.f32.mrf.mxu0
  %v2179 = vadd.f32 %v2165, %v2178
  %2180 = vdwg.mxu0
  %2181 = vmatpush.bf16.msra.mxu0 %v1315
  %2182 = vmatpush.bf16.msra.mxu0 %v1306
  %2183 = vmatpush.bf16.msra.mxu0 %v1297
  %2184 = vmatpush.bf16.msra.mxu0 %v1288
  %2185 = vmatpush.bf16.msra.mxu0 %v1279
  %2186 = vmatpush.bf16.msra.mxu0 %v1270
  %2187 = vmatpush.bf16.msra.mxu0 %v1261
  %2188 = vmatpush.bf16.msra.mxu0 %v1252
  %2189 = vmatmul.bf16.gmra.mxu0 %v357
  %v2190 = vpop.f32.mrf.mxu0
  %v2191 = vadd.f32 %v338, %v2190
  %v2192 = vpop.f32.mrf.mxu0
  %v2193 = vadd.f32 %v343, %v2192
  %2194 = vdwg.mxu0
  %2195 = vmatpush.bf16.msra.mxu0 %v1387
  %2196 = vmatpush.bf16.msra.mxu0 %v1378
  %2197 = vmatpush.bf16.msra.mxu0 %v1369
  %2198 = vmatpush.bf16.msra.mxu0 %v1360
  %2199 = vmatpush.bf16.msra.mxu0 %v1351
  %2200 = vmatpush.bf16.msra.mxu0 %v1342
  %2201 = vmatpush.bf16.msra.mxu0 %v1333
  %2202 = vmatpush.bf16.msra.mxu0 %v1324
  %2203 = vmatmul.bf16.gmra.mxu0 %v358
  %v2204 = vpop.f32.mrf.mxu0
  %v2205 = vadd.f32 %v2191, %v2204
  %v2206 = vpop.f32.mrf.mxu0
  %v2207 = vadd.f32 %v2193, %v2206
  %2208 = vdwg.mxu0
  %2209 = vmatpush.bf16.msra.mxu0 %v1459
  %2210 = vmatpush.bf16.msra.mxu0 %v1450
  %2211 = vmatpush.bf16.msra.mxu0 %v1441
  %2212 = vmatpush.bf16.msra.mxu0 %v1432
  %2213 = vmatpush.bf16.msra.mxu0 %v1423
  %2214 = vmatpush.bf16.msra.mxu0 %v1414
  %2215 = vmatpush.bf16.msra.mxu0 %v1405
  %2216 = vmatpush.bf16.msra.mxu0 %v1396
  %2217 = vmatmul.bf16.gmra.mxu0 %v359
  %v2218 = vpop.f32.mrf.mxu0
  %v2219 = vadd.f32 %v2205, %v2218
  %v2220 = vpop.f32.mrf.mxu0
  %v2221 = vadd.f32 %v2207, %v2220
  %2222 = vdwg.mxu0
  %2223 = vmatpush.bf16.msra.mxu0 %v1837
  %2224 = vmatpush.bf16.msra.mxu0 %v1522
  %2225 = vmatpush.bf16.msra.mxu0 %v1513
  %2226 = vmatpush.bf16.msra.mxu0 %v1504
  %2227 = vmatpush.bf16.msra.mxu0 %v1495
  %2228 = vmatpush.bf16.msra.mxu0 %v1486
  %2229 = vmatpush.bf16.msra.mxu0 %v1477
  %2230 = vmatpush.bf16.msra.mxu0 %v1468
  %2231 = vmatmul.bf16.gmra.mxu0 %v1815
  %v2232 = vpop.f32.mrf.mxu0
  %v2233 = vadd.f32 %v2219, %v2232
  %v2234 = vpop.f32.mrf.mxu0
  %v2235 = vadd.f32 %v2221, %v2234
  %2236 = vdwg.mxu0
  %2237 = vmatpush.bf16.msra.mxu0 %v1316
  %2238 = vmatpush.bf16.msra.mxu0 %v1307
  %2239 = vmatpush.bf16.msra.mxu0 %v1298
  %2240 = vmatpush.bf16.msra.mxu0 %v1289
  %2241 = vmatpush.bf16.msra.mxu0 %v1280
  %2242 = vmatpush.bf16.msra.mxu0 %v1271
  %2243 = vmatpush.bf16.msra.mxu0 %v1262
  %2244 = vmatpush.bf16.msra.mxu0 %v1253
  %2245 = vmatmul.bf16.gmra.mxu0 %v357
  %v2246 = vpop.f32.mrf.mxu0
  %v2247 = vadd.f32 %v338, %v2246
  %v2248 = vpop.f32.mrf.mxu0
  %v2249 = vadd.f32 %v343, %v2248
  %2250 = vdwg.mxu0
  %2251 = vmatpush.bf16.msra.mxu0 %v1388
  %2252 = vmatpush.bf16.msra.mxu0 %v1379
  %2253 = vmatpush.bf16.msra.mxu0 %v1370
  %2254 = vmatpush.bf16.msra.mxu0 %v1361
  %2255 = vmatpush.bf16.msra.mxu0 %v1352
  %2256 = vmatpush.bf16.msra.mxu0 %v1343
  %2257 = vmatpush.bf16.msra.mxu0 %v1334
  %2258 = vmatpush.bf16.msra.mxu0 %v1325
  %2259 = vmatmul.bf16.gmra.mxu0 %v358
  %v2260 = vpop.f32.mrf.mxu0
  %v2261 = vadd.f32 %v2247, %v2260
  %v2262 = vpop.f32.mrf.mxu0
  %v2263 = vadd.f32 %v2249, %v2262
  %2264 = vdwg.mxu0
  %2265 = vmatpush.bf16.msra.mxu0 %v1460
  %2266 = vmatpush.bf16.msra.mxu0 %v1451
  %2267 = vmatpush.bf16.msra.mxu0 %v1442
  %2268 = vmatpush.bf16.msra.mxu0 %v1433
  %2269 = vmatpush.bf16.msra.mxu0 %v1424
  %2270 = vmatpush.bf16.msra.mxu0 %v1415
  %2271 = vmatpush.bf16.msra.mxu0 %v1406
  %2272 = vmatpush.bf16.msra.mxu0 %v1397
  %2273 = vmatmul.bf16.gmra.mxu0 %v359
  %v2274 = vpop.f32.mrf.mxu0
  %v2275 = vadd.f32 %v2261, %v2274
  %v2276 = vpop.f32.mrf.mxu0
  %v2277 = vadd.f32 %v2263, %v2276
  %2278 = vdwg.mxu0
  %2279 = vmatpush.bf16.msra.mxu0 %v1840
  %2280 = vmatpush.bf16.msra.mxu0 %v1523
  %2281 = vmatpush.bf16.msra.mxu0 %v1514
  %2282 = vmatpush.bf16.msra.mxu0 %v1505
  %2283 = vmatpush.bf16.msra.mxu0 %v1496
  %2284 = vmatpush.bf16.msra.mxu0 %v1487
  %2285 = vmatpush.bf16.msra.mxu0 %v1478
  %2286 = vmatpush.bf16.msra.mxu0 %v1469
  %2287 = vmatmul.bf16.gmra.mxu0 %v1815
  %v2288 = vpop.f32.mrf.mxu0
  %v2289 = vadd.f32 %v2275, %v2288
  %v2290 = vpop.f32.mrf.mxu0
  %v2291 = vadd.f32 %v2277, %v2290
  %2292 = vdwg.mxu0
  %2293 = vmatpush.bf16.msra.mxu0 %v1317
  %2294 = vmatpush.bf16.msra.mxu0 %v1308
  %2295 = vmatpush.bf16.msra.mxu0 %v1299
  %2296 = vmatpush.bf16.msra.mxu0 %v1290
  %2297 = vmatpush.bf16.msra.mxu0 %v1281
  %2298 = vmatpush.bf16.msra.mxu0 %v1272
  %2299 = vmatpush.bf16.msra.mxu0 %v1263
  %2300 = vmatpush.bf16.msra.mxu0 %v1254
  %2301 = vmatmul.bf16.gmra.mxu0 %v357
  %v2302 = vpop.f32.mrf.mxu0
  %v2303 = vadd.f32 %v338, %v2302
  %v2304 = vpop.f32.mrf.mxu0
  %v2305 = vadd.f32 %v343, %v2304
  %2306 = vdwg.mxu0
  %2307 = vmatpush.bf16.msra.mxu0 %v1389
  %2308 = vmatpush.bf16.msra.mxu0 %v1380
  %2309 = vmatpush.bf16.msra.mxu0 %v1371
  %2310 = vmatpush.bf16.msra.mxu0 %v1362
  %2311 = vmatpush.bf16.msra.mxu0 %v1353
  %2312 = vmatpush.bf16.msra.mxu0 %v1344
  %2313 = vmatpush.bf16.msra.mxu0 %v1335
  %2314 = vmatpush.bf16.msra.mxu0 %v1326
  %2315 = vmatmul.bf16.gmra.mxu0 %v358
  %v2316 = vpop.f32.mrf.mxu0
  %v2317 = vadd.f32 %v2303, %v2316
  %v2318 = vpop.f32.mrf.mxu0
  %v2319 = vadd.f32 %v2305, %v2318
  %2320 = vdwg.mxu0
  %2321 = vmatpush.bf16.msra.mxu0 %v1461
  %2322 = vmatpush.bf16.msra.mxu0 %v1452
  %2323 = vmatpush.bf16.msra.mxu0 %v1443
  %2324 = vmatpush.bf16.msra.mxu0 %v1434
  %2325 = vmatpush.bf16.msra.mxu0 %v1425
  %2326 = vmatpush.bf16.msra.mxu0 %v1416
  %2327 = vmatpush.bf16.msra.mxu0 %v1407
  %2328 = vmatpush.bf16.msra.mxu0 %v1398
  %2329 = vmatmul.bf16.gmra.mxu0 %v359
  %v2330 = vpop.f32.mrf.mxu0
  %v2331 = vadd.f32 %v2317, %v2330
  %v2332 = vpop.f32.mrf.mxu0
  %v2333 = vadd.f32 %v2319, %v2332
  %2334 = vdwg.mxu0
  %2335 = vmatpush.bf16.msra.mxu0 %v1843
  %2336 = vmatpush.bf16.msra.mxu0 %v1524
  %2337 = vmatpush.bf16.msra.mxu0 %v1515
  %2338 = vmatpush.bf16.msra.mxu0 %v1506
  %2339 = vmatpush.bf16.msra.mxu0 %v1497
  %2340 = vmatpush.bf16.msra.mxu0 %v1488
  %2341 = vmatpush.bf16.msra.mxu0 %v1479
  %2342 = vmatpush.bf16.msra.mxu0 %v1470
  %2343 = vmatmul.bf16.gmra.mxu0 %v1815
  %v2344 = vpop.f32.mrf.mxu0
  %v2345 = vadd.f32 %v2331, %v2344
  %v2346 = vpop.f32.mrf.mxu0
  %v2347 = vadd.f32 %v2333, %v2346
  %2348 = vdwg.mxu0
  %v2349 = vmax.f32 %v1897, 0.0
  %v2350 = vmax.f32 %v1953, 0.0
  %v2351 = vmax.f32 %v2009, 0.0
  %v2352 = vmax.f32 %v2065, 0.0
  %v2353 = vmax.f32 %v2121, 0.0
  %v2354 = vmax.f32 %v2177, 0.0
  %v2355 = vmax.f32 %v2233, 0.0
  %v2356 = vmax.f32 %v2289, 0.0
  %v2357 = vmax.f32 %v2345, 0.0
  %v2358 = vmax.f32 %v1899, 0.0
  %v2359 = vmax.f32 %v1955, 0.0
  %v2360 = vmax.f32 %v2011, 0.0
  %v2361 = vmax.f32 %v2067, 0.0
  %v2362 = vmax.f32 %v2123, 0.0
  %v2363 = vmax.f32 %v2179, 0.0
  %v2364 = vmax.f32 %v2235, 0.0
  %v2365 = vmax.f32 %v2291, 0.0
  %v2366 = vmax.f32 %v2347, 0.0
  %2367 = vst [vmem:[%s3] sm:$0xff] %v2349
  %2368 = vst [vmem:[%s3 + $0x8] sm:$0xff] %v2350
  %2369 = vst [vmem:[%s3 + $0x10] sm:$0xff] %v2351
  %2370 = vst [vmem:[%s3 + $0x18] sm:$0xff] %v2352
  %2371 = vst [vmem:[%s3 + $0x20] sm:$0xff] %v2353
  %2372 = vst [vmem:[%s3 + $0x28] sm:$0xff] %v2354
  %2373 = vst [vmem:[%s3 + $0x30] sm:$0xff] %v2355
  %2374 = vst [vmem:[%s3 + $0x38] sm:$0xff] %v2356
  %2375 = vst [vmem:[%s3 + $0x40] sm:$0xff] %v2357
  %2376 = vst [vmem:[%s3 + $0x48] sm:$0x3] %v2358
  %2377 = vst [vmem:[%s3 + $0x50] sm:$0x3] %v2359
  %2378 = vst [vmem:[%s3 + $0x58] sm:$0x3] %v2360
  %2379 = vst [vmem:[%s3 + $0x60] sm:$0x3] %v2361
  %2380 = vst [vmem:[%s3 + $0x68] sm:$0x3] %v2362
  %2381 = vst [vmem:[%s3 + $0x70] sm:$0x3] %v2363
  %2382 = vst [vmem:[%s3 + $0x78] sm:$0x3] %v2364
  %2383 = vst [vmem:[%s3 + $0x80] sm:$0x3] %v2365
  %2384 = vst [vmem:[%s3 + $0x88] sm:$0x3] %v2366
  // Predicated region
  $region14: #{net_forward.8} parent=0 // pred_check
    _
  $region15: #{net_forward.8} parent=0 // pred_check_branch
    %2386 = sbr.rel (0) target = $region17
  $region16: #{net_forward.8} parent=0 // pred_region
    _
  $region17: #{net_forward.8} parent=0 // pred_fallthru
    _
  // Predicated region
  $region18: #{net_forward.8} parent=0 // pred_check
    _
  $region19: #{net_forward.8} parent=0 // pred_check_branch
    %2388 = sbr.rel (0) target = $region21
  $region20: #{net_forward.8} parent=0 // pred_region
    _
  $region21: #{net_forward.8} parent=0 // pred_fallthru
    _

// kernel: net_forward.9
$region0: #{net_forward.9}
  #allocation0 [shape = 'u32[]', space=smem, size = 0x4, offset = 0x4, fixed_abs, tag = 'smem constant byte address 0x4 - core index']
  #allocation1 [shape = 'u32[72,128]{1,0:T(1,128)}', space=vmem, size = 0x9000, scoped, tag = 'internal scratch']
  #allocation2 [shape = 'f32[1,1]{1,0:T(1,128)S(1)}', space=vmem, size = 0x200, scoped, tag = 'scoped memory for net_forward.9']
  %s0 = inlined_call_operand.vmem [shape: bf16[1,250,6272], index: 0, kind: input, shape index: {}]
  %s1 = inlined_call_operand.vmem [shape: bf16[1,250], index: 1, kind: input, shape index: {}]
  %s2 = inlined_call_operand.<no memory space> [shape: f32[1,1], index: 2, kind: input, shape index: {}]
  %s3 = inlined_call_operand.vmem [shape: f32[1,1,6272], index: 3, kind: output, shape index: {}]
  %s4 = sld [smem:[#allocation0]]
  $region22: #{net_forward.9} parent=0
    _
  %s6 = ssub.s32 1, %s4
  %s7 = scalar_select 0, %s6, %s4
  %v8 = vstv %s2
  %9 = vst [vmem:[#allocation2] sm:$0x1] %v8
  // Predicated region
  $region2: #{net_forward.9} parent=0 // pred_check
    _
  $region3: #{net_forward.9} parent=0 // pred_check_branch
    %11 = sbr.rel (0) target = $region5
  $region4: #{net_forward.9} parent=0 // pred_region
    _
  $region5: #{net_forward.9} parent=0 // pred_fallthru
    _
  // Predicated region
  $region6: #{net_forward.9} parent=0 // pred_check
    _
  $region7: #{net_forward.9} parent=0 // pred_check_branch
    %13 = sbr.rel (0) target = $region9
  $region8: #{net_forward.9} parent=0 // pred_region
    _
  $region9: #{net_forward.9} parent=0 // pred_fallthru
    _
  // Predicated region
  $region10: #{net_forward.9} parent=0 // pred_check
    _
  $region11: #{net_forward.9} parent=0 // pred_check_branch
    %15 = sbr.rel (0) target = $region13
  $region12: #{net_forward.9} parent=0 // pred_region
    _
  $region13: #{net_forward.9} parent=0 // pred_fallthru
    _
  %v16 = vld [vmem:[%s1] sm:$0x3]
  %v17 = vld [vmem:[%s0] sm:$0xff]
  %v18 = vld [vmem:[%s0 + $0x8] sm:$0xff]
  %v19 = vld [vmem:[%s0 + $0x10] sm:$0xff]
  %v20 = vld [vmem:[%s0 + $0x18] sm:$0xff]
  %v21 = vld [vmem:[%s0 + $0x20] sm:$0xff]
  %v22 = vld [vmem:[%s0 + $0x28] sm:$0xff]
  %v23 = vld [vmem:[%s0 + $0x30] sm:$0xff]
  %v24 = vld [vmem:[%s0 + $0x38] sm:$0xff]
  %v25 = vld [vmem:[%s0 + $0x40] sm:$0xff]
  %v26 = vld [vmem:[%s0 + $0x48] sm:$0xff]
  %v27 = vld [vmem:[%s0 + $0x50] sm:$0xff]
  %v28 = vld [vmem:[%s0 + $0x58] sm:$0xff]
  %v29 = vld [vmem:[%s0 + $0x60] sm:$0xff]
  %v30 = vld [vmem:[%s0 + $0x68] sm:$0xff]
  %v31 = vld [vmem:[%s0 + $0x70] sm:$0xff]
  %v32 = vld [vmem:[%s0 + $0x78] sm:$0xff]
  %v33 = vld [vmem:[%s0 + $0x80] sm:$0xff]
  %v34 = vld [vmem:[%s0 + $0x88] sm:$0xff]
  %v35 = vld [vmem:[%s0 + $0x90] sm:$0xff]
  %v36 = vld [vmem:[%s0 + $0x98] sm:$0xff]
  %v37 = vld [vmem:[%s0 + $0xa0] sm:$0xff]
  %v38 = vld [vmem:[%s0 + $0xa8] sm:$0xff]
  %v39 = vld [vmem:[%s0 + $0xb0] sm:$0xff]
  %v40 = vld [vmem:[%s0 + $0xb8] sm:$0xff]
  %v41 = vld [vmem:[%s0 + $0xc0] sm:$0xf]
  %v42 = vld [vmem:[%s0 + $0xc4] sm:$0xff]
  %v43 = vld [vmem:[%s0 + $0xcc] sm:$0xff]
  %v44 = vld [vmem:[%s0 + $0xd4] sm:$0xff]
  %v45 = vld [vmem:[%s0 + $0xdc] sm:$0xff]
  %v46 = vld [vmem:[%s0 + $0xe4] sm:$0xff]
  %v47 = vld [vmem:[%s0 + $0xec] sm:$0xff]
  %v48 = vld [vmem:[%s0 + $0xf4] sm:$0xff]
  %v49 = vld [vmem:[%s0 + $0xfc] sm:$0xff]
  %v50 = vld [vmem:[%s0 + $0x104] sm:$0xff]
  %v51 = vld [vmem:[%s0 + $0x10c] sm:$0xff]
  %v52 = vld [vmem:[%s0 + $0x114] sm:$0xff]
  %v53 = vld [vmem:[%s0 + $0x11c] sm:$0xff]
  %v54 = vld [vmem:[%s0 + $0x124] sm:$0xff]
  %v55 = vld [vmem:[%s0 + $0x12c] sm:$0xff]
  %v56 = vld [vmem:[%s0 + $0x134] sm:$0xff]
  %v57 = vld [vmem:[%s0 + $0x13c] sm:$0xff]
  %v58 = vld [vmem:[%s0 + $0x144] sm:$0xff]
  %v59 = vld [vmem:[%s0 + $0x14c] sm:$0xff]
  %v60 = vld [vmem:[%s0 + $0x154] sm:$0xff]
  %v61 = vld [vmem:[%s0 + $0x15c] sm:$0xff]
  %v62 = vld [vmem:[%s0 + $0x164] sm:$0xff]
  %v63 = vld [vmem:[%s0 + $0x16c] sm:$0xff]
  %v64 = vld [vmem:[%s0 + $0x174] sm:$0xff]
  %v65 = vld [vmem:[%s0 + $0x17c] sm:$0xff]
  %v66 = vld [vmem:[%s0 + $0x184] sm:$0xf]
  %v67 = vld [vmem:[%s0 + $0x188] sm:$0xff]
  %v68 = vld [vmem:[%s0 + $0x190] sm:$0xff]
  %v69 = vld [vmem:[%s0 + $0x198] sm:$0xff]
  %v70 = vld [vmem:[%s0 + $0x1a0] sm:$0xff]
  %v71 = vld [vmem:[%s0 + $0x1a8] sm:$0xff]
  %v72 = vld [vmem:[%s0 + $0x1b0] sm:$0xff]
  %v73 = vld [vmem:[%s0 + $0x1b8] sm:$0xff]
  %v74 = vld [vmem:[%s0 + $0x1c0] sm:$0xff]
  %v75 = vld [vmem:[%s0 + $0x1c8] sm:$0xff]
  %v76 = vld [vmem:[%s0 + $0x1d0] sm:$0xff]
  %v77 = vld [vmem:[%s0 + $0x1d8] sm:$0xff]
  %v78 = vld [vmem:[%s0 + $0x1e0] sm:$0xff]
  %v79 = vld [vmem:[%s0 + $0x1e8] sm:$0xff]
  %v80 = vld [vmem:[%s0 + $0x1f0] sm:$0xff]
  %v81 = vld [vmem:[%s0 + $0x1f8] sm:$0xff]
  %v82 = vld [vmem:[%s0 + $0x200] sm:$0xff]
  %v83 = vld [vmem:[%s0 + $0x208] sm:$0xff]
  %v84 = vld [vmem:[%s0 + $0x210] sm:$0xff]
  %v85 = vld [vmem:[%s0 + $0x218] sm:$0xff]
  %v86 = vld [vmem:[%s0 + $0x220] sm:$0xff]
  %v87 = vld [vmem:[%s0 + $0x228] sm:$0xff]
  %v88 = vld [vmem:[%s0 + $0x230] sm:$0xff]
  %v89 = vld [vmem:[%s0 + $0x238] sm:$0xff]
  %v90 = vld [vmem:[%s0 + $0x240] sm:$0xff]
  %v91 = vld [vmem:[%s0 + $0x248] sm:$0xf]
  %v92 = vld [vmem:[%s0 + $0x24c] sm:$0xff]
  %v93 = vld [vmem:[%s0 + $0x254] sm:$0xff]
  %v94 = vld [vmem:[%s0 + $0x25c] sm:$0xff]
  %v95 = vld [vmem:[%s0 + $0x264] sm:$0xff]
  %v96 = vld [vmem:[%s0 + $0x26c] sm:$0xff]
  %v97 = vld [vmem:[%s0 + $0x274] sm:$0xff]
  %v98 = vld [vmem:[%s0 + $0x27c] sm:$0xff]
  %v99 = vld [vmem:[%s0 + $0x284] sm:$0xff]
  %v100 = vld [vmem:[%s0 + $0x28c] sm:$0xff]
  %v101 = vld [vmem:[%s0 + $0x294] sm:$0xff]
  %v102 = vld [vmem:[%s0 + $0x29c] sm:$0xff]
  %v103 = vld [vmem:[%s0 + $0x2a4] sm:$0xff]
  %v104 = vld [vmem:[%s0 + $0x2ac] sm:$0xff]
  %v105 = vld [vmem:[%s0 + $0x2b4] sm:$0xff]
  %v106 = vld [vmem:[%s0 + $0x2bc] sm:$0xff]
  %v107 = vld [vmem:[%s0 + $0x2c4] sm:$0xff]
  %v108 = vld [vmem:[%s0 + $0x2cc] sm:$0xff]
  %v109 = vld [vmem:[%s0 + $0x2d4] sm:$0xff]
  %v110 = vld [vmem:[%s0 + $0x2dc] sm:$0xff]
  %v111 = vld [vmem:[%s0 + $0x2e4] sm:$0xff]
  %v112 = vld [vmem:[%s0 + $0x2ec] sm:$0xff]
  %v113 = vld [vmem:[%s0 + $0x2f4] sm:$0xff]
  %v114 = vld [vmem:[%s0 + $0x2fc] sm:$0xff]
  %v115 = vld [vmem:[%s0 + $0x304] sm:$0xff]
  %v116 = vld [vmem:[%s0 + $0x30c] sm:$0xf]
  %v117 = vld [vmem:[%s0 + $0x310] sm:$0xff]
  %v118 = vld [vmem:[%s0 + $0x318] sm:$0xff]
  %v119 = vld [vmem:[%s0 + $0x320] sm:$0xff]
  %v120 = vld [vmem:[%s0 + $0x328] sm:$0xff]
  %v121 = vld [vmem:[%s0 + $0x330] sm:$0xff]
  %v122 = vld [vmem:[%s0 + $0x338] sm:$0xff]
  %v123 = vld [vmem:[%s0 + $0x340] sm:$0xff]
  %v124 = vld [vmem:[%s0 + $0x348] sm:$0xff]
  %v125 = vld [vmem:[%s0 + $0x350] sm:$0xff]
  %v126 = vld [vmem:[%s0 + $0x358] sm:$0xff]
  %v127 = vld [vmem:[%s0 + $0x360] sm:$0xff]
  %v128 = vld [vmem:[%s0 + $0x368] sm:$0xff]
  %v129 = vld [vmem:[%s0 + $0x370] sm:$0xff]
  %v130 = vld [vmem:[%s0 + $0x378] sm:$0xff]
  %v131 = vld [vmem:[%s0 + $0x380] sm:$0xff]
  %v132 = vld [vmem:[%s0 + $0x388] sm:$0xff]
  %v133 = vld [vmem:[%s0 + $0x390] sm:$0xff]
  %v134 = vld [vmem:[%s0 + $0x398] sm:$0xff]
  %v135 = vld [vmem:[%s0 + $0x3a0] sm:$0xff]
  %v136 = vld [vmem:[%s0 + $0x3a8] sm:$0xff]
  %v137 = vld [vmem:[%s0 + $0x3b0] sm:$0xff]
  %v138 = vld [vmem:[%s0 + $0x3b8] sm:$0xff]
  %v139 = vld [vmem:[%s0 + $0x3c0] sm:$0xff]
  %v140 = vld [vmem:[%s0 + $0x3c8] sm:$0xff]
  %v141 = vld [vmem:[%s0 + $0x3d0] sm:$0xf]
  %v142 = vld [vmem:[%s0 + $0x3d4] sm:$0xff]
  %v143 = vld [vmem:[%s0 + $0x3dc] sm:$0xff]
  %v144 = vld [vmem:[%s0 + $0x3e4] sm:$0xff]
  %v145 = vld [vmem:[%s0 + $0x3ec] sm:$0xff]
  %v146 = vld [vmem:[%s0 + $0x3f4] sm:$0xff]
  %v147 = vld [vmem:[%s0 + $0x3fc] sm:$0xff]
  %v148 = vld [vmem:[%s0 + $0x404] sm:$0xff]
  %v149 = vld [vmem:[%s0 + $0x40c] sm:$0xff]
  %v150 = vld [vmem:[%s0 + $0x414] sm:$0xff]
  %v151 = vld [vmem:[%s0 + $0x41c] sm:$0xff]
  %v152 = vld [vmem:[%s0 + $0x424] sm:$0xff]
  %v153 = vld [vmem:[%s0 + $0x42c] sm:$0xff]
  %v154 = vld [vmem:[%s0 + $0x434] sm:$0xff]
  %v155 = vld [vmem:[%s0 + $0x43c] sm:$0xff]
  %v156 = vld [vmem:[%s0 + $0x444] sm:$0xff]
  %v157 = vld [vmem:[%s0 + $0x44c] sm:$0xff]
  %v158 = vld [vmem:[%s0 + $0x454] sm:$0xff]
  %v159 = vld [vmem:[%s0 + $0x45c] sm:$0xff]
  %v160 = vld [vmem:[%s0 + $0x464] sm:$0xff]
  %v161 = vld [vmem:[%s0 + $0x46c] sm:$0xff]
  %v162 = vld [vmem:[%s0 + $0x474] sm:$0xff]
  %v163 = vld [vmem:[%s0 + $0x47c] sm:$0xff]
  %v164 = vld [vmem:[%s0 + $0x484] sm:$0xff]
  %v165 = vld [vmem:[%s0 + $0x48c] sm:$0xff]
  %v166 = vld [vmem:[%s0 + $0x494] sm:$0xf]
  %v167 = vld [vmem:[%s0 + $0x498] sm:$0xff]
  %v168 = vld [vmem:[%s0 + $0x4a0] sm:$0xff]
  %v169 = vld [vmem:[%s0 + $0x4a8] sm:$0xff]
  %v170 = vld [vmem:[%s0 + $0x4b0] sm:$0xff]
  %v171 = vld [vmem:[%s0 + $0x4b8] sm:$0xff]
  %v172 = vld [vmem:[%s0 + $0x4c0] sm:$0xff]
  %v173 = vld [vmem:[%s0 + $0x4c8] sm:$0xff]
  %v174 = vld [vmem:[%s0 + $0x4d0] sm:$0xff]
  %v175 = vld [vmem:[%s0 + $0x4d8] sm:$0xff]
  %v176 = vld [vmem:[%s0 + $0x4e0] sm:$0xff]
  %v177 = vld [vmem:[%s0 + $0x4e8] sm:$0xff]
  %v178 = vld [vmem:[%s0 + $0x4f0] sm:$0xff]
  %v179 = vld [vmem:[%s0 + $0x4f8] sm:$0xff]
  %v180 = vld [vmem:[%s0 + $0x500] sm:$0xff]
  %v181 = vld [vmem:[%s0 + $0x508] sm:$0xff]
  %v182 = vld [vmem:[%s0 + $0x510] sm:$0xff]
  %v183 = vld [vmem:[%s0 + $0x518] sm:$0xff]
  %v184 = vld [vmem:[%s0 + $0x520] sm:$0xff]
  %v185 = vld [vmem:[%s0 + $0x528] sm:$0xff]
  %v186 = vld [vmem:[%s0 + $0x530] sm:$0xff]
  %v187 = vld [vmem:[%s0 + $0x538] sm:$0xff]
  %v188 = vld [vmem:[%s0 + $0x540] sm:$0xff]
  %v189 = vld [vmem:[%s0 + $0x548] sm:$0xff]
  %v190 = vld [vmem:[%s0 + $0x550] sm:$0xff]
  %v191 = vld [vmem:[%s0 + $0x558] sm:$0xf]
  %v192 = vld [vmem:[%s0 + $0x55c] sm:$0xff]
  %v193 = vld [vmem:[%s0 + $0x564] sm:$0xff]
  %v194 = vld [vmem:[%s0 + $0x56c] sm:$0xff]
  %v195 = vld [vmem:[%s0 + $0x574] sm:$0xff]
  %v196 = vld [vmem:[%s0 + $0x57c] sm:$0xff]
  %v197 = vld [vmem:[%s0 + $0x584] sm:$0xff]
  %v198 = vld [vmem:[%s0 + $0x58c] sm:$0xff]
  %v199 = vld [vmem:[%s0 + $0x594] sm:$0xff]
  %v200 = vld [vmem:[%s0 + $0x59c] sm:$0xff]
  %v201 = vld [vmem:[%s0 + $0x5a4] sm:$0xff]
  %v202 = vld [vmem:[%s0 + $0x5ac] sm:$0xff]
  %v203 = vld [vmem:[%s0 + $0x5b4] sm:$0xff]
  %v204 = vld [vmem:[%s0 + $0x5bc] sm:$0xff]
  %v205 = vld [vmem:[%s0 + $0x5c4] sm:$0xff]
  %v206 = vld [vmem:[%s0 + $0x5cc] sm:$0xff]
  %v207 = vld [vmem:[%s0 + $0x5d4] sm:$0xff]
  %v208 = vld [vmem:[%s0 + $0x5dc] sm:$0xff]
  %v209 = vld [vmem:[%s0 + $0x5e4] sm:$0xff]
  %v210 = vld [vmem:[%s0 + $0x5ec] sm:$0xff]
  %v211 = vld [vmem:[%s0 + $0x5f4] sm:$0xff]
  %v212 = vld [vmem:[%s0 + $0x5fc] sm:$0xff]
  %v213 = vld [vmem:[%s0 + $0x604] sm:$0xff]
  %v214 = vld [vmem:[%s0 + $0x60c] sm:$0xff]
  %v215 = vld [vmem:[%s0 + $0x614] sm:$0xff]
  %v216 = vld [vmem:[%s0 + $0x61c] sm:$0xf]
  %v217 = vld [vmem:[%s0 + $0x620] sm:$0xff]
  %v218 = vld [vmem:[%s0 + $0x628] sm:$0xff]
  %v219 = vld [vmem:[%s0 + $0x630] sm:$0xff]
  %v220 = vld [vmem:[%s0 + $0x638] sm:$0xff]
  %v221 = vld [vmem:[%s0 + $0x640] sm:$0xff]
  %v222 = vld [vmem:[%s0 + $0x648] sm:$0xff]
  %v223 = vld [vmem:[%s0 + $0x650] sm:$0xff]
  %v224 = vld [vmem:[%s0 + $0x658] sm:$0xff]
  %v225 = vld [vmem:[%s0 + $0x660] sm:$0xff]
  %v226 = vld [vmem:[%s0 + $0x668] sm:$0xff]
  %v227 = vld [vmem:[%s0 + $0x670] sm:$0xff]
  %v228 = vld [vmem:[%s0 + $0x678] sm:$0xff]
  %v229 = vld [vmem:[%s0 + $0x680] sm:$0xff]
  %v230 = vld [vmem:[%s0 + $0x688] sm:$0xff]
  %v231 = vld [vmem:[%s0 + $0x690] sm:$0xff]
  %v232 = vld [vmem:[%s0 + $0x698] sm:$0xff]
  %v233 = vld [vmem:[%s0 + $0x6a0] sm:$0xff]
  %v234 = vld [vmem:[%s0 + $0x6a8] sm:$0xff]
  %v235 = vld [vmem:[%s0 + $0x6b0] sm:$0xff]
  %v236 = vld [vmem:[%s0 + $0x6b8] sm:$0xff]
  %v237 = vld [vmem:[%s0 + $0x6c0] sm:$0xff]
  %v238 = vld [vmem:[%s0 + $0x6c8] sm:$0xff]
  %v239 = vld [vmem:[%s0 + $0x6d0] sm:$0xff]
  %v240 = vld [vmem:[%s0 + $0x6d8] sm:$0xff]
  %v241 = vld [vmem:[%s0 + $0x6e0] sm:$0xf]
  %v242 = vld [vmem:[%s0 + $0x6e4] sm:$0xff]
  %v243 = vld [vmem:[%s0 + $0x6ec] sm:$0xff]
  %v244 = vld [vmem:[%s0 + $0x6f4] sm:$0xff]
  %v245 = vld [vmem:[%s0 + $0x6fc] sm:$0xff]
  %v246 = vld [vmem:[%s0 + $0x704] sm:$0xff]
  %v247 = vld [vmem:[%s0 + $0x70c] sm:$0xff]
  %v248 = vld [vmem:[%s0 + $0x714] sm:$0xff]
  %v249 = vld [vmem:[%s0 + $0x71c] sm:$0xff]
  %v250 = vld [vmem:[%s0 + $0x724] sm:$0xff]
  %v251 = vld [vmem:[%s0 + $0x72c] sm:$0xff]
  %v252 = vld [vmem:[%s0 + $0x734] sm:$0xff]
  %v253 = vld [vmem:[%s0 + $0x73c] sm:$0xff]
  %v254 = vld [vmem:[%s0 + $0x744] sm:$0xff]
  %v255 = vld [vmem:[%s0 + $0x74c] sm:$0xff]
  %v256 = vld [vmem:[%s0 + $0x754] sm:$0xff]
  %v257 = vld [vmem:[%s0 + $0x75c] sm:$0xff]
  %v258 = vld [vmem:[%s0 + $0x764] sm:$0xff]
  %v259 = vld [vmem:[%s0 + $0x76c] sm:$0xff]
  %v260 = vld [vmem:[%s0 + $0x774] sm:$0xff]
  %v261 = vld [vmem:[%s0 + $0x77c] sm:$0xff]
  %v262 = vld [vmem:[%s0 + $0x784] sm:$0xff]
  %v263 = vld [vmem:[%s0 + $0x78c] sm:$0xff]
  %v264 = vld [vmem:[%s0 + $0x794] sm:$0xff]
  %v265 = vld [vmem:[%s0 + $0x79c] sm:$0xff]
  %v266 = vld [vmem:[%s0 + $0x7a4] sm:$0xf]
  %v267 = vld [vmem:[%s0 + $0x7a8] sm:$0xff]
  %v268 = vld [vmem:[%s0 + $0x7b0] sm:$0xff]
  %v269 = vld [vmem:[%s0 + $0x7b8] sm:$0xff]
  %v270 = vld [vmem:[%s0 + $0x7c0] sm:$0xff]
  %v271 = vld [vmem:[%s0 + $0x7c8] sm:$0xff]
  %v272 = vld [vmem:[%s0 + $0x7d0] sm:$0xff]
  %v273 = vld [vmem:[%s0 + $0x7d8] sm:$0xff]
  %v274 = vld [vmem:[%s0 + $0x7e0] sm:$0xff]
  %v275 = vld [vmem:[%s0 + $0x7e8] sm:$0xff]
  %v276 = vld [vmem:[%s0 + $0x7f0] sm:$0xff]
  %v277 = vld [vmem:[%s0 + $0x7f8] sm:$0xff]
  %v278 = vld [vmem:[%s0 + $0x800] sm:$0xff]
  %v279 = vld [vmem:[%s0 + $0x808] sm:$0xff]
  %v280 = vld [vmem:[%s0 + $0x810] sm:$0xff]
  %v281 = vld [vmem:[%s0 + $0x818] sm:$0xff]
  %v282 = vld [vmem:[%s0 + $0x820] sm:$0xff]
  %v283 = vld [vmem:[%s0 + $0x828] sm:$0xff]
  %v284 = vld [vmem:[%s0 + $0x830] sm:$0xff]
  %v285 = vld [vmem:[%s0 + $0x838] sm:$0xff]
  %v286 = vld [vmem:[%s0 + $0x840] sm:$0xff]
  %v287 = vld [vmem:[%s0 + $0x848] sm:$0xff]
  %v288 = vld [vmem:[%s0 + $0x850] sm:$0xff]
  %v289 = vld [vmem:[%s0 + $0x858] sm:$0xff]
  %v290 = vld [vmem:[%s0 + $0x860] sm:$0xff]
  %v291 = vld [vmem:[%s0 + $0x868] sm:$0xf]
  %v292 = vld [vmem:[%s0 + $0x86c] sm:$0xff]
  %v293 = vld [vmem:[%s0 + $0x874] sm:$0xff]
  %v294 = vld [vmem:[%s0 + $0x87c] sm:$0xff]
  %v295 = vld [vmem:[%s0 + $0x884] sm:$0xff]
  %v296 = vld [vmem:[%s0 + $0x88c] sm:$0xff]
  %v297 = vld [vmem:[%s0 + $0x894] sm:$0xff]
  %v298 = vld [vmem:[%s0 + $0x89c] sm:$0xff]
  %v299 = vld [vmem:[%s0 + $0x8a4] sm:$0xff]
  %v300 = vld [vmem:[%s0 + $0x8ac] sm:$0xff]
  %v301 = vld [vmem:[%s0 + $0x8b4] sm:$0xff]
  %v302 = vld [vmem:[%s0 + $0x8bc] sm:$0xff]
  %v303 = vld [vmem:[%s0 + $0x8c4] sm:$0xff]
  %v304 = vld [vmem:[%s0 + $0x8cc] sm:$0xff]
  %v305 = vld [vmem:[%s0 + $0x8d4] sm:$0xff]
  %v306 = vld [vmem:[%s0 + $0x8dc] sm:$0xff]
  %v307 = vld [vmem:[%s0 + $0x8e4] sm:$0xff]
  %v308 = vld [vmem:[%s0 + $0x8ec] sm:$0xff]
  %v309 = vld [vmem:[%s0 + $0x8f4] sm:$0xff]
  %v310 = vld [vmem:[%s0 + $0x8fc] sm:$0xff]
  %v311 = vld [vmem:[%s0 + $0x904] sm:$0xff]
  %v312 = vld [vmem:[%s0 + $0x90c] sm:$0xff]
  %v313 = vld [vmem:[%s0 + $0x914] sm:$0xff]
  %v314 = vld [vmem:[%s0 + $0x91c] sm:$0xff]
  %v315 = vld [vmem:[%s0 + $0x924] sm:$0xff]
  %v316 = vld [vmem:[%s0 + $0x92c] sm:$0xf]
  %v317 = vld [vmem:[%s0 + $0x930] sm:$0xff]
  %v318 = vld [vmem:[%s0 + $0x938] sm:$0xff]
  %v319 = vld [vmem:[%s0 + $0x940] sm:$0xff]
  %v320 = vld [vmem:[%s0 + $0x948] sm:$0xff]
  %v321 = vld [vmem:[%s0 + $0x950] sm:$0xff]
  %v322 = vld [vmem:[%s0 + $0x958] sm:$0xff]
  %v323 = vld [vmem:[%s0 + $0x960] sm:$0xff]
  %v324 = vld [vmem:[%s0 + $0x968] sm:$0xff]
  %v325 = vld [vmem:[%s0 + $0x970] sm:$0xff]
  %v326 = vld [vmem:[%s0 + $0x978] sm:$0xff]
  %v327 = vld [vmem:[%s0 + $0x980] sm:$0xff]
  %v328 = vld [vmem:[%s0 + $0x988] sm:$0xff]
  %v329 = vld [vmem:[%s0 + $0x990] sm:$0xff]
  %v330 = vld [vmem:[%s0 + $0x998] sm:$0xff]
  %v331 = vld [vmem:[%s0 + $0x9a0] sm:$0xff]
  %v332 = vld [vmem:[%s0 + $0x9a8] sm:$0xff]
  %v333 = vld [vmem:[%s0 + $0x9b0] sm:$0xff]
  %v334 = vld [vmem:[%s0 + $0x9b8] sm:$0xff]
  %v335 = vld [vmem:[%s0 + $0x9c0] sm:$0xff]
  %v336 = vld [vmem:[%s0 + $0x9c8] sm:$0xff]
  %v337 = vld [vmem:[%s0 + $0x9d0] sm:$0xff]
  %v338 = vld [vmem:[%s0 + $0x9d8] sm:$0xff]
  %v339 = vld [vmem:[%s0 + $0x9e0] sm:$0xff]
  %v340 = vld [vmem:[%s0 + $0x9e8] sm:$0xff]
  %v341 = vld [vmem:[%s0 + $0x9f0] sm:$0xf]
  %v342 = vld [vmem:[%s0 + $0x9f4] sm:$0xff]
  %v343 = vld [vmem:[%s0 + $0x9fc] sm:$0xff]
  %v344 = vld [vmem:[%s0 + $0xa04] sm:$0xff]
  %v345 = vld [vmem:[%s0 + $0xa0c] sm:$0xff]
  %v346 = vld [vmem:[%s0 + $0xa14] sm:$0xff]
  %v347 = vld [vmem:[%s0 + $0xa1c] sm:$0xff]
  %v348 = vld [vmem:[%s0 + $0xa24] sm:$0xff]
  %v349 = vld [vmem:[%s0 + $0xa2c] sm:$0xff]
  %v350 = vld [vmem:[%s0 + $0xa34] sm:$0xff]
  %v351 = vld [vmem:[%s0 + $0xa3c] sm:$0xff]
  %v352 = vld [vmem:[%s0 + $0xa44] sm:$0xff]
  %v353 = vld [vmem:[%s0 + $0xa4c] sm:$0xff]
  %v354 = vld [vmem:[%s0 + $0xa54] sm:$0xff]
  %v355 = vld [vmem:[%s0 + $0xa5c] sm:$0xff]
  %v356 = vld [vmem:[%s0 + $0xa64] sm:$0xff]
  %v357 = vld [vmem:[%s0 + $0xa6c] sm:$0xff]
  %v358 = vld [vmem:[%s0 + $0xa74] sm:$0xff]
  %v359 = vld [vmem:[%s0 + $0xa7c] sm:$0xff]
  %v360 = vld [vmem:[%s0 + $0xa84] sm:$0xff]
  %v361 = vld [vmem:[%s0 + $0xa8c] sm:$0xff]
  %v362 = vld [vmem:[%s0 + $0xa94] sm:$0xff]
  %v363 = vld [vmem:[%s0 + $0xa9c] sm:$0xff]
  %v364 = vld [vmem:[%s0 + $0xaa4] sm:$0xff]
  %v365 = vld [vmem:[%s0 + $0xaac] sm:$0xff]
  %v366 = vld [vmem:[%s0 + $0xab4] sm:$0xf]
  %v367 = vld [vmem:[%s0 + $0xab8] sm:$0xff]
  %v368 = vld [vmem:[%s0 + $0xac0] sm:$0xff]
  %v369 = vld [vmem:[%s0 + $0xac8] sm:$0xff]
  %v370 = vld [vmem:[%s0 + $0xad0] sm:$0xff]
  %v371 = vld [vmem:[%s0 + $0xad8] sm:$0xff]
  %v372 = vld [vmem:[%s0 + $0xae0] sm:$0xff]
  %v373 = vld [vmem:[%s0 + $0xae8] sm:$0xff]
  %v374 = vld [vmem:[%s0 + $0xaf0] sm:$0xff]
  %v375 = vld [vmem:[%s0 + $0xaf8] sm:$0xff]
  %v376 = vld [vmem:[%s0 + $0xb00] sm:$0xff]
  %v377 = vld [vmem:[%s0 + $0xb08] sm:$0xff]
  %v378 = vld [vmem:[%s0 + $0xb10] sm:$0xff]
  %v379 = vld [vmem:[%s0 + $0xb18] sm:$0xff]
  %v380 = vld [vmem:[%s0 + $0xb20] sm:$0xff]
  %v381 = vld [vmem:[%s0 + $0xb28] sm:$0xff]
  %v382 = vld [vmem:[%s0 + $0xb30] sm:$0xff]
  %v383 = vld [vmem:[%s0 + $0xb38] sm:$0xff]
  %v384 = vld [vmem:[%s0 + $0xb40] sm:$0xff]
  %v385 = vld [vmem:[%s0 + $0xb48] sm:$0xff]
  %v386 = vld [vmem:[%s0 + $0xb50] sm:$0xff]
  %v387 = vld [vmem:[%s0 + $0xb58] sm:$0xff]
  %v388 = vld [vmem:[%s0 + $0xb60] sm:$0xff]
  %v389 = vld [vmem:[%s0 + $0xb68] sm:$0xff]
  %v390 = vld [vmem:[%s0 + $0xb70] sm:$0xff]
  %v391 = vld [vmem:[%s0 + $0xb78] sm:$0xf]
  %v392 = vld [vmem:[%s0 + $0xb7c] sm:$0xff]
  %v393 = vld [vmem:[%s0 + $0xb84] sm:$0xff]
  %v394 = vld [vmem:[%s0 + $0xb8c] sm:$0xff]
  %v395 = vld [vmem:[%s0 + $0xb94] sm:$0xff]
  %v396 = vld [vmem:[%s0 + $0xb9c] sm:$0xff]
  %v397 = vld [vmem:[%s0 + $0xba4] sm:$0xff]
  %v398 = vld [vmem:[%s0 + $0xbac] sm:$0xff]
  %v399 = vld [vmem:[%s0 + $0xbb4] sm:$0xff]
  %v400 = vld [vmem:[%s0 + $0xbbc] sm:$0xff]
  %v401 = vld [vmem:[%s0 + $0xbc4] sm:$0xff]
  %v402 = vld [vmem:[%s0 + $0xbcc] sm:$0xff]
  %v403 = vld [vmem:[%s0 + $0xbd4] sm:$0xff]
  %v404 = vld [vmem:[%s0 + $0xbdc] sm:$0xff]
  %v405 = vld [vmem:[%s0 + $0xbe4] sm:$0xff]
  %v406 = vld [vmem:[%s0 + $0xbec] sm:$0xff]
  %v407 = vld [vmem:[%s0 + $0xbf4] sm:$0xff]
  %v408 = vld [vmem:[%s0 + $0xbfc] sm:$0xff]
  %v409 = vld [vmem:[%s0 + $0xc04] sm:$0xff]
  %v410 = vld [vmem:[%s0 + $0xc0c] sm:$0xff]
  %v411 = vld [vmem:[%s0 + $0xc14] sm:$0xff]
  %v412 = vld [vmem:[%s0 + $0xc1c] sm:$0xff]
  %v413 = vld [vmem:[%s0 + $0xc24] sm:$0xff]
  %v414 = vld [vmem:[%s0 + $0xc2c] sm:$0xff]
  %v415 = vld [vmem:[%s0 + $0xc34] sm:$0xff]
  %v416 = vld [vmem:[%s0 + $0xc3c] sm:$0xf]
  %v417 = vld [vmem:[%s0 + $0xc40] sm:$0xff]
  %v418 = vld [vmem:[%s0 + $0xc48] sm:$0xff]
  %v419 = vld [vmem:[%s0 + $0xc50] sm:$0xff]
  %v420 = vld [vmem:[%s0 + $0xc58] sm:$0xff]
  %v421 = vld [vmem:[%s0 + $0xc60] sm:$0xff]
  %v422 = vld [vmem:[%s0 + $0xc68] sm:$0xff]
  %v423 = vld [vmem:[%s0 + $0xc70] sm:$0xff]
  %v424 = vld [vmem:[%s0 + $0xc78] sm:$0xff]
  %v425 = vld [vmem:[%s0 + $0xc80] sm:$0xff]
  %v426 = vld [vmem:[%s0 + $0xc88] sm:$0xff]
  %v427 = vld [vmem:[%s0 + $0xc90] sm:$0xff]
  %v428 = vld [vmem:[%s0 + $0xc98] sm:$0xff]
  %v429 = vld [vmem:[%s0 + $0xca0] sm:$0xff]
  %v430 = vld [vmem:[%s0 + $0xca8] sm:$0xff]
  %v431 = vld [vmem:[%s0 + $0xcb0] sm:$0xff]
  %v432 = vld [vmem:[%s0 + $0xcb8] sm:$0xff]
  %v433 = vld [vmem:[%s0 + $0xcc0] sm:$0xff]
  %v434 = vld [vmem:[%s0 + $0xcc8] sm:$0xff]
  %v435 = vld [vmem:[%s0 + $0xcd0] sm:$0xff]
  %v436 = vld [vmem:[%s0 + $0xcd8] sm:$0xff]
  %v437 = vld [vmem:[%s0 + $0xce0] sm:$0xff]
  %v438 = vld [vmem:[%s0 + $0xce8] sm:$0xff]
  %v439 = vld [vmem:[%s0 + $0xcf0] sm:$0xff]
  %v440 = vld [vmem:[%s0 + $0xcf8] sm:$0xff]
  %v441 = vld [vmem:[%s0 + $0xd00] sm:$0xf]
  %v442 = vld [vmem:[%s0 + $0xd04] sm:$0xff]
  %v443 = vld [vmem:[%s0 + $0xd0c] sm:$0xff]
  %v444 = vld [vmem:[%s0 + $0xd14] sm:$0xff]
  %v445 = vld [vmem:[%s0 + $0xd1c] sm:$0xff]
  %v446 = vld [vmem:[%s0 + $0xd24] sm:$0xff]
  %v447 = vld [vmem:[%s0 + $0xd2c] sm:$0xff]
  %v448 = vld [vmem:[%s0 + $0xd34] sm:$0xff]
  %v449 = vld [vmem:[%s0 + $0xd3c] sm:$0xff]
  %v450 = vld [vmem:[%s0 + $0xd44] sm:$0xff]
  %v451 = vld [vmem:[%s0 + $0xd4c] sm:$0xff]
  %v452 = vld [vmem:[%s0 + $0xd54] sm:$0xff]
  %v453 = vld [vmem:[%s0 + $0xd5c] sm:$0xff]
  %v454 = vld [vmem:[%s0 + $0xd64] sm:$0xff]
  %v455 = vld [vmem:[%s0 + $0xd6c] sm:$0xff]
  %v456 = vld [vmem:[%s0 + $0xd74] sm:$0xff]
  %v457 = vld [vmem:[%s0 + $0xd7c] sm:$0xff]
  %v458 = vld [vmem:[%s0 + $0xd84] sm:$0xff]
  %v459 = vld [vmem:[%s0 + $0xd8c] sm:$0xff]
  %v460 = vld [vmem:[%s0 + $0xd94] sm:$0xff]
  %v461 = vld [vmem:[%s0 + $0xd9c] sm:$0xff]
  %v462 = vld [vmem:[%s0 + $0xda4] sm:$0xff]
  %v463 = vld [vmem:[%s0 + $0xdac] sm:$0xff]
  %v464 = vld [vmem:[%s0 + $0xdb4] sm:$0xff]
  %v465 = vld [vmem:[%s0 + $0xdbc] sm:$0xff]
  %v466 = vld [vmem:[%s0 + $0xdc4] sm:$0xf]
  %v467 = vld [vmem:[%s0 + $0xdc8] sm:$0xff]
  %v468 = vld [vmem:[%s0 + $0xdd0] sm:$0xff]
  %v469 = vld [vmem:[%s0 + $0xdd8] sm:$0xff]
  %v470 = vld [vmem:[%s0 + $0xde0] sm:$0xff]
  %v471 = vld [vmem:[%s0 + $0xde8] sm:$0xff]
  %v472 = vld [vmem:[%s0 + $0xdf0] sm:$0xff]
  %v473 = vld [vmem:[%s0 + $0xdf8] sm:$0xff]
  %v474 = vld [vmem:[%s0 + $0xe00] sm:$0xff]
  %v475 = vld [vmem:[%s0 + $0xe08] sm:$0xff]
  %v476 = vld [vmem:[%s0 + $0xe10] sm:$0xff]
  %v477 = vld [vmem:[%s0 + $0xe18] sm:$0xff]
  %v478 = vld [vmem:[%s0 + $0xe20] sm:$0xff]
  %v479 = vld [vmem:[%s0 + $0xe28] sm:$0xff]
  %v480 = vld [vmem:[%s0 + $0xe30] sm:$0xff]
  %v481 = vld [vmem:[%s0 + $0xe38] sm:$0xff]
  %v482 = vld [vmem:[%s0 + $0xe40] sm:$0xff]
  %v483 = vld [vmem:[%s0 + $0xe48] sm:$0xff]
  %v484 = vld [vmem:[%s0 + $0xe50] sm:$0xff]
  %v485 = vld [vmem:[%s0 + $0xe58] sm:$0xff]
  %v486 = vld [vmem:[%s0 + $0xe60] sm:$0xff]
  %v487 = vld [vmem:[%s0 + $0xe68] sm:$0xff]
  %v488 = vld [vmem:[%s0 + $0xe70] sm:$0xff]
  %v489 = vld [vmem:[%s0 + $0xe78] sm:$0xff]
  %v490 = vld [vmem:[%s0 + $0xe80] sm:$0xff]
  %v491 = vld [vmem:[%s0 + $0xe88] sm:$0xf]
  %v492 = vld [vmem:[%s0 + $0xe8c] sm:$0xff]
  %v493 = vld [vmem:[%s0 + $0xe94] sm:$0xff]
  %v494 = vld [vmem:[%s0 + $0xe9c] sm:$0xff]
  %v495 = vld [vmem:[%s0 + $0xea4] sm:$0xff]
  %v496 = vld [vmem:[%s0 + $0xeac] sm:$0xff]
  %v497 = vld [vmem:[%s0 + $0xeb4] sm:$0xff]
  %v498 = vld [vmem:[%s0 + $0xebc] sm:$0xff]
  %v499 = vld [vmem:[%s0 + $0xec4] sm:$0xff]
  %v500 = vld [vmem:[%s0 + $0xecc] sm:$0xff]
  %v501 = vld [vmem:[%s0 + $0xed4] sm:$0xff]
  %v502 = vld [vmem:[%s0 + $0xedc] sm:$0xff]
  %v503 = vld [vmem:[%s0 + $0xee4] sm:$0xff]
  %v504 = vld [vmem:[%s0 + $0xeec] sm:$0xff]
  %v505 = vld [vmem:[%s0 + $0xef4] sm:$0xff]
  %v506 = vld [vmem:[%s0 + $0xefc] sm:$0xff]
  %v507 = vld [vmem:[%s0 + $0xf04] sm:$0xff]
  %v508 = vld [vmem:[%s0 + $0xf0c] sm:$0xff]
  %v509 = vld [vmem:[%s0 + $0xf14] sm:$0xff]
  %v510 = vld [vmem:[%s0 + $0xf1c] sm:$0xff]
  %v511 = vld [vmem:[%s0 + $0xf24] sm:$0xff]
  %v512 = vld [vmem:[%s0 + $0xf2c] sm:$0xff]
  %v513 = vld [vmem:[%s0 + $0xf34] sm:$0xff]
  %v514 = vld [vmem:[%s0 + $0xf3c] sm:$0xff]
  %v515 = vld [vmem:[%s0 + $0xf44] sm:$0xff]
  %v516 = vld [vmem:[%s0 + $0xf4c] sm:$0xf]
  %v517 = vld [vmem:[%s0 + $0xf50] sm:$0xff]
  %v518 = vld [vmem:[%s0 + $0xf58] sm:$0xff]
  %v519 = vld [vmem:[%s0 + $0xf60] sm:$0xff]
  %v520 = vld [vmem:[%s0 + $0xf68] sm:$0xff]
  %v521 = vld [vmem:[%s0 + $0xf70] sm:$0xff]
  %v522 = vld [vmem:[%s0 + $0xf78] sm:$0xff]
  %v523 = vld [vmem:[%s0 + $0xf80] sm:$0xff]
  %v524 = vld [vmem:[%s0 + $0xf88] sm:$0xff]
  %v525 = vld [vmem:[%s0 + $0xf90] sm:$0xff]
  %v526 = vld [vmem:[%s0 + $0xf98] sm:$0xff]
  %v527 = vld [vmem:[%s0 + $0xfa0] sm:$0xff]
  %v528 = vld [vmem:[%s0 + $0xfa8] sm:$0xff]
  %v529 = vld [vmem:[%s0 + $0xfb0] sm:$0xff]
  %v530 = vld [vmem:[%s0 + $0xfb8] sm:$0xff]
  %v531 = vld [vmem:[%s0 + $0xfc0] sm:$0xff]
  %v532 = vld [vmem:[%s0 + $0xfc8] sm:$0xff]
  %v533 = vld [vmem:[%s0 + $0xfd0] sm:$0xff]
  %v534 = vld [vmem:[%s0 + $0xfd8] sm:$0xff]
  %v535 = vld [vmem:[%s0 + $0xfe0] sm:$0xff]
  %v536 = vld [vmem:[%s0 + $0xfe8] sm:$0xff]
  %v537 = vld [vmem:[%s0 + $0xff0] sm:$0xff]
  %v538 = vld [vmem:[%s0 + $0xff8] sm:$0xff]
  %v539 = vld [vmem:[%s0 + $0x1000] sm:$0xff]
  %v540 = vld [vmem:[%s0 + $0x1008] sm:$0xff]
  %v541 = vld [vmem:[%s0 + $0x1010] sm:$0xf]
  %v542 = vld [vmem:[%s0 + $0x1014] sm:$0xff]
  %v543 = vld [vmem:[%s0 + $0x101c] sm:$0xff]
  %v544 = vld [vmem:[%s0 + $0x1024] sm:$0xff]
  %v545 = vld [vmem:[%s0 + $0x102c] sm:$0xff]
  %v546 = vld [vmem:[%s0 + $0x1034] sm:$0xff]
  %v547 = vld [vmem:[%s0 + $0x103c] sm:$0xff]
  %v548 = vld [vmem:[%s0 + $0x1044] sm:$0xff]
  %v549 = vld [vmem:[%s0 + $0x104c] sm:$0xff]
  %v550 = vld [vmem:[%s0 + $0x1054] sm:$0xff]
  %v551 = vld [vmem:[%s0 + $0x105c] sm:$0xff]
  %v552 = vld [vmem:[%s0 + $0x1064] sm:$0xff]
  %v553 = vld [vmem:[%s0 + $0x106c] sm:$0xff]
  %v554 = vld [vmem:[%s0 + $0x1074] sm:$0xff]
  %v555 = vld [vmem:[%s0 + $0x107c] sm:$0xff]
  %v556 = vld [vmem:[%s0 + $0x1084] sm:$0xff]
  %v557 = vld [vmem:[%s0 + $0x108c] sm:$0xff]
  %v558 = vld [vmem:[%s0 + $0x1094] sm:$0xff]
  %v559 = vld [vmem:[%s0 + $0x109c] sm:$0xff]
  %v560 = vld [vmem:[%s0 + $0x10a4] sm:$0xff]
  %v561 = vld [vmem:[%s0 + $0x10ac] sm:$0xff]
  %v562 = vld [vmem:[%s0 + $0x10b4] sm:$0xff]
  %v563 = vld [vmem:[%s0 + $0x10bc] sm:$0xff]
  %v564 = vld [vmem:[%s0 + $0x10c4] sm:$0xff]
  %v565 = vld [vmem:[%s0 + $0x10cc] sm:$0xff]
  %v566 = vld [vmem:[%s0 + $0x10d4] sm:$0xf]
  %v567 = vld [vmem:[%s0 + $0x10d8] sm:$0xff]
  %v568 = vld [vmem:[%s0 + $0x10e0] sm:$0xff]
  %v569 = vld [vmem:[%s0 + $0x10e8] sm:$0xff]
  %v570 = vld [vmem:[%s0 + $0x10f0] sm:$0xff]
  %v571 = vld [vmem:[%s0 + $0x10f8] sm:$0xff]
  %v572 = vld [vmem:[%s0 + $0x1100] sm:$0xff]
  %v573 = vld [vmem:[%s0 + $0x1108] sm:$0xff]
  %v574 = vld [vmem:[%s0 + $0x1110] sm:$0xff]
  %v575 = vld [vmem:[%s0 + $0x1118] sm:$0xff]
  %v576 = vld [vmem:[%s0 + $0x1120] sm:$0xff]
  %v577 = vld [vmem:[%s0 + $0x1128] sm:$0xff]
  %v578 = vld [vmem:[%s0 + $0x1130] sm:$0xff]
  %v579 = vld [vmem:[%s0 + $0x1138] sm:$0xff]
  %v580 = vld [vmem:[%s0 + $0x1140] sm:$0xff]
  %v581 = vld [vmem:[%s0 + $0x1148] sm:$0xff]
  %v582 = vld [vmem:[%s0 + $0x1150] sm:$0xff]
  %v583 = vld [vmem:[%s0 + $0x1158] sm:$0xff]
  %v584 = vld [vmem:[%s0 + $0x1160] sm:$0xff]
  %v585 = vld [vmem:[%s0 + $0x1168] sm:$0xff]
  %v586 = vld [vmem:[%s0 + $0x1170] sm:$0xff]
  %v587 = vld [vmem:[%s0 + $0x1178] sm:$0xff]
  %v588 = vld [vmem:[%s0 + $0x1180] sm:$0xff]
  %v589 = vld [vmem:[%s0 + $0x1188] sm:$0xff]
  %v590 = vld [vmem:[%s0 + $0x1190] sm:$0xff]
  %v591 = vld [vmem:[%s0 + $0x1198] sm:$0xf]
  %v592 = vld [vmem:[%s0 + $0x119c] sm:$0xff]
  %v593 = vld [vmem:[%s0 + $0x11a4] sm:$0xff]
  %v594 = vld [vmem:[%s0 + $0x11ac] sm:$0xff]
  %v595 = vld [vmem:[%s0 + $0x11b4] sm:$0xff]
  %v596 = vld [vmem:[%s0 + $0x11bc] sm:$0xff]
  %v597 = vld [vmem:[%s0 + $0x11c4] sm:$0xff]
  %v598 = vld [vmem:[%s0 + $0x11cc] sm:$0xff]
  %v599 = vld [vmem:[%s0 + $0x11d4] sm:$0xff]
  %v600 = vld [vmem:[%s0 + $0x11dc] sm:$0xff]
  %v601 = vld [vmem:[%s0 + $0x11e4] sm:$0xff]
  %v602 = vld [vmem:[%s0 + $0x11ec] sm:$0xff]
  %v603 = vld [vmem:[%s0 + $0x11f4] sm:$0xff]
  %v604 = vld [vmem:[%s0 + $0x11fc] sm:$0xff]
  %v605 = vld [vmem:[%s0 + $0x1204] sm:$0xff]
  %v606 = vld [vmem:[%s0 + $0x120c] sm:$0xff]
  %v607 = vld [vmem:[%s0 + $0x1214] sm:$0xff]
  %v608 = vld [vmem:[%s0 + $0x121c] sm:$0xff]
  %v609 = vld [vmem:[%s0 + $0x1224] sm:$0xff]
  %v610 = vld [vmem:[%s0 + $0x122c] sm:$0xff]
  %v611 = vld [vmem:[%s0 + $0x1234] sm:$0xff]
  %v612 = vld [vmem:[%s0 + $0x123c] sm:$0xff]
  %v613 = vld [vmem:[%s0 + $0x1244] sm:$0xff]
  %v614 = vld [vmem:[%s0 + $0x124c] sm:$0xff]
  %v615 = vld [vmem:[%s0 + $0x1254] sm:$0xff]
  %v616 = vld [vmem:[%s0 + $0x125c] sm:$0xf]
  %v617 = vld [vmem:[%s0 + $0x1260] sm:$0xff]
  %v618 = vld [vmem:[%s0 + $0x1268] sm:$0xff]
  %v619 = vld [vmem:[%s0 + $0x1270] sm:$0xff]
  %v620 = vld [vmem:[%s0 + $0x1278] sm:$0xff]
  %v621 = vld [vmem:[%s0 + $0x1280] sm:$0xff]
  %v622 = vld [vmem:[%s0 + $0x1288] sm:$0xff]
  %v623 = vld [vmem:[%s0 + $0x1290] sm:$0xff]
  %v624 = vld [vmem:[%s0 + $0x1298] sm:$0xff]
  %v625 = vld [vmem:[%s0 + $0x12a0] sm:$0xff]
  %v626 = vld [vmem:[%s0 + $0x12a8] sm:$0xff]
  %v627 = vld [vmem:[%s0 + $0x12b0] sm:$0xff]
  %v628 = vld [vmem:[%s0 + $0x12b8] sm:$0xff]
  %v629 = vld [vmem:[%s0 + $0x12c0] sm:$0xff]
  %v630 = vld [vmem:[%s0 + $0x12c8] sm:$0xff]
  %v631 = vld [vmem:[%s0 + $0x12d0] sm:$0xff]
  %v632 = vld [vmem:[%s0 + $0x12d8] sm:$0xff]
  %v633 = vld [vmem:[%s0 + $0x12e0] sm:$0xff]
  %v634 = vld [vmem:[%s0 + $0x12e8] sm:$0xff]
  %v635 = vld [vmem:[%s0 + $0x12f0] sm:$0xff]
  %v636 = vld [vmem:[%s0 + $0x12f8] sm:$0xff]
  %v637 = vld [vmem:[%s0 + $0x1300] sm:$0xff]
  %v638 = vld [vmem:[%s0 + $0x1308] sm:$0xff]
  %v639 = vld [vmem:[%s0 + $0x1310] sm:$0xff]
  %v640 = vld [vmem:[%s0 + $0x1318] sm:$0xff]
  %v641 = vld [vmem:[%s0 + $0x1320] sm:$0xf]
  %v642 = vld [vmem:[%s0 + $0x1324] sm:$0xff]
  %v643 = vld [vmem:[%s0 + $0x132c] sm:$0xff]
  %v644 = vld [vmem:[%s0 + $0x1334] sm:$0xff]
  %v645 = vld [vmem:[%s0 + $0x133c] sm:$0xff]
  %v646 = vld [vmem:[%s0 + $0x1344] sm:$0xff]
  %v647 = vld [vmem:[%s0 + $0x134c] sm:$0xff]
  %v648 = vld [vmem:[%s0 + $0x1354] sm:$0xff]
  %v649 = vld [vmem:[%s0 + $0x135c] sm:$0xff]
  %v650 = vld [vmem:[%s0 + $0x1364] sm:$0xff]
  %v651 = vld [vmem:[%s0 + $0x136c] sm:$0xff]
  %v652 = vld [vmem:[%s0 + $0x1374] sm:$0xff]
  %v653 = vld [vmem:[%s0 + $0x137c] sm:$0xff]
  %v654 = vld [vmem:[%s0 + $0x1384] sm:$0xff]
  %v655 = vld [vmem:[%s0 + $0x138c] sm:$0xff]
  %v656 = vld [vmem:[%s0 + $0x1394] sm:$0xff]
  %v657 = vld [vmem:[%s0 + $0x139c] sm:$0xff]
  %v658 = vld [vmem:[%s0 + $0x13a4] sm:$0xff]
  %v659 = vld [vmem:[%s0 + $0x13ac] sm:$0xff]
  %v660 = vld [vmem:[%s0 + $0x13b4] sm:$0xff]
  %v661 = vld [vmem:[%s0 + $0x13bc] sm:$0xff]
  %v662 = vld [vmem:[%s0 + $0x13c4] sm:$0xff]
  %v663 = vld [vmem:[%s0 + $0x13cc] sm:$0xff]
  %v664 = vld [vmem:[%s0 + $0x13d4] sm:$0xff]
  %v665 = vld [vmem:[%s0 + $0x13dc] sm:$0xff]
  %v666 = vld [vmem:[%s0 + $0x13e4] sm:$0xf]
  %v667 = vld [vmem:[%s0 + $0x13e8] sm:$0xff]
  %v668 = vld [vmem:[%s0 + $0x13f0] sm:$0xff]
  %v669 = vld [vmem:[%s0 + $0x13f8] sm:$0xff]
  %v670 = vld [vmem:[%s0 + $0x1400] sm:$0xff]
  %v671 = vld [vmem:[%s0 + $0x1408] sm:$0xff]
  %v672 = vld [vmem:[%s0 + $0x1410] sm:$0xff]
  %v673 = vld [vmem:[%s0 + $0x1418] sm:$0xff]
  %v674 = vld [vmem:[%s0 + $0x1420] sm:$0xff]
  %v675 = vld [vmem:[%s0 + $0x1428] sm:$0xff]
  %v676 = vld [vmem:[%s0 + $0x1430] sm:$0xff]
  %v677 = vld [vmem:[%s0 + $0x1438] sm:$0xff]
  %v678 = vld [vmem:[%s0 + $0x1440] sm:$0xff]
  %v679 = vld [vmem:[%s0 + $0x1448] sm:$0xff]
  %v680 = vld [vmem:[%s0 + $0x1450] sm:$0xff]
  %v681 = vld [vmem:[%s0 + $0x1458] sm:$0xff]
  %v682 = vld [vmem:[%s0 + $0x1460] sm:$0xff]
  %v683 = vld [vmem:[%s0 + $0x1468] sm:$0xff]
  %v684 = vld [vmem:[%s0 + $0x1470] sm:$0xff]
  %v685 = vld [vmem:[%s0 + $0x1478] sm:$0xff]
  %v686 = vld [vmem:[%s0 + $0x1480] sm:$0xff]
  %v687 = vld [vmem:[%s0 + $0x1488] sm:$0xff]
  %v688 = vld [vmem:[%s0 + $0x1490] sm:$0xff]
  %v689 = vld [vmem:[%s0 + $0x1498] sm:$0xff]
  %v690 = vld [vmem:[%s0 + $0x14a0] sm:$0xff]
  %v691 = vld [vmem:[%s0 + $0x14a8] sm:$0xf]
  %v692 = vld [vmem:[%s0 + $0x14ac] sm:$0xff]
  %v693 = vld [vmem:[%s0 + $0x14b4] sm:$0xff]
  %v694 = vld [vmem:[%s0 + $0x14bc] sm:$0xff]
  %v695 = vld [vmem:[%s0 + $0x14c4] sm:$0xff]
  %v696 = vld [vmem:[%s0 + $0x14cc] sm:$0xff]
  %v697 = vld [vmem:[%s0 + $0x14d4] sm:$0xff]
  %v698 = vld [vmem:[%s0 + $0x14dc] sm:$0xff]
  %v699 = vld [vmem:[%s0 + $0x14e4] sm:$0xff]
  %v700 = vld [vmem:[%s0 + $0x14ec] sm:$0xff]
  %v701 = vld [vmem:[%s0 + $0x14f4] sm:$0xff]
  %v702 = vld [vmem:[%s0 + $0x14fc] sm:$0xff]
  %v703 = vld [vmem:[%s0 + $0x1504] sm:$0xff]
  %v704 = vld [vmem:[%s0 + $0x150c] sm:$0xff]
  %v705 = vld [vmem:[%s0 + $0x1514] sm:$0xff]
  %v706 = vld [vmem:[%s0 + $0x151c] sm:$0xff]
  %v707 = vld [vmem:[%s0 + $0x1524] sm:$0xff]
  %v708 = vld [vmem:[%s0 + $0x152c] sm:$0xff]
  %v709 = vld [vmem:[%s0 + $0x1534] sm:$0xff]
  %v710 = vld [vmem:[%s0 + $0x153c] sm:$0xff]
  %v711 = vld [vmem:[%s0 + $0x1544] sm:$0xff]
  %v712 = vld [vmem:[%s0 + $0x154c] sm:$0xff]
  %v713 = vld [vmem:[%s0 + $0x1554] sm:$0xff]
  %v714 = vld [vmem:[%s0 + $0x155c] sm:$0xff]
  %v715 = vld [vmem:[%s0 + $0x1564] sm:$0xff]
  %v716 = vld [vmem:[%s0 + $0x156c] sm:$0xf]
  %v717 = vld [vmem:[%s0 + $0x1570] sm:$0xff]
  %v718 = vld [vmem:[%s0 + $0x1578] sm:$0xff]
  %v719 = vld [vmem:[%s0 + $0x1580] sm:$0xff]
  %v720 = vld [vmem:[%s0 + $0x1588] sm:$0xff]
  %v721 = vld [vmem:[%s0 + $0x1590] sm:$0xff]
  %v722 = vld [vmem:[%s0 + $0x1598] sm:$0xff]
  %v723 = vld [vmem:[%s0 + $0x15a0] sm:$0xff]
  %v724 = vld [vmem:[%s0 + $0x15a8] sm:$0xff]
  %v725 = vld [vmem:[%s0 + $0x15b0] sm:$0xff]
  %v726 = vld [vmem:[%s0 + $0x15b8] sm:$0xff]
  %v727 = vld [vmem:[%s0 + $0x15c0] sm:$0xff]
  %v728 = vld [vmem:[%s0 + $0x15c8] sm:$0xff]
  %v729 = vld [vmem:[%s0 + $0x15d0] sm:$0xff]
  %v730 = vld [vmem:[%s0 + $0x15d8] sm:$0xff]
  %v731 = vld [vmem:[%s0 + $0x15e0] sm:$0xff]
  %v732 = vld [vmem:[%s0 + $0x15e8] sm:$0xff]
  %v733 = vld [vmem:[%s0 + $0x15f0] sm:$0xff]
  %v734 = vld [vmem:[%s0 + $0x15f8] sm:$0xff]
  %v735 = vld [vmem:[%s0 + $0x1600] sm:$0xff]
  %v736 = vld [vmem:[%s0 + $0x1608] sm:$0xff]
  %v737 = vld [vmem:[%s0 + $0x1610] sm:$0xff]
  %v738 = vld [vmem:[%s0 + $0x1618] sm:$0xff]
  %v739 = vld [vmem:[%s0 + $0x1620] sm:$0xff]
  %v740 = vld [vmem:[%s0 + $0x1628] sm:$0xff]
  %v741 = vld [vmem:[%s0 + $0x1630] sm:$0xf]
  %v742 = vld [vmem:[%s0 + $0x1634] sm:$0xff]
  %v743 = vld [vmem:[%s0 + $0x163c] sm:$0xff]
  %v744 = vld [vmem:[%s0 + $0x1644] sm:$0xff]
  %v745 = vld [vmem:[%s0 + $0x164c] sm:$0xff]
  %v746 = vld [vmem:[%s0 + $0x1654] sm:$0xff]
  %v747 = vld [vmem:[%s0 + $0x165c] sm:$0xff]
  %v748 = vld [vmem:[%s0 + $0x1664] sm:$0xff]
  %v749 = vld [vmem:[%s0 + $0x166c] sm:$0xff]
  %v750 = vld [vmem:[%s0 + $0x1674] sm:$0xff]
  %v751 = vld [vmem:[%s0 + $0x167c] sm:$0xff]
  %v752 = vld [vmem:[%s0 + $0x1684] sm:$0xff]
  %v753 = vld [vmem:[%s0 + $0x168c] sm:$0xff]
  %v754 = vld [vmem:[%s0 + $0x1694] sm:$0xff]
  %v755 = vld [vmem:[%s0 + $0x169c] sm:$0xff]
  %v756 = vld [vmem:[%s0 + $0x16a4] sm:$0xff]
  %v757 = vld [vmem:[%s0 + $0x16ac] sm:$0xff]
  %v758 = vld [vmem:[%s0 + $0x16b4] sm:$0xff]
  %v759 = vld [vmem:[%s0 + $0x16bc] sm:$0xff]
  %v760 = vld [vmem:[%s0 + $0x16c4] sm:$0xff]
  %v761 = vld [vmem:[%s0 + $0x16cc] sm:$0xff]
  %v762 = vld [vmem:[%s0 + $0x16d4] sm:$0xff]
  %v763 = vld [vmem:[%s0 + $0x16dc] sm:$0xff]
  %v764 = vld [vmem:[%s0 + $0x16e4] sm:$0xff]
  %v765 = vld [vmem:[%s0 + $0x16ec] sm:$0xff]
  %v766 = vld [vmem:[%s0 + $0x16f4] sm:$0xf]
  %v767 = vld [vmem:[%s0 + $0x16f8] sm:$0xff]
  %v768 = vld [vmem:[%s0 + $0x1700] sm:$0xff]
  %v769 = vld [vmem:[%s0 + $0x1708] sm:$0xff]
  %v770 = vld [vmem:[%s0 + $0x1710] sm:$0xff]
  %v771 = vld [vmem:[%s0 + $0x1718] sm:$0xff]
  %v772 = vld [vmem:[%s0 + $0x1720] sm:$0xff]
  %v773 = vld [vmem:[%s0 + $0x1728] sm:$0xff]
  %v774 = vld [vmem:[%s0 + $0x1730] sm:$0xff]
  %v775 = vld [vmem:[%s0 + $0x1738] sm:$0xff]
  %v776 = vld [vmem:[%s0 + $0x1740] sm:$0xff]
  %v777 = vld [vmem:[%s0 + $0x1748] sm:$0xff]
  %v778 = vld [vmem:[%s0 + $0x1750] sm:$0xff]
  %v779 = vld [vmem:[%s0 + $0x1758] sm:$0xff]
  %v780 = vld [vmem:[%s0 + $0x1760] sm:$0xff]
  %v781 = vld [vmem:[%s0 + $0x1768] sm:$0xff]
  %v782 = vld [vmem:[%s0 + $0x1770] sm:$0xff]
  %v783 = vld [vmem:[%s0 + $0x1778] sm:$0xff]
  %v784 = vld [vmem:[%s0 + $0x1780] sm:$0xff]
  %v785 = vld [vmem:[%s0 + $0x1788] sm:$0xff]
  %v786 = vld [vmem:[%s0 + $0x1790] sm:$0xff]
  %v787 = vld [vmem:[%s0 + $0x1798] sm:$0xff]
  %v788 = vld [vmem:[%s0 + $0x17a0] sm:$0xff]
  %v789 = vld [vmem:[%s0 + $0x17a8] sm:$0xff]
  %v790 = vld [vmem:[%s0 + $0x17b0] sm:$0xff]
  %v791 = vld [vmem:[%s0 + $0x17b8] sm:$0xf]
  %v792 = vld [vmem:[%s0 + $0x17bc] sm:$0x11]
  %v793 = vld [vmem:[%s0 + $0x17c4] sm:$0x11]
  %v794 = vld [vmem:[%s0 + $0x17cc] sm:$0x11]
  %v795 = vld [vmem:[%s0 + $0x17d4] sm:$0x11]
  %v796 = vld [vmem:[%s0 + $0x17dc] sm:$0x11]
  %v797 = vld [vmem:[%s0 + $0x17e4] sm:$0x11]
  %v798 = vld [vmem:[%s0 + $0x17ec] sm:$0x11]
  %v799 = vld [vmem:[%s0 + $0x17f4] sm:$0x11]
  %v800 = vld [vmem:[%s0 + $0x17fc] sm:$0x11]
  %v801 = vld [vmem:[%s0 + $0x1804] sm:$0x11]
  %v802 = vld [vmem:[%s0 + $0x180c] sm:$0x11]
  %v803 = vld [vmem:[%s0 + $0x1814] sm:$0x11]
  %v804 = vld [vmem:[%s0 + $0x181c] sm:$0x11]
  %v805 = vld [vmem:[%s0 + $0x1824] sm:$0x11]
  %v806 = vld [vmem:[%s0 + $0x182c] sm:$0x11]
  %v807 = vld [vmem:[%s0 + $0x1834] sm:$0x11]
  %v808 = vld [vmem:[%s0 + $0x183c] sm:$0x11]
  %v809 = vld [vmem:[%s0 + $0x1844] sm:$0x11]
  %v810 = vld [vmem:[%s0 + $0x184c] sm:$0x11]
  %v811 = vld [vmem:[%s0 + $0x1854] sm:$0x11]
  %v812 = vld [vmem:[%s0 + $0x185c] sm:$0x11]
  %v813 = vld [vmem:[%s0 + $0x1864] sm:$0x11]
  %v814 = vld [vmem:[%s0 + $0x186c] sm:$0x11]
  %v815 = vld [vmem:[%s0 + $0x1874] sm:$0x11]
  %v816 = vld [vmem:[%s0 + $0x187c] sm:$0x1]
  %v817 = vld [vmem:[#allocation2] sm:$0x1]
  %819 = vset.pattern.permute.xlu0 0
  %820 = vperm.xlu0 %819, %v817
  %v821 = vpop.permute.xlu0 %820
  %v823 = vperm.slane %v821, 0
  %825 = vst [vmem:[#allocation1] ss:$9 sm:$0xff] %v16
  %v826 = vld [vmem:[#allocation1] sm:$0xff]
  %v827 = vld [vmem:[#allocation1 + $0x9] sm:$0xff]
  %v1629 = vunpack.c.l.b16 %v17
  %v1630 = vunpack.c.h.b16 %v17
  %v1631 = vunpack.c.l.b16 %v18
  %v1632 = vunpack.c.h.b16 %v18
  %v1633 = vunpack.c.l.b16 %v19
  %v1634 = vunpack.c.h.b16 %v19
  %v1635 = vunpack.c.l.b16 %v20
  %v1636 = vunpack.c.h.b16 %v20
  %v1637 = vunpack.c.l.b16 %v21
  %v1638 = vunpack.c.h.b16 %v21
  %v1639 = vunpack.c.l.b16 %v22
  %v1640 = vunpack.c.h.b16 %v22
  %v1641 = vunpack.c.l.b16 %v23
  %v1642 = vunpack.c.h.b16 %v23
  %v1643 = vunpack.c.l.b16 %v24
  %v1644 = vunpack.c.h.b16 %v24
  %v1645 = vunpack.c.l.b16 %v25
  %v1646 = vunpack.c.h.b16 %v25
  %v1647 = vunpack.c.l.b16 %v26
  %v1648 = vunpack.c.h.b16 %v26
  %v1649 = vunpack.c.l.b16 %v27
  %v1650 = vunpack.c.h.b16 %v27
  %v1651 = vunpack.c.l.b16 %v28
  %v1652 = vunpack.c.h.b16 %v28
  %v1653 = vunpack.c.l.b16 %v29
  %v1654 = vunpack.c.h.b16 %v29
  %v1655 = vunpack.c.l.b16 %v30
  %v1656 = vunpack.c.h.b16 %v30
  %v1657 = vunpack.c.l.b16 %v31
  %v1658 = vunpack.c.h.b16 %v31
  %v1659 = vunpack.c.l.b16 %v32
  %v1660 = vunpack.c.h.b16 %v32
  %v1661 = vunpack.c.l.b16 %v33
  %v1662 = vunpack.c.h.b16 %v33
  %v1663 = vunpack.c.l.b16 %v34
  %v1664 = vunpack.c.h.b16 %v34
  %v1665 = vunpack.c.l.b16 %v35
  %v1666 = vunpack.c.h.b16 %v35
  %v1667 = vunpack.c.l.b16 %v36
  %v1668 = vunpack.c.h.b16 %v36
  %v1669 = vunpack.c.l.b16 %v37
  %v1670 = vunpack.c.h.b16 %v37
  %v1671 = vunpack.c.l.b16 %v38
  %v1672 = vunpack.c.h.b16 %v38
  %v1673 = vunpack.c.l.b16 %v39
  %v1674 = vunpack.c.h.b16 %v39
  %v1675 = vunpack.c.l.b16 %v40
  %v1676 = vunpack.c.h.b16 %v40
  %v1677 = vunpack.c.l.b16 %v41
  %v1678 = vunpack.c.l.b16 %v42
  %v1679 = vunpack.c.h.b16 %v42
  %v1680 = vunpack.c.l.b16 %v43
  %v1681 = vunpack.c.h.b16 %v43
  %v1682 = vunpack.c.l.b16 %v44
  %v1683 = vunpack.c.h.b16 %v44
  %v1684 = vunpack.c.l.b16 %v45
  %v1685 = vunpack.c.h.b16 %v45
  %v1686 = vunpack.c.l.b16 %v46
  %v1687 = vunpack.c.h.b16 %v46
  %v1688 = vunpack.c.l.b16 %v47
  %v1689 = vunpack.c.h.b16 %v47
  %v1690 = vunpack.c.l.b16 %v48
  %v1691 = vunpack.c.h.b16 %v48
  %v1692 = vunpack.c.l.b16 %v49
  %v1693 = vunpack.c.h.b16 %v49
  %v1694 = vunpack.c.l.b16 %v50
  %v1695 = vunpack.c.h.b16 %v50
  %v1696 = vunpack.c.l.b16 %v51
  %v1697 = vunpack.c.h.b16 %v51
  %v1698 = vunpack.c.l.b16 %v52
  %v1699 = vunpack.c.h.b16 %v52
  %v1700 = vunpack.c.l.b16 %v53
  %v1701 = vunpack.c.h.b16 %v53
  %v1702 = vunpack.c.l.b16 %v54
  %v1703 = vunpack.c.h.b16 %v54
  %v1704 = vunpack.c.l.b16 %v55
  %v1705 = vunpack.c.h.b16 %v55
  %v1706 = vunpack.c.l.b16 %v56
  %v1707 = vunpack.c.h.b16 %v56
  %v1708 = vunpack.c.l.b16 %v57
  %v1709 = vunpack.c.h.b16 %v57
  %v1710 = vunpack.c.l.b16 %v58
  %v1711 = vunpack.c.h.b16 %v58
  %v1712 = vunpack.c.l.b16 %v59
  %v1713 = vunpack.c.h.b16 %v59
  %v1714 = vunpack.c.l.b16 %v60
  %v1715 = vunpack.c.h.b16 %v60
  %v1716 = vunpack.c.l.b16 %v61
  %v1717 = vunpack.c.h.b16 %v61
  %v1718 = vunpack.c.l.b16 %v62
  %v1719 = vunpack.c.h.b16 %v62
  %v1720 = vunpack.c.l.b16 %v63
  %v1721 = vunpack.c.h.b16 %v63
  %v1722 = vunpack.c.l.b16 %v64
  %v1723 = vunpack.c.h.b16 %v64
  %v1724 = vunpack.c.l.b16 %v65
  %v1725 = vunpack.c.h.b16 %v65
  %v1726 = vunpack.c.l.b16 %v66
  %v1727 = vunpack.c.l.b16 %v67
  %v1728 = vunpack.c.h.b16 %v67
  %v1729 = vunpack.c.l.b16 %v68
  %v1730 = vunpack.c.h.b16 %v68
  %v1731 = vunpack.c.l.b16 %v69
  %v1732 = vunpack.c.h.b16 %v69
  %v1733 = vunpack.c.l.b16 %v70
  %v1734 = vunpack.c.h.b16 %v70
  %v1735 = vunpack.c.l.b16 %v71
  %v1736 = vunpack.c.h.b16 %v71
  %v1737 = vunpack.c.l.b16 %v72
  %v1738 = vunpack.c.h.b16 %v72
  %v1739 = vunpack.c.l.b16 %v73
  %v1740 = vunpack.c.h.b16 %v73
  %v1741 = vunpack.c.l.b16 %v74
  %v1742 = vunpack.c.h.b16 %v74
  %v1743 = vunpack.c.l.b16 %v75
  %v1744 = vunpack.c.h.b16 %v75
  %v1745 = vunpack.c.l.b16 %v76
  %v1746 = vunpack.c.h.b16 %v76
  %v1747 = vunpack.c.l.b16 %v77
  %v1748 = vunpack.c.h.b16 %v77
  %v1749 = vunpack.c.l.b16 %v78
  %v1750 = vunpack.c.h.b16 %v78
  %v1751 = vunpack.c.l.b16 %v79
  %v1752 = vunpack.c.h.b16 %v79
  %v1753 = vunpack.c.l.b16 %v80
  %v1754 = vunpack.c.h.b16 %v80
  %v1755 = vunpack.c.l.b16 %v81
  %v1756 = vunpack.c.h.b16 %v81
  %v1757 = vunpack.c.l.b16 %v82
  %v1758 = vunpack.c.h.b16 %v82
  %v1759 = vunpack.c.l.b16 %v83
  %v1760 = vunpack.c.h.b16 %v83
  %v1761 = vunpack.c.l.b16 %v84
  %v1762 = vunpack.c.h.b16 %v84
  %v1763 = vunpack.c.l.b16 %v85
  %v1764 = vunpack.c.h.b16 %v85
  %v1765 = vunpack.c.l.b16 %v86
  %v1766 = vunpack.c.h.b16 %v86
  %v1767 = vunpack.c.l.b16 %v87
  %v1768 = vunpack.c.h.b16 %v87
  %v1769 = vunpack.c.l.b16 %v88
  %v1770 = vunpack.c.h.b16 %v88
  %v1771 = vunpack.c.l.b16 %v89
  %v1772 = vunpack.c.h.b16 %v89
  %v1773 = vunpack.c.l.b16 %v90
  %v1774 = vunpack.c.h.b16 %v90
  %v1775 = vunpack.c.l.b16 %v91
  %v1776 = vunpack.c.l.b16 %v92
  %v1777 = vunpack.c.h.b16 %v92
  %v1778 = vunpack.c.l.b16 %v93
  %v1779 = vunpack.c.h.b16 %v93
  %v1780 = vunpack.c.l.b16 %v94
  %v1781 = vunpack.c.h.b16 %v94
  %v1782 = vunpack.c.l.b16 %v95
  %v1783 = vunpack.c.h.b16 %v95
  %v1784 = vunpack.c.l.b16 %v96
  %v1785 = vunpack.c.h.b16 %v96
  %v1786 = vunpack.c.l.b16 %v97
  %v1787 = vunpack.c.h.b16 %v97
  %v1788 = vunpack.c.l.b16 %v98
  %v1789 = vunpack.c.h.b16 %v98
  %v1790 = vunpack.c.l.b16 %v99
  %v1791 = vunpack.c.h.b16 %v99
  %v1792 = vunpack.c.l.b16 %v100
  %v1793 = vunpack.c.h.b16 %v100
  %v1794 = vunpack.c.l.b16 %v101
  %v1795 = vunpack.c.h.b16 %v101
  %v1796 = vunpack.c.l.b16 %v102
  %v1797 = vunpack.c.h.b16 %v102
  %v1798 = vunpack.c.l.b16 %v103
  %v1799 = vunpack.c.h.b16 %v103
  %v1800 = vunpack.c.l.b16 %v104
  %v1801 = vunpack.c.h.b16 %v104
  %v1802 = vunpack.c.l.b16 %v105
  %v1803 = vunpack.c.h.b16 %v105
  %v1804 = vunpack.c.l.b16 %v106
  %v1805 = vunpack.c.h.b16 %v106
  %v1806 = vunpack.c.l.b16 %v107
  %v1807 = vunpack.c.h.b16 %v107
  %v1808 = vunpack.c.l.b16 %v108
  %v1809 = vunpack.c.h.b16 %v108
  %v1810 = vunpack.c.l.b16 %v109
  %v1811 = vunpack.c.h.b16 %v109
  %v1812 = vunpack.c.l.b16 %v110
  %v1813 = vunpack.c.h.b16 %v110
  %v1814 = vunpack.c.l.b16 %v111
  %v1815 = vunpack.c.h.b16 %v111
  %v1816 = vunpack.c.l.b16 %v112
  %v1817 = vunpack.c.h.b16 %v112
  %v1818 = vunpack.c.l.b16 %v113
  %v1819 = vunpack.c.h.b16 %v113
  %v1820 = vunpack.c.l.b16 %v114
  %v1821 = vunpack.c.h.b16 %v114
  %v1822 = vunpack.c.l.b16 %v115
  %v1823 = vunpack.c.h.b16 %v115
  %v1824 = vunpack.c.l.b16 %v116
  %v1825 = vunpack.c.l.b16 %v117
  %v1826 = vunpack.c.h.b16 %v117
  %v1827 = vunpack.c.l.b16 %v118
  %v1828 = vunpack.c.h.b16 %v118
  %v1829 = vunpack.c.l.b16 %v119
  %v1830 = vunpack.c.h.b16 %v119
  %v1831 = vunpack.c.l.b16 %v120
  %v1832 = vunpack.c.h.b16 %v120
  %v1833 = vunpack.c.l.b16 %v121
  %v1834 = vunpack.c.h.b16 %v121
  %v1835 = vunpack.c.l.b16 %v122
  %v1836 = vunpack.c.h.b16 %v122
  %v1837 = vunpack.c.l.b16 %v123
  %v1838 = vunpack.c.h.b16 %v123
  %v1839 = vunpack.c.l.b16 %v124
  %v1840 = vunpack.c.h.b16 %v124
  %v1841 = vunpack.c.l.b16 %v125
  %v1842 = vunpack.c.h.b16 %v125
  %v1843 = vunpack.c.l.b16 %v126
  %v1844 = vunpack.c.h.b16 %v126
  %v1845 = vunpack.c.l.b16 %v127
  %v1846 = vunpack.c.h.b16 %v127
  %v1847 = vunpack.c.l.b16 %v128
  %v1848 = vunpack.c.h.b16 %v128
  %v1849 = vunpack.c.l.b16 %v129
  %v1850 = vunpack.c.h.b16 %v129
  %v1851 = vunpack.c.l.b16 %v130
  %v1852 = vunpack.c.h.b16 %v130
  %v1853 = vunpack.c.l.b16 %v131
  %v1854 = vunpack.c.h.b16 %v131
  %v1855 = vunpack.c.l.b16 %v132
  %v1856 = vunpack.c.h.b16 %v132
  %v1857 = vunpack.c.l.b16 %v133
  %v1858 = vunpack.c.h.b16 %v133
  %v1859 = vunpack.c.l.b16 %v134
  %v1860 = vunpack.c.h.b16 %v134
  %v1861 = vunpack.c.l.b16 %v135
  %v1862 = vunpack.c.h.b16 %v135
  %v1863 = vunpack.c.l.b16 %v136
  %v1864 = vunpack.c.h.b16 %v136
  %v1865 = vunpack.c.l.b16 %v137
  %v1866 = vunpack.c.h.b16 %v137
  %v1867 = vunpack.c.l.b16 %v138
  %v1868 = vunpack.c.h.b16 %v138
  %v1869 = vunpack.c.l.b16 %v139
  %v1870 = vunpack.c.h.b16 %v139
  %v1871 = vunpack.c.l.b16 %v140
  %v1872 = vunpack.c.h.b16 %v140
  %v1873 = vunpack.c.l.b16 %v141
  %v1874 = vunpack.c.l.b16 %v142
  %v1875 = vunpack.c.h.b16 %v142
  %v1876 = vunpack.c.l.b16 %v143
  %v1877 = vunpack.c.h.b16 %v143
  %v1878 = vunpack.c.l.b16 %v144
  %v1879 = vunpack.c.h.b16 %v144
  %v1880 = vunpack.c.l.b16 %v145
  %v1881 = vunpack.c.h.b16 %v145
  %v1882 = vunpack.c.l.b16 %v146
  %v1883 = vunpack.c.h.b16 %v146
  %v1884 = vunpack.c.l.b16 %v147
  %v1885 = vunpack.c.h.b16 %v147
  %v1886 = vunpack.c.l.b16 %v148
  %v1887 = vunpack.c.h.b16 %v148
  %v1888 = vunpack.c.l.b16 %v149
  %v1889 = vunpack.c.h.b16 %v149
  %v1890 = vunpack.c.l.b16 %v150
  %v1891 = vunpack.c.h.b16 %v150
  %v1892 = vunpack.c.l.b16 %v151
  %v1893 = vunpack.c.h.b16 %v151
  %v1894 = vunpack.c.l.b16 %v152
  %v1895 = vunpack.c.h.b16 %v152
  %v1896 = vunpack.c.l.b16 %v153
  %v1897 = vunpack.c.h.b16 %v153
  %v1898 = vunpack.c.l.b16 %v154
  %v1899 = vunpack.c.h.b16 %v154
  %v1900 = vunpack.c.l.b16 %v155
  %v1901 = vunpack.c.h.b16 %v155
  %v1902 = vunpack.c.l.b16 %v156
  %v1903 = vunpack.c.h.b16 %v156
  %v1904 = vunpack.c.l.b16 %v157
  %v1905 = vunpack.c.h.b16 %v157
  %v1906 = vunpack.c.l.b16 %v158
  %v1907 = vunpack.c.h.b16 %v158
  %v1908 = vunpack.c.l.b16 %v159
  %v1909 = vunpack.c.h.b16 %v159
  %v1910 = vunpack.c.l.b16 %v160
  %v1911 = vunpack.c.h.b16 %v160
  %v1912 = vunpack.c.l.b16 %v161
  %v1913 = vunpack.c.h.b16 %v161
  %v1914 = vunpack.c.l.b16 %v162
  %v1915 = vunpack.c.h.b16 %v162
  %v1916 = vunpack.c.l.b16 %v163
  %v1917 = vunpack.c.h.b16 %v163
  %v1918 = vunpack.c.l.b16 %v164
  %v1919 = vunpack.c.h.b16 %v164
  %v1920 = vunpack.c.l.b16 %v165
  %v1921 = vunpack.c.h.b16 %v165
  %v1922 = vunpack.c.l.b16 %v166
  %v1923 = vunpack.c.l.b16 %v167
  %v1924 = vunpack.c.h.b16 %v167
  %v1925 = vunpack.c.l.b16 %v168
  %v1926 = vunpack.c.h.b16 %v168
  %v1927 = vunpack.c.l.b16 %v169
  %v1928 = vunpack.c.h.b16 %v169
  %v1929 = vunpack.c.l.b16 %v170
  %v1930 = vunpack.c.h.b16 %v170
  %v1931 = vunpack.c.l.b16 %v171
  %v1932 = vunpack.c.h.b16 %v171
  %v1933 = vunpack.c.l.b16 %v172
  %v1934 = vunpack.c.h.b16 %v172
  %v1935 = vunpack.c.l.b16 %v173
  %v1936 = vunpack.c.h.b16 %v173
  %v1937 = vunpack.c.l.b16 %v174
  %v1938 = vunpack.c.h.b16 %v174
  %v1939 = vunpack.c.l.b16 %v175
  %v1940 = vunpack.c.h.b16 %v175
  %v1941 = vunpack.c.l.b16 %v176
  %v1942 = vunpack.c.h.b16 %v176
  %v1943 = vunpack.c.l.b16 %v177
  %v1944 = vunpack.c.h.b16 %v177
  %v1945 = vunpack.c.l.b16 %v178
  %v1946 = vunpack.c.h.b16 %v178
  %v1947 = vunpack.c.l.b16 %v179
  %v1948 = vunpack.c.h.b16 %v179
  %v1949 = vunpack.c.l.b16 %v180
  %v1950 = vunpack.c.h.b16 %v180
  %v1951 = vunpack.c.l.b16 %v181
  %v1952 = vunpack.c.h.b16 %v181
  %v1953 = vunpack.c.l.b16 %v182
  %v1954 = vunpack.c.h.b16 %v182
  %v1955 = vunpack.c.l.b16 %v183
  %v1956 = vunpack.c.h.b16 %v183
  %v1957 = vunpack.c.l.b16 %v184
  %v1958 = vunpack.c.h.b16 %v184
  %v1959 = vunpack.c.l.b16 %v185
  %v1960 = vunpack.c.h.b16 %v185
  %v1961 = vunpack.c.l.b16 %v186
  %v1962 = vunpack.c.h.b16 %v186
  %v1963 = vunpack.c.l.b16 %v187
  %v1964 = vunpack.c.h.b16 %v187
  %v1965 = vunpack.c.l.b16 %v188
  %v1966 = vunpack.c.h.b16 %v188
  %v1967 = vunpack.c.l.b16 %v189
  %v1968 = vunpack.c.h.b16 %v189
  %v1969 = vunpack.c.l.b16 %v190
  %v1970 = vunpack.c.h.b16 %v190
  %v1971 = vunpack.c.l.b16 %v191
  %v1972 = vunpack.c.l.b16 %v192
  %v1973 = vunpack.c.h.b16 %v192
  %v1974 = vunpack.c.l.b16 %v193
  %v1975 = vunpack.c.h.b16 %v193
  %v1976 = vunpack.c.l.b16 %v194
  %v1977 = vunpack.c.h.b16 %v194
  %v1978 = vunpack.c.l.b16 %v195
  %v1979 = vunpack.c.h.b16 %v195
  %v1980 = vunpack.c.l.b16 %v196
  %v1981 = vunpack.c.h.b16 %v196
  %v1982 = vunpack.c.l.b16 %v197
  %v1983 = vunpack.c.h.b16 %v197
  %v1984 = vunpack.c.l.b16 %v198
  %v1985 = vunpack.c.h.b16 %v198
  %v1986 = vunpack.c.l.b16 %v199
  %v1987 = vunpack.c.h.b16 %v199
  %v1988 = vunpack.c.l.b16 %v200
  %v1989 = vunpack.c.h.b16 %v200
  %v1990 = vunpack.c.l.b16 %v201
  %v1991 = vunpack.c.h.b16 %v201
  %v1992 = vunpack.c.l.b16 %v202
  %v1993 = vunpack.c.h.b16 %v202
  %v1994 = vunpack.c.l.b16 %v203
  %v1995 = vunpack.c.h.b16 %v203
  %v1996 = vunpack.c.l.b16 %v204
  %v1997 = vunpack.c.h.b16 %v204
  %v1998 = vunpack.c.l.b16 %v205
  %v1999 = vunpack.c.h.b16 %v205
  %v2000 = vunpack.c.l.b16 %v206
  %v2001 = vunpack.c.h.b16 %v206
  %v2002 = vunpack.c.l.b16 %v207
  %v2003 = vunpack.c.h.b16 %v207
  %v2004 = vunpack.c.l.b16 %v208
  %v2005 = vunpack.c.h.b16 %v208
  %v2006 = vunpack.c.l.b16 %v209
  %v2007 = vunpack.c.h.b16 %v209
  %v2008 = vunpack.c.l.b16 %v210
  %v2009 = vunpack.c.h.b16 %v210
  %v2010 = vunpack.c.l.b16 %v211
  %v2011 = vunpack.c.h.b16 %v211
  %v2012 = vunpack.c.l.b16 %v212
  %v2013 = vunpack.c.h.b16 %v212
  %v2014 = vunpack.c.l.b16 %v213
  %v2015 = vunpack.c.h.b16 %v213
  %v2016 = vunpack.c.l.b16 %v214
  %v2017 = vunpack.c.h.b16 %v214
  %v2018 = vunpack.c.l.b16 %v215
  %v2019 = vunpack.c.h.b16 %v215
  %v2020 = vunpack.c.l.b16 %v216
  %v2021 = vunpack.c.l.b16 %v217
  %v2022 = vunpack.c.h.b16 %v217
  %v2023 = vunpack.c.l.b16 %v218
  %v2024 = vunpack.c.h.b16 %v218
  %v2025 = vunpack.c.l.b16 %v219
  %v2026 = vunpack.c.h.b16 %v219
  %v2027 = vunpack.c.l.b16 %v220
  %v2028 = vunpack.c.h.b16 %v220
  %v2029 = vunpack.c.l.b16 %v221
  %v2030 = vunpack.c.h.b16 %v221
  %v2031 = vunpack.c.l.b16 %v222
  %v2032 = vunpack.c.h.b16 %v222
  %v2033 = vunpack.c.l.b16 %v223
  %v2034 = vunpack.c.h.b16 %v223
  %v2035 = vunpack.c.l.b16 %v224
  %v2036 = vunpack.c.h.b16 %v224
  %v2037 = vunpack.c.l.b16 %v225
  %v2038 = vunpack.c.h.b16 %v225
  %v2039 = vunpack.c.l.b16 %v226
  %v2040 = vunpack.c.h.b16 %v226
  %v2041 = vunpack.c.l.b16 %v227
  %v2042 = vunpack.c.h.b16 %v227
  %v2043 = vunpack.c.l.b16 %v228
  %v2044 = vunpack.c.h.b16 %v228
  %v2045 = vunpack.c.l.b16 %v229
  %v2046 = vunpack.c.h.b16 %v229
  %v2047 = vunpack.c.l.b16 %v230
  %v2048 = vunpack.c.h.b16 %v230
  %v2049 = vunpack.c.l.b16 %v231
  %v2050 = vunpack.c.h.b16 %v231
  %v2051 = vunpack.c.l.b16 %v232
  %v2052 = vunpack.c.h.b16 %v232
  %v2053 = vunpack.c.l.b16 %v233
  %v2054 = vunpack.c.h.b16 %v233
  %v2055 = vunpack.c.l.b16 %v234
  %v2056 = vunpack.c.h.b16 %v234
  %v2057 = vunpack.c.l.b16 %v235
  %v2058 = vunpack.c.h.b16 %v235
  %v2059 = vunpack.c.l.b16 %v236
  %v2060 = vunpack.c.h.b16 %v236
  %v2061 = vunpack.c.l.b16 %v237
  %v2062 = vunpack.c.h.b16 %v237
  %v2063 = vunpack.c.l.b16 %v238
  %v2064 = vunpack.c.h.b16 %v238
  %v2065 = vunpack.c.l.b16 %v239
  %v2066 = vunpack.c.h.b16 %v239
  %v2067 = vunpack.c.l.b16 %v240
  %v2068 = vunpack.c.h.b16 %v240
  %v2069 = vunpack.c.l.b16 %v241
  %v2070 = vunpack.c.l.b16 %v242
  %v2071 = vunpack.c.h.b16 %v242
  %v2072 = vunpack.c.l.b16 %v243
  %v2073 = vunpack.c.h.b16 %v243
  %v2074 = vunpack.c.l.b16 %v244
  %v2075 = vunpack.c.h.b16 %v244
  %v2076 = vunpack.c.l.b16 %v245
  %v2077 = vunpack.c.h.b16 %v245
  %v2078 = vunpack.c.l.b16 %v246
  %v2079 = vunpack.c.h.b16 %v246
  %v2080 = vunpack.c.l.b16 %v247
  %v2081 = vunpack.c.h.b16 %v247
  %v2082 = vunpack.c.l.b16 %v248
  %v2083 = vunpack.c.h.b16 %v248
  %v2084 = vunpack.c.l.b16 %v249
  %v2085 = vunpack.c.h.b16 %v249
  %v2086 = vunpack.c.l.b16 %v250
  %v2087 = vunpack.c.h.b16 %v250
  %v2088 = vunpack.c.l.b16 %v251
  %v2089 = vunpack.c.h.b16 %v251
  %v2090 = vunpack.c.l.b16 %v252
  %v2091 = vunpack.c.h.b16 %v252
  %v2092 = vunpack.c.l.b16 %v253
  %v2093 = vunpack.c.h.b16 %v253
  %v2094 = vunpack.c.l.b16 %v254
  %v2095 = vunpack.c.h.b16 %v254
  %v2096 = vunpack.c.l.b16 %v255
  %v2097 = vunpack.c.h.b16 %v255
  %v2098 = vunpack.c.l.b16 %v256
  %v2099 = vunpack.c.h.b16 %v256
  %v2100 = vunpack.c.l.b16 %v257
  %v2101 = vunpack.c.h.b16 %v257
  %v2102 = vunpack.c.l.b16 %v258
  %v2103 = vunpack.c.h.b16 %v258
  %v2104 = vunpack.c.l.b16 %v259
  %v2105 = vunpack.c.h.b16 %v259
  %v2106 = vunpack.c.l.b16 %v260
  %v2107 = vunpack.c.h.b16 %v260
  %v2108 = vunpack.c.l.b16 %v261
  %v2109 = vunpack.c.h.b16 %v261
  %v2110 = vunpack.c.l.b16 %v262
  %v2111 = vunpack.c.h.b16 %v262
  %v2112 = vunpack.c.l.b16 %v263
  %v2113 = vunpack.c.h.b16 %v263
  %v2114 = vunpack.c.l.b16 %v264
  %v2115 = vunpack.c.h.b16 %v264
  %v2116 = vunpack.c.l.b16 %v265
  %v2117 = vunpack.c.h.b16 %v265
  %v2118 = vunpack.c.l.b16 %v266
  %v2119 = vunpack.c.l.b16 %v267
  %v2120 = vunpack.c.h.b16 %v267
  %v2121 = vunpack.c.l.b16 %v268
  %v2122 = vunpack.c.h.b16 %v268
  %v2123 = vunpack.c.l.b16 %v269
  %v2124 = vunpack.c.h.b16 %v269
  %v2125 = vunpack.c.l.b16 %v270
  %v2126 = vunpack.c.h.b16 %v270
  %v2127 = vunpack.c.l.b16 %v271
  %v2128 = vunpack.c.h.b16 %v271
  %v2129 = vunpack.c.l.b16 %v272
  %v2130 = vunpack.c.h.b16 %v272
  %v2131 = vunpack.c.l.b16 %v273
  %v2132 = vunpack.c.h.b16 %v273
  %v2133 = vunpack.c.l.b16 %v274
  %v2134 = vunpack.c.h.b16 %v274
  %v2135 = vunpack.c.l.b16 %v275
  %v2136 = vunpack.c.h.b16 %v275
  %v2137 = vunpack.c.l.b16 %v276
  %v2138 = vunpack.c.h.b16 %v276
  %v2139 = vunpack.c.l.b16 %v277
  %v2140 = vunpack.c.h.b16 %v277
  %v2141 = vunpack.c.l.b16 %v278
  %v2142 = vunpack.c.h.b16 %v278
  %v2143 = vunpack.c.l.b16 %v279
  %v2144 = vunpack.c.h.b16 %v279
  %v2145 = vunpack.c.l.b16 %v280
  %v2146 = vunpack.c.h.b16 %v280
  %v2147 = vunpack.c.l.b16 %v281
  %v2148 = vunpack.c.h.b16 %v281
  %v2149 = vunpack.c.l.b16 %v282
  %v2150 = vunpack.c.h.b16 %v282
  %v2151 = vunpack.c.l.b16 %v283
  %v2152 = vunpack.c.h.b16 %v283
  %v2153 = vunpack.c.l.b16 %v284
  %v2154 = vunpack.c.h.b16 %v284
  %v2155 = vunpack.c.l.b16 %v285
  %v2156 = vunpack.c.h.b16 %v285
  %v2157 = vunpack.c.l.b16 %v286
  %v2158 = vunpack.c.h.b16 %v286
  %v2159 = vunpack.c.l.b16 %v287
  %v2160 = vunpack.c.h.b16 %v287
  %v2161 = vunpack.c.l.b16 %v288
  %v2162 = vunpack.c.h.b16 %v288
  %v2163 = vunpack.c.l.b16 %v289
  %v2164 = vunpack.c.h.b16 %v289
  %v2165 = vunpack.c.l.b16 %v290
  %v2166 = vunpack.c.h.b16 %v290
  %v2167 = vunpack.c.l.b16 %v291
  %v2168 = vunpack.c.l.b16 %v292
  %v2169 = vunpack.c.h.b16 %v292
  %v2170 = vunpack.c.l.b16 %v293
  %v2171 = vunpack.c.h.b16 %v293
  %v2172 = vunpack.c.l.b16 %v294
  %v2173 = vunpack.c.h.b16 %v294
  %v2174 = vunpack.c.l.b16 %v295
  %v2175 = vunpack.c.h.b16 %v295
  %v2176 = vunpack.c.l.b16 %v296
  %v2177 = vunpack.c.h.b16 %v296
  %v2178 = vunpack.c.l.b16 %v297
  %v2179 = vunpack.c.h.b16 %v297
  %v2180 = vunpack.c.l.b16 %v298
  %v2181 = vunpack.c.h.b16 %v298
  %v2182 = vunpack.c.l.b16 %v299
  %v2183 = vunpack.c.h.b16 %v299
  %v2184 = vunpack.c.l.b16 %v300
  %v2185 = vunpack.c.h.b16 %v300
  %v2186 = vunpack.c.l.b16 %v301
  %v2187 = vunpack.c.h.b16 %v301
  %v2188 = vunpack.c.l.b16 %v302
  %v2189 = vunpack.c.h.b16 %v302
  %v2190 = vunpack.c.l.b16 %v303
  %v2191 = vunpack.c.h.b16 %v303
  %v2192 = vunpack.c.l.b16 %v304
  %v2193 = vunpack.c.h.b16 %v304
  %v2194 = vunpack.c.l.b16 %v305
  %v2195 = vunpack.c.h.b16 %v305
  %v2196 = vunpack.c.l.b16 %v306
  %v2197 = vunpack.c.h.b16 %v306
  %v2198 = vunpack.c.l.b16 %v307
  %v2199 = vunpack.c.h.b16 %v307
  %v2200 = vunpack.c.l.b16 %v308
  %v2201 = vunpack.c.h.b16 %v308
  %v2202 = vunpack.c.l.b16 %v309
  %v2203 = vunpack.c.h.b16 %v309
  %v2204 = vunpack.c.l.b16 %v310
  %v2205 = vunpack.c.h.b16 %v310
  %v2206 = vunpack.c.l.b16 %v311
  %v2207 = vunpack.c.h.b16 %v311
  %v2208 = vunpack.c.l.b16 %v312
  %v2209 = vunpack.c.h.b16 %v312
  %v2210 = vunpack.c.l.b16 %v313
  %v2211 = vunpack.c.h.b16 %v313
  %v2212 = vunpack.c.l.b16 %v314
  %v2213 = vunpack.c.h.b16 %v314
  %v2214 = vunpack.c.l.b16 %v315
  %v2215 = vunpack.c.h.b16 %v315
  %v2216 = vunpack.c.l.b16 %v316
  %v2217 = vunpack.c.l.b16 %v317
  %v2218 = vunpack.c.h.b16 %v317
  %v2219 = vunpack.c.l.b16 %v318
  %v2220 = vunpack.c.h.b16 %v318
  %v2221 = vunpack.c.l.b16 %v319
  %v2222 = vunpack.c.h.b16 %v319
  %v2223 = vunpack.c.l.b16 %v320
  %v2224 = vunpack.c.h.b16 %v320
  %v2225 = vunpack.c.l.b16 %v321
  %v2226 = vunpack.c.h.b16 %v321
  %v2227 = vunpack.c.l.b16 %v322
  %v2228 = vunpack.c.h.b16 %v322
  %v2229 = vunpack.c.l.b16 %v323
  %v2230 = vunpack.c.h.b16 %v323
  %v2231 = vunpack.c.l.b16 %v324
  %v2232 = vunpack.c.h.b16 %v324
  %v2233 = vunpack.c.l.b16 %v325
  %v2234 = vunpack.c.h.b16 %v325
  %v2235 = vunpack.c.l.b16 %v326
  %v2236 = vunpack.c.h.b16 %v326
  %v2237 = vunpack.c.l.b16 %v327
  %v2238 = vunpack.c.h.b16 %v327
  %v2239 = vunpack.c.l.b16 %v328
  %v2240 = vunpack.c.h.b16 %v328
  %v2241 = vunpack.c.l.b16 %v329
  %v2242 = vunpack.c.h.b16 %v329
  %v2243 = vunpack.c.l.b16 %v330
  %v2244 = vunpack.c.h.b16 %v330
  %v2245 = vunpack.c.l.b16 %v331
  %v2246 = vunpack.c.h.b16 %v331
  %v2247 = vunpack.c.l.b16 %v332
  %v2248 = vunpack.c.h.b16 %v332
  %v2249 = vunpack.c.l.b16 %v333
  %v2250 = vunpack.c.h.b16 %v333
  %v2251 = vunpack.c.l.b16 %v334
  %v2252 = vunpack.c.h.b16 %v334
  %v2253 = vunpack.c.l.b16 %v335
  %v2254 = vunpack.c.h.b16 %v335
  %v2255 = vunpack.c.l.b16 %v336
  %v2256 = vunpack.c.h.b16 %v336
  %v2257 = vunpack.c.l.b16 %v337
  %v2258 = vunpack.c.h.b16 %v337
  %v2259 = vunpack.c.l.b16 %v338
  %v2260 = vunpack.c.h.b16 %v338
  %v2261 = vunpack.c.l.b16 %v339
  %v2262 = vunpack.c.h.b16 %v339
  %v2263 = vunpack.c.l.b16 %v340
  %v2264 = vunpack.c.h.b16 %v340
  %v2265 = vunpack.c.l.b16 %v341
  %v2266 = vunpack.c.l.b16 %v342
  %v2267 = vunpack.c.h.b16 %v342
  %v2268 = vunpack.c.l.b16 %v343
  %v2269 = vunpack.c.h.b16 %v343
  %v2270 = vunpack.c.l.b16 %v344
  %v2271 = vunpack.c.h.b16 %v344
  %v2272 = vunpack.c.l.b16 %v345
  %v2273 = vunpack.c.h.b16 %v345
  %v2274 = vunpack.c.l.b16 %v346
  %v2275 = vunpack.c.h.b16 %v346
  %v2276 = vunpack.c.l.b16 %v347
  %v2277 = vunpack.c.h.b16 %v347
  %v2278 = vunpack.c.l.b16 %v348
  %v2279 = vunpack.c.h.b16 %v348
  %v2280 = vunpack.c.l.b16 %v349
  %v2281 = vunpack.c.h.b16 %v349
  %v2282 = vunpack.c.l.b16 %v350
  %v2283 = vunpack.c.h.b16 %v350
  %v2284 = vunpack.c.l.b16 %v351
  %v2285 = vunpack.c.h.b16 %v351
  %v2286 = vunpack.c.l.b16 %v352
  %v2287 = vunpack.c.h.b16 %v352
  %v2288 = vunpack.c.l.b16 %v353
  %v2289 = vunpack.c.h.b16 %v353
  %v2290 = vunpack.c.l.b16 %v354
  %v2291 = vunpack.c.h.b16 %v354
  %v2292 = vunpack.c.l.b16 %v355
  %v2293 = vunpack.c.h.b16 %v355
  %v2294 = vunpack.c.l.b16 %v356
  %v2295 = vunpack.c.h.b16 %v356
  %v2296 = vunpack.c.l.b16 %v357
  %v2297 = vunpack.c.h.b16 %v357
  %v2298 = vunpack.c.l.b16 %v358
  %v2299 = vunpack.c.h.b16 %v358
  %v2300 = vunpack.c.l.b16 %v359
  %v2301 = vunpack.c.h.b16 %v359
  %v2302 = vunpack.c.l.b16 %v360
  %v2303 = vunpack.c.h.b16 %v360
  %v2304 = vunpack.c.l.b16 %v361
  %v2305 = vunpack.c.h.b16 %v361
  %v2306 = vunpack.c.l.b16 %v362
  %v2307 = vunpack.c.h.b16 %v362
  %v2308 = vunpack.c.l.b16 %v363
  %v2309 = vunpack.c.h.b16 %v363
  %v2310 = vunpack.c.l.b16 %v364
  %v2311 = vunpack.c.h.b16 %v364
  %v2312 = vunpack.c.l.b16 %v365
  %v2313 = vunpack.c.h.b16 %v365
  %v2314 = vunpack.c.l.b16 %v366
  %v2315 = vunpack.c.l.b16 %v367
  %v2316 = vunpack.c.h.b16 %v367
  %v2317 = vunpack.c.l.b16 %v368
  %v2318 = vunpack.c.h.b16 %v368
  %v2319 = vunpack.c.l.b16 %v369
  %v2320 = vunpack.c.h.b16 %v369
  %v2321 = vunpack.c.l.b16 %v370
  %v2322 = vunpack.c.h.b16 %v370
  %v2323 = vunpack.c.l.b16 %v371
  %v2324 = vunpack.c.h.b16 %v371
  %v2325 = vunpack.c.l.b16 %v372
  %v2326 = vunpack.c.h.b16 %v372
  %v2327 = vunpack.c.l.b16 %v373
  %v2328 = vunpack.c.h.b16 %v373
  %v2329 = vunpack.c.l.b16 %v374
  %v2330 = vunpack.c.h.b16 %v374
  %v2331 = vunpack.c.l.b16 %v375
  %v2332 = vunpack.c.h.b16 %v375
  %v2333 = vunpack.c.l.b16 %v376
  %v2334 = vunpack.c.h.b16 %v376
  %v2335 = vunpack.c.l.b16 %v377
  %v2336 = vunpack.c.h.b16 %v377
  %v2337 = vunpack.c.l.b16 %v378
  %v2338 = vunpack.c.h.b16 %v378
  %v2339 = vunpack.c.l.b16 %v379
  %v2340 = vunpack.c.h.b16 %v379
  %v2341 = vunpack.c.l.b16 %v380
  %v2342 = vunpack.c.h.b16 %v380
  %v2343 = vunpack.c.l.b16 %v381
  %v2344 = vunpack.c.h.b16 %v381
  %v2345 = vunpack.c.l.b16 %v382
  %v2346 = vunpack.c.h.b16 %v382
  %v2347 = vunpack.c.l.b16 %v383
  %v2348 = vunpack.c.h.b16 %v383
  %v2349 = vunpack.c.l.b16 %v384
  %v2350 = vunpack.c.h.b16 %v384
  %v2351 = vunpack.c.l.b16 %v385
  %v2352 = vunpack.c.h.b16 %v385
  %v2353 = vunpack.c.l.b16 %v386
  %v2354 = vunpack.c.h.b16 %v386
  %v2355 = vunpack.c.l.b16 %v387
  %v2356 = vunpack.c.h.b16 %v387
  %v2357 = vunpack.c.l.b16 %v388
  %v2358 = vunpack.c.h.b16 %v388
  %v2359 = vunpack.c.l.b16 %v389
  %v2360 = vunpack.c.h.b16 %v389
  %v2361 = vunpack.c.l.b16 %v390
  %v2362 = vunpack.c.h.b16 %v390
  %v2363 = vunpack.c.l.b16 %v391
  %v2364 = vunpack.c.l.b16 %v392
  %v2365 = vunpack.c.h.b16 %v392
  %v2366 = vunpack.c.l.b16 %v393
  %v2367 = vunpack.c.h.b16 %v393
  %v2368 = vunpack.c.l.b16 %v394
  %v2369 = vunpack.c.h.b16 %v394
  %v2370 = vunpack.c.l.b16 %v395
  %v2371 = vunpack.c.h.b16 %v395
  %v2372 = vunpack.c.l.b16 %v396
  %v2373 = vunpack.c.h.b16 %v396
  %v2374 = vunpack.c.l.b16 %v397
  %v2375 = vunpack.c.h.b16 %v397
  %v2376 = vunpack.c.l.b16 %v398
  %v2377 = vunpack.c.h.b16 %v398
  %v2378 = vunpack.c.l.b16 %v399
  %v2379 = vunpack.c.h.b16 %v399
  %v2380 = vunpack.c.l.b16 %v400
  %v2381 = vunpack.c.h.b16 %v400
  %v2382 = vunpack.c.l.b16 %v401
  %v2383 = vunpack.c.h.b16 %v401
  %v2384 = vunpack.c.l.b16 %v402
  %v2385 = vunpack.c.h.b16 %v402
  %v2386 = vunpack.c.l.b16 %v403
  %v2387 = vunpack.c.h.b16 %v403
  %v2388 = vunpack.c.l.b16 %v404
  %v2389 = vunpack.c.h.b16 %v404
  %v2390 = vunpack.c.l.b16 %v405
  %v2391 = vunpack.c.h.b16 %v405
  %v2392 = vunpack.c.l.b16 %v406
  %v2393 = vunpack.c.h.b16 %v406
  %v2394 = vunpack.c.l.b16 %v407
  %v2395 = vunpack.c.h.b16 %v407
  %v2396 = vunpack.c.l.b16 %v408
  %v2397 = vunpack.c.h.b16 %v408
  %v2398 = vunpack.c.l.b16 %v409
  %v2399 = vunpack.c.h.b16 %v409
  %v2400 = vunpack.c.l.b16 %v410
  %v2401 = vunpack.c.h.b16 %v410
  %v2402 = vunpack.c.l.b16 %v411
  %v2403 = vunpack.c.h.b16 %v411
  %v2404 = vunpack.c.l.b16 %v412
  %v2405 = vunpack.c.h.b16 %v412
  %v2406 = vunpack.c.l.b16 %v413
  %v2407 = vunpack.c.h.b16 %v413
  %v2408 = vunpack.c.l.b16 %v414
  %v2409 = vunpack.c.h.b16 %v414
  %v2410 = vunpack.c.l.b16 %v415
  %v2411 = vunpack.c.h.b16 %v415
  %v2412 = vunpack.c.l.b16 %v416
  %v2413 = vunpack.c.l.b16 %v417
  %v2414 = vunpack.c.h.b16 %v417
  %v2415 = vunpack.c.l.b16 %v418
  %v2416 = vunpack.c.h.b16 %v418
  %v2417 = vunpack.c.l.b16 %v419
  %v2418 = vunpack.c.h.b16 %v419
  %v2419 = vunpack.c.l.b16 %v420
  %v2420 = vunpack.c.h.b16 %v420
  %v2421 = vunpack.c.l.b16 %v421
  %v2422 = vunpack.c.h.b16 %v421
  %v2423 = vunpack.c.l.b16 %v422
  %v2424 = vunpack.c.h.b16 %v422
  %v2425 = vunpack.c.l.b16 %v423
  %v2426 = vunpack.c.h.b16 %v423
  %v2427 = vunpack.c.l.b16 %v424
  %v2428 = vunpack.c.h.b16 %v424
  %v2429 = vunpack.c.l.b16 %v425
  %v2430 = vunpack.c.h.b16 %v425
  %v2431 = vunpack.c.l.b16 %v426
  %v2432 = vunpack.c.h.b16 %v426
  %v2433 = vunpack.c.l.b16 %v427
  %v2434 = vunpack.c.h.b16 %v427
  %v2435 = vunpack.c.l.b16 %v428
  %v2436 = vunpack.c.h.b16 %v428
  %v2437 = vunpack.c.l.b16 %v429
  %v2438 = vunpack.c.h.b16 %v429
  %v2439 = vunpack.c.l.b16 %v430
  %v2440 = vunpack.c.h.b16 %v430
  %v2441 = vunpack.c.l.b16 %v431
  %v2442 = vunpack.c.h.b16 %v431
  %v2443 = vunpack.c.l.b16 %v432
  %v2444 = vunpack.c.h.b16 %v432
  %v2445 = vunpack.c.l.b16 %v433
  %v2446 = vunpack.c.h.b16 %v433
  %v2447 = vunpack.c.l.b16 %v434
  %v2448 = vunpack.c.h.b16 %v434
  %v2449 = vunpack.c.l.b16 %v435
  %v2450 = vunpack.c.h.b16 %v435
  %v2451 = vunpack.c.l.b16 %v436
  %v2452 = vunpack.c.h.b16 %v436
  %v2453 = vunpack.c.l.b16 %v437
  %v2454 = vunpack.c.h.b16 %v437
  %v2455 = vunpack.c.l.b16 %v438
  %v2456 = vunpack.c.h.b16 %v438
  %v2457 = vunpack.c.l.b16 %v439
  %v2458 = vunpack.c.h.b16 %v439
  %v2459 = vunpack.c.l.b16 %v440
  %v2460 = vunpack.c.h.b16 %v440
  %v2461 = vunpack.c.l.b16 %v441
  %v2462 = vunpack.c.l.b16 %v442
  %v2463 = vunpack.c.h.b16 %v442
  %v2464 = vunpack.c.l.b16 %v443
  %v2465 = vunpack.c.h.b16 %v443
  %v2466 = vunpack.c.l.b16 %v444
  %v2467 = vunpack.c.h.b16 %v444
  %v2468 = vunpack.c.l.b16 %v445
  %v2469 = vunpack.c.h.b16 %v445
  %v2470 = vunpack.c.l.b16 %v446
  %v2471 = vunpack.c.h.b16 %v446
  %v2472 = vunpack.c.l.b16 %v447
  %v2473 = vunpack.c.h.b16 %v447
  %v2474 = vunpack.c.l.b16 %v448
  %v2475 = vunpack.c.h.b16 %v448
  %v2476 = vunpack.c.l.b16 %v449
  %v2477 = vunpack.c.h.b16 %v449
  %v2478 = vunpack.c.l.b16 %v450
  %v2479 = vunpack.c.h.b16 %v450
  %v2480 = vunpack.c.l.b16 %v451
  %v2481 = vunpack.c.h.b16 %v451
  %v2482 = vunpack.c.l.b16 %v452
  %v2483 = vunpack.c.h.b16 %v452
  %v2484 = vunpack.c.l.b16 %v453
  %v2485 = vunpack.c.h.b16 %v453
  %v2486 = vunpack.c.l.b16 %v454
  %v2487 = vunpack.c.h.b16 %v454
  %v2488 = vunpack.c.l.b16 %v455
  %v2489 = vunpack.c.h.b16 %v455
  %v2490 = vunpack.c.l.b16 %v456
  %v2491 = vunpack.c.h.b16 %v456
  %v2492 = vunpack.c.l.b16 %v457
  %v2493 = vunpack.c.h.b16 %v457
  %v2494 = vunpack.c.l.b16 %v458
  %v2495 = vunpack.c.h.b16 %v458
  %v2496 = vunpack.c.l.b16 %v459
  %v2497 = vunpack.c.h.b16 %v459
  %v2498 = vunpack.c.l.b16 %v460
  %v2499 = vunpack.c.h.b16 %v460
  %v2500 = vunpack.c.l.b16 %v461
  %v2501 = vunpack.c.h.b16 %v461
  %v2502 = vunpack.c.l.b16 %v462
  %v2503 = vunpack.c.h.b16 %v462
  %v2504 = vunpack.c.l.b16 %v463
  %v2505 = vunpack.c.h.b16 %v463
  %v2506 = vunpack.c.l.b16 %v464
  %v2507 = vunpack.c.h.b16 %v464
  %v2508 = vunpack.c.l.b16 %v465
  %v2509 = vunpack.c.h.b16 %v465
  %v2510 = vunpack.c.l.b16 %v466
  %v2511 = vunpack.c.l.b16 %v467
  %v2512 = vunpack.c.h.b16 %v467
  %v2513 = vunpack.c.l.b16 %v468
  %v2514 = vunpack.c.h.b16 %v468
  %v2515 = vunpack.c.l.b16 %v469
  %v2516 = vunpack.c.h.b16 %v469
  %v2517 = vunpack.c.l.b16 %v470
  %v2518 = vunpack.c.h.b16 %v470
  %v2519 = vunpack.c.l.b16 %v471
  %v2520 = vunpack.c.h.b16 %v471
  %v2521 = vunpack.c.l.b16 %v472
  %v2522 = vunpack.c.h.b16 %v472
  %v2523 = vunpack.c.l.b16 %v473
  %v2524 = vunpack.c.h.b16 %v473
  %v2525 = vunpack.c.l.b16 %v474
  %v2526 = vunpack.c.h.b16 %v474
  %v2527 = vunpack.c.l.b16 %v475
  %v2528 = vunpack.c.h.b16 %v475
  %v2529 = vunpack.c.l.b16 %v476
  %v2530 = vunpack.c.h.b16 %v476
  %v2531 = vunpack.c.l.b16 %v477
  %v2532 = vunpack.c.h.b16 %v477
  %v2533 = vunpack.c.l.b16 %v478
  %v2534 = vunpack.c.h.b16 %v478
  %v2535 = vunpack.c.l.b16 %v479
  %v2536 = vunpack.c.h.b16 %v479
  %v2537 = vunpack.c.l.b16 %v480
  %v2538 = vunpack.c.h.b16 %v480
  %v2539 = vunpack.c.l.b16 %v481
  %v2540 = vunpack.c.h.b16 %v481
  %v2541 = vunpack.c.l.b16 %v482
  %v2542 = vunpack.c.h.b16 %v482
  %v2543 = vunpack.c.l.b16 %v483
  %v2544 = vunpack.c.h.b16 %v483
  %v2545 = vunpack.c.l.b16 %v484
  %v2546 = vunpack.c.h.b16 %v484
  %v2547 = vunpack.c.l.b16 %v485
  %v2548 = vunpack.c.h.b16 %v485
  %v2549 = vunpack.c.l.b16 %v486
  %v2550 = vunpack.c.h.b16 %v486
  %v2551 = vunpack.c.l.b16 %v487
  %v2552 = vunpack.c.h.b16 %v487
  %v2553 = vunpack.c.l.b16 %v488
  %v2554 = vunpack.c.h.b16 %v488
  %v2555 = vunpack.c.l.b16 %v489
  %v2556 = vunpack.c.h.b16 %v489
  %v2557 = vunpack.c.l.b16 %v490
  %v2558 = vunpack.c.h.b16 %v490
  %v2559 = vunpack.c.l.b16 %v491
  %v2560 = vunpack.c.l.b16 %v492
  %v2561 = vunpack.c.h.b16 %v492
  %v2562 = vunpack.c.l.b16 %v493
  %v2563 = vunpack.c.h.b16 %v493
  %v2564 = vunpack.c.l.b16 %v494
  %v2565 = vunpack.c.h.b16 %v494
  %v2566 = vunpack.c.l.b16 %v495
  %v2567 = vunpack.c.h.b16 %v495
  %v2568 = vunpack.c.l.b16 %v496
  %v2569 = vunpack.c.h.b16 %v496
  %v2570 = vunpack.c.l.b16 %v497
  %v2571 = vunpack.c.h.b16 %v497
  %v2572 = vunpack.c.l.b16 %v498
  %v2573 = vunpack.c.h.b16 %v498
  %v2574 = vunpack.c.l.b16 %v499
  %v2575 = vunpack.c.h.b16 %v499
  %v2576 = vunpack.c.l.b16 %v500
  %v2577 = vunpack.c.h.b16 %v500
  %v2578 = vunpack.c.l.b16 %v501
  %v2579 = vunpack.c.h.b16 %v501
  %v2580 = vunpack.c.l.b16 %v502
  %v2581 = vunpack.c.h.b16 %v502
  %v2582 = vunpack.c.l.b16 %v503
  %v2583 = vunpack.c.h.b16 %v503
  %v2584 = vunpack.c.l.b16 %v504
  %v2585 = vunpack.c.h.b16 %v504
  %v2586 = vunpack.c.l.b16 %v505
  %v2587 = vunpack.c.h.b16 %v505
  %v2588 = vunpack.c.l.b16 %v506
  %v2589 = vunpack.c.h.b16 %v506
  %v2590 = vunpack.c.l.b16 %v507
  %v2591 = vunpack.c.h.b16 %v507
  %v2592 = vunpack.c.l.b16 %v508
  %v2593 = vunpack.c.h.b16 %v508
  %v2594 = vunpack.c.l.b16 %v509
  %v2595 = vunpack.c.h.b16 %v509
  %v2596 = vunpack.c.l.b16 %v510
  %v2597 = vunpack.c.h.b16 %v510
  %v2598 = vunpack.c.l.b16 %v511
  %v2599 = vunpack.c.h.b16 %v511
  %v2600 = vunpack.c.l.b16 %v512
  %v2601 = vunpack.c.h.b16 %v512
  %v2602 = vunpack.c.l.b16 %v513
  %v2603 = vunpack.c.h.b16 %v513
  %v2604 = vunpack.c.l.b16 %v514
  %v2605 = vunpack.c.h.b16 %v514
  %v2606 = vunpack.c.l.b16 %v515
  %v2607 = vunpack.c.h.b16 %v515
  %v2608 = vunpack.c.l.b16 %v516
  %v2609 = vunpack.c.l.b16 %v517
  %v2610 = vunpack.c.h.b16 %v517
  %v2611 = vunpack.c.l.b16 %v518
  %v2612 = vunpack.c.h.b16 %v518
  %v2613 = vunpack.c.l.b16 %v519
  %v2614 = vunpack.c.h.b16 %v519
  %v2615 = vunpack.c.l.b16 %v520
  %v2616 = vunpack.c.h.b16 %v520
  %v2617 = vunpack.c.l.b16 %v521
  %v2618 = vunpack.c.h.b16 %v521
  %v2619 = vunpack.c.l.b16 %v522
  %v2620 = vunpack.c.h.b16 %v522
  %v2621 = vunpack.c.l.b16 %v523
  %v2622 = vunpack.c.h.b16 %v523
  %v2623 = vunpack.c.l.b16 %v524
  %v2624 = vunpack.c.h.b16 %v524
  %v2625 = vunpack.c.l.b16 %v525
  %v2626 = vunpack.c.h.b16 %v525
  %v2627 = vunpack.c.l.b16 %v526
  %v2628 = vunpack.c.h.b16 %v526
  %v2629 = vunpack.c.l.b16 %v527
  %v2630 = vunpack.c.h.b16 %v527
  %v2631 = vunpack.c.l.b16 %v528
  %v2632 = vunpack.c.h.b16 %v528
  %v2633 = vunpack.c.l.b16 %v529
  %v2634 = vunpack.c.h.b16 %v529
  %v2635 = vunpack.c.l.b16 %v530
  %v2636 = vunpack.c.h.b16 %v530
  %v2637 = vunpack.c.l.b16 %v531
  %v2638 = vunpack.c.h.b16 %v531
  %v2639 = vunpack.c.l.b16 %v532
  %v2640 = vunpack.c.h.b16 %v532
  %v2641 = vunpack.c.l.b16 %v533
  %v2642 = vunpack.c.h.b16 %v533
  %v2643 = vunpack.c.l.b16 %v534
  %v2644 = vunpack.c.h.b16 %v534
  %v2645 = vunpack.c.l.b16 %v535
  %v2646 = vunpack.c.h.b16 %v535
  %v2647 = vunpack.c.l.b16 %v536
  %v2648 = vunpack.c.h.b16 %v536
  %v2649 = vunpack.c.l.b16 %v537
  %v2650 = vunpack.c.h.b16 %v537
  %v2651 = vunpack.c.l.b16 %v538
  %v2652 = vunpack.c.h.b16 %v538
  %v2653 = vunpack.c.l.b16 %v539
  %v2654 = vunpack.c.h.b16 %v539
  %v2655 = vunpack.c.l.b16 %v540
  %v2656 = vunpack.c.h.b16 %v540
  %v2657 = vunpack.c.l.b16 %v541
  %v2658 = vunpack.c.l.b16 %v542
  %v2659 = vunpack.c.h.b16 %v542
  %v2660 = vunpack.c.l.b16 %v543
  %v2661 = vunpack.c.h.b16 %v543
  %v2662 = vunpack.c.l.b16 %v544
  %v2663 = vunpack.c.h.b16 %v544
  %v2664 = vunpack.c.l.b16 %v545
  %v2665 = vunpack.c.h.b16 %v545
  %v2666 = vunpack.c.l.b16 %v546
  %v2667 = vunpack.c.h.b16 %v546
  %v2668 = vunpack.c.l.b16 %v547
  %v2669 = vunpack.c.h.b16 %v547
  %v2670 = vunpack.c.l.b16 %v548
  %v2671 = vunpack.c.h.b16 %v548
  %v2672 = vunpack.c.l.b16 %v549
  %v2673 = vunpack.c.h.b16 %v549
  %v2674 = vunpack.c.l.b16 %v550
  %v2675 = vunpack.c.h.b16 %v550
  %v2676 = vunpack.c.l.b16 %v551
  %v2677 = vunpack.c.h.b16 %v551
  %v2678 = vunpack.c.l.b16 %v552
  %v2679 = vunpack.c.h.b16 %v552
  %v2680 = vunpack.c.l.b16 %v553
  %v2681 = vunpack.c.h.b16 %v553
  %v2682 = vunpack.c.l.b16 %v554
  %v2683 = vunpack.c.h.b16 %v554
  %v2684 = vunpack.c.l.b16 %v555
  %v2685 = vunpack.c.h.b16 %v555
  %v2686 = vunpack.c.l.b16 %v556
  %v2687 = vunpack.c.h.b16 %v556
  %v2688 = vunpack.c.l.b16 %v557
  %v2689 = vunpack.c.h.b16 %v557
  %v2690 = vunpack.c.l.b16 %v558
  %v2691 = vunpack.c.h.b16 %v558
  %v2692 = vunpack.c.l.b16 %v559
  %v2693 = vunpack.c.h.b16 %v559
  %v2694 = vunpack.c.l.b16 %v560
  %v2695 = vunpack.c.h.b16 %v560
  %v2696 = vunpack.c.l.b16 %v561
  %v2697 = vunpack.c.h.b16 %v561
  %v2698 = vunpack.c.l.b16 %v562
  %v2699 = vunpack.c.h.b16 %v562
  %v2700 = vunpack.c.l.b16 %v563
  %v2701 = vunpack.c.h.b16 %v563
  %v2702 = vunpack.c.l.b16 %v564
  %v2703 = vunpack.c.h.b16 %v564
  %v2704 = vunpack.c.l.b16 %v565
  %v2705 = vunpack.c.h.b16 %v565
  %v2706 = vunpack.c.l.b16 %v566
  %v2707 = vunpack.c.l.b16 %v567
  %v2708 = vunpack.c.h.b16 %v567
  %v2709 = vunpack.c.l.b16 %v568
  %v2710 = vunpack.c.h.b16 %v568
  %v2711 = vunpack.c.l.b16 %v569
  %v2712 = vunpack.c.h.b16 %v569
  %v2713 = vunpack.c.l.b16 %v570
  %v2714 = vunpack.c.h.b16 %v570
  %v2715 = vunpack.c.l.b16 %v571
  %v2716 = vunpack.c.h.b16 %v571
  %v2717 = vunpack.c.l.b16 %v572
  %v2718 = vunpack.c.h.b16 %v572
  %v2719 = vunpack.c.l.b16 %v573
  %v2720 = vunpack.c.h.b16 %v573
  %v2721 = vunpack.c.l.b16 %v574
  %v2722 = vunpack.c.h.b16 %v574
  %v2723 = vunpack.c.l.b16 %v575
  %v2724 = vunpack.c.h.b16 %v575
  %v2725 = vunpack.c.l.b16 %v576
  %v2726 = vunpack.c.h.b16 %v576
  %v2727 = vunpack.c.l.b16 %v577
  %v2728 = vunpack.c.h.b16 %v577
  %v2729 = vunpack.c.l.b16 %v578
  %v2730 = vunpack.c.h.b16 %v578
  %v2731 = vunpack.c.l.b16 %v579
  %v2732 = vunpack.c.h.b16 %v579
  %v2733 = vunpack.c.l.b16 %v580
  %v2734 = vunpack.c.h.b16 %v580
  %v2735 = vunpack.c.l.b16 %v581
  %v2736 = vunpack.c.h.b16 %v581
  %v2737 = vunpack.c.l.b16 %v582
  %v2738 = vunpack.c.h.b16 %v582
  %v2739 = vunpack.c.l.b16 %v583
  %v2740 = vunpack.c.h.b16 %v583
  %v2741 = vunpack.c.l.b16 %v584
  %v2742 = vunpack.c.h.b16 %v584
  %v2743 = vunpack.c.l.b16 %v585
  %v2744 = vunpack.c.h.b16 %v585
  %v2745 = vunpack.c.l.b16 %v586
  %v2746 = vunpack.c.h.b16 %v586
  %v2747 = vunpack.c.l.b16 %v587
  %v2748 = vunpack.c.h.b16 %v587
  %v2749 = vunpack.c.l.b16 %v588
  %v2750 = vunpack.c.h.b16 %v588
  %v2751 = vunpack.c.l.b16 %v589
  %v2752 = vunpack.c.h.b16 %v589
  %v2753 = vunpack.c.l.b16 %v590
  %v2754 = vunpack.c.h.b16 %v590
  %v2755 = vunpack.c.l.b16 %v591
  %v2756 = vunpack.c.l.b16 %v592
  %v2757 = vunpack.c.h.b16 %v592
  %v2758 = vunpack.c.l.b16 %v593
  %v2759 = vunpack.c.h.b16 %v593
  %v2760 = vunpack.c.l.b16 %v594
  %v2761 = vunpack.c.h.b16 %v594
  %v2762 = vunpack.c.l.b16 %v595
  %v2763 = vunpack.c.h.b16 %v595
  %v2764 = vunpack.c.l.b16 %v596
  %v2765 = vunpack.c.h.b16 %v596
  %v2766 = vunpack.c.l.b16 %v597
  %v2767 = vunpack.c.h.b16 %v597
  %v2768 = vunpack.c.l.b16 %v598
  %v2769 = vunpack.c.h.b16 %v598
  %v2770 = vunpack.c.l.b16 %v599
  %v2771 = vunpack.c.h.b16 %v599
  %v2772 = vunpack.c.l.b16 %v600
  %v2773 = vunpack.c.h.b16 %v600
  %v2774 = vunpack.c.l.b16 %v601
  %v2775 = vunpack.c.h.b16 %v601
  %v2776 = vunpack.c.l.b16 %v602
  %v2777 = vunpack.c.h.b16 %v602
  %v2778 = vunpack.c.l.b16 %v603
  %v2779 = vunpack.c.h.b16 %v603
  %v2780 = vunpack.c.l.b16 %v604
  %v2781 = vunpack.c.h.b16 %v604
  %v2782 = vunpack.c.l.b16 %v605
  %v2783 = vunpack.c.h.b16 %v605
  %v2784 = vunpack.c.l.b16 %v606
  %v2785 = vunpack.c.h.b16 %v606
  %v2786 = vunpack.c.l.b16 %v607
  %v2787 = vunpack.c.h.b16 %v607
  %v2788 = vunpack.c.l.b16 %v608
  %v2789 = vunpack.c.h.b16 %v608
  %v2790 = vunpack.c.l.b16 %v609
  %v2791 = vunpack.c.h.b16 %v609
  %v2792 = vunpack.c.l.b16 %v610
  %v2793 = vunpack.c.h.b16 %v610
  %v2794 = vunpack.c.l.b16 %v611
  %v2795 = vunpack.c.h.b16 %v611
  %v2796 = vunpack.c.l.b16 %v612
  %v2797 = vunpack.c.h.b16 %v612
  %v2798 = vunpack.c.l.b16 %v613
  %v2799 = vunpack.c.h.b16 %v613
  %v2800 = vunpack.c.l.b16 %v614
  %v2801 = vunpack.c.h.b16 %v614
  %v2802 = vunpack.c.l.b16 %v615
  %v2803 = vunpack.c.h.b16 %v615
  %v2804 = vunpack.c.l.b16 %v616
  %v2805 = vunpack.c.l.b16 %v617
  %v2806 = vunpack.c.h.b16 %v617
  %v2807 = vunpack.c.l.b16 %v618
  %v2808 = vunpack.c.h.b16 %v618
  %v2809 = vunpack.c.l.b16 %v619
  %v2810 = vunpack.c.h.b16 %v619
  %v2811 = vunpack.c.l.b16 %v620
  %v2812 = vunpack.c.h.b16 %v620
  %v2813 = vunpack.c.l.b16 %v621
  %v2814 = vunpack.c.h.b16 %v621
  %v2815 = vunpack.c.l.b16 %v622
  %v2816 = vunpack.c.h.b16 %v622
  %v2817 = vunpack.c.l.b16 %v623
  %v2818 = vunpack.c.h.b16 %v623
  %v2819 = vunpack.c.l.b16 %v624
  %v2820 = vunpack.c.h.b16 %v624
  %v2821 = vunpack.c.l.b16 %v625
  %v2822 = vunpack.c.h.b16 %v625
  %v2823 = vunpack.c.l.b16 %v626
  %v2824 = vunpack.c.h.b16 %v626
  %v2825 = vunpack.c.l.b16 %v627
  %v2826 = vunpack.c.h.b16 %v627
  %v2827 = vunpack.c.l.b16 %v628
  %v2828 = vunpack.c.h.b16 %v628
  %v2829 = vunpack.c.l.b16 %v629
  %v2830 = vunpack.c.h.b16 %v629
  %v2831 = vunpack.c.l.b16 %v630
  %v2832 = vunpack.c.h.b16 %v630
  %v2833 = vunpack.c.l.b16 %v631
  %v2834 = vunpack.c.h.b16 %v631
  %v2835 = vunpack.c.l.b16 %v632
  %v2836 = vunpack.c.h.b16 %v632
  %v2837 = vunpack.c.l.b16 %v633
  %v2838 = vunpack.c.h.b16 %v633
  %v2839 = vunpack.c.l.b16 %v634
  %v2840 = vunpack.c.h.b16 %v634
  %v2841 = vunpack.c.l.b16 %v635
  %v2842 = vunpack.c.h.b16 %v635
  %v2843 = vunpack.c.l.b16 %v636
  %v2844 = vunpack.c.h.b16 %v636
  %v2845 = vunpack.c.l.b16 %v637
  %v2846 = vunpack.c.h.b16 %v637
  %v2847 = vunpack.c.l.b16 %v638
  %v2848 = vunpack.c.h.b16 %v638
  %v2849 = vunpack.c.l.b16 %v639
  %v2850 = vunpack.c.h.b16 %v639
  %v2851 = vunpack.c.l.b16 %v640
  %v2852 = vunpack.c.h.b16 %v640
  %v2853 = vunpack.c.l.b16 %v641
  %v2854 = vunpack.c.l.b16 %v642
  %v2855 = vunpack.c.h.b16 %v642
  %v2856 = vunpack.c.l.b16 %v643
  %v2857 = vunpack.c.h.b16 %v643
  %v2858 = vunpack.c.l.b16 %v644
  %v2859 = vunpack.c.h.b16 %v644
  %v2860 = vunpack.c.l.b16 %v645
  %v2861 = vunpack.c.h.b16 %v645
  %v2862 = vunpack.c.l.b16 %v646
  %v2863 = vunpack.c.h.b16 %v646
  %v2864 = vunpack.c.l.b16 %v647
  %v2865 = vunpack.c.h.b16 %v647
  %v2866 = vunpack.c.l.b16 %v648
  %v2867 = vunpack.c.h.b16 %v648
  %v2868 = vunpack.c.l.b16 %v649
  %v2869 = vunpack.c.h.b16 %v649
  %v2870 = vunpack.c.l.b16 %v650
  %v2871 = vunpack.c.h.b16 %v650
  %v2872 = vunpack.c.l.b16 %v651
  %v2873 = vunpack.c.h.b16 %v651
  %v2874 = vunpack.c.l.b16 %v652
  %v2875 = vunpack.c.h.b16 %v652
  %v2876 = vunpack.c.l.b16 %v653
  %v2877 = vunpack.c.h.b16 %v653
  %v2878 = vunpack.c.l.b16 %v654
  %v2879 = vunpack.c.h.b16 %v654
  %v2880 = vunpack.c.l.b16 %v655
  %v2881 = vunpack.c.h.b16 %v655
  %v2882 = vunpack.c.l.b16 %v656
  %v2883 = vunpack.c.h.b16 %v656
  %v2884 = vunpack.c.l.b16 %v657
  %v2885 = vunpack.c.h.b16 %v657
  %v2886 = vunpack.c.l.b16 %v658
  %v2887 = vunpack.c.h.b16 %v658
  %v2888 = vunpack.c.l.b16 %v659
  %v2889 = vunpack.c.h.b16 %v659
  %v2890 = vunpack.c.l.b16 %v660
  %v2891 = vunpack.c.h.b16 %v660
  %v2892 = vunpack.c.l.b16 %v661
  %v2893 = vunpack.c.h.b16 %v661
  %v2894 = vunpack.c.l.b16 %v662
  %v2895 = vunpack.c.h.b16 %v662
  %v2896 = vunpack.c.l.b16 %v663
  %v2897 = vunpack.c.h.b16 %v663
  %v2898 = vunpack.c.l.b16 %v664
  %v2899 = vunpack.c.h.b16 %v664
  %v2900 = vunpack.c.l.b16 %v665
  %v2901 = vunpack.c.h.b16 %v665
  %v2902 = vunpack.c.l.b16 %v666
  %v2903 = vunpack.c.l.b16 %v667
  %v2904 = vunpack.c.h.b16 %v667
  %v2905 = vunpack.c.l.b16 %v668
  %v2906 = vunpack.c.h.b16 %v668
  %v2907 = vunpack.c.l.b16 %v669
  %v2908 = vunpack.c.h.b16 %v669
  %v2909 = vunpack.c.l.b16 %v670
  %v2910 = vunpack.c.h.b16 %v670
  %v2911 = vunpack.c.l.b16 %v671
  %v2912 = vunpack.c.h.b16 %v671
  %v2913 = vunpack.c.l.b16 %v672
  %v2914 = vunpack.c.h.b16 %v672
  %v2915 = vunpack.c.l.b16 %v673
  %v2916 = vunpack.c.h.b16 %v673
  %v2917 = vunpack.c.l.b16 %v674
  %v2918 = vunpack.c.h.b16 %v674
  %v2919 = vunpack.c.l.b16 %v675
  %v2920 = vunpack.c.h.b16 %v675
  %v2921 = vunpack.c.l.b16 %v676
  %v2922 = vunpack.c.h.b16 %v676
  %v2923 = vunpack.c.l.b16 %v677
  %v2924 = vunpack.c.h.b16 %v677
  %v2925 = vunpack.c.l.b16 %v678
  %v2926 = vunpack.c.h.b16 %v678
  %v2927 = vunpack.c.l.b16 %v679
  %v2928 = vunpack.c.h.b16 %v679
  %v2929 = vunpack.c.l.b16 %v680
  %v2930 = vunpack.c.h.b16 %v680
  %v2931 = vunpack.c.l.b16 %v681
  %v2932 = vunpack.c.h.b16 %v681
  %v2933 = vunpack.c.l.b16 %v682
  %v2934 = vunpack.c.h.b16 %v682
  %v2935 = vunpack.c.l.b16 %v683
  %v2936 = vunpack.c.h.b16 %v683
  %v2937 = vunpack.c.l.b16 %v684
  %v2938 = vunpack.c.h.b16 %v684
  %v2939 = vunpack.c.l.b16 %v685
  %v2940 = vunpack.c.h.b16 %v685
  %v2941 = vunpack.c.l.b16 %v686
  %v2942 = vunpack.c.h.b16 %v686
  %v2943 = vunpack.c.l.b16 %v687
  %v2944 = vunpack.c.h.b16 %v687
  %v2945 = vunpack.c.l.b16 %v688
  %v2946 = vunpack.c.h.b16 %v688
  %v2947 = vunpack.c.l.b16 %v689
  %v2948 = vunpack.c.h.b16 %v689
  %v2949 = vunpack.c.l.b16 %v690
  %v2950 = vunpack.c.h.b16 %v690
  %v2951 = vunpack.c.l.b16 %v691
  %v2952 = vunpack.c.l.b16 %v692
  %v2953 = vunpack.c.h.b16 %v692
  %v2954 = vunpack.c.l.b16 %v693
  %v2955 = vunpack.c.h.b16 %v693
  %v2956 = vunpack.c.l.b16 %v694
  %v2957 = vunpack.c.h.b16 %v694
  %v2958 = vunpack.c.l.b16 %v695
  %v2959 = vunpack.c.h.b16 %v695
  %v2960 = vunpack.c.l.b16 %v696
  %v2961 = vunpack.c.h.b16 %v696
  %v2962 = vunpack.c.l.b16 %v697
  %v2963 = vunpack.c.h.b16 %v697
  %v2964 = vunpack.c.l.b16 %v698
  %v2965 = vunpack.c.h.b16 %v698
  %v2966 = vunpack.c.l.b16 %v699
  %v2967 = vunpack.c.h.b16 %v699
  %v2968 = vunpack.c.l.b16 %v700
  %v2969 = vunpack.c.h.b16 %v700
  %v2970 = vunpack.c.l.b16 %v701
  %v2971 = vunpack.c.h.b16 %v701
  %v2972 = vunpack.c.l.b16 %v702
  %v2973 = vunpack.c.h.b16 %v702
  %v2974 = vunpack.c.l.b16 %v703
  %v2975 = vunpack.c.h.b16 %v703
  %v2976 = vunpack.c.l.b16 %v704
  %v2977 = vunpack.c.h.b16 %v704
  %v2978 = vunpack.c.l.b16 %v705
  %v2979 = vunpack.c.h.b16 %v705
  %v2980 = vunpack.c.l.b16 %v706
  %v2981 = vunpack.c.h.b16 %v706
  %v2982 = vunpack.c.l.b16 %v707
  %v2983 = vunpack.c.h.b16 %v707
  %v2984 = vunpack.c.l.b16 %v708
  %v2985 = vunpack.c.h.b16 %v708
  %v2986 = vunpack.c.l.b16 %v709
  %v2987 = vunpack.c.h.b16 %v709
  %v2988 = vunpack.c.l.b16 %v710
  %v2989 = vunpack.c.h.b16 %v710
  %v2990 = vunpack.c.l.b16 %v711
  %v2991 = vunpack.c.h.b16 %v711
  %v2992 = vunpack.c.l.b16 %v712
  %v2993 = vunpack.c.h.b16 %v712
  %v2994 = vunpack.c.l.b16 %v713
  %v2995 = vunpack.c.h.b16 %v713
  %v2996 = vunpack.c.l.b16 %v714
  %v2997 = vunpack.c.h.b16 %v714
  %v2998 = vunpack.c.l.b16 %v715
  %v2999 = vunpack.c.h.b16 %v715
  %v3000 = vunpack.c.l.b16 %v716
  %v3001 = vunpack.c.l.b16 %v717
  %v3002 = vunpack.c.h.b16 %v717
  %v3003 = vunpack.c.l.b16 %v718
  %v3004 = vunpack.c.h.b16 %v718
  %v3005 = vunpack.c.l.b16 %v719
  %v3006 = vunpack.c.h.b16 %v719
  %v3007 = vunpack.c.l.b16 %v720
  %v3008 = vunpack.c.h.b16 %v720
  %v3009 = vunpack.c.l.b16 %v721
  %v3010 = vunpack.c.h.b16 %v721
  %v3011 = vunpack.c.l.b16 %v722
  %v3012 = vunpack.c.h.b16 %v722
  %v3013 = vunpack.c.l.b16 %v723
  %v3014 = vunpack.c.h.b16 %v723
  %v3015 = vunpack.c.l.b16 %v724
  %v3016 = vunpack.c.h.b16 %v724
  %v3017 = vunpack.c.l.b16 %v725
  %v3018 = vunpack.c.h.b16 %v725
  %v3019 = vunpack.c.l.b16 %v726
  %v3020 = vunpack.c.h.b16 %v726
  %v3021 = vunpack.c.l.b16 %v727
  %v3022 = vunpack.c.h.b16 %v727
  %v3023 = vunpack.c.l.b16 %v728
  %v3024 = vunpack.c.h.b16 %v728
  %v3025 = vunpack.c.l.b16 %v729
  %v3026 = vunpack.c.h.b16 %v729
  %v3027 = vunpack.c.l.b16 %v730
  %v3028 = vunpack.c.h.b16 %v730
  %v3029 = vunpack.c.l.b16 %v731
  %v3030 = vunpack.c.h.b16 %v731
  %v3031 = vunpack.c.l.b16 %v732
  %v3032 = vunpack.c.h.b16 %v732
  %v3033 = vunpack.c.l.b16 %v733
  %v3034 = vunpack.c.h.b16 %v733
  %v3035 = vunpack.c.l.b16 %v734
  %v3036 = vunpack.c.h.b16 %v734
  %v3037 = vunpack.c.l.b16 %v735
  %v3038 = vunpack.c.h.b16 %v735
  %v3039 = vunpack.c.l.b16 %v736
  %v3040 = vunpack.c.h.b16 %v736
  %v3041 = vunpack.c.l.b16 %v737
  %v3042 = vunpack.c.h.b16 %v737
  %v3043 = vunpack.c.l.b16 %v738
  %v3044 = vunpack.c.h.b16 %v738
  %v3045 = vunpack.c.l.b16 %v739
  %v3046 = vunpack.c.h.b16 %v739
  %v3047 = vunpack.c.l.b16 %v740
  %v3048 = vunpack.c.h.b16 %v740
  %v3049 = vunpack.c.l.b16 %v741
  %v3050 = vunpack.c.l.b16 %v742
  %v3051 = vunpack.c.h.b16 %v742
  %v3052 = vunpack.c.l.b16 %v743
  %v3053 = vunpack.c.h.b16 %v743
  %v3054 = vunpack.c.l.b16 %v744
  %v3055 = vunpack.c.h.b16 %v744
  %v3056 = vunpack.c.l.b16 %v745
  %v3057 = vunpack.c.h.b16 %v745
  %v3058 = vunpack.c.l.b16 %v746
  %v3059 = vunpack.c.h.b16 %v746
  %v3060 = vunpack.c.l.b16 %v747
  %v3061 = vunpack.c.h.b16 %v747
  %v3062 = vunpack.c.l.b16 %v748
  %v3063 = vunpack.c.h.b16 %v748
  %v3064 = vunpack.c.l.b16 %v749
  %v3065 = vunpack.c.h.b16 %v749
  %v3066 = vunpack.c.l.b16 %v750
  %v3067 = vunpack.c.h.b16 %v750
  %v3068 = vunpack.c.l.b16 %v751
  %v3069 = vunpack.c.h.b16 %v751
  %v3070 = vunpack.c.l.b16 %v752
  %v3071 = vunpack.c.h.b16 %v752
  %v3072 = vunpack.c.l.b16 %v753
  %v3073 = vunpack.c.h.b16 %v753
  %v3074 = vunpack.c.l.b16 %v754
  %v3075 = vunpack.c.h.b16 %v754
  %v3076 = vunpack.c.l.b16 %v755
  %v3077 = vunpack.c.h.b16 %v755
  %v3078 = vunpack.c.l.b16 %v756
  %v3079 = vunpack.c.h.b16 %v756
  %v3080 = vunpack.c.l.b16 %v757
  %v3081 = vunpack.c.h.b16 %v757
  %v3082 = vunpack.c.l.b16 %v758
  %v3083 = vunpack.c.h.b16 %v758
  %v3084 = vunpack.c.l.b16 %v759
  %v3085 = vunpack.c.h.b16 %v759
  %v3086 = vunpack.c.l.b16 %v760
  %v3087 = vunpack.c.h.b16 %v760
  %v3088 = vunpack.c.l.b16 %v761
  %v3089 = vunpack.c.h.b16 %v761
  %v3090 = vunpack.c.l.b16 %v762
  %v3091 = vunpack.c.h.b16 %v762
  %v3092 = vunpack.c.l.b16 %v763
  %v3093 = vunpack.c.h.b16 %v763
  %v3094 = vunpack.c.l.b16 %v764
  %v3095 = vunpack.c.h.b16 %v764
  %v3096 = vunpack.c.l.b16 %v765
  %v3097 = vunpack.c.h.b16 %v765
  %v3098 = vunpack.c.l.b16 %v766
  %v3099 = vunpack.c.l.b16 %v767
  %v3100 = vunpack.c.h.b16 %v767
  %v3101 = vunpack.c.l.b16 %v768
  %v3102 = vunpack.c.h.b16 %v768
  %v3103 = vunpack.c.l.b16 %v769
  %v3104 = vunpack.c.h.b16 %v769
  %v3105 = vunpack.c.l.b16 %v770
  %v3106 = vunpack.c.h.b16 %v770
  %v3107 = vunpack.c.l.b16 %v771
  %v3108 = vunpack.c.h.b16 %v771
  %v3109 = vunpack.c.l.b16 %v772
  %v3110 = vunpack.c.h.b16 %v772
  %v3111 = vunpack.c.l.b16 %v773
  %v3112 = vunpack.c.h.b16 %v773
  %v3113 = vunpack.c.l.b16 %v774
  %v3114 = vunpack.c.h.b16 %v774
  %v3115 = vunpack.c.l.b16 %v775
  %v3116 = vunpack.c.h.b16 %v775
  %v3117 = vunpack.c.l.b16 %v776
  %v3118 = vunpack.c.h.b16 %v776
  %v3119 = vunpack.c.l.b16 %v777
  %v3120 = vunpack.c.h.b16 %v777
  %v3121 = vunpack.c.l.b16 %v778
  %v3122 = vunpack.c.h.b16 %v778
  %v3123 = vunpack.c.l.b16 %v779
  %v3124 = vunpack.c.h.b16 %v779
  %v3125 = vunpack.c.l.b16 %v780
  %v3126 = vunpack.c.h.b16 %v780
  %v3127 = vunpack.c.l.b16 %v781
  %v3128 = vunpack.c.h.b16 %v781
  %v3129 = vunpack.c.l.b16 %v782
  %v3130 = vunpack.c.h.b16 %v782
  %v3131 = vunpack.c.l.b16 %v783
  %v3132 = vunpack.c.h.b16 %v783
  %v3133 = vunpack.c.l.b16 %v784
  %v3134 = vunpack.c.h.b16 %v784
  %v3135 = vunpack.c.l.b16 %v785
  %v3136 = vunpack.c.h.b16 %v785
  %v3137 = vunpack.c.l.b16 %v786
  %v3138 = vunpack.c.h.b16 %v786
  %v3139 = vunpack.c.l.b16 %v787
  %v3140 = vunpack.c.h.b16 %v787
  %v3141 = vunpack.c.l.b16 %v788
  %v3142 = vunpack.c.h.b16 %v788
  %v3143 = vunpack.c.l.b16 %v789
  %v3144 = vunpack.c.h.b16 %v789
  %v3145 = vunpack.c.l.b16 %v790
  %v3146 = vunpack.c.h.b16 %v790
  %v3147 = vunpack.c.l.b16 %v791
  %v3148 = vunpack.c.l.b16 %v792
  %v3149 = vunpack.c.h.b16 %v792
  %v3150 = vunpack.c.l.b16 %v793
  %v3151 = vunpack.c.h.b16 %v793
  %v3152 = vunpack.c.l.b16 %v794
  %v3153 = vunpack.c.h.b16 %v794
  %v3154 = vunpack.c.l.b16 %v795
  %v3155 = vunpack.c.h.b16 %v795
  %v3156 = vunpack.c.l.b16 %v796
  %v3157 = vunpack.c.h.b16 %v796
  %v3158 = vunpack.c.l.b16 %v797
  %v3159 = vunpack.c.h.b16 %v797
  %v3160 = vunpack.c.l.b16 %v798
  %v3161 = vunpack.c.h.b16 %v798
  %v3162 = vunpack.c.l.b16 %v799
  %v3163 = vunpack.c.h.b16 %v799
  %v3164 = vunpack.c.l.b16 %v800
  %v3165 = vunpack.c.h.b16 %v800
  %v3166 = vunpack.c.l.b16 %v801
  %v3167 = vunpack.c.h.b16 %v801
  %v3168 = vunpack.c.l.b16 %v802
  %v3169 = vunpack.c.h.b16 %v802
  %v3170 = vunpack.c.l.b16 %v803
  %v3171 = vunpack.c.h.b16 %v803
  %v3172 = vunpack.c.l.b16 %v804
  %v3173 = vunpack.c.h.b16 %v804
  %v3174 = vunpack.c.l.b16 %v805
  %v3175 = vunpack.c.h.b16 %v805
  %v3176 = vunpack.c.l.b16 %v806
  %v3177 = vunpack.c.h.b16 %v806
  %v3178 = vunpack.c.l.b16 %v807
  %v3179 = vunpack.c.h.b16 %v807
  %v3180 = vunpack.c.l.b16 %v808
  %v3181 = vunpack.c.h.b16 %v808
  %v3182 = vunpack.c.l.b16 %v809
  %v3183 = vunpack.c.h.b16 %v809
  %v3184 = vunpack.c.l.b16 %v810
  %v3185 = vunpack.c.h.b16 %v810
  %v3186 = vunpack.c.l.b16 %v811
  %v3187 = vunpack.c.h.b16 %v811
  %v3188 = vunpack.c.l.b16 %v812
  %v3189 = vunpack.c.h.b16 %v812
  %v3190 = vunpack.c.l.b16 %v813
  %v3191 = vunpack.c.h.b16 %v813
  %v3192 = vunpack.c.l.b16 %v814
  %v3193 = vunpack.c.h.b16 %v814
  %v3194 = vunpack.c.l.b16 %v815
  %v3195 = vunpack.c.h.b16 %v815
  %v3196 = vunpack.c.l.b16 %v816
  %v3197 = vpack.c.b16 %v1678, %v1629
  %v3198 = vpack.c.b16 %v1679, %v1630
  %v3199 = vpack.c.b16 %v1680, %v1631
  %v3200 = vpack.c.b16 %v1681, %v1632
  %v3201 = vpack.c.b16 %v1682, %v1633
  %v3202 = vpack.c.b16 %v1683, %v1634
  %v3203 = vpack.c.b16 %v1684, %v1635
  %v3204 = vpack.c.b16 %v1685, %v1636
  %v3205 = vpack.c.b16 %v1686, %v1637
  %v3206 = vpack.c.b16 %v1687, %v1638
  %v3207 = vpack.c.b16 %v1688, %v1639
  %v3208 = vpack.c.b16 %v1689, %v1640
  %v3209 = vpack.c.b16 %v1690, %v1641
  %v3210 = vpack.c.b16 %v1691, %v1642
  %v3211 = vpack.c.b16 %v1692, %v1643
  %v3212 = vpack.c.b16 %v1693, %v1644
  %v3213 = vpack.c.b16 %v1694, %v1645
  %v3214 = vpack.c.b16 %v1695, %v1646
  %v3215 = vpack.c.b16 %v1696, %v1647
  %v3216 = vpack.c.b16 %v1697, %v1648
  %v3217 = vpack.c.b16 %v1698, %v1649
  %v3218 = vpack.c.b16 %v1699, %v1650
  %v3219 = vpack.c.b16 %v1700, %v1651
  %v3220 = vpack.c.b16 %v1701, %v1652
  %v3221 = vpack.c.b16 %v1702, %v1653
  %v3222 = vpack.c.b16 %v1703, %v1654
  %v3223 = vpack.c.b16 %v1704, %v1655
  %v3224 = vpack.c.b16 %v1705, %v1656
  %v3225 = vpack.c.b16 %v1706, %v1657
  %v3226 = vpack.c.b16 %v1707, %v1658
  %v3227 = vpack.c.b16 %v1708, %v1659
  %v3228 = vpack.c.b16 %v1709, %v1660
  %v3229 = vpack.c.b16 %v1710, %v1661
  %v3230 = vpack.c.b16 %v1711, %v1662
  %v3231 = vpack.c.b16 %v1712, %v1663
  %v3232 = vpack.c.b16 %v1713, %v1664
  %v3233 = vpack.c.b16 %v1714, %v1665
  %v3234 = vpack.c.b16 %v1715, %v1666
  %v3235 = vpack.c.b16 %v1716, %v1667
  %v3236 = vpack.c.b16 %v1717, %v1668
  %v3237 = vpack.c.b16 %v1718, %v1669
  %v3238 = vpack.c.b16 %v1719, %v1670
  %v3239 = vpack.c.b16 %v1720, %v1671
  %v3240 = vpack.c.b16 %v1721, %v1672
  %v3241 = vpack.c.b16 %v1722, %v1673
  %v3242 = vpack.c.b16 %v1723, %v1674
  %v3243 = vpack.c.b16 %v1724, %v1675
  %v3244 = vpack.c.b16 %v1725, %v1676
  %v3245 = vpack.c.b16 %v1726, %v1677
  %v3246 = vpack.c.b16 %v1776, %v1727
  %v3247 = vpack.c.b16 %v1777, %v1728
  %v3248 = vpack.c.b16 %v1778, %v1729
  %v3249 = vpack.c.b16 %v1779, %v1730
  %v3250 = vpack.c.b16 %v1780, %v1731
  %v3251 = vpack.c.b16 %v1781, %v1732
  %v3252 = vpack.c.b16 %v1782, %v1733
  %v3253 = vpack.c.b16 %v1783, %v1734
  %v3254 = vpack.c.b16 %v1784, %v1735
  %v3255 = vpack.c.b16 %v1785, %v1736
  %v3256 = vpack.c.b16 %v1786, %v1737
  %v3257 = vpack.c.b16 %v1787, %v1738
  %v3258 = vpack.c.b16 %v1788, %v1739
  %v3259 = vpack.c.b16 %v1789, %v1740
  %v3260 = vpack.c.b16 %v1790, %v1741
  %v3261 = vpack.c.b16 %v1791, %v1742
  %v3262 = vpack.c.b16 %v1792, %v1743
  %v3263 = vpack.c.b16 %v1793, %v1744
  %v3264 = vpack.c.b16 %v1794, %v1745
  %v3265 = vpack.c.b16 %v1795, %v1746
  %v3266 = vpack.c.b16 %v1796, %v1747
  %v3267 = vpack.c.b16 %v1797, %v1748
  %v3268 = vpack.c.b16 %v1798, %v1749
  %v3269 = vpack.c.b16 %v1799, %v1750
  %v3270 = vpack.c.b16 %v1800, %v1751
  %v3271 = vpack.c.b16 %v1801, %v1752
  %v3272 = vpack.c.b16 %v1802, %v1753
  %v3273 = vpack.c.b16 %v1803, %v1754
  %v3274 = vpack.c.b16 %v1804, %v1755
  %v3275 = vpack.c.b16 %v1805, %v1756
  %v3276 = vpack.c.b16 %v1806, %v1757
  %v3277 = vpack.c.b16 %v1807, %v1758
  %v3278 = vpack.c.b16 %v1808, %v1759
  %v3279 = vpack.c.b16 %v1809, %v1760
  %v3280 = vpack.c.b16 %v1810, %v1761
  %v3281 = vpack.c.b16 %v1811, %v1762
  %v3282 = vpack.c.b16 %v1812, %v1763
  %v3283 = vpack.c.b16 %v1813, %v1764
  %v3284 = vpack.c.b16 %v1814, %v1765
  %v3285 = vpack.c.b16 %v1815, %v1766
  %v3286 = vpack.c.b16 %v1816, %v1767
  %v3287 = vpack.c.b16 %v1817, %v1768
  %v3288 = vpack.c.b16 %v1818, %v1769
  %v3289 = vpack.c.b16 %v1819, %v1770
  %v3290 = vpack.c.b16 %v1820, %v1771
  %v3291 = vpack.c.b16 %v1821, %v1772
  %v3292 = vpack.c.b16 %v1822, %v1773
  %v3293 = vpack.c.b16 %v1823, %v1774
  %v3294 = vpack.c.b16 %v1824, %v1775
  %v3295 = vpack.c.b16 %v1874, %v1825
  %v3296 = vpack.c.b16 %v1875, %v1826
  %v3297 = vpack.c.b16 %v1876, %v1827
  %v3298 = vpack.c.b16 %v1877, %v1828
  %v3299 = vpack.c.b16 %v1878, %v1829
  %v3300 = vpack.c.b16 %v1879, %v1830
  %v3301 = vpack.c.b16 %v1880, %v1831
  %v3302 = vpack.c.b16 %v1881, %v1832
  %v3303 = vpack.c.b16 %v1882, %v1833
  %v3304 = vpack.c.b16 %v1883, %v1834
  %v3305 = vpack.c.b16 %v1884, %v1835
  %v3306 = vpack.c.b16 %v1885, %v1836
  %v3307 = vpack.c.b16 %v1886, %v1837
  %v3308 = vpack.c.b16 %v1887, %v1838
  %v3309 = vpack.c.b16 %v1888, %v1839
  %v3310 = vpack.c.b16 %v1889, %v1840
  %v3311 = vpack.c.b16 %v1890, %v1841
  %v3312 = vpack.c.b16 %v1891, %v1842
  %v3313 = vpack.c.b16 %v1892, %v1843
  %v3314 = vpack.c.b16 %v1893, %v1844
  %v3315 = vpack.c.b16 %v1894, %v1845
  %v3316 = vpack.c.b16 %v1895, %v1846
  %v3317 = vpack.c.b16 %v1896, %v1847
  %v3318 = vpack.c.b16 %v1897, %v1848
  %v3319 = vpack.c.b16 %v1898, %v1849
  %v3320 = vpack.c.b16 %v1899, %v1850
  %v3321 = vpack.c.b16 %v1900, %v1851
  %v3322 = vpack.c.b16 %v1901, %v1852
  %v3323 = vpack.c.b16 %v1902, %v1853
  %v3324 = vpack.c.b16 %v1903, %v1854
  %v3325 = vpack.c.b16 %v1904, %v1855
  %v3326 = vpack.c.b16 %v1905, %v1856
  %v3327 = vpack.c.b16 %v1906, %v1857
  %v3328 = vpack.c.b16 %v1907, %v1858
  %v3329 = vpack.c.b16 %v1908, %v1859
  %v3330 = vpack.c.b16 %v1909, %v1860
  %v3331 = vpack.c.b16 %v1910, %v1861
  %v3332 = vpack.c.b16 %v1911, %v1862
  %v3333 = vpack.c.b16 %v1912, %v1863
  %v3334 = vpack.c.b16 %v1913, %v1864
  %v3335 = vpack.c.b16 %v1914, %v1865
  %v3336 = vpack.c.b16 %v1915, %v1866
  %v3337 = vpack.c.b16 %v1916, %v1867
  %v3338 = vpack.c.b16 %v1917, %v1868
  %v3339 = vpack.c.b16 %v1918, %v1869
  %v3340 = vpack.c.b16 %v1919, %v1870
  %v3341 = vpack.c.b16 %v1920, %v1871
  %v3342 = vpack.c.b16 %v1921, %v1872
  %v3343 = vpack.c.b16 %v1922, %v1873
  %v3344 = vpack.c.b16 %v1972, %v1923
  %v3345 = vpack.c.b16 %v1973, %v1924
  %v3346 = vpack.c.b16 %v1974, %v1925
  %v3347 = vpack.c.b16 %v1975, %v1926
  %v3348 = vpack.c.b16 %v1976, %v1927
  %v3349 = vpack.c.b16 %v1977, %v1928
  %v3350 = vpack.c.b16 %v1978, %v1929
  %v3351 = vpack.c.b16 %v1979, %v1930
  %v3352 = vpack.c.b16 %v1980, %v1931
  %v3353 = vpack.c.b16 %v1981, %v1932
  %v3354 = vpack.c.b16 %v1982, %v1933
  %v3355 = vpack.c.b16 %v1983, %v1934
  %v3356 = vpack.c.b16 %v1984, %v1935
  %v3357 = vpack.c.b16 %v1985, %v1936
  %v3358 = vpack.c.b16 %v1986, %v1937
  %v3359 = vpack.c.b16 %v1987, %v1938
  %v3360 = vpack.c.b16 %v1988, %v1939
  %v3361 = vpack.c.b16 %v1989, %v1940
  %v3362 = vpack.c.b16 %v1990, %v1941
  %v3363 = vpack.c.b16 %v1991, %v1942
  %v3364 = vpack.c.b16 %v1992, %v1943
  %v3365 = vpack.c.b16 %v1993, %v1944
  %v3366 = vpack.c.b16 %v1994, %v1945
  %v3367 = vpack.c.b16 %v1995, %v1946
  %v3368 = vpack.c.b16 %v1996, %v1947
  %v3369 = vpack.c.b16 %v1997, %v1948
  %v3370 = vpack.c.b16 %v1998, %v1949
  %v3371 = vpack.c.b16 %v1999, %v1950
  %v3372 = vpack.c.b16 %v2000, %v1951
  %v3373 = vpack.c.b16 %v2001, %v1952
  %v3374 = vpack.c.b16 %v2002, %v1953
  %v3375 = vpack.c.b16 %v2003, %v1954
  %v3376 = vpack.c.b16 %v2004, %v1955
  %v3377 = vpack.c.b16 %v2005, %v1956
  %v3378 = vpack.c.b16 %v2006, %v1957
  %v3379 = vpack.c.b16 %v2007, %v1958
  %v3380 = vpack.c.b16 %v2008, %v1959
  %v3381 = vpack.c.b16 %v2009, %v1960
  %v3382 = vpack.c.b16 %v2010, %v1961
  %v3383 = vpack.c.b16 %v2011, %v1962
  %v3384 = vpack.c.b16 %v2012, %v1963
  %v3385 = vpack.c.b16 %v2013, %v1964
  %v3386 = vpack.c.b16 %v2014, %v1965
  %v3387 = vpack.c.b16 %v2015, %v1966
  %v3388 = vpack.c.b16 %v2016, %v1967
  %v3389 = vpack.c.b16 %v2017, %v1968
  %v3390 = vpack.c.b16 %v2018, %v1969
  %v3391 = vpack.c.b16 %v2019, %v1970
  %v3392 = vpack.c.b16 %v2020, %v1971
  %v3393 = vpack.c.b16 %v2070, %v2021
  %v3394 = vpack.c.b16 %v2071, %v2022
  %v3395 = vpack.c.b16 %v2072, %v2023
  %v3396 = vpack.c.b16 %v2073, %v2024
  %v3397 = vpack.c.b16 %v2074, %v2025
  %v3398 = vpack.c.b16 %v2075, %v2026
  %v3399 = vpack.c.b16 %v2076, %v2027
  %v3400 = vpack.c.b16 %v2077, %v2028
  %v3401 = vpack.c.b16 %v2078, %v2029
  %v3402 = vpack.c.b16 %v2079, %v2030
  %v3403 = vpack.c.b16 %v2080, %v2031
  %v3404 = vpack.c.b16 %v2081, %v2032
  %v3405 = vpack.c.b16 %v2082, %v2033
  %v3406 = vpack.c.b16 %v2083, %v2034
  %v3407 = vpack.c.b16 %v2084, %v2035
  %v3408 = vpack.c.b16 %v2085, %v2036
  %v3409 = vpack.c.b16 %v2086, %v2037
  %v3410 = vpack.c.b16 %v2087, %v2038
  %v3411 = vpack.c.b16 %v2088, %v2039
  %v3412 = vpack.c.b16 %v2089, %v2040
  %v3413 = vpack.c.b16 %v2090, %v2041
  %v3414 = vpack.c.b16 %v2091, %v2042
  %v3415 = vpack.c.b16 %v2092, %v2043
  %v3416 = vpack.c.b16 %v2093, %v2044
  %v3417 = vpack.c.b16 %v2094, %v2045
  %v3418 = vpack.c.b16 %v2095, %v2046
  %v3419 = vpack.c.b16 %v2096, %v2047
  %v3420 = vpack.c.b16 %v2097, %v2048
  %v3421 = vpack.c.b16 %v2098, %v2049
  %v3422 = vpack.c.b16 %v2099, %v2050
  %v3423 = vpack.c.b16 %v2100, %v2051
  %v3424 = vpack.c.b16 %v2101, %v2052
  %v3425 = vpack.c.b16 %v2102, %v2053
  %v3426 = vpack.c.b16 %v2103, %v2054
  %v3427 = vpack.c.b16 %v2104, %v2055
  %v3428 = vpack.c.b16 %v2105, %v2056
  %v3429 = vpack.c.b16 %v2106, %v2057
  %v3430 = vpack.c.b16 %v2107, %v2058
  %v3431 = vpack.c.b16 %v2108, %v2059
  %v3432 = vpack.c.b16 %v2109, %v2060
  %v3433 = vpack.c.b16 %v2110, %v2061
  %v3434 = vpack.c.b16 %v2111, %v2062
  %v3435 = vpack.c.b16 %v2112, %v2063
  %v3436 = vpack.c.b16 %v2113, %v2064
  %v3437 = vpack.c.b16 %v2114, %v2065
  %v3438 = vpack.c.b16 %v2115, %v2066
  %v3439 = vpack.c.b16 %v2116, %v2067
  %v3440 = vpack.c.b16 %v2117, %v2068
  %v3441 = vpack.c.b16 %v2118, %v2069
  %v3442 = vpack.c.b16 %v2168, %v2119
  %v3443 = vpack.c.b16 %v2169, %v2120
  %v3444 = vpack.c.b16 %v2170, %v2121
  %v3445 = vpack.c.b16 %v2171, %v2122
  %v3446 = vpack.c.b16 %v2172, %v2123
  %v3447 = vpack.c.b16 %v2173, %v2124
  %v3448 = vpack.c.b16 %v2174, %v2125
  %v3449 = vpack.c.b16 %v2175, %v2126
  %v3450 = vpack.c.b16 %v2176, %v2127
  %v3451 = vpack.c.b16 %v2177, %v2128
  %v3452 = vpack.c.b16 %v2178, %v2129
  %v3453 = vpack.c.b16 %v2179, %v2130
  %v3454 = vpack.c.b16 %v2180, %v2131
  %v3455 = vpack.c.b16 %v2181, %v2132
  %v3456 = vpack.c.b16 %v2182, %v2133
  %v3457 = vpack.c.b16 %v2183, %v2134
  %v3458 = vpack.c.b16 %v2184, %v2135
  %v3459 = vpack.c.b16 %v2185, %v2136
  %v3460 = vpack.c.b16 %v2186, %v2137
  %v3461 = vpack.c.b16 %v2187, %v2138
  %v3462 = vpack.c.b16 %v2188, %v2139
  %v3463 = vpack.c.b16 %v2189, %v2140
  %v3464 = vpack.c.b16 %v2190, %v2141
  %v3465 = vpack.c.b16 %v2191, %v2142
  %v3466 = vpack.c.b16 %v2192, %v2143
  %v3467 = vpack.c.b16 %v2193, %v2144
  %v3468 = vpack.c.b16 %v2194, %v2145
  %v3469 = vpack.c.b16 %v2195, %v2146
  %v3470 = vpack.c.b16 %v2196, %v2147
  %v3471 = vpack.c.b16 %v2197, %v2148
  %v3472 = vpack.c.b16 %v2198, %v2149
  %v3473 = vpack.c.b16 %v2199, %v2150
  %v3474 = vpack.c.b16 %v2200, %v2151
  %v3475 = vpack.c.b16 %v2201, %v2152
  %v3476 = vpack.c.b16 %v2202, %v2153
  %v3477 = vpack.c.b16 %v2203, %v2154
  %v3478 = vpack.c.b16 %v2204, %v2155
  %v3479 = vpack.c.b16 %v2205, %v2156
  %v3480 = vpack.c.b16 %v2206, %v2157
  %v3481 = vpack.c.b16 %v2207, %v2158
  %v3482 = vpack.c.b16 %v2208, %v2159
  %v3483 = vpack.c.b16 %v2209, %v2160
  %v3484 = vpack.c.b16 %v2210, %v2161
  %v3485 = vpack.c.b16 %v2211, %v2162
  %v3486 = vpack.c.b16 %v2212, %v2163
  %v3487 = vpack.c.b16 %v2213, %v2164
  %v3488 = vpack.c.b16 %v2214, %v2165
  %v3489 = vpack.c.b16 %v2215, %v2166
  %v3490 = vpack.c.b16 %v2216, %v2167
  %v3491 = vpack.c.b16 %v2266, %v2217
  %v3492 = vpack.c.b16 %v2267, %v2218
  %v3493 = vpack.c.b16 %v2268, %v2219
  %v3494 = vpack.c.b16 %v2269, %v2220
  %v3495 = vpack.c.b16 %v2270, %v2221
  %v3496 = vpack.c.b16 %v2271, %v2222
  %v3497 = vpack.c.b16 %v2272, %v2223
  %v3498 = vpack.c.b16 %v2273, %v2224
  %v3499 = vpack.c.b16 %v2274, %v2225
  %v3500 = vpack.c.b16 %v2275, %v2226
  %v3501 = vpack.c.b16 %v2276, %v2227
  %v3502 = vpack.c.b16 %v2277, %v2228
  %v3503 = vpack.c.b16 %v2278, %v2229
  %v3504 = vpack.c.b16 %v2279, %v2230
  %v3505 = vpack.c.b16 %v2280, %v2231
  %v3506 = vpack.c.b16 %v2281, %v2232
  %v3507 = vpack.c.b16 %v2282, %v2233
  %v3508 = vpack.c.b16 %v2283, %v2234
  %v3509 = vpack.c.b16 %v2284, %v2235
  %v3510 = vpack.c.b16 %v2285, %v2236
  %v3511 = vpack.c.b16 %v2286, %v2237
  %v3512 = vpack.c.b16 %v2287, %v2238
  %v3513 = vpack.c.b16 %v2288, %v2239
  %v3514 = vpack.c.b16 %v2289, %v2240
  %v3515 = vpack.c.b16 %v2290, %v2241
  %v3516 = vpack.c.b16 %v2291, %v2242
  %v3517 = vpack.c.b16 %v2292, %v2243
  %v3518 = vpack.c.b16 %v2293, %v2244
  %v3519 = vpack.c.b16 %v2294, %v2245
  %v3520 = vpack.c.b16 %v2295, %v2246
  %v3521 = vpack.c.b16 %v2296, %v2247
  %v3522 = vpack.c.b16 %v2297, %v2248
  %v3523 = vpack.c.b16 %v2298, %v2249
  %v3524 = vpack.c.b16 %v2299, %v2250
  %v3525 = vpack.c.b16 %v2300, %v2251
  %v3526 = vpack.c.b16 %v2301, %v2252
  %v3527 = vpack.c.b16 %v2302, %v2253
  %v3528 = vpack.c.b16 %v2303, %v2254
  %v3529 = vpack.c.b16 %v2304, %v2255
  %v3530 = vpack.c.b16 %v2305, %v2256
  %v3531 = vpack.c.b16 %v2306, %v2257
  %v3532 = vpack.c.b16 %v2307, %v2258
  %v3533 = vpack.c.b16 %v2308, %v2259
  %v3534 = vpack.c.b16 %v2309, %v2260
  %v3535 = vpack.c.b16 %v2310, %v2261
  %v3536 = vpack.c.b16 %v2311, %v2262
  %v3537 = vpack.c.b16 %v2312, %v2263
  %v3538 = vpack.c.b16 %v2313, %v2264
  %v3539 = vpack.c.b16 %v2314, %v2265
  %v3540 = vpack.c.b16 %v2364, %v2315
  %v3541 = vpack.c.b16 %v2365, %v2316
  %v3542 = vpack.c.b16 %v2366, %v2317
  %v3543 = vpack.c.b16 %v2367, %v2318
  %v3544 = vpack.c.b16 %v2368, %v2319
  %v3545 = vpack.c.b16 %v2369, %v2320
  %v3546 = vpack.c.b16 %v2370, %v2321
  %v3547 = vpack.c.b16 %v2371, %v2322
  %v3548 = vpack.c.b16 %v2372, %v2323
  %v3549 = vpack.c.b16 %v2373, %v2324
  %v3550 = vpack.c.b16 %v2374, %v2325
  %v3551 = vpack.c.b16 %v2375, %v2326
  %v3552 = vpack.c.b16 %v2376, %v2327
  %v3553 = vpack.c.b16 %v2377, %v2328
  %v3554 = vpack.c.b16 %v2378, %v2329
  %v3555 = vpack.c.b16 %v2379, %v2330
  %v3556 = vpack.c.b16 %v2380, %v2331
  %v3557 = vpack.c.b16 %v2381, %v2332
  %v3558 = vpack.c.b16 %v2382, %v2333
  %v3559 = vpack.c.b16 %v2383, %v2334
  %v3560 = vpack.c.b16 %v2384, %v2335
  %v3561 = vpack.c.b16 %v2385, %v2336
  %v3562 = vpack.c.b16 %v2386, %v2337
  %v3563 = vpack.c.b16 %v2387, %v2338
  %v3564 = vpack.c.b16 %v2388, %v2339
  %v3565 = vpack.c.b16 %v2389, %v2340
  %v3566 = vpack.c.b16 %v2390, %v2341
  %v3567 = vpack.c.b16 %v2391, %v2342
  %v3568 = vpack.c.b16 %v2392, %v2343
  %v3569 = vpack.c.b16 %v2393, %v2344
  %v3570 = vpack.c.b16 %v2394, %v2345
  %v3571 = vpack.c.b16 %v2395, %v2346
  %v3572 = vpack.c.b16 %v2396, %v2347
  %v3573 = vpack.c.b16 %v2397, %v2348
  %v3574 = vpack.c.b16 %v2398, %v2349
  %v3575 = vpack.c.b16 %v2399, %v2350
  %v3576 = vpack.c.b16 %v2400, %v2351
  %v3577 = vpack.c.b16 %v2401, %v2352
  %v3578 = vpack.c.b16 %v2402, %v2353
  %v3579 = vpack.c.b16 %v2403, %v2354
  %v3580 = vpack.c.b16 %v2404, %v2355
  %v3581 = vpack.c.b16 %v2405, %v2356
  %v3582 = vpack.c.b16 %v2406, %v2357
  %v3583 = vpack.c.b16 %v2407, %v2358
  %v3584 = vpack.c.b16 %v2408, %v2359
  %v3585 = vpack.c.b16 %v2409, %v2360
  %v3586 = vpack.c.b16 %v2410, %v2361
  %v3587 = vpack.c.b16 %v2411, %v2362
  %v3588 = vpack.c.b16 %v2412, %v2363
  %v3589 = vpack.c.b16 %v2462, %v2413
  %v3590 = vpack.c.b16 %v2463, %v2414
  %v3591 = vpack.c.b16 %v2464, %v2415
  %v3592 = vpack.c.b16 %v2465, %v2416
  %v3593 = vpack.c.b16 %v2466, %v2417
  %v3594 = vpack.c.b16 %v2467, %v2418
  %v3595 = vpack.c.b16 %v2468, %v2419
  %v3596 = vpack.c.b16 %v2469, %v2420
  %v3597 = vpack.c.b16 %v2470, %v2421
  %v3598 = vpack.c.b16 %v2471, %v2422
  %v3599 = vpack.c.b16 %v2472, %v2423
  %v3600 = vpack.c.b16 %v2473, %v2424
  %v3601 = vpack.c.b16 %v2474, %v2425
  %v3602 = vpack.c.b16 %v2475, %v2426
  %v3603 = vpack.c.b16 %v2476, %v2427
  %v3604 = vpack.c.b16 %v2477, %v2428
  %v3605 = vpack.c.b16 %v2478, %v2429
  %v3606 = vpack.c.b16 %v2479, %v2430
  %v3607 = vpack.c.b16 %v2480, %v2431
  %v3608 = vpack.c.b16 %v2481, %v2432
  %v3609 = vpack.c.b16 %v2482, %v2433
  %v3610 = vpack.c.b16 %v2483, %v2434
  %v3611 = vpack.c.b16 %v2484, %v2435
  %v3612 = vpack.c.b16 %v2485, %v2436
  %v3613 = vpack.c.b16 %v2486, %v2437
  %v3614 = vpack.c.b16 %v2487, %v2438
  %v3615 = vpack.c.b16 %v2488, %v2439
  %v3616 = vpack.c.b16 %v2489, %v2440
  %v3617 = vpack.c.b16 %v2490, %v2441
  %v3618 = vpack.c.b16 %v2491, %v2442
  %v3619 = vpack.c.b16 %v2492, %v2443
  %v3620 = vpack.c.b16 %v2493, %v2444
  %v3621 = vpack.c.b16 %v2494, %v2445
  %v3622 = vpack.c.b16 %v2495, %v2446
  %v3623 = vpack.c.b16 %v2496, %v2447
  %v3624 = vpack.c.b16 %v2497, %v2448
  %v3625 = vpack.c.b16 %v2498, %v2449
  %v3626 = vpack.c.b16 %v2499, %v2450
  %v3627 = vpack.c.b16 %v2500, %v2451
  %v3628 = vpack.c.b16 %v2501, %v2452
  %v3629 = vpack.c.b16 %v2502, %v2453
  %v3630 = vpack.c.b16 %v2503, %v2454
  %v3631 = vpack.c.b16 %v2504, %v2455
  %v3632 = vpack.c.b16 %v2505, %v2456
  %v3633 = vpack.c.b16 %v2506, %v2457
  %v3634 = vpack.c.b16 %v2507, %v2458
  %v3635 = vpack.c.b16 %v2508, %v2459
  %v3636 = vpack.c.b16 %v2509, %v2460
  %v3637 = vpack.c.b16 %v2510, %v2461
  %v3638 = vpack.c.b16 %v2560, %v2511
  %v3639 = vpack.c.b16 %v2561, %v2512
  %v3640 = vpack.c.b16 %v2562, %v2513
  %v3641 = vpack.c.b16 %v2563, %v2514
  %v3642 = vpack.c.b16 %v2564, %v2515
  %v3643 = vpack.c.b16 %v2565, %v2516
  %v3644 = vpack.c.b16 %v2566, %v2517
  %v3645 = vpack.c.b16 %v2567, %v2518
  %v3646 = vpack.c.b16 %v2568, %v2519
  %v3647 = vpack.c.b16 %v2569, %v2520
  %v3648 = vpack.c.b16 %v2570, %v2521
  %v3649 = vpack.c.b16 %v2571, %v2522
  %v3650 = vpack.c.b16 %v2572, %v2523
  %v3651 = vpack.c.b16 %v2573, %v2524
  %v3652 = vpack.c.b16 %v2574, %v2525
  %v3653 = vpack.c.b16 %v2575, %v2526
  %v3654 = vpack.c.b16 %v2576, %v2527
  %v3655 = vpack.c.b16 %v2577, %v2528
  %v3656 = vpack.c.b16 %v2578, %v2529
  %v3657 = vpack.c.b16 %v2579, %v2530
  %v3658 = vpack.c.b16 %v2580, %v2531
  %v3659 = vpack.c.b16 %v2581, %v2532
  %v3660 = vpack.c.b16 %v2582, %v2533
  %v3661 = vpack.c.b16 %v2583, %v2534
  %v3662 = vpack.c.b16 %v2584, %v2535
  %v3663 = vpack.c.b16 %v2585, %v2536
  %v3664 = vpack.c.b16 %v2586, %v2537
  %v3665 = vpack.c.b16 %v2587, %v2538
  %v3666 = vpack.c.b16 %v2588, %v2539
  %v3667 = vpack.c.b16 %v2589, %v2540
  %v3668 = vpack.c.b16 %v2590, %v2541
  %v3669 = vpack.c.b16 %v2591, %v2542
  %v3670 = vpack.c.b16 %v2592, %v2543
  %v3671 = vpack.c.b16 %v2593, %v2544
  %v3672 = vpack.c.b16 %v2594, %v2545
  %v3673 = vpack.c.b16 %v2595, %v2546
  %v3674 = vpack.c.b16 %v2596, %v2547
  %v3675 = vpack.c.b16 %v2597, %v2548
  %v3676 = vpack.c.b16 %v2598, %v2549
  %v3677 = vpack.c.b16 %v2599, %v2550
  %v3678 = vpack.c.b16 %v2600, %v2551
  %v3679 = vpack.c.b16 %v2601, %v2552
  %v3680 = vpack.c.b16 %v2602, %v2553
  %v3681 = vpack.c.b16 %v2603, %v2554
  %v3682 = vpack.c.b16 %v2604, %v2555
  %v3683 = vpack.c.b16 %v2605, %v2556
  %v3684 = vpack.c.b16 %v2606, %v2557
  %v3685 = vpack.c.b16 %v2607, %v2558
  %v3686 = vpack.c.b16 %v2608, %v2559
  %v3687 = vpack.c.b16 %v2658, %v2609
  %v3688 = vpack.c.b16 %v2659, %v2610
  %v3689 = vpack.c.b16 %v2660, %v2611
  %v3690 = vpack.c.b16 %v2661, %v2612
  %v3691 = vpack.c.b16 %v2662, %v2613
  %v3692 = vpack.c.b16 %v2663, %v2614
  %v3693 = vpack.c.b16 %v2664, %v2615
  %v3694 = vpack.c.b16 %v2665, %v2616
  %v3695 = vpack.c.b16 %v2666, %v2617
  %v3696 = vpack.c.b16 %v2667, %v2618
  %v3697 = vpack.c.b16 %v2668, %v2619
  %v3698 = vpack.c.b16 %v2669, %v2620
  %v3699 = vpack.c.b16 %v2670, %v2621
  %v3700 = vpack.c.b16 %v2671, %v2622
  %v3701 = vpack.c.b16 %v2672, %v2623
  %v3702 = vpack.c.b16 %v2673, %v2624
  %v3703 = vpack.c.b16 %v2674, %v2625
  %v3704 = vpack.c.b16 %v2675, %v2626
  %v3705 = vpack.c.b16 %v2676, %v2627
  %v3706 = vpack.c.b16 %v2677, %v2628
  %v3707 = vpack.c.b16 %v2678, %v2629
  %v3708 = vpack.c.b16 %v2679, %v2630
  %v3709 = vpack.c.b16 %v2680, %v2631
  %v3710 = vpack.c.b16 %v2681, %v2632
  %v3711 = vpack.c.b16 %v2682, %v2633
  %v3712 = vpack.c.b16 %v2683, %v2634
  %v3713 = vpack.c.b16 %v2684, %v2635
  %v3714 = vpack.c.b16 %v2685, %v2636
  %v3715 = vpack.c.b16 %v2686, %v2637
  %v3716 = vpack.c.b16 %v2687, %v2638
  %v3717 = vpack.c.b16 %v2688, %v2639
  %v3718 = vpack.c.b16 %v2689, %v2640
  %v3719 = vpack.c.b16 %v2690, %v2641
  %v3720 = vpack.c.b16 %v2691, %v2642
  %v3721 = vpack.c.b16 %v2692, %v2643
  %v3722 = vpack.c.b16 %v2693, %v2644
  %v3723 = vpack.c.b16 %v2694, %v2645
  %v3724 = vpack.c.b16 %v2695, %v2646
  %v3725 = vpack.c.b16 %v2696, %v2647
  %v3726 = vpack.c.b16 %v2697, %v2648
  %v3727 = vpack.c.b16 %v2698, %v2649
  %v3728 = vpack.c.b16 %v2699, %v2650
  %v3729 = vpack.c.b16 %v2700, %v2651
  %v3730 = vpack.c.b16 %v2701, %v2652
  %v3731 = vpack.c.b16 %v2702, %v2653
  %v3732 = vpack.c.b16 %v2703, %v2654
  %v3733 = vpack.c.b16 %v2704, %v2655
  %v3734 = vpack.c.b16 %v2705, %v2656
  %v3735 = vpack.c.b16 %v2706, %v2657
  %v3736 = vpack.c.b16 %v2756, %v2707
  %v3737 = vpack.c.b16 %v2757, %v2708
  %v3738 = vpack.c.b16 %v2758, %v2709
  %v3739 = vpack.c.b16 %v2759, %v2710
  %v3740 = vpack.c.b16 %v2760, %v2711
  %v3741 = vpack.c.b16 %v2761, %v2712
  %v3742 = vpack.c.b16 %v2762, %v2713
  %v3743 = vpack.c.b16 %v2763, %v2714
  %v3744 = vpack.c.b16 %v2764, %v2715
  %v3745 = vpack.c.b16 %v2765, %v2716
  %v3746 = vpack.c.b16 %v2766, %v2717
  %v3747 = vpack.c.b16 %v2767, %v2718
  %v3748 = vpack.c.b16 %v2768, %v2719
  %v3749 = vpack.c.b16 %v2769, %v2720
  %v3750 = vpack.c.b16 %v2770, %v2721
  %v3751 = vpack.c.b16 %v2771, %v2722
  %v3752 = vpack.c.b16 %v2772, %v2723
  %v3753 = vpack.c.b16 %v2773, %v2724
  %v3754 = vpack.c.b16 %v2774, %v2725
  %v3755 = vpack.c.b16 %v2775, %v2726
  %v3756 = vpack.c.b16 %v2776, %v2727
  %v3757 = vpack.c.b16 %v2777, %v2728
  %v3758 = vpack.c.b16 %v2778, %v2729
  %v3759 = vpack.c.b16 %v2779, %v2730
  %v3760 = vpack.c.b16 %v2780, %v2731
  %v3761 = vpack.c.b16 %v2781, %v2732
  %v3762 = vpack.c.b16 %v2782, %v2733
  %v3763 = vpack.c.b16 %v2783, %v2734
  %v3764 = vpack.c.b16 %v2784, %v2735
  %v3765 = vpack.c.b16 %v2785, %v2736
  %v3766 = vpack.c.b16 %v2786, %v2737
  %v3767 = vpack.c.b16 %v2787, %v2738
  %v3768 = vpack.c.b16 %v2788, %v2739
  %v3769 = vpack.c.b16 %v2789, %v2740
  %v3770 = vpack.c.b16 %v2790, %v2741
  %v3771 = vpack.c.b16 %v2791, %v2742
  %v3772 = vpack.c.b16 %v2792, %v2743
  %v3773 = vpack.c.b16 %v2793, %v2744
  %v3774 = vpack.c.b16 %v2794, %v2745
  %v3775 = vpack.c.b16 %v2795, %v2746
  %v3776 = vpack.c.b16 %v2796, %v2747
  %v3777 = vpack.c.b16 %v2797, %v2748
  %v3778 = vpack.c.b16 %v2798, %v2749
  %v3779 = vpack.c.b16 %v2799, %v2750
  %v3780 = vpack.c.b16 %v2800, %v2751
  %v3781 = vpack.c.b16 %v2801, %v2752
  %v3782 = vpack.c.b16 %v2802, %v2753
  %v3783 = vpack.c.b16 %v2803, %v2754
  %v3784 = vpack.c.b16 %v2804, %v2755
  %v3785 = vpack.c.b16 %v2854, %v2805
  %v3786 = vpack.c.b16 %v2855, %v2806
  %v3787 = vpack.c.b16 %v2856, %v2807
  %v3788 = vpack.c.b16 %v2857, %v2808
  %v3789 = vpack.c.b16 %v2858, %v2809
  %v3790 = vpack.c.b16 %v2859, %v2810
  %v3791 = vpack.c.b16 %v2860, %v2811
  %v3792 = vpack.c.b16 %v2861, %v2812
  %v3793 = vpack.c.b16 %v2862, %v2813
  %v3794 = vpack.c.b16 %v2863, %v2814
  %v3795 = vpack.c.b16 %v2864, %v2815
  %v3796 = vpack.c.b16 %v2865, %v2816
  %v3797 = vpack.c.b16 %v2866, %v2817
  %v3798 = vpack.c.b16 %v2867, %v2818
  %v3799 = vpack.c.b16 %v2868, %v2819
  %v3800 = vpack.c.b16 %v2869, %v2820
  %v3801 = vpack.c.b16 %v2870, %v2821
  %v3802 = vpack.c.b16 %v2871, %v2822
  %v3803 = vpack.c.b16 %v2872, %v2823
  %v3804 = vpack.c.b16 %v2873, %v2824
  %v3805 = vpack.c.b16 %v2874, %v2825
  %v3806 = vpack.c.b16 %v2875, %v2826
  %v3807 = vpack.c.b16 %v2876, %v2827
  %v3808 = vpack.c.b16 %v2877, %v2828
  %v3809 = vpack.c.b16 %v2878, %v2829
  %v3810 = vpack.c.b16 %v2879, %v2830
  %v3811 = vpack.c.b16 %v2880, %v2831
  %v3812 = vpack.c.b16 %v2881, %v2832
  %v3813 = vpack.c.b16 %v2882, %v2833
  %v3814 = vpack.c.b16 %v2883, %v2834
  %v3815 = vpack.c.b16 %v2884, %v2835
  %v3816 = vpack.c.b16 %v2885, %v2836
  %v3817 = vpack.c.b16 %v2886, %v2837
  %v3818 = vpack.c.b16 %v2887, %v2838
  %v3819 = vpack.c.b16 %v2888, %v2839
  %v3820 = vpack.c.b16 %v2889, %v2840
  %v3821 = vpack.c.b16 %v2890, %v2841
  %v3822 = vpack.c.b16 %v2891, %v2842
  %v3823 = vpack.c.b16 %v2892, %v2843
  %v3824 = vpack.c.b16 %v2893, %v2844
  %v3825 = vpack.c.b16 %v2894, %v2845
  %v3826 = vpack.c.b16 %v2895, %v2846
  %v3827 = vpack.c.b16 %v2896, %v2847
  %v3828 = vpack.c.b16 %v2897, %v2848
  %v3829 = vpack.c.b16 %v2898, %v2849
  %v3830 = vpack.c.b16 %v2899, %v2850
  %v3831 = vpack.c.b16 %v2900, %v2851
  %v3832 = vpack.c.b16 %v2901, %v2852
  %v3833 = vpack.c.b16 %v2902, %v2853
  %v3834 = vpack.c.b16 %v2952, %v2903
  %v3835 = vpack.c.b16 %v2953, %v2904
  %v3836 = vpack.c.b16 %v2954, %v2905
  %v3837 = vpack.c.b16 %v2955, %v2906
  %v3838 = vpack.c.b16 %v2956, %v2907
  %v3839 = vpack.c.b16 %v2957, %v2908
  %v3840 = vpack.c.b16 %v2958, %v2909
  %v3841 = vpack.c.b16 %v2959, %v2910
  %v3842 = vpack.c.b16 %v2960, %v2911
  %v3843 = vpack.c.b16 %v2961, %v2912
  %v3844 = vpack.c.b16 %v2962, %v2913
  %v3845 = vpack.c.b16 %v2963, %v2914
  %v3846 = vpack.c.b16 %v2964, %v2915
  %v3847 = vpack.c.b16 %v2965, %v2916
  %v3848 = vpack.c.b16 %v2966, %v2917
  %v3849 = vpack.c.b16 %v2967, %v2918
  %v3850 = vpack.c.b16 %v2968, %v2919
  %v3851 = vpack.c.b16 %v2969, %v2920
  %v3852 = vpack.c.b16 %v2970, %v2921
  %v3853 = vpack.c.b16 %v2971, %v2922
  %v3854 = vpack.c.b16 %v2972, %v2923
  %v3855 = vpack.c.b16 %v2973, %v2924
  %v3856 = vpack.c.b16 %v2974, %v2925
  %v3857 = vpack.c.b16 %v2975, %v2926
  %v3858 = vpack.c.b16 %v2976, %v2927
  %v3859 = vpack.c.b16 %v2977, %v2928
  %v3860 = vpack.c.b16 %v2978, %v2929
  %v3861 = vpack.c.b16 %v2979, %v2930
  %v3862 = vpack.c.b16 %v2980, %v2931
  %v3863 = vpack.c.b16 %v2981, %v2932
  %v3864 = vpack.c.b16 %v2982, %v2933
  %v3865 = vpack.c.b16 %v2983, %v2934
  %v3866 = vpack.c.b16 %v2984, %v2935
  %v3867 = vpack.c.b16 %v2985, %v2936
  %v3868 = vpack.c.b16 %v2986, %v2937
  %v3869 = vpack.c.b16 %v2987, %v2938
  %v3870 = vpack.c.b16 %v2988, %v2939
  %v3871 = vpack.c.b16 %v2989, %v2940
  %v3872 = vpack.c.b16 %v2990, %v2941
  %v3873 = vpack.c.b16 %v2991, %v2942
  %v3874 = vpack.c.b16 %v2992, %v2943
  %v3875 = vpack.c.b16 %v2993, %v2944
  %v3876 = vpack.c.b16 %v2994, %v2945
  %v3877 = vpack.c.b16 %v2995, %v2946
  %v3878 = vpack.c.b16 %v2996, %v2947
  %v3879 = vpack.c.b16 %v2997, %v2948
  %v3880 = vpack.c.b16 %v2998, %v2949
  %v3881 = vpack.c.b16 %v2999, %v2950
  %v3882 = vpack.c.b16 %v3000, %v2951
  %v3883 = vpack.c.b16 %v3050, %v3001
  %v3884 = vpack.c.b16 %v3051, %v3002
  %v3885 = vpack.c.b16 %v3052, %v3003
  %v3886 = vpack.c.b16 %v3053, %v3004
  %v3887 = vpack.c.b16 %v3054, %v3005
  %v3888 = vpack.c.b16 %v3055, %v3006
  %v3889 = vpack.c.b16 %v3056, %v3007
  %v3890 = vpack.c.b16 %v3057, %v3008
  %v3891 = vpack.c.b16 %v3058, %v3009
  %v3892 = vpack.c.b16 %v3059, %v3010
  %v3893 = vpack.c.b16 %v3060, %v3011
  %v3894 = vpack.c.b16 %v3061, %v3012
  %v3895 = vpack.c.b16 %v3062, %v3013
  %v3896 = vpack.c.b16 %v3063, %v3014
  %v3897 = vpack.c.b16 %v3064, %v3015
  %v3898 = vpack.c.b16 %v3065, %v3016
  %v3899 = vpack.c.b16 %v3066, %v3017
  %v3900 = vpack.c.b16 %v3067, %v3018
  %v3901 = vpack.c.b16 %v3068, %v3019
  %v3902 = vpack.c.b16 %v3069, %v3020
  %v3903 = vpack.c.b16 %v3070, %v3021
  %v3904 = vpack.c.b16 %v3071, %v3022
  %v3905 = vpack.c.b16 %v3072, %v3023
  %v3906 = vpack.c.b16 %v3073, %v3024
  %v3907 = vpack.c.b16 %v3074, %v3025
  %v3908 = vpack.c.b16 %v3075, %v3026
  %v3909 = vpack.c.b16 %v3076, %v3027
  %v3910 = vpack.c.b16 %v3077, %v3028
  %v3911 = vpack.c.b16 %v3078, %v3029
  %v3912 = vpack.c.b16 %v3079, %v3030
  %v3913 = vpack.c.b16 %v3080, %v3031
  %v3914 = vpack.c.b16 %v3081, %v3032
  %v3915 = vpack.c.b16 %v3082, %v3033
  %v3916 = vpack.c.b16 %v3083, %v3034
  %v3917 = vpack.c.b16 %v3084, %v3035
  %v3918 = vpack.c.b16 %v3085, %v3036
  %v3919 = vpack.c.b16 %v3086, %v3037
  %v3920 = vpack.c.b16 %v3087, %v3038
  %v3921 = vpack.c.b16 %v3088, %v3039
  %v3922 = vpack.c.b16 %v3089, %v3040
  %v3923 = vpack.c.b16 %v3090, %v3041
  %v3924 = vpack.c.b16 %v3091, %v3042
  %v3925 = vpack.c.b16 %v3092, %v3043
  %v3926 = vpack.c.b16 %v3093, %v3044
  %v3927 = vpack.c.b16 %v3094, %v3045
  %v3928 = vpack.c.b16 %v3095, %v3046
  %v3929 = vpack.c.b16 %v3096, %v3047
  %v3930 = vpack.c.b16 %v3097, %v3048
  %v3931 = vpack.c.b16 %v3098, %v3049
  %v3932 = vpack.c.b16 %v3148, %v3099
  %v3933 = vpack.c.b16 %v3149, %v3100
  %v3934 = vpack.c.b16 %v3150, %v3101
  %v3935 = vpack.c.b16 %v3151, %v3102
  %v3936 = vpack.c.b16 %v3152, %v3103
  %v3937 = vpack.c.b16 %v3153, %v3104
  %v3938 = vpack.c.b16 %v3154, %v3105
  %v3939 = vpack.c.b16 %v3155, %v3106
  %v3940 = vpack.c.b16 %v3156, %v3107
  %v3941 = vpack.c.b16 %v3157, %v3108
  %v3942 = vpack.c.b16 %v3158, %v3109
  %v3943 = vpack.c.b16 %v3159, %v3110
  %v3944 = vpack.c.b16 %v3160, %v3111
  %v3945 = vpack.c.b16 %v3161, %v3112
  %v3946 = vpack.c.b16 %v3162, %v3113
  %v3947 = vpack.c.b16 %v3163, %v3114
  %v3948 = vpack.c.b16 %v3164, %v3115
  %v3949 = vpack.c.b16 %v3165, %v3116
  %v3950 = vpack.c.b16 %v3166, %v3117
  %v3951 = vpack.c.b16 %v3167, %v3118
  %v3952 = vpack.c.b16 %v3168, %v3119
  %v3953 = vpack.c.b16 %v3169, %v3120
  %v3954 = vpack.c.b16 %v3170, %v3121
  %v3955 = vpack.c.b16 %v3171, %v3122
  %v3956 = vpack.c.b16 %v3172, %v3123
  %v3957 = vpack.c.b16 %v3173, %v3124
  %v3958 = vpack.c.b16 %v3174, %v3125
  %v3959 = vpack.c.b16 %v3175, %v3126
  %v3960 = vpack.c.b16 %v3176, %v3127
  %v3961 = vpack.c.b16 %v3177, %v3128
  %v3962 = vpack.c.b16 %v3178, %v3129
  %v3963 = vpack.c.b16 %v3179, %v3130
  %v3964 = vpack.c.b16 %v3180, %v3131
  %v3965 = vpack.c.b16 %v3181, %v3132
  %v3966 = vpack.c.b16 %v3182, %v3133
  %v3967 = vpack.c.b16 %v3183, %v3134
  %v3968 = vpack.c.b16 %v3184, %v3135
  %v3969 = vpack.c.b16 %v3185, %v3136
  %v3970 = vpack.c.b16 %v3186, %v3137
  %v3971 = vpack.c.b16 %v3187, %v3138
  %v3972 = vpack.c.b16 %v3188, %v3139
  %v3973 = vpack.c.b16 %v3189, %v3140
  %v3974 = vpack.c.b16 %v3190, %v3141
  %v3975 = vpack.c.b16 %v3191, %v3142
  %v3976 = vpack.c.b16 %v3192, %v3143
  %v3977 = vpack.c.b16 %v3193, %v3144
  %v3978 = vpack.c.b16 %v3194, %v3145
  %v3979 = vpack.c.b16 %v3195, %v3146
  %v3980 = vpack.c.b16 %v3196, %v3147
  %vm4716 = vcmask 998400
  %v4717 = vsel %vm4716, %v827, 0
  %vm4719 = vcmask 1044480
  %v4721 = vsel %vm4719, %v3932, 0
  %v4724 = vsel %vm4719, %v3933, 0
  %v4727 = vsel %vm4719, %v3934, 0
  %v4730 = vsel %vm4719, %v3935, 0
  %v4733 = vsel %vm4719, %v3936, 0
  %v4736 = vsel %vm4719, %v3937, 0
  %v4739 = vsel %vm4719, %v3938, 0
  %v4742 = vsel %vm4719, %v3939, 0
  %v4745 = vsel %vm4719, %v3940, 0
  %v4748 = vsel %vm4719, %v3941, 0
  %v4751 = vsel %vm4719, %v3942, 0
  %v4754 = vsel %vm4719, %v3943, 0
  %v4757 = vsel %vm4719, %v3944, 0
  %v4760 = vsel %vm4719, %v3945, 0
  %v4763 = vsel %vm4719, %v3946, 0
  %v4766 = vsel %vm4719, %v3947, 0
  %v4769 = vsel %vm4719, %v3948, 0
  %v4772 = vsel %vm4719, %v3949, 0
  %v4775 = vsel %vm4719, %v3950, 0
  %v4778 = vsel %vm4719, %v3951, 0
  %v4781 = vsel %vm4719, %v3952, 0
  %v4784 = vsel %vm4719, %v3953, 0
  %v4787 = vsel %vm4719, %v3954, 0
  %v4790 = vsel %vm4719, %v3955, 0
  %v4793 = vsel %vm4719, %v3956, 0
  %v4796 = vsel %vm4719, %v3957, 0
  %v4799 = vsel %vm4719, %v3958, 0
  %v4802 = vsel %vm4719, %v3959, 0
  %v4805 = vsel %vm4719, %v3960, 0
  %v4808 = vsel %vm4719, %v3961, 0
  %v4811 = vsel %vm4719, %v3962, 0
  %v4814 = vsel %vm4719, %v3963, 0
  %v4817 = vsel %vm4719, %v3964, 0
  %v4820 = vsel %vm4719, %v3965, 0
  %v4823 = vsel %vm4719, %v3966, 0
  %v4826 = vsel %vm4719, %v3967, 0
  %v4829 = vsel %vm4719, %v3968, 0
  %v4832 = vsel %vm4719, %v3969, 0
  %v4835 = vsel %vm4719, %v3970, 0
  %v4838 = vsel %vm4719, %v3971, 0
  %v4841 = vsel %vm4719, %v3972, 0
  %v4844 = vsel %vm4719, %v3973, 0
  %v4847 = vsel %vm4719, %v3974, 0
  %v4850 = vsel %vm4719, %v3975, 0
  %v4853 = vsel %vm4719, %v3976, 0
  %v4856 = vsel %vm4719, %v3977, 0
  %v4859 = vsel %vm4719, %v3978, 0
  %v4862 = vsel %vm4719, %v3979, 0
  %v4865 = vsel %vm4719, %v3980, 0
  %4867 = vmatpush.bf16.msra.mxu0 %v3540
  %4868 = vmatpush.bf16.msra.mxu0 %v3491
  %4869 = vmatpush.bf16.msra.mxu0 %v3442
  %4870 = vmatpush.bf16.msra.mxu0 %v3393
  %4871 = vmatpush.bf16.msra.mxu0 %v3344
  %4872 = vmatpush.bf16.msra.mxu0 %v3295
  %4873 = vmatpush.bf16.msra.mxu0 %v3246
  %4874 = vmatpush.bf16.msra.mxu0 %v3197
  %4875 = vmatmul.bf16.gmra.mxu0 %v826
  %v4876 = vpop.f32.mrf.mxu0
  %v4877 = vadd.f32 %v823, %v4876
  %v4878 = vpop.f32.mrf.mxu0
  %4879 = vdwg.mxu0
  %4880 = vmatpush.bf16.msra.mxu0 %v4721
  %4881 = vmatpush.bf16.msra.mxu0 %v3883
  %4882 = vmatpush.bf16.msra.mxu0 %v3834
  %4883 = vmatpush.bf16.msra.mxu0 %v3785
  %4884 = vmatpush.bf16.msra.mxu0 %v3736
  %4885 = vmatpush.bf16.msra.mxu0 %v3687
  %4886 = vmatpush.bf16.msra.mxu0 %v3638
  %4887 = vmatpush.bf16.msra.mxu0 %v3589
  %4888 = vmatmul.bf16.gmra.mxu0 %v4717
  %v4889 = vpop.f32.mrf.mxu0
  %v4890 = vadd.f32 %v4877, %v4889
  %v4891 = vpop.f32.mrf.mxu0
  %4892 = vdwg.mxu0
  %4893 = vmatpush.bf16.msra.mxu0 %v3541
  %4894 = vmatpush.bf16.msra.mxu0 %v3492
  %4895 = vmatpush.bf16.msra.mxu0 %v3443
  %4896 = vmatpush.bf16.msra.mxu0 %v3394
  %4897 = vmatpush.bf16.msra.mxu0 %v3345
  %4898 = vmatpush.bf16.msra.mxu0 %v3296
  %4899 = vmatpush.bf16.msra.mxu0 %v3247
  %4900 = vmatpush.bf16.msra.mxu0 %v3198
  %4901 = vmatmul.bf16.gmra.mxu0 %v826
  %v4902 = vpop.f32.mrf.mxu0
  %v4903 = vadd.f32 %v823, %v4902
  %v4904 = vpop.f32.mrf.mxu0
  %4905 = vdwg.mxu0
  %4906 = vmatpush.bf16.msra.mxu0 %v4724
  %4907 = vmatpush.bf16.msra.mxu0 %v3884
  %4908 = vmatpush.bf16.msra.mxu0 %v3835
  %4909 = vmatpush.bf16.msra.mxu0 %v3786
  %4910 = vmatpush.bf16.msra.mxu0 %v3737
  %4911 = vmatpush.bf16.msra.mxu0 %v3688
  %4912 = vmatpush.bf16.msra.mxu0 %v3639
  %4913 = vmatpush.bf16.msra.mxu0 %v3590
  %4914 = vmatmul.bf16.gmra.mxu0 %v4717
  %v4915 = vpop.f32.mrf.mxu0
  %v4916 = vadd.f32 %v4903, %v4915
  %v4917 = vpop.f32.mrf.mxu0
  %4918 = vdwg.mxu0
  %4919 = vmatpush.bf16.msra.mxu0 %v3542
  %4920 = vmatpush.bf16.msra.mxu0 %v3493
  %4921 = vmatpush.bf16.msra.mxu0 %v3444
  %4922 = vmatpush.bf16.msra.mxu0 %v3395
  %4923 = vmatpush.bf16.msra.mxu0 %v3346
  %4924 = vmatpush.bf16.msra.mxu0 %v3297
  %4925 = vmatpush.bf16.msra.mxu0 %v3248
  %4926 = vmatpush.bf16.msra.mxu0 %v3199
  %4927 = vmatmul.bf16.gmra.mxu0 %v826
  %v4928 = vpop.f32.mrf.mxu0
  %v4929 = vadd.f32 %v823, %v4928
  %v4930 = vpop.f32.mrf.mxu0
  %4931 = vdwg.mxu0
  %4932 = vmatpush.bf16.msra.mxu0 %v4727
  %4933 = vmatpush.bf16.msra.mxu0 %v3885
  %4934 = vmatpush.bf16.msra.mxu0 %v3836
  %4935 = vmatpush.bf16.msra.mxu0 %v3787
  %4936 = vmatpush.bf16.msra.mxu0 %v3738
  %4937 = vmatpush.bf16.msra.mxu0 %v3689
  %4938 = vmatpush.bf16.msra.mxu0 %v3640
  %4939 = vmatpush.bf16.msra.mxu0 %v3591
  %4940 = vmatmul.bf16.gmra.mxu0 %v4717
  %v4941 = vpop.f32.mrf.mxu0
  %v4942 = vadd.f32 %v4929, %v4941
  %v4943 = vpop.f32.mrf.mxu0
  %4944 = vdwg.mxu0
  %4945 = vmatpush.bf16.msra.mxu0 %v3543
  %4946 = vmatpush.bf16.msra.mxu0 %v3494
  %4947 = vmatpush.bf16.msra.mxu0 %v3445
  %4948 = vmatpush.bf16.msra.mxu0 %v3396
  %4949 = vmatpush.bf16.msra.mxu0 %v3347
  %4950 = vmatpush.bf16.msra.mxu0 %v3298
  %4951 = vmatpush.bf16.msra.mxu0 %v3249
  %4952 = vmatpush.bf16.msra.mxu0 %v3200
  %4953 = vmatmul.bf16.gmra.mxu0 %v826
  %v4954 = vpop.f32.mrf.mxu0
  %v4955 = vadd.f32 %v823, %v4954
  %v4956 = vpop.f32.mrf.mxu0
  %4957 = vdwg.mxu0
  %4958 = vmatpush.bf16.msra.mxu0 %v4730
  %4959 = vmatpush.bf16.msra.mxu0 %v3886
  %4960 = vmatpush.bf16.msra.mxu0 %v3837
  %4961 = vmatpush.bf16.msra.mxu0 %v3788
  %4962 = vmatpush.bf16.msra.mxu0 %v3739
  %4963 = vmatpush.bf16.msra.mxu0 %v3690
  %4964 = vmatpush.bf16.msra.mxu0 %v3641
  %4965 = vmatpush.bf16.msra.mxu0 %v3592
  %4966 = vmatmul.bf16.gmra.mxu0 %v4717
  %v4967 = vpop.f32.mrf.mxu0
  %v4968 = vadd.f32 %v4955, %v4967
  %v4969 = vpop.f32.mrf.mxu0
  %4970 = vdwg.mxu0
  %4971 = vmatpush.bf16.msra.mxu0 %v3544
  %4972 = vmatpush.bf16.msra.mxu0 %v3495
  %4973 = vmatpush.bf16.msra.mxu0 %v3446
  %4974 = vmatpush.bf16.msra.mxu0 %v3397
  %4975 = vmatpush.bf16.msra.mxu0 %v3348
  %4976 = vmatpush.bf16.msra.mxu0 %v3299
  %4977 = vmatpush.bf16.msra.mxu0 %v3250
  %4978 = vmatpush.bf16.msra.mxu0 %v3201
  %4979 = vmatmul.bf16.gmra.mxu0 %v826
  %v4980 = vpop.f32.mrf.mxu0
  %v4981 = vadd.f32 %v823, %v4980
  %v4982 = vpop.f32.mrf.mxu0
  %4983 = vdwg.mxu0
  %4984 = vmatpush.bf16.msra.mxu0 %v4733
  %4985 = vmatpush.bf16.msra.mxu0 %v3887
  %4986 = vmatpush.bf16.msra.mxu0 %v3838
  %4987 = vmatpush.bf16.msra.mxu0 %v3789
  %4988 = vmatpush.bf16.msra.mxu0 %v3740
  %4989 = vmatpush.bf16.msra.mxu0 %v3691
  %4990 = vmatpush.bf16.msra.mxu0 %v3642
  %4991 = vmatpush.bf16.msra.mxu0 %v3593
  %4992 = vmatmul.bf16.gmra.mxu0 %v4717
  %v4993 = vpop.f32.mrf.mxu0
  %v4994 = vadd.f32 %v4981, %v4993
  %v4995 = vpop.f32.mrf.mxu0
  %4996 = vdwg.mxu0
  %4997 = vmatpush.bf16.msra.mxu0 %v3545
  %4998 = vmatpush.bf16.msra.mxu0 %v3496
  %4999 = vmatpush.bf16.msra.mxu0 %v3447
  %5000 = vmatpush.bf16.msra.mxu0 %v3398
  %5001 = vmatpush.bf16.msra.mxu0 %v3349
  %5002 = vmatpush.bf16.msra.mxu0 %v3300
  %5003 = vmatpush.bf16.msra.mxu0 %v3251
  %5004 = vmatpush.bf16.msra.mxu0 %v3202
  %5005 = vmatmul.bf16.gmra.mxu0 %v826
  %v5006 = vpop.f32.mrf.mxu0
  %v5007 = vadd.f32 %v823, %v5006
  %v5008 = vpop.f32.mrf.mxu0
  %5009 = vdwg.mxu0
  %5010 = vmatpush.bf16.msra.mxu0 %v4736
  %5011 = vmatpush.bf16.msra.mxu0 %v3888
  %5012 = vmatpush.bf16.msra.mxu0 %v3839
  %5013 = vmatpush.bf16.msra.mxu0 %v3790
  %5014 = vmatpush.bf16.msra.mxu0 %v3741
  %5015 = vmatpush.bf16.msra.mxu0 %v3692
  %5016 = vmatpush.bf16.msra.mxu0 %v3643
  %5017 = vmatpush.bf16.msra.mxu0 %v3594
  %5018 = vmatmul.bf16.gmra.mxu0 %v4717
  %v5019 = vpop.f32.mrf.mxu0
  %v5020 = vadd.f32 %v5007, %v5019
  %v5021 = vpop.f32.mrf.mxu0
  %5022 = vdwg.mxu0
  %5023 = vmatpush.bf16.msra.mxu0 %v3546
  %5024 = vmatpush.bf16.msra.mxu0 %v3497
  %5025 = vmatpush.bf16.msra.mxu0 %v3448
  %5026 = vmatpush.bf16.msra.mxu0 %v3399
  %5027 = vmatpush.bf16.msra.mxu0 %v3350
  %5028 = vmatpush.bf16.msra.mxu0 %v3301
  %5029 = vmatpush.bf16.msra.mxu0 %v3252
  %5030 = vmatpush.bf16.msra.mxu0 %v3203
  %5031 = vmatmul.bf16.gmra.mxu0 %v826
  %v5032 = vpop.f32.mrf.mxu0
  %v5033 = vadd.f32 %v823, %v5032
  %v5034 = vpop.f32.mrf.mxu0
  %5035 = vdwg.mxu0
  %5036 = vmatpush.bf16.msra.mxu0 %v4739
  %5037 = vmatpush.bf16.msra.mxu0 %v3889
  %5038 = vmatpush.bf16.msra.mxu0 %v3840
  %5039 = vmatpush.bf16.msra.mxu0 %v3791
  %5040 = vmatpush.bf16.msra.mxu0 %v3742
  %5041 = vmatpush.bf16.msra.mxu0 %v3693
  %5042 = vmatpush.bf16.msra.mxu0 %v3644
  %5043 = vmatpush.bf16.msra.mxu0 %v3595
  %5044 = vmatmul.bf16.gmra.mxu0 %v4717
  %v5045 = vpop.f32.mrf.mxu0
  %v5046 = vadd.f32 %v5033, %v5045
  %v5047 = vpop.f32.mrf.mxu0
  %5048 = vdwg.mxu0
  %5049 = vmatpush.bf16.msra.mxu0 %v3547
  %5050 = vmatpush.bf16.msra.mxu0 %v3498
  %5051 = vmatpush.bf16.msra.mxu0 %v3449
  %5052 = vmatpush.bf16.msra.mxu0 %v3400
  %5053 = vmatpush.bf16.msra.mxu0 %v3351
  %5054 = vmatpush.bf16.msra.mxu0 %v3302
  %5055 = vmatpush.bf16.msra.mxu0 %v3253
  %5056 = vmatpush.bf16.msra.mxu0 %v3204
  %5057 = vmatmul.bf16.gmra.mxu0 %v826
  %v5058 = vpop.f32.mrf.mxu0
  %v5059 = vadd.f32 %v823, %v5058
  %v5060 = vpop.f32.mrf.mxu0
  %5061 = vdwg.mxu0
  %5062 = vmatpush.bf16.msra.mxu0 %v4742
  %5063 = vmatpush.bf16.msra.mxu0 %v3890
  %5064 = vmatpush.bf16.msra.mxu0 %v3841
  %5065 = vmatpush.bf16.msra.mxu0 %v3792
  %5066 = vmatpush.bf16.msra.mxu0 %v3743
  %5067 = vmatpush.bf16.msra.mxu0 %v3694
  %5068 = vmatpush.bf16.msra.mxu0 %v3645
  %5069 = vmatpush.bf16.msra.mxu0 %v3596
  %5070 = vmatmul.bf16.gmra.mxu0 %v4717
  %v5071 = vpop.f32.mrf.mxu0
  %v5072 = vadd.f32 %v5059, %v5071
  %v5073 = vpop.f32.mrf.mxu0
  %5074 = vdwg.mxu0
  %5075 = vmatpush.bf16.msra.mxu0 %v3548
  %5076 = vmatpush.bf16.msra.mxu0 %v3499
  %5077 = vmatpush.bf16.msra.mxu0 %v3450
  %5078 = vmatpush.bf16.msra.mxu0 %v3401
  %5079 = vmatpush.bf16.msra.mxu0 %v3352
  %5080 = vmatpush.bf16.msra.mxu0 %v3303
  %5081 = vmatpush.bf16.msra.mxu0 %v3254
  %5082 = vmatpush.bf16.msra.mxu0 %v3205
  %5083 = vmatmul.bf16.gmra.mxu0 %v826
  %v5084 = vpop.f32.mrf.mxu0
  %v5085 = vadd.f32 %v823, %v5084
  %v5086 = vpop.f32.mrf.mxu0
  %5087 = vdwg.mxu0
  %5088 = vmatpush.bf16.msra.mxu0 %v4745
  %5089 = vmatpush.bf16.msra.mxu0 %v3891
  %5090 = vmatpush.bf16.msra.mxu0 %v3842
  %5091 = vmatpush.bf16.msra.mxu0 %v3793
  %5092 = vmatpush.bf16.msra.mxu0 %v3744
  %5093 = vmatpush.bf16.msra.mxu0 %v3695
  %5094 = vmatpush.bf16.msra.mxu0 %v3646
  %5095 = vmatpush.bf16.msra.mxu0 %v3597
  %5096 = vmatmul.bf16.gmra.mxu0 %v4717
  %v5097 = vpop.f32.mrf.mxu0
  %v5098 = vadd.f32 %v5085, %v5097
  %v5099 = vpop.f32.mrf.mxu0
  %5100 = vdwg.mxu0
  %5101 = vmatpush.bf16.msra.mxu0 %v3549
  %5102 = vmatpush.bf16.msra.mxu0 %v3500
  %5103 = vmatpush.bf16.msra.mxu0 %v3451
  %5104 = vmatpush.bf16.msra.mxu0 %v3402
  %5105 = vmatpush.bf16.msra.mxu0 %v3353
  %5106 = vmatpush.bf16.msra.mxu0 %v3304
  %5107 = vmatpush.bf16.msra.mxu0 %v3255
  %5108 = vmatpush.bf16.msra.mxu0 %v3206
  %5109 = vmatmul.bf16.gmra.mxu0 %v826
  %v5110 = vpop.f32.mrf.mxu0
  %v5111 = vadd.f32 %v823, %v5110
  %v5112 = vpop.f32.mrf.mxu0
  %5113 = vdwg.mxu0
  %5114 = vmatpush.bf16.msra.mxu0 %v4748
  %5115 = vmatpush.bf16.msra.mxu0 %v3892
  %5116 = vmatpush.bf16.msra.mxu0 %v3843
  %5117 = vmatpush.bf16.msra.mxu0 %v3794
  %5118 = vmatpush.bf16.msra.mxu0 %v3745
  %5119 = vmatpush.bf16.msra.mxu0 %v3696
  %5120 = vmatpush.bf16.msra.mxu0 %v3647
  %5121 = vmatpush.bf16.msra.mxu0 %v3598
  %5122 = vmatmul.bf16.gmra.mxu0 %v4717
  %v5123 = vpop.f32.mrf.mxu0
  %v5124 = vadd.f32 %v5111, %v5123
  %v5125 = vpop.f32.mrf.mxu0
  %5126 = vdwg.mxu0
  %5127 = vmatpush.bf16.msra.mxu0 %v3550
  %5128 = vmatpush.bf16.msra.mxu0 %v3501
  %5129 = vmatpush.bf16.msra.mxu0 %v3452
  %5130 = vmatpush.bf16.msra.mxu0 %v3403
  %5131 = vmatpush.bf16.msra.mxu0 %v3354
  %5132 = vmatpush.bf16.msra.mxu0 %v3305
  %5133 = vmatpush.bf16.msra.mxu0 %v3256
  %5134 = vmatpush.bf16.msra.mxu0 %v3207
  %5135 = vmatmul.bf16.gmra.mxu0 %v826
  %v5136 = vpop.f32.mrf.mxu0
  %v5137 = vadd.f32 %v823, %v5136
  %v5138 = vpop.f32.mrf.mxu0
  %5139 = vdwg.mxu0
  %5140 = vmatpush.bf16.msra.mxu0 %v4751
  %5141 = vmatpush.bf16.msra.mxu0 %v3893
  %5142 = vmatpush.bf16.msra.mxu0 %v3844
  %5143 = vmatpush.bf16.msra.mxu0 %v3795
  %5144 = vmatpush.bf16.msra.mxu0 %v3746
  %5145 = vmatpush.bf16.msra.mxu0 %v3697
  %5146 = vmatpush.bf16.msra.mxu0 %v3648
  %5147 = vmatpush.bf16.msra.mxu0 %v3599
  %5148 = vmatmul.bf16.gmra.mxu0 %v4717
  %v5149 = vpop.f32.mrf.mxu0
  %v5150 = vadd.f32 %v5137, %v5149
  %v5151 = vpop.f32.mrf.mxu0
  %5152 = vdwg.mxu0
  %5153 = vmatpush.bf16.msra.mxu0 %v3551
  %5154 = vmatpush.bf16.msra.mxu0 %v3502
  %5155 = vmatpush.bf16.msra.mxu0 %v3453
  %5156 = vmatpush.bf16.msra.mxu0 %v3404
  %5157 = vmatpush.bf16.msra.mxu0 %v3355
  %5158 = vmatpush.bf16.msra.mxu0 %v3306
  %5159 = vmatpush.bf16.msra.mxu0 %v3257
  %5160 = vmatpush.bf16.msra.mxu0 %v3208
  %5161 = vmatmul.bf16.gmra.mxu0 %v826
  %v5162 = vpop.f32.mrf.mxu0
  %v5163 = vadd.f32 %v823, %v5162
  %v5164 = vpop.f32.mrf.mxu0
  %5165 = vdwg.mxu0
  %5166 = vmatpush.bf16.msra.mxu0 %v4754
  %5167 = vmatpush.bf16.msra.mxu0 %v3894
  %5168 = vmatpush.bf16.msra.mxu0 %v3845
  %5169 = vmatpush.bf16.msra.mxu0 %v3796
  %5170 = vmatpush.bf16.msra.mxu0 %v3747
  %5171 = vmatpush.bf16.msra.mxu0 %v3698
  %5172 = vmatpush.bf16.msra.mxu0 %v3649
  %5173 = vmatpush.bf16.msra.mxu0 %v3600
  %5174 = vmatmul.bf16.gmra.mxu0 %v4717
  %v5175 = vpop.f32.mrf.mxu0
  %v5176 = vadd.f32 %v5163, %v5175
  %v5177 = vpop.f32.mrf.mxu0
  %5178 = vdwg.mxu0
  %5179 = vmatpush.bf16.msra.mxu0 %v3552
  %5180 = vmatpush.bf16.msra.mxu0 %v3503
  %5181 = vmatpush.bf16.msra.mxu0 %v3454
  %5182 = vmatpush.bf16.msra.mxu0 %v3405
  %5183 = vmatpush.bf16.msra.mxu0 %v3356
  %5184 = vmatpush.bf16.msra.mxu0 %v3307
  %5185 = vmatpush.bf16.msra.mxu0 %v3258
  %5186 = vmatpush.bf16.msra.mxu0 %v3209
  %5187 = vmatmul.bf16.gmra.mxu0 %v826
  %v5188 = vpop.f32.mrf.mxu0
  %v5189 = vadd.f32 %v823, %v5188
  %v5190 = vpop.f32.mrf.mxu0
  %5191 = vdwg.mxu0
  %5192 = vmatpush.bf16.msra.mxu0 %v4757
  %5193 = vmatpush.bf16.msra.mxu0 %v3895
  %5194 = vmatpush.bf16.msra.mxu0 %v3846
  %5195 = vmatpush.bf16.msra.mxu0 %v3797
  %5196 = vmatpush.bf16.msra.mxu0 %v3748
  %5197 = vmatpush.bf16.msra.mxu0 %v3699
  %5198 = vmatpush.bf16.msra.mxu0 %v3650
  %5199 = vmatpush.bf16.msra.mxu0 %v3601
  %5200 = vmatmul.bf16.gmra.mxu0 %v4717
  %v5201 = vpop.f32.mrf.mxu0
  %v5202 = vadd.f32 %v5189, %v5201
  %v5203 = vpop.f32.mrf.mxu0
  %5204 = vdwg.mxu0
  %5205 = vmatpush.bf16.msra.mxu0 %v3553
  %5206 = vmatpush.bf16.msra.mxu0 %v3504
  %5207 = vmatpush.bf16.msra.mxu0 %v3455
  %5208 = vmatpush.bf16.msra.mxu0 %v3406
  %5209 = vmatpush.bf16.msra.mxu0 %v3357
  %5210 = vmatpush.bf16.msra.mxu0 %v3308
  %5211 = vmatpush.bf16.msra.mxu0 %v3259
  %5212 = vmatpush.bf16.msra.mxu0 %v3210
  %5213 = vmatmul.bf16.gmra.mxu0 %v826
  %v5214 = vpop.f32.mrf.mxu0
  %v5215 = vadd.f32 %v823, %v5214
  %v5216 = vpop.f32.mrf.mxu0
  %5217 = vdwg.mxu0
  %5218 = vmatpush.bf16.msra.mxu0 %v4760
  %5219 = vmatpush.bf16.msra.mxu0 %v3896
  %5220 = vmatpush.bf16.msra.mxu0 %v3847
  %5221 = vmatpush.bf16.msra.mxu0 %v3798
  %5222 = vmatpush.bf16.msra.mxu0 %v3749
  %5223 = vmatpush.bf16.msra.mxu0 %v3700
  %5224 = vmatpush.bf16.msra.mxu0 %v3651
  %5225 = vmatpush.bf16.msra.mxu0 %v3602
  %5226 = vmatmul.bf16.gmra.mxu0 %v4717
  %v5227 = vpop.f32.mrf.mxu0
  %v5228 = vadd.f32 %v5215, %v5227
  %v5229 = vpop.f32.mrf.mxu0
  %5230 = vdwg.mxu0
  %5231 = vmatpush.bf16.msra.mxu0 %v3554
  %5232 = vmatpush.bf16.msra.mxu0 %v3505
  %5233 = vmatpush.bf16.msra.mxu0 %v3456
  %5234 = vmatpush.bf16.msra.mxu0 %v3407
  %5235 = vmatpush.bf16.msra.mxu0 %v3358
  %5236 = vmatpush.bf16.msra.mxu0 %v3309
  %5237 = vmatpush.bf16.msra.mxu0 %v3260
  %5238 = vmatpush.bf16.msra.mxu0 %v3211
  %5239 = vmatmul.bf16.gmra.mxu0 %v826
  %v5240 = vpop.f32.mrf.mxu0
  %v5241 = vadd.f32 %v823, %v5240
  %v5242 = vpop.f32.mrf.mxu0
  %5243 = vdwg.mxu0
  %5244 = vmatpush.bf16.msra.mxu0 %v4763
  %5245 = vmatpush.bf16.msra.mxu0 %v3897
  %5246 = vmatpush.bf16.msra.mxu0 %v3848
  %5247 = vmatpush.bf16.msra.mxu0 %v3799
  %5248 = vmatpush.bf16.msra.mxu0 %v3750
  %5249 = vmatpush.bf16.msra.mxu0 %v3701
  %5250 = vmatpush.bf16.msra.mxu0 %v3652
  %5251 = vmatpush.bf16.msra.mxu0 %v3603
  %5252 = vmatmul.bf16.gmra.mxu0 %v4717
  %v5253 = vpop.f32.mrf.mxu0
  %v5254 = vadd.f32 %v5241, %v5253
  %v5255 = vpop.f32.mrf.mxu0
  %5256 = vdwg.mxu0
  %5257 = vmatpush.bf16.msra.mxu0 %v3555
  %5258 = vmatpush.bf16.msra.mxu0 %v3506
  %5259 = vmatpush.bf16.msra.mxu0 %v3457
  %5260 = vmatpush.bf16.msra.mxu0 %v3408
  %5261 = vmatpush.bf16.msra.mxu0 %v3359
  %5262 = vmatpush.bf16.msra.mxu0 %v3310
  %5263 = vmatpush.bf16.msra.mxu0 %v3261
  %5264 = vmatpush.bf16.msra.mxu0 %v3212
  %5265 = vmatmul.bf16.gmra.mxu0 %v826
  %v5266 = vpop.f32.mrf.mxu0
  %v5267 = vadd.f32 %v823, %v5266
  %v5268 = vpop.f32.mrf.mxu0
  %5269 = vdwg.mxu0
  %5270 = vmatpush.bf16.msra.mxu0 %v4766
  %5271 = vmatpush.bf16.msra.mxu0 %v3898
  %5272 = vmatpush.bf16.msra.mxu0 %v3849
  %5273 = vmatpush.bf16.msra.mxu0 %v3800
  %5274 = vmatpush.bf16.msra.mxu0 %v3751
  %5275 = vmatpush.bf16.msra.mxu0 %v3702
  %5276 = vmatpush.bf16.msra.mxu0 %v3653
  %5277 = vmatpush.bf16.msra.mxu0 %v3604
  %5278 = vmatmul.bf16.gmra.mxu0 %v4717
  %v5279 = vpop.f32.mrf.mxu0
  %v5280 = vadd.f32 %v5267, %v5279
  %v5281 = vpop.f32.mrf.mxu0
  %5282 = vdwg.mxu0
  %5283 = vmatpush.bf16.msra.mxu0 %v3556
  %5284 = vmatpush.bf16.msra.mxu0 %v3507
  %5285 = vmatpush.bf16.msra.mxu0 %v3458
  %5286 = vmatpush.bf16.msra.mxu0 %v3409
  %5287 = vmatpush.bf16.msra.mxu0 %v3360
  %5288 = vmatpush.bf16.msra.mxu0 %v3311
  %5289 = vmatpush.bf16.msra.mxu0 %v3262
  %5290 = vmatpush.bf16.msra.mxu0 %v3213
  %5291 = vmatmul.bf16.gmra.mxu0 %v826
  %v5292 = vpop.f32.mrf.mxu0
  %v5293 = vadd.f32 %v823, %v5292
  %v5294 = vpop.f32.mrf.mxu0
  %5295 = vdwg.mxu0
  %5296 = vmatpush.bf16.msra.mxu0 %v4769
  %5297 = vmatpush.bf16.msra.mxu0 %v3899
  %5298 = vmatpush.bf16.msra.mxu0 %v3850
  %5299 = vmatpush.bf16.msra.mxu0 %v3801
  %5300 = vmatpush.bf16.msra.mxu0 %v3752
  %5301 = vmatpush.bf16.msra.mxu0 %v3703
  %5302 = vmatpush.bf16.msra.mxu0 %v3654
  %5303 = vmatpush.bf16.msra.mxu0 %v3605
  %5304 = vmatmul.bf16.gmra.mxu0 %v4717
  %v5305 = vpop.f32.mrf.mxu0
  %v5306 = vadd.f32 %v5293, %v5305
  %v5307 = vpop.f32.mrf.mxu0
  %5308 = vdwg.mxu0
  %5309 = vmatpush.bf16.msra.mxu0 %v3557
  %5310 = vmatpush.bf16.msra.mxu0 %v3508
  %5311 = vmatpush.bf16.msra.mxu0 %v3459
  %5312 = vmatpush.bf16.msra.mxu0 %v3410
  %5313 = vmatpush.bf16.msra.mxu0 %v3361
  %5314 = vmatpush.bf16.msra.mxu0 %v3312
  %5315 = vmatpush.bf16.msra.mxu0 %v3263
  %5316 = vmatpush.bf16.msra.mxu0 %v3214
  %5317 = vmatmul.bf16.gmra.mxu0 %v826
  %v5318 = vpop.f32.mrf.mxu0
  %v5319 = vadd.f32 %v823, %v5318
  %v5320 = vpop.f32.mrf.mxu0
  %5321 = vdwg.mxu0
  %5322 = vmatpush.bf16.msra.mxu0 %v4772
  %5323 = vmatpush.bf16.msra.mxu0 %v3900
  %5324 = vmatpush.bf16.msra.mxu0 %v3851
  %5325 = vmatpush.bf16.msra.mxu0 %v3802
  %5326 = vmatpush.bf16.msra.mxu0 %v3753
  %5327 = vmatpush.bf16.msra.mxu0 %v3704
  %5328 = vmatpush.bf16.msra.mxu0 %v3655
  %5329 = vmatpush.bf16.msra.mxu0 %v3606
  %5330 = vmatmul.bf16.gmra.mxu0 %v4717
  %v5331 = vpop.f32.mrf.mxu0
  %v5332 = vadd.f32 %v5319, %v5331
  %v5333 = vpop.f32.mrf.mxu0
  %5334 = vdwg.mxu0
  %5335 = vmatpush.bf16.msra.mxu0 %v3558
  %5336 = vmatpush.bf16.msra.mxu0 %v3509
  %5337 = vmatpush.bf16.msra.mxu0 %v3460
  %5338 = vmatpush.bf16.msra.mxu0 %v3411
  %5339 = vmatpush.bf16.msra.mxu0 %v3362
  %5340 = vmatpush.bf16.msra.mxu0 %v3313
  %5341 = vmatpush.bf16.msra.mxu0 %v3264
  %5342 = vmatpush.bf16.msra.mxu0 %v3215
  %5343 = vmatmul.bf16.gmra.mxu0 %v826
  %v5344 = vpop.f32.mrf.mxu0
  %v5345 = vadd.f32 %v823, %v5344
  %v5346 = vpop.f32.mrf.mxu0
  %5347 = vdwg.mxu0
  %5348 = vmatpush.bf16.msra.mxu0 %v4775
  %5349 = vmatpush.bf16.msra.mxu0 %v3901
  %5350 = vmatpush.bf16.msra.mxu0 %v3852
  %5351 = vmatpush.bf16.msra.mxu0 %v3803
  %5352 = vmatpush.bf16.msra.mxu0 %v3754
  %5353 = vmatpush.bf16.msra.mxu0 %v3705
  %5354 = vmatpush.bf16.msra.mxu0 %v3656
  %5355 = vmatpush.bf16.msra.mxu0 %v3607
  %5356 = vmatmul.bf16.gmra.mxu0 %v4717
  %v5357 = vpop.f32.mrf.mxu0
  %v5358 = vadd.f32 %v5345, %v5357
  %v5359 = vpop.f32.mrf.mxu0
  %5360 = vdwg.mxu0
  %5361 = vmatpush.bf16.msra.mxu0 %v3559
  %5362 = vmatpush.bf16.msra.mxu0 %v3510
  %5363 = vmatpush.bf16.msra.mxu0 %v3461
  %5364 = vmatpush.bf16.msra.mxu0 %v3412
  %5365 = vmatpush.bf16.msra.mxu0 %v3363
  %5366 = vmatpush.bf16.msra.mxu0 %v3314
  %5367 = vmatpush.bf16.msra.mxu0 %v3265
  %5368 = vmatpush.bf16.msra.mxu0 %v3216
  %5369 = vmatmul.bf16.gmra.mxu0 %v826
  %v5370 = vpop.f32.mrf.mxu0
  %v5371 = vadd.f32 %v823, %v5370
  %v5372 = vpop.f32.mrf.mxu0
  %5373 = vdwg.mxu0
  %5374 = vmatpush.bf16.msra.mxu0 %v4778
  %5375 = vmatpush.bf16.msra.mxu0 %v3902
  %5376 = vmatpush.bf16.msra.mxu0 %v3853
  %5377 = vmatpush.bf16.msra.mxu0 %v3804
  %5378 = vmatpush.bf16.msra.mxu0 %v3755
  %5379 = vmatpush.bf16.msra.mxu0 %v3706
  %5380 = vmatpush.bf16.msra.mxu0 %v3657
  %5381 = vmatpush.bf16.msra.mxu0 %v3608
  %5382 = vmatmul.bf16.gmra.mxu0 %v4717
  %v5383 = vpop.f32.mrf.mxu0
  %v5384 = vadd.f32 %v5371, %v5383
  %v5385 = vpop.f32.mrf.mxu0
  %5386 = vdwg.mxu0
  %5387 = vmatpush.bf16.msra.mxu0 %v3560
  %5388 = vmatpush.bf16.msra.mxu0 %v3511
  %5389 = vmatpush.bf16.msra.mxu0 %v3462
  %5390 = vmatpush.bf16.msra.mxu0 %v3413
  %5391 = vmatpush.bf16.msra.mxu0 %v3364
  %5392 = vmatpush.bf16.msra.mxu0 %v3315
  %5393 = vmatpush.bf16.msra.mxu0 %v3266
  %5394 = vmatpush.bf16.msra.mxu0 %v3217
  %5395 = vmatmul.bf16.gmra.mxu0 %v826
  %v5396 = vpop.f32.mrf.mxu0
  %v5397 = vadd.f32 %v823, %v5396
  %v5398 = vpop.f32.mrf.mxu0
  %5399 = vdwg.mxu0
  %5400 = vmatpush.bf16.msra.mxu0 %v4781
  %5401 = vmatpush.bf16.msra.mxu0 %v3903
  %5402 = vmatpush.bf16.msra.mxu0 %v3854
  %5403 = vmatpush.bf16.msra.mxu0 %v3805
  %5404 = vmatpush.bf16.msra.mxu0 %v3756
  %5405 = vmatpush.bf16.msra.mxu0 %v3707
  %5406 = vmatpush.bf16.msra.mxu0 %v3658
  %5407 = vmatpush.bf16.msra.mxu0 %v3609
  %5408 = vmatmul.bf16.gmra.mxu0 %v4717
  %v5409 = vpop.f32.mrf.mxu0
  %v5410 = vadd.f32 %v5397, %v5409
  %v5411 = vpop.f32.mrf.mxu0
  %5412 = vdwg.mxu0
  %5413 = vmatpush.bf16.msra.mxu0 %v3561
  %5414 = vmatpush.bf16.msra.mxu0 %v3512
  %5415 = vmatpush.bf16.msra.mxu0 %v3463
  %5416 = vmatpush.bf16.msra.mxu0 %v3414
  %5417 = vmatpush.bf16.msra.mxu0 %v3365
  %5418 = vmatpush.bf16.msra.mxu0 %v3316
  %5419 = vmatpush.bf16.msra.mxu0 %v3267
  %5420 = vmatpush.bf16.msra.mxu0 %v3218
  %5421 = vmatmul.bf16.gmra.mxu0 %v826
  %v5422 = vpop.f32.mrf.mxu0
  %v5423 = vadd.f32 %v823, %v5422
  %v5424 = vpop.f32.mrf.mxu0
  %5425 = vdwg.mxu0
  %5426 = vmatpush.bf16.msra.mxu0 %v4784
  %5427 = vmatpush.bf16.msra.mxu0 %v3904
  %5428 = vmatpush.bf16.msra.mxu0 %v3855
  %5429 = vmatpush.bf16.msra.mxu0 %v3806
  %5430 = vmatpush.bf16.msra.mxu0 %v3757
  %5431 = vmatpush.bf16.msra.mxu0 %v3708
  %5432 = vmatpush.bf16.msra.mxu0 %v3659
  %5433 = vmatpush.bf16.msra.mxu0 %v3610
  %5434 = vmatmul.bf16.gmra.mxu0 %v4717
  %v5435 = vpop.f32.mrf.mxu0
  %v5436 = vadd.f32 %v5423, %v5435
  %v5437 = vpop.f32.mrf.mxu0
  %5438 = vdwg.mxu0
  %5439 = vmatpush.bf16.msra.mxu0 %v3562
  %5440 = vmatpush.bf16.msra.mxu0 %v3513
  %5441 = vmatpush.bf16.msra.mxu0 %v3464
  %5442 = vmatpush.bf16.msra.mxu0 %v3415
  %5443 = vmatpush.bf16.msra.mxu0 %v3366
  %5444 = vmatpush.bf16.msra.mxu0 %v3317
  %5445 = vmatpush.bf16.msra.mxu0 %v3268
  %5446 = vmatpush.bf16.msra.mxu0 %v3219
  %5447 = vmatmul.bf16.gmra.mxu0 %v826
  %v5448 = vpop.f32.mrf.mxu0
  %v5449 = vadd.f32 %v823, %v5448
  %v5450 = vpop.f32.mrf.mxu0
  %5451 = vdwg.mxu0
  %5452 = vmatpush.bf16.msra.mxu0 %v4787
  %5453 = vmatpush.bf16.msra.mxu0 %v3905
  %5454 = vmatpush.bf16.msra.mxu0 %v3856
  %5455 = vmatpush.bf16.msra.mxu0 %v3807
  %5456 = vmatpush.bf16.msra.mxu0 %v3758
  %5457 = vmatpush.bf16.msra.mxu0 %v3709
  %5458 = vmatpush.bf16.msra.mxu0 %v3660
  %5459 = vmatpush.bf16.msra.mxu0 %v3611
  %5460 = vmatmul.bf16.gmra.mxu0 %v4717
  %v5461 = vpop.f32.mrf.mxu0
  %v5462 = vadd.f32 %v5449, %v5461
  %v5463 = vpop.f32.mrf.mxu0
  %5464 = vdwg.mxu0
  %5465 = vmatpush.bf16.msra.mxu0 %v3563
  %5466 = vmatpush.bf16.msra.mxu0 %v3514
  %5467 = vmatpush.bf16.msra.mxu0 %v3465
  %5468 = vmatpush.bf16.msra.mxu0 %v3416
  %5469 = vmatpush.bf16.msra.mxu0 %v3367
  %5470 = vmatpush.bf16.msra.mxu0 %v3318
  %5471 = vmatpush.bf16.msra.mxu0 %v3269
  %5472 = vmatpush.bf16.msra.mxu0 %v3220
  %5473 = vmatmul.bf16.gmra.mxu0 %v826
  %v5474 = vpop.f32.mrf.mxu0
  %v5475 = vadd.f32 %v823, %v5474
  %v5476 = vpop.f32.mrf.mxu0
  %5477 = vdwg.mxu0
  %5478 = vmatpush.bf16.msra.mxu0 %v4790
  %5479 = vmatpush.bf16.msra.mxu0 %v3906
  %5480 = vmatpush.bf16.msra.mxu0 %v3857
  %5481 = vmatpush.bf16.msra.mxu0 %v3808
  %5482 = vmatpush.bf16.msra.mxu0 %v3759
  %5483 = vmatpush.bf16.msra.mxu0 %v3710
  %5484 = vmatpush.bf16.msra.mxu0 %v3661
  %5485 = vmatpush.bf16.msra.mxu0 %v3612
  %5486 = vmatmul.bf16.gmra.mxu0 %v4717
  %v5487 = vpop.f32.mrf.mxu0
  %v5488 = vadd.f32 %v5475, %v5487
  %v5489 = vpop.f32.mrf.mxu0
  %5490 = vdwg.mxu0
  %5491 = vmatpush.bf16.msra.mxu0 %v3564
  %5492 = vmatpush.bf16.msra.mxu0 %v3515
  %5493 = vmatpush.bf16.msra.mxu0 %v3466
  %5494 = vmatpush.bf16.msra.mxu0 %v3417
  %5495 = vmatpush.bf16.msra.mxu0 %v3368
  %5496 = vmatpush.bf16.msra.mxu0 %v3319
  %5497 = vmatpush.bf16.msra.mxu0 %v3270
  %5498 = vmatpush.bf16.msra.mxu0 %v3221
  %5499 = vmatmul.bf16.gmra.mxu0 %v826
  %v5500 = vpop.f32.mrf.mxu0
  %v5501 = vadd.f32 %v823, %v5500
  %v5502 = vpop.f32.mrf.mxu0
  %5503 = vdwg.mxu0
  %5504 = vmatpush.bf16.msra.mxu0 %v4793
  %5505 = vmatpush.bf16.msra.mxu0 %v3907
  %5506 = vmatpush.bf16.msra.mxu0 %v3858
  %5507 = vmatpush.bf16.msra.mxu0 %v3809
  %5508 = vmatpush.bf16.msra.mxu0 %v3760
  %5509 = vmatpush.bf16.msra.mxu0 %v3711
  %5510 = vmatpush.bf16.msra.mxu0 %v3662
  %5511 = vmatpush.bf16.msra.mxu0 %v3613
  %5512 = vmatmul.bf16.gmra.mxu0 %v4717
  %v5513 = vpop.f32.mrf.mxu0
  %v5514 = vadd.f32 %v5501, %v5513
  %v5515 = vpop.f32.mrf.mxu0
  %5516 = vdwg.mxu0
  %5517 = vmatpush.bf16.msra.mxu0 %v3565
  %5518 = vmatpush.bf16.msra.mxu0 %v3516
  %5519 = vmatpush.bf16.msra.mxu0 %v3467
  %5520 = vmatpush.bf16.msra.mxu0 %v3418
  %5521 = vmatpush.bf16.msra.mxu0 %v3369
  %5522 = vmatpush.bf16.msra.mxu0 %v3320
  %5523 = vmatpush.bf16.msra.mxu0 %v3271
  %5524 = vmatpush.bf16.msra.mxu0 %v3222
  %5525 = vmatmul.bf16.gmra.mxu0 %v826
  %v5526 = vpop.f32.mrf.mxu0
  %v5527 = vadd.f32 %v823, %v5526
  %v5528 = vpop.f32.mrf.mxu0
  %5529 = vdwg.mxu0
  %5530 = vmatpush.bf16.msra.mxu0 %v4796
  %5531 = vmatpush.bf16.msra.mxu0 %v3908
  %5532 = vmatpush.bf16.msra.mxu0 %v3859
  %5533 = vmatpush.bf16.msra.mxu0 %v3810
  %5534 = vmatpush.bf16.msra.mxu0 %v3761
  %5535 = vmatpush.bf16.msra.mxu0 %v3712
  %5536 = vmatpush.bf16.msra.mxu0 %v3663
  %5537 = vmatpush.bf16.msra.mxu0 %v3614
  %5538 = vmatmul.bf16.gmra.mxu0 %v4717
  %v5539 = vpop.f32.mrf.mxu0
  %v5540 = vadd.f32 %v5527, %v5539
  %v5541 = vpop.f32.mrf.mxu0
  %5542 = vdwg.mxu0
  %5543 = vmatpush.bf16.msra.mxu0 %v3566
  %5544 = vmatpush.bf16.msra.mxu0 %v3517
  %5545 = vmatpush.bf16.msra.mxu0 %v3468
  %5546 = vmatpush.bf16.msra.mxu0 %v3419
  %5547 = vmatpush.bf16.msra.mxu0 %v3370
  %5548 = vmatpush.bf16.msra.mxu0 %v3321
  %5549 = vmatpush.bf16.msra.mxu0 %v3272
  %5550 = vmatpush.bf16.msra.mxu0 %v3223
  %5551 = vmatmul.bf16.gmra.mxu0 %v826
  %v5552 = vpop.f32.mrf.mxu0
  %v5553 = vadd.f32 %v823, %v5552
  %v5554 = vpop.f32.mrf.mxu0
  %5555 = vdwg.mxu0
  %5556 = vmatpush.bf16.msra.mxu0 %v4799
  %5557 = vmatpush.bf16.msra.mxu0 %v3909
  %5558 = vmatpush.bf16.msra.mxu0 %v3860
  %5559 = vmatpush.bf16.msra.mxu0 %v3811
  %5560 = vmatpush.bf16.msra.mxu0 %v3762
  %5561 = vmatpush.bf16.msra.mxu0 %v3713
  %5562 = vmatpush.bf16.msra.mxu0 %v3664
  %5563 = vmatpush.bf16.msra.mxu0 %v3615
  %5564 = vmatmul.bf16.gmra.mxu0 %v4717
  %v5565 = vpop.f32.mrf.mxu0
  %v5566 = vadd.f32 %v5553, %v5565
  %v5567 = vpop.f32.mrf.mxu0
  %5568 = vdwg.mxu0
  %5569 = vmatpush.bf16.msra.mxu0 %v3567
  %5570 = vmatpush.bf16.msra.mxu0 %v3518
  %5571 = vmatpush.bf16.msra.mxu0 %v3469
  %5572 = vmatpush.bf16.msra.mxu0 %v3420
  %5573 = vmatpush.bf16.msra.mxu0 %v3371
  %5574 = vmatpush.bf16.msra.mxu0 %v3322
  %5575 = vmatpush.bf16.msra.mxu0 %v3273
  %5576 = vmatpush.bf16.msra.mxu0 %v3224
  %5577 = vmatmul.bf16.gmra.mxu0 %v826
  %v5578 = vpop.f32.mrf.mxu0
  %v5579 = vadd.f32 %v823, %v5578
  %v5580 = vpop.f32.mrf.mxu0
  %5581 = vdwg.mxu0
  %5582 = vmatpush.bf16.msra.mxu0 %v4802
  %5583 = vmatpush.bf16.msra.mxu0 %v3910
  %5584 = vmatpush.bf16.msra.mxu0 %v3861
  %5585 = vmatpush.bf16.msra.mxu0 %v3812
  %5586 = vmatpush.bf16.msra.mxu0 %v3763
  %5587 = vmatpush.bf16.msra.mxu0 %v3714
  %5588 = vmatpush.bf16.msra.mxu0 %v3665
  %5589 = vmatpush.bf16.msra.mxu0 %v3616
  %5590 = vmatmul.bf16.gmra.mxu0 %v4717
  %v5591 = vpop.f32.mrf.mxu0
  %v5592 = vadd.f32 %v5579, %v5591
  %v5593 = vpop.f32.mrf.mxu0
  %5594 = vdwg.mxu0
  %5595 = vmatpush.bf16.msra.mxu0 %v3568
  %5596 = vmatpush.bf16.msra.mxu0 %v3519
  %5597 = vmatpush.bf16.msra.mxu0 %v3470
  %5598 = vmatpush.bf16.msra.mxu0 %v3421
  %5599 = vmatpush.bf16.msra.mxu0 %v3372
  %5600 = vmatpush.bf16.msra.mxu0 %v3323
  %5601 = vmatpush.bf16.msra.mxu0 %v3274
  %5602 = vmatpush.bf16.msra.mxu0 %v3225
  %5603 = vmatmul.bf16.gmra.mxu0 %v826
  %v5604 = vpop.f32.mrf.mxu0
  %v5605 = vadd.f32 %v823, %v5604
  %v5606 = vpop.f32.mrf.mxu0
  %5607 = vdwg.mxu0
  %5608 = vmatpush.bf16.msra.mxu0 %v4805
  %5609 = vmatpush.bf16.msra.mxu0 %v3911
  %5610 = vmatpush.bf16.msra.mxu0 %v3862
  %5611 = vmatpush.bf16.msra.mxu0 %v3813
  %5612 = vmatpush.bf16.msra.mxu0 %v3764
  %5613 = vmatpush.bf16.msra.mxu0 %v3715
  %5614 = vmatpush.bf16.msra.mxu0 %v3666
  %5615 = vmatpush.bf16.msra.mxu0 %v3617
  %5616 = vmatmul.bf16.gmra.mxu0 %v4717
  %v5617 = vpop.f32.mrf.mxu0
  %v5618 = vadd.f32 %v5605, %v5617
  %v5619 = vpop.f32.mrf.mxu0
  %5620 = vdwg.mxu0
  %5621 = vmatpush.bf16.msra.mxu0 %v3569
  %5622 = vmatpush.bf16.msra.mxu0 %v3520
  %5623 = vmatpush.bf16.msra.mxu0 %v3471
  %5624 = vmatpush.bf16.msra.mxu0 %v3422
  %5625 = vmatpush.bf16.msra.mxu0 %v3373
  %5626 = vmatpush.bf16.msra.mxu0 %v3324
  %5627 = vmatpush.bf16.msra.mxu0 %v3275
  %5628 = vmatpush.bf16.msra.mxu0 %v3226
  %5629 = vmatmul.bf16.gmra.mxu0 %v826
  %v5630 = vpop.f32.mrf.mxu0
  %v5631 = vadd.f32 %v823, %v5630
  %v5632 = vpop.f32.mrf.mxu0
  %5633 = vdwg.mxu0
  %5634 = vmatpush.bf16.msra.mxu0 %v4808
  %5635 = vmatpush.bf16.msra.mxu0 %v3912
  %5636 = vmatpush.bf16.msra.mxu0 %v3863
  %5637 = vmatpush.bf16.msra.mxu0 %v3814
  %5638 = vmatpush.bf16.msra.mxu0 %v3765
  %5639 = vmatpush.bf16.msra.mxu0 %v3716
  %5640 = vmatpush.bf16.msra.mxu0 %v3667
  %5641 = vmatpush.bf16.msra.mxu0 %v3618
  %5642 = vmatmul.bf16.gmra.mxu0 %v4717
  %v5643 = vpop.f32.mrf.mxu0
  %v5644 = vadd.f32 %v5631, %v5643
  %v5645 = vpop.f32.mrf.mxu0
  %5646 = vdwg.mxu0
  %5647 = vmatpush.bf16.msra.mxu0 %v3570
  %5648 = vmatpush.bf16.msra.mxu0 %v3521
  %5649 = vmatpush.bf16.msra.mxu0 %v3472
  %5650 = vmatpush.bf16.msra.mxu0 %v3423
  %5651 = vmatpush.bf16.msra.mxu0 %v3374
  %5652 = vmatpush.bf16.msra.mxu0 %v3325
  %5653 = vmatpush.bf16.msra.mxu0 %v3276
  %5654 = vmatpush.bf16.msra.mxu0 %v3227
  %5655 = vmatmul.bf16.gmra.mxu0 %v826
  %v5656 = vpop.f32.mrf.mxu0
  %v5657 = vadd.f32 %v823, %v5656
  %v5658 = vpop.f32.mrf.mxu0
  %5659 = vdwg.mxu0
  %5660 = vmatpush.bf16.msra.mxu0 %v4811
  %5661 = vmatpush.bf16.msra.mxu0 %v3913
  %5662 = vmatpush.bf16.msra.mxu0 %v3864
  %5663 = vmatpush.bf16.msra.mxu0 %v3815
  %5664 = vmatpush.bf16.msra.mxu0 %v3766
  %5665 = vmatpush.bf16.msra.mxu0 %v3717
  %5666 = vmatpush.bf16.msra.mxu0 %v3668
  %5667 = vmatpush.bf16.msra.mxu0 %v3619
  %5668 = vmatmul.bf16.gmra.mxu0 %v4717
  %v5669 = vpop.f32.mrf.mxu0
  %v5670 = vadd.f32 %v5657, %v5669
  %v5671 = vpop.f32.mrf.mxu0
  %5672 = vdwg.mxu0
  %5673 = vmatpush.bf16.msra.mxu0 %v3571
  %5674 = vmatpush.bf16.msra.mxu0 %v3522
  %5675 = vmatpush.bf16.msra.mxu0 %v3473
  %5676 = vmatpush.bf16.msra.mxu0 %v3424
  %5677 = vmatpush.bf16.msra.mxu0 %v3375
  %5678 = vmatpush.bf16.msra.mxu0 %v3326
  %5679 = vmatpush.bf16.msra.mxu0 %v3277
  %5680 = vmatpush.bf16.msra.mxu0 %v3228
  %5681 = vmatmul.bf16.gmra.mxu0 %v826
  %v5682 = vpop.f32.mrf.mxu0
  %v5683 = vadd.f32 %v823, %v5682
  %v5684 = vpop.f32.mrf.mxu0
  %5685 = vdwg.mxu0
  %5686 = vmatpush.bf16.msra.mxu0 %v4814
  %5687 = vmatpush.bf16.msra.mxu0 %v3914
  %5688 = vmatpush.bf16.msra.mxu0 %v3865
  %5689 = vmatpush.bf16.msra.mxu0 %v3816
  %5690 = vmatpush.bf16.msra.mxu0 %v3767
  %5691 = vmatpush.bf16.msra.mxu0 %v3718
  %5692 = vmatpush.bf16.msra.mxu0 %v3669
  %5693 = vmatpush.bf16.msra.mxu0 %v3620
  %5694 = vmatmul.bf16.gmra.mxu0 %v4717
  %v5695 = vpop.f32.mrf.mxu0
  %v5696 = vadd.f32 %v5683, %v5695
  %v5697 = vpop.f32.mrf.mxu0
  %5698 = vdwg.mxu0
  %5699 = vmatpush.bf16.msra.mxu0 %v3572
  %5700 = vmatpush.bf16.msra.mxu0 %v3523
  %5701 = vmatpush.bf16.msra.mxu0 %v3474
  %5702 = vmatpush.bf16.msra.mxu0 %v3425
  %5703 = vmatpush.bf16.msra.mxu0 %v3376
  %5704 = vmatpush.bf16.msra.mxu0 %v3327
  %5705 = vmatpush.bf16.msra.mxu0 %v3278
  %5706 = vmatpush.bf16.msra.mxu0 %v3229
  %5707 = vmatmul.bf16.gmra.mxu0 %v826
  %v5708 = vpop.f32.mrf.mxu0
  %v5709 = vadd.f32 %v823, %v5708
  %v5710 = vpop.f32.mrf.mxu0
  %5711 = vdwg.mxu0
  %5712 = vmatpush.bf16.msra.mxu0 %v4817
  %5713 = vmatpush.bf16.msra.mxu0 %v3915
  %5714 = vmatpush.bf16.msra.mxu0 %v3866
  %5715 = vmatpush.bf16.msra.mxu0 %v3817
  %5716 = vmatpush.bf16.msra.mxu0 %v3768
  %5717 = vmatpush.bf16.msra.mxu0 %v3719
  %5718 = vmatpush.bf16.msra.mxu0 %v3670
  %5719 = vmatpush.bf16.msra.mxu0 %v3621
  %5720 = vmatmul.bf16.gmra.mxu0 %v4717
  %v5721 = vpop.f32.mrf.mxu0
  %v5722 = vadd.f32 %v5709, %v5721
  %v5723 = vpop.f32.mrf.mxu0
  %5724 = vdwg.mxu0
  %5725 = vmatpush.bf16.msra.mxu0 %v3573
  %5726 = vmatpush.bf16.msra.mxu0 %v3524
  %5727 = vmatpush.bf16.msra.mxu0 %v3475
  %5728 = vmatpush.bf16.msra.mxu0 %v3426
  %5729 = vmatpush.bf16.msra.mxu0 %v3377
  %5730 = vmatpush.bf16.msra.mxu0 %v3328
  %5731 = vmatpush.bf16.msra.mxu0 %v3279
  %5732 = vmatpush.bf16.msra.mxu0 %v3230
  %5733 = vmatmul.bf16.gmra.mxu0 %v826
  %v5734 = vpop.f32.mrf.mxu0
  %v5735 = vadd.f32 %v823, %v5734
  %v5736 = vpop.f32.mrf.mxu0
  %5737 = vdwg.mxu0
  %5738 = vmatpush.bf16.msra.mxu0 %v4820
  %5739 = vmatpush.bf16.msra.mxu0 %v3916
  %5740 = vmatpush.bf16.msra.mxu0 %v3867
  %5741 = vmatpush.bf16.msra.mxu0 %v3818
  %5742 = vmatpush.bf16.msra.mxu0 %v3769
  %5743 = vmatpush.bf16.msra.mxu0 %v3720
  %5744 = vmatpush.bf16.msra.mxu0 %v3671
  %5745 = vmatpush.bf16.msra.mxu0 %v3622
  %5746 = vmatmul.bf16.gmra.mxu0 %v4717
  %v5747 = vpop.f32.mrf.mxu0
  %v5748 = vadd.f32 %v5735, %v5747
  %v5749 = vpop.f32.mrf.mxu0
  %5750 = vdwg.mxu0
  %5751 = vmatpush.bf16.msra.mxu0 %v3574
  %5752 = vmatpush.bf16.msra.mxu0 %v3525
  %5753 = vmatpush.bf16.msra.mxu0 %v3476
  %5754 = vmatpush.bf16.msra.mxu0 %v3427
  %5755 = vmatpush.bf16.msra.mxu0 %v3378
  %5756 = vmatpush.bf16.msra.mxu0 %v3329
  %5757 = vmatpush.bf16.msra.mxu0 %v3280
  %5758 = vmatpush.bf16.msra.mxu0 %v3231
  %5759 = vmatmul.bf16.gmra.mxu0 %v826
  %v5760 = vpop.f32.mrf.mxu0
  %v5761 = vadd.f32 %v823, %v5760
  %v5762 = vpop.f32.mrf.mxu0
  %5763 = vdwg.mxu0
  %5764 = vmatpush.bf16.msra.mxu0 %v4823
  %5765 = vmatpush.bf16.msra.mxu0 %v3917
  %5766 = vmatpush.bf16.msra.mxu0 %v3868
  %5767 = vmatpush.bf16.msra.mxu0 %v3819
  %5768 = vmatpush.bf16.msra.mxu0 %v3770
  %5769 = vmatpush.bf16.msra.mxu0 %v3721
  %5770 = vmatpush.bf16.msra.mxu0 %v3672
  %5771 = vmatpush.bf16.msra.mxu0 %v3623
  %5772 = vmatmul.bf16.gmra.mxu0 %v4717
  %v5773 = vpop.f32.mrf.mxu0
  %v5774 = vadd.f32 %v5761, %v5773
  %v5775 = vpop.f32.mrf.mxu0
  %5776 = vdwg.mxu0
  %5777 = vmatpush.bf16.msra.mxu0 %v3575
  %5778 = vmatpush.bf16.msra.mxu0 %v3526
  %5779 = vmatpush.bf16.msra.mxu0 %v3477
  %5780 = vmatpush.bf16.msra.mxu0 %v3428
  %5781 = vmatpush.bf16.msra.mxu0 %v3379
  %5782 = vmatpush.bf16.msra.mxu0 %v3330
  %5783 = vmatpush.bf16.msra.mxu0 %v3281
  %5784 = vmatpush.bf16.msra.mxu0 %v3232
  %5785 = vmatmul.bf16.gmra.mxu0 %v826
  %v5786 = vpop.f32.mrf.mxu0
  %v5787 = vadd.f32 %v823, %v5786
  %v5788 = vpop.f32.mrf.mxu0
  %5789 = vdwg.mxu0
  %5790 = vmatpush.bf16.msra.mxu0 %v4826
  %5791 = vmatpush.bf16.msra.mxu0 %v3918
  %5792 = vmatpush.bf16.msra.mxu0 %v3869
  %5793 = vmatpush.bf16.msra.mxu0 %v3820
  %5794 = vmatpush.bf16.msra.mxu0 %v3771
  %5795 = vmatpush.bf16.msra.mxu0 %v3722
  %5796 = vmatpush.bf16.msra.mxu0 %v3673
  %5797 = vmatpush.bf16.msra.mxu0 %v3624
  %5798 = vmatmul.bf16.gmra.mxu0 %v4717
  %v5799 = vpop.f32.mrf.mxu0
  %v5800 = vadd.f32 %v5787, %v5799
  %v5801 = vpop.f32.mrf.mxu0
  %5802 = vdwg.mxu0
  %5803 = vmatpush.bf16.msra.mxu0 %v3576
  %5804 = vmatpush.bf16.msra.mxu0 %v3527
  %5805 = vmatpush.bf16.msra.mxu0 %v3478
  %5806 = vmatpush.bf16.msra.mxu0 %v3429
  %5807 = vmatpush.bf16.msra.mxu0 %v3380
  %5808 = vmatpush.bf16.msra.mxu0 %v3331
  %5809 = vmatpush.bf16.msra.mxu0 %v3282
  %5810 = vmatpush.bf16.msra.mxu0 %v3233
  %5811 = vmatmul.bf16.gmra.mxu0 %v826
  %v5812 = vpop.f32.mrf.mxu0
  %v5813 = vadd.f32 %v823, %v5812
  %v5814 = vpop.f32.mrf.mxu0
  %5815 = vdwg.mxu0
  %5816 = vmatpush.bf16.msra.mxu0 %v4829
  %5817 = vmatpush.bf16.msra.mxu0 %v3919
  %5818 = vmatpush.bf16.msra.mxu0 %v3870
  %5819 = vmatpush.bf16.msra.mxu0 %v3821
  %5820 = vmatpush.bf16.msra.mxu0 %v3772
  %5821 = vmatpush.bf16.msra.mxu0 %v3723
  %5822 = vmatpush.bf16.msra.mxu0 %v3674
  %5823 = vmatpush.bf16.msra.mxu0 %v3625
  %5824 = vmatmul.bf16.gmra.mxu0 %v4717
  %v5825 = vpop.f32.mrf.mxu0
  %v5826 = vadd.f32 %v5813, %v5825
  %v5827 = vpop.f32.mrf.mxu0
  %5828 = vdwg.mxu0
  %5829 = vmatpush.bf16.msra.mxu0 %v3577
  %5830 = vmatpush.bf16.msra.mxu0 %v3528
  %5831 = vmatpush.bf16.msra.mxu0 %v3479
  %5832 = vmatpush.bf16.msra.mxu0 %v3430
  %5833 = vmatpush.bf16.msra.mxu0 %v3381
  %5834 = vmatpush.bf16.msra.mxu0 %v3332
  %5835 = vmatpush.bf16.msra.mxu0 %v3283
  %5836 = vmatpush.bf16.msra.mxu0 %v3234
  %5837 = vmatmul.bf16.gmra.mxu0 %v826
  %v5838 = vpop.f32.mrf.mxu0
  %v5839 = vadd.f32 %v823, %v5838
  %v5840 = vpop.f32.mrf.mxu0
  %5841 = vdwg.mxu0
  %5842 = vmatpush.bf16.msra.mxu0 %v4832
  %5843 = vmatpush.bf16.msra.mxu0 %v3920
  %5844 = vmatpush.bf16.msra.mxu0 %v3871
  %5845 = vmatpush.bf16.msra.mxu0 %v3822
  %5846 = vmatpush.bf16.msra.mxu0 %v3773
  %5847 = vmatpush.bf16.msra.mxu0 %v3724
  %5848 = vmatpush.bf16.msra.mxu0 %v3675
  %5849 = vmatpush.bf16.msra.mxu0 %v3626
  %5850 = vmatmul.bf16.gmra.mxu0 %v4717
  %v5851 = vpop.f32.mrf.mxu0
  %v5852 = vadd.f32 %v5839, %v5851
  %v5853 = vpop.f32.mrf.mxu0
  %5854 = vdwg.mxu0
  %5855 = vmatpush.bf16.msra.mxu0 %v3578
  %5856 = vmatpush.bf16.msra.mxu0 %v3529
  %5857 = vmatpush.bf16.msra.mxu0 %v3480
  %5858 = vmatpush.bf16.msra.mxu0 %v3431
  %5859 = vmatpush.bf16.msra.mxu0 %v3382
  %5860 = vmatpush.bf16.msra.mxu0 %v3333
  %5861 = vmatpush.bf16.msra.mxu0 %v3284
  %5862 = vmatpush.bf16.msra.mxu0 %v3235
  %5863 = vmatmul.bf16.gmra.mxu0 %v826
  %v5864 = vpop.f32.mrf.mxu0
  %v5865 = vadd.f32 %v823, %v5864
  %v5866 = vpop.f32.mrf.mxu0
  %5867 = vdwg.mxu0
  %5868 = vmatpush.bf16.msra.mxu0 %v4835
  %5869 = vmatpush.bf16.msra.mxu0 %v3921
  %5870 = vmatpush.bf16.msra.mxu0 %v3872
  %5871 = vmatpush.bf16.msra.mxu0 %v3823
  %5872 = vmatpush.bf16.msra.mxu0 %v3774
  %5873 = vmatpush.bf16.msra.mxu0 %v3725
  %5874 = vmatpush.bf16.msra.mxu0 %v3676
  %5875 = vmatpush.bf16.msra.mxu0 %v3627
  %5876 = vmatmul.bf16.gmra.mxu0 %v4717
  %v5877 = vpop.f32.mrf.mxu0
  %v5878 = vadd.f32 %v5865, %v5877
  %v5879 = vpop.f32.mrf.mxu0
  %5880 = vdwg.mxu0
  %5881 = vmatpush.bf16.msra.mxu0 %v3579
  %5882 = vmatpush.bf16.msra.mxu0 %v3530
  %5883 = vmatpush.bf16.msra.mxu0 %v3481
  %5884 = vmatpush.bf16.msra.mxu0 %v3432
  %5885 = vmatpush.bf16.msra.mxu0 %v3383
  %5886 = vmatpush.bf16.msra.mxu0 %v3334
  %5887 = vmatpush.bf16.msra.mxu0 %v3285
  %5888 = vmatpush.bf16.msra.mxu0 %v3236
  %5889 = vmatmul.bf16.gmra.mxu0 %v826
  %v5890 = vpop.f32.mrf.mxu0
  %v5891 = vadd.f32 %v823, %v5890
  %v5892 = vpop.f32.mrf.mxu0
  %5893 = vdwg.mxu0
  %5894 = vmatpush.bf16.msra.mxu0 %v4838
  %5895 = vmatpush.bf16.msra.mxu0 %v3922
  %5896 = vmatpush.bf16.msra.mxu0 %v3873
  %5897 = vmatpush.bf16.msra.mxu0 %v3824
  %5898 = vmatpush.bf16.msra.mxu0 %v3775
  %5899 = vmatpush.bf16.msra.mxu0 %v3726
  %5900 = vmatpush.bf16.msra.mxu0 %v3677
  %5901 = vmatpush.bf16.msra.mxu0 %v3628
  %5902 = vmatmul.bf16.gmra.mxu0 %v4717
  %v5903 = vpop.f32.mrf.mxu0
  %v5904 = vadd.f32 %v5891, %v5903
  %v5905 = vpop.f32.mrf.mxu0
  %5906 = vdwg.mxu0
  %5907 = vmatpush.bf16.msra.mxu0 %v3580
  %5908 = vmatpush.bf16.msra.mxu0 %v3531
  %5909 = vmatpush.bf16.msra.mxu0 %v3482
  %5910 = vmatpush.bf16.msra.mxu0 %v3433
  %5911 = vmatpush.bf16.msra.mxu0 %v3384
  %5912 = vmatpush.bf16.msra.mxu0 %v3335
  %5913 = vmatpush.bf16.msra.mxu0 %v3286
  %5914 = vmatpush.bf16.msra.mxu0 %v3237
  %5915 = vmatmul.bf16.gmra.mxu0 %v826
  %v5916 = vpop.f32.mrf.mxu0
  %v5917 = vadd.f32 %v823, %v5916
  %v5918 = vpop.f32.mrf.mxu0
  %5919 = vdwg.mxu0
  %5920 = vmatpush.bf16.msra.mxu0 %v4841
  %5921 = vmatpush.bf16.msra.mxu0 %v3923
  %5922 = vmatpush.bf16.msra.mxu0 %v3874
  %5923 = vmatpush.bf16.msra.mxu0 %v3825
  %5924 = vmatpush.bf16.msra.mxu0 %v3776
  %5925 = vmatpush.bf16.msra.mxu0 %v3727
  %5926 = vmatpush.bf16.msra.mxu0 %v3678
  %5927 = vmatpush.bf16.msra.mxu0 %v3629
  %5928 = vmatmul.bf16.gmra.mxu0 %v4717
  %v5929 = vpop.f32.mrf.mxu0
  %v5930 = vadd.f32 %v5917, %v5929
  %v5931 = vpop.f32.mrf.mxu0
  %5932 = vdwg.mxu0
  %5933 = vmatpush.bf16.msra.mxu0 %v3581
  %5934 = vmatpush.bf16.msra.mxu0 %v3532
  %5935 = vmatpush.bf16.msra.mxu0 %v3483
  %5936 = vmatpush.bf16.msra.mxu0 %v3434
  %5937 = vmatpush.bf16.msra.mxu0 %v3385
  %5938 = vmatpush.bf16.msra.mxu0 %v3336
  %5939 = vmatpush.bf16.msra.mxu0 %v3287
  %5940 = vmatpush.bf16.msra.mxu0 %v3238
  %5941 = vmatmul.bf16.gmra.mxu0 %v826
  %v5942 = vpop.f32.mrf.mxu0
  %v5943 = vadd.f32 %v823, %v5942
  %v5944 = vpop.f32.mrf.mxu0
  %5945 = vdwg.mxu0
  %5946 = vmatpush.bf16.msra.mxu0 %v4844
  %5947 = vmatpush.bf16.msra.mxu0 %v3924
  %5948 = vmatpush.bf16.msra.mxu0 %v3875
  %5949 = vmatpush.bf16.msra.mxu0 %v3826
  %5950 = vmatpush.bf16.msra.mxu0 %v3777
  %5951 = vmatpush.bf16.msra.mxu0 %v3728
  %5952 = vmatpush.bf16.msra.mxu0 %v3679
  %5953 = vmatpush.bf16.msra.mxu0 %v3630
  %5954 = vmatmul.bf16.gmra.mxu0 %v4717
  %v5955 = vpop.f32.mrf.mxu0
  %v5956 = vadd.f32 %v5943, %v5955
  %v5957 = vpop.f32.mrf.mxu0
  %5958 = vdwg.mxu0
  %5959 = vmatpush.bf16.msra.mxu0 %v3582
  %5960 = vmatpush.bf16.msra.mxu0 %v3533
  %5961 = vmatpush.bf16.msra.mxu0 %v3484
  %5962 = vmatpush.bf16.msra.mxu0 %v3435
  %5963 = vmatpush.bf16.msra.mxu0 %v3386
  %5964 = vmatpush.bf16.msra.mxu0 %v3337
  %5965 = vmatpush.bf16.msra.mxu0 %v3288
  %5966 = vmatpush.bf16.msra.mxu0 %v3239
  %5967 = vmatmul.bf16.gmra.mxu0 %v826
  %v5968 = vpop.f32.mrf.mxu0
  %v5969 = vadd.f32 %v823, %v5968
  %v5970 = vpop.f32.mrf.mxu0
  %5971 = vdwg.mxu0
  %5972 = vmatpush.bf16.msra.mxu0 %v4847
  %5973 = vmatpush.bf16.msra.mxu0 %v3925
  %5974 = vmatpush.bf16.msra.mxu0 %v3876
  %5975 = vmatpush.bf16.msra.mxu0 %v3827
  %5976 = vmatpush.bf16.msra.mxu0 %v3778
  %5977 = vmatpush.bf16.msra.mxu0 %v3729
  %5978 = vmatpush.bf16.msra.mxu0 %v3680
  %5979 = vmatpush.bf16.msra.mxu0 %v3631
  %5980 = vmatmul.bf16.gmra.mxu0 %v4717
  %v5981 = vpop.f32.mrf.mxu0
  %v5982 = vadd.f32 %v5969, %v5981
  %v5983 = vpop.f32.mrf.mxu0
  %5984 = vdwg.mxu0
  %5985 = vmatpush.bf16.msra.mxu0 %v3583
  %5986 = vmatpush.bf16.msra.mxu0 %v3534
  %5987 = vmatpush.bf16.msra.mxu0 %v3485
  %5988 = vmatpush.bf16.msra.mxu0 %v3436
  %5989 = vmatpush.bf16.msra.mxu0 %v3387
  %5990 = vmatpush.bf16.msra.mxu0 %v3338
  %5991 = vmatpush.bf16.msra.mxu0 %v3289
  %5992 = vmatpush.bf16.msra.mxu0 %v3240
  %5993 = vmatmul.bf16.gmra.mxu0 %v826
  %v5994 = vpop.f32.mrf.mxu0
  %v5995 = vadd.f32 %v823, %v5994
  %v5996 = vpop.f32.mrf.mxu0
  %5997 = vdwg.mxu0
  %5998 = vmatpush.bf16.msra.mxu0 %v4850
  %5999 = vmatpush.bf16.msra.mxu0 %v3926
  %6000 = vmatpush.bf16.msra.mxu0 %v3877
  %6001 = vmatpush.bf16.msra.mxu0 %v3828
  %6002 = vmatpush.bf16.msra.mxu0 %v3779
  %6003 = vmatpush.bf16.msra.mxu0 %v3730
  %6004 = vmatpush.bf16.msra.mxu0 %v3681
  %6005 = vmatpush.bf16.msra.mxu0 %v3632
  %6006 = vmatmul.bf16.gmra.mxu0 %v4717
  %v6007 = vpop.f32.mrf.mxu0
  %v6008 = vadd.f32 %v5995, %v6007
  %v6009 = vpop.f32.mrf.mxu0
  %6010 = vdwg.mxu0
  %6011 = vmatpush.bf16.msra.mxu0 %v3584
  %6012 = vmatpush.bf16.msra.mxu0 %v3535
  %6013 = vmatpush.bf16.msra.mxu0 %v3486
  %6014 = vmatpush.bf16.msra.mxu0 %v3437
  %6015 = vmatpush.bf16.msra.mxu0 %v3388
  %6016 = vmatpush.bf16.msra.mxu0 %v3339
  %6017 = vmatpush.bf16.msra.mxu0 %v3290
  %6018 = vmatpush.bf16.msra.mxu0 %v3241
  %6019 = vmatmul.bf16.gmra.mxu0 %v826
  %v6020 = vpop.f32.mrf.mxu0
  %v6021 = vadd.f32 %v823, %v6020
  %v6022 = vpop.f32.mrf.mxu0
  %6023 = vdwg.mxu0
  %6024 = vmatpush.bf16.msra.mxu0 %v4853
  %6025 = vmatpush.bf16.msra.mxu0 %v3927
  %6026 = vmatpush.bf16.msra.mxu0 %v3878
  %6027 = vmatpush.bf16.msra.mxu0 %v3829
  %6028 = vmatpush.bf16.msra.mxu0 %v3780
  %6029 = vmatpush.bf16.msra.mxu0 %v3731
  %6030 = vmatpush.bf16.msra.mxu0 %v3682
  %6031 = vmatpush.bf16.msra.mxu0 %v3633
  %6032 = vmatmul.bf16.gmra.mxu0 %v4717
  %v6033 = vpop.f32.mrf.mxu0
  %v6034 = vadd.f32 %v6021, %v6033
  %v6035 = vpop.f32.mrf.mxu0
  %6036 = vdwg.mxu0
  %6037 = vmatpush.bf16.msra.mxu0 %v3585
  %6038 = vmatpush.bf16.msra.mxu0 %v3536
  %6039 = vmatpush.bf16.msra.mxu0 %v3487
  %6040 = vmatpush.bf16.msra.mxu0 %v3438
  %6041 = vmatpush.bf16.msra.mxu0 %v3389
  %6042 = vmatpush.bf16.msra.mxu0 %v3340
  %6043 = vmatpush.bf16.msra.mxu0 %v3291
  %6044 = vmatpush.bf16.msra.mxu0 %v3242
  %6045 = vmatmul.bf16.gmra.mxu0 %v826
  %v6046 = vpop.f32.mrf.mxu0
  %v6047 = vadd.f32 %v823, %v6046
  %v6048 = vpop.f32.mrf.mxu0
  %6049 = vdwg.mxu0
  %6050 = vmatpush.bf16.msra.mxu0 %v4856
  %6051 = vmatpush.bf16.msra.mxu0 %v3928
  %6052 = vmatpush.bf16.msra.mxu0 %v3879
  %6053 = vmatpush.bf16.msra.mxu0 %v3830
  %6054 = vmatpush.bf16.msra.mxu0 %v3781
  %6055 = vmatpush.bf16.msra.mxu0 %v3732
  %6056 = vmatpush.bf16.msra.mxu0 %v3683
  %6057 = vmatpush.bf16.msra.mxu0 %v3634
  %6058 = vmatmul.bf16.gmra.mxu0 %v4717
  %v6059 = vpop.f32.mrf.mxu0
  %v6060 = vadd.f32 %v6047, %v6059
  %v6061 = vpop.f32.mrf.mxu0
  %6062 = vdwg.mxu0
  %6063 = vmatpush.bf16.msra.mxu0 %v3586
  %6064 = vmatpush.bf16.msra.mxu0 %v3537
  %6065 = vmatpush.bf16.msra.mxu0 %v3488
  %6066 = vmatpush.bf16.msra.mxu0 %v3439
  %6067 = vmatpush.bf16.msra.mxu0 %v3390
  %6068 = vmatpush.bf16.msra.mxu0 %v3341
  %6069 = vmatpush.bf16.msra.mxu0 %v3292
  %6070 = vmatpush.bf16.msra.mxu0 %v3243
  %6071 = vmatmul.bf16.gmra.mxu0 %v826
  %v6072 = vpop.f32.mrf.mxu0
  %v6073 = vadd.f32 %v823, %v6072
  %v6074 = vpop.f32.mrf.mxu0
  %6075 = vdwg.mxu0
  %6076 = vmatpush.bf16.msra.mxu0 %v4859
  %6077 = vmatpush.bf16.msra.mxu0 %v3929
  %6078 = vmatpush.bf16.msra.mxu0 %v3880
  %6079 = vmatpush.bf16.msra.mxu0 %v3831
  %6080 = vmatpush.bf16.msra.mxu0 %v3782
  %6081 = vmatpush.bf16.msra.mxu0 %v3733
  %6082 = vmatpush.bf16.msra.mxu0 %v3684
  %6083 = vmatpush.bf16.msra.mxu0 %v3635
  %6084 = vmatmul.bf16.gmra.mxu0 %v4717
  %v6085 = vpop.f32.mrf.mxu0
  %v6086 = vadd.f32 %v6073, %v6085
  %v6087 = vpop.f32.mrf.mxu0
  %6088 = vdwg.mxu0
  %6089 = vmatpush.bf16.msra.mxu0 %v3587
  %6090 = vmatpush.bf16.msra.mxu0 %v3538
  %6091 = vmatpush.bf16.msra.mxu0 %v3489
  %6092 = vmatpush.bf16.msra.mxu0 %v3440
  %6093 = vmatpush.bf16.msra.mxu0 %v3391
  %6094 = vmatpush.bf16.msra.mxu0 %v3342
  %6095 = vmatpush.bf16.msra.mxu0 %v3293
  %6096 = vmatpush.bf16.msra.mxu0 %v3244
  %6097 = vmatmul.bf16.gmra.mxu0 %v826
  %v6098 = vpop.f32.mrf.mxu0
  %v6099 = vadd.f32 %v823, %v6098
  %v6100 = vpop.f32.mrf.mxu0
  %6101 = vdwg.mxu0
  %6102 = vmatpush.bf16.msra.mxu0 %v4862
  %6103 = vmatpush.bf16.msra.mxu0 %v3930
  %6104 = vmatpush.bf16.msra.mxu0 %v3881
  %6105 = vmatpush.bf16.msra.mxu0 %v3832
  %6106 = vmatpush.bf16.msra.mxu0 %v3783
  %6107 = vmatpush.bf16.msra.mxu0 %v3734
  %6108 = vmatpush.bf16.msra.mxu0 %v3685
  %6109 = vmatpush.bf16.msra.mxu0 %v3636
  %6110 = vmatmul.bf16.gmra.mxu0 %v4717
  %v6111 = vpop.f32.mrf.mxu0
  %v6112 = vadd.f32 %v6099, %v6111
  %v6113 = vpop.f32.mrf.mxu0
  %6114 = vdwg.mxu0
  %6115 = vmatpush.bf16.msra.mxu0 %v3588
  %6116 = vmatpush.bf16.msra.mxu0 %v3539
  %6117 = vmatpush.bf16.msra.mxu0 %v3490
  %6118 = vmatpush.bf16.msra.mxu0 %v3441
  %6119 = vmatpush.bf16.msra.mxu0 %v3392
  %6120 = vmatpush.bf16.msra.mxu0 %v3343
  %6121 = vmatpush.bf16.msra.mxu0 %v3294
  %6122 = vmatpush.bf16.msra.mxu0 %v3245
  %6123 = vmatmul.bf16.gmra.mxu0 %v826
  %v6124 = vpop.f32.mrf.mxu0
  %v6125 = vadd.f32 %v823, %v6124
  %v6126 = vpop.f32.mrf.mxu0
  %6127 = vdwg.mxu0
  %6128 = vmatpush.bf16.msra.mxu0 %v4865
  %6129 = vmatpush.bf16.msra.mxu0 %v3931
  %6130 = vmatpush.bf16.msra.mxu0 %v3882
  %6131 = vmatpush.bf16.msra.mxu0 %v3833
  %6132 = vmatpush.bf16.msra.mxu0 %v3784
  %6133 = vmatpush.bf16.msra.mxu0 %v3735
  %6134 = vmatpush.bf16.msra.mxu0 %v3686
  %6135 = vmatpush.bf16.msra.mxu0 %v3637
  %6136 = vmatmul.bf16.gmra.mxu0 %v4717
  %v6137 = vpop.f32.mrf.mxu0
  %v6138 = vadd.f32 %v6125, %v6137
  %v6139 = vpop.f32.mrf.mxu0
  %6140 = vdwg.mxu0
  %v6141 = vmax.f32 %v4890, 0.0
  %v6142 = vmax.f32 %v4916, 0.0
  %v6143 = vmax.f32 %v4942, 0.0
  %v6144 = vmax.f32 %v4968, 0.0
  %v6145 = vmax.f32 %v4994, 0.0
  %v6146 = vmax.f32 %v5020, 0.0
  %v6147 = vmax.f32 %v5046, 0.0
  %v6148 = vmax.f32 %v5072, 0.0
  %v6149 = vmax.f32 %v5098, 0.0
  %v6150 = vmax.f32 %v5124, 0.0
  %v6151 = vmax.f32 %v5150, 0.0
  %v6152 = vmax.f32 %v5176, 0.0
  %v6153 = vmax.f32 %v5202, 0.0
  %v6154 = vmax.f32 %v5228, 0.0
  %v6155 = vmax.f32 %v5254, 0.0
  %v6156 = vmax.f32 %v5280, 0.0
  %v6157 = vmax.f32 %v5306, 0.0
  %v6158 = vmax.f32 %v5332, 0.0
  %v6159 = vmax.f32 %v5358, 0.0
  %v6160 = vmax.f32 %v5384, 0.0
  %v6161 = vmax.f32 %v5410, 0.0
  %v6162 = vmax.f32 %v5436, 0.0
  %v6163 = vmax.f32 %v5462, 0.0
  %v6164 = vmax.f32 %v5488, 0.0
  %v6165 = vmax.f32 %v5514, 0.0
  %v6166 = vmax.f32 %v5540, 0.0
  %v6167 = vmax.f32 %v5566, 0.0
  %v6168 = vmax.f32 %v5592, 0.0
  %v6169 = vmax.f32 %v5618, 0.0
  %v6170 = vmax.f32 %v5644, 0.0
  %v6171 = vmax.f32 %v5670, 0.0
  %v6172 = vmax.f32 %v5696, 0.0
  %v6173 = vmax.f32 %v5722, 0.0
  %v6174 = vmax.f32 %v5748, 0.0
  %v6175 = vmax.f32 %v5774, 0.0
  %v6176 = vmax.f32 %v5800, 0.0
  %v6177 = vmax.f32 %v5826, 0.0
  %v6178 = vmax.f32 %v5852, 0.0
  %v6179 = vmax.f32 %v5878, 0.0
  %v6180 = vmax.f32 %v5904, 0.0
  %v6181 = vmax.f32 %v5930, 0.0
  %v6182 = vmax.f32 %v5956, 0.0
  %v6183 = vmax.f32 %v5982, 0.0
  %v6184 = vmax.f32 %v6008, 0.0
  %v6185 = vmax.f32 %v6034, 0.0
  %v6186 = vmax.f32 %v6060, 0.0
  %v6187 = vmax.f32 %v6086, 0.0
  %v6188 = vmax.f32 %v6112, 0.0
  %v6189 = vmax.f32 %v6138, 0.0
  %v6238 = vrot.slane %v6142, 7
  %v6239 = vrot.slane %v6143, 6
  %v6240 = vrot.slane %v6144, 5
  %v6241 = vrot.slane %v6145, 4
  %v6242 = vrot.slane %v6146, 3
  %v6243 = vrot.slane %v6147, 2
  %v6244 = vrot.slane %v6148, 1
  %v6245 = vrot.slane %v6150, 7
  %v6246 = vrot.slane %v6151, 6
  %v6247 = vrot.slane %v6152, 5
  %v6248 = vrot.slane %v6153, 4
  %v6249 = vrot.slane %v6154, 3
  %v6250 = vrot.slane %v6155, 2
  %v6251 = vrot.slane %v6156, 1
  %v6252 = vrot.slane %v6158, 7
  %v6253 = vrot.slane %v6159, 6
  %v6254 = vrot.slane %v6160, 5
  %v6255 = vrot.slane %v6161, 4
  %v6256 = vrot.slane %v6162, 3
  %v6257 = vrot.slane %v6163, 2
  %v6258 = vrot.slane %v6164, 1
  %v6259 = vrot.slane %v6166, 7
  %v6260 = vrot.slane %v6167, 6
  %v6261 = vrot.slane %v6168, 5
  %v6262 = vrot.slane %v6169, 4
  %v6263 = vrot.slane %v6170, 3
  %v6264 = vrot.slane %v6171, 2
  %v6265 = vrot.slane %v6172, 1
  %v6266 = vrot.slane %v6174, 7
  %v6267 = vrot.slane %v6175, 6
  %v6268 = vrot.slane %v6176, 5
  %v6269 = vrot.slane %v6177, 4
  %v6270 = vrot.slane %v6178, 3
  %v6271 = vrot.slane %v6179, 2
  %v6272 = vrot.slane %v6180, 1
  %v6273 = vrot.slane %v6182, 7
  %v6274 = vrot.slane %v6183, 6
  %v6275 = vrot.slane %v6184, 5
  %v6276 = vrot.slane %v6185, 4
  %v6277 = vrot.slane %v6186, 3
  %v6278 = vrot.slane %v6187, 2
  %v6279 = vrot.slane %v6188, 1
  %vm6280 = vcmask 1040384
  %v6281 = vsel %vm6280, %v6141, %v6238
  %vm6282 = vcmask 1042434
  %v6283 = vsel %vm6282, %v6239, %v6240
  %vm6284 = vcmask 1041408
  %v6285 = vsel %vm6284, %v6281, %v6283
  %vm6286 = vcmask 1044484
  %v6287 = vsel %vm6286, %v6241, %v6242
  %vm6288 = vcmask 1046534
  %v6289 = vsel %vm6288, %v6243, %v6244
  %vm6290 = vcmask 1045508
  %v6291 = vsel %vm6290, %v6287, %v6289
  %vm6292 = vcmask 1043456
  %v6293 = vsel %vm6292, %v6285, %v6291
  %v6294 = vsel %vm6280, %v6149, %v6245
  %v6295 = vsel %vm6282, %v6246, %v6247
  %v6296 = vsel %vm6284, %v6294, %v6295
  %v6297 = vsel %vm6286, %v6248, %v6249
  %v6298 = vsel %vm6288, %v6250, %v6251
  %v6299 = vsel %vm6290, %v6297, %v6298
  %v6300 = vsel %vm6292, %v6296, %v6299
  %v6301 = vsel %vm6280, %v6157, %v6252
  %v6302 = vsel %vm6282, %v6253, %v6254
  %v6303 = vsel %vm6284, %v6301, %v6302
  %v6304 = vsel %vm6286, %v6255, %v6256
  %v6305 = vsel %vm6288, %v6257, %v6258
  %v6306 = vsel %vm6290, %v6304, %v6305
  %v6307 = vsel %vm6292, %v6303, %v6306
  %v6308 = vsel %vm6280, %v6165, %v6259
  %v6309 = vsel %vm6282, %v6260, %v6261
  %v6310 = vsel %vm6284, %v6308, %v6309
  %v6311 = vsel %vm6286, %v6262, %v6263
  %v6312 = vsel %vm6288, %v6264, %v6265
  %v6313 = vsel %vm6290, %v6311, %v6312
  %v6314 = vsel %vm6292, %v6310, %v6313
  %v6315 = vsel %vm6280, %v6173, %v6266
  %v6316 = vsel %vm6282, %v6267, %v6268
  %v6317 = vsel %vm6284, %v6315, %v6316
  %v6318 = vsel %vm6286, %v6269, %v6270
  %v6319 = vsel %vm6288, %v6271, %v6272
  %v6320 = vsel %vm6290, %v6318, %v6319
  %v6321 = vsel %vm6292, %v6317, %v6320
  %v6322 = vsel %vm6280, %v6181, %v6273
  %v6323 = vsel %vm6282, %v6274, %v6275
  %v6324 = vsel %vm6284, %v6322, %v6323
  %v6325 = vsel %vm6286, %v6276, %v6277
  %v6326 = vsel %vm6288, %v6278, %v6279
  %v6327 = vsel %vm6290, %v6325, %v6326
  %v6328 = vsel %vm6292, %v6324, %v6327
  %6335 = vst [vmem:[%s3] sm:$0xff] %v6293
  %6336 = vst [vmem:[%s3 + $0x8] sm:$0xff] %v6300
  %6337 = vst [vmem:[%s3 + $0x10] sm:$0xff] %v6307
  %6338 = vst [vmem:[%s3 + $0x18] sm:$0xff] %v6314
  %6339 = vst [vmem:[%s3 + $0x20] sm:$0xff] %v6321
  %6340 = vst [vmem:[%s3 + $0x28] sm:$0xff] %v6328
  %v6341 = vlaneseq
  %vm6342 = vcmp.ge.s32.totalorder %v6341, 0
  %vm6343 = vcmp.lt.s32.totalorder %v6341, 128
  %vm6344 = vmand %vm6342, %vm6343
  %6345 = vst.msk [vmem:[%s3 + $0x30] sm:$0x1] %vm6344, %v6189
  // Predicated region
  $region14: #{net_forward.9} parent=0 // pred_check
    _
  $region15: #{net_forward.9} parent=0 // pred_check_branch
    %6347 = sbr.rel (0) target = $region17
  $region16: #{net_forward.9} parent=0 // pred_region
    _
  $region17: #{net_forward.9} parent=0 // pred_fallthru
    _
  // Predicated region
  $region18: #{net_forward.9} parent=0 // pred_check
    _
  $region19: #{net_forward.9} parent=0 // pred_check_branch
    %6349 = sbr.rel (0) target = $region21
  $region20: #{net_forward.9} parent=0 // pred_region
    _
  $region21: #{net_forward.9} parent=0 // pred_fallthru
    _

</llo_original>
